<compile_context>
chip_gen: v6e
topology: v6e:2x2x1
jax: 0.10.0
libtpu: 0.0.40
codegen_flags: <defaults>
</compile_context>

<pallas_src>
import functools
import math

import jax
import jax.numpy as jnp
from jax.experimental import pallas as pl
from jax.experimental.pallas import tpu as pltpu

K_STRIPS = 3
IMG_SIZE = 28
PROTO_CH = 128            # prototype_shape[1]
FEAT_CH = 256             # first_add_on_layer_in_channels (last backbone conv)
FC1_IN = 512 * K_STRIPS * 7 * 7   # = 75264 = K_STRIPS * PROTO_CH * 14 * 14


# ----------------------------------------------------------------------------
# Tiling helpers
# ----------------------------------------------------------------------------
def _pick_m_tile(M, target=512):
    """Return (tm, Mp). Prefer an exact divisor of M (mult of 16, then 8);
    otherwise fall back to padding M up to a multiple of `target`."""
    if M <= target:
        return M, M
    for mult in (16, 8):
        for d in range(target, 127, -1):
            if d % mult == 0 and M % d == 0:
                return d, M
    return target, ((M + target - 1) // target) * target


def _pick_k_tile(K, target=6272):
    """Largest divisor of K that is a multiple of 128 and <= target (or None)."""
    start = target - (target % 128)
    for d in range(start, 127, -128):
        if K % d == 0:
            return d
    return None


# ----------------------------------------------------------------------------
# Kernel 1: single-K-block dense  out = act(x @ w + b), M-tiled ("parallel").
# Used for the first 3x3 conv (as an im2col GEMM). bf16 operands, f32 acc.
# ----------------------------------------------------------------------------
def _conv_dense_kernel(x_ref, w_ref, b_ref, o_ref, *, activation):
    y = jnp.dot(x_ref[...], w_ref[...], preferred_element_type=jnp.float32)
    y = y + b_ref[...]
    if activation == "relu":
        y = jnp.maximum(y, 0.0)
    elif activation == "sigmoid":
        y = jax.nn.sigmoid(y)
    o_ref[...] = y.astype(o_ref.dtype)


def dense_act(x, w, b, activation=None, *, tm_target=512, out_dtype=jnp.bfloat16):
    """activation(x @ w + b); x:(M,K) w:(K,N) b:(N,) -> (M,N) out_dtype."""
    M, K = x.shape
    Kw, N = w.shape
    assert K == Kw and b.shape == (N,)

    x = x.astype(jnp.bfloat16)
    w = w.astype(jnp.bfloat16)
    b2 = b.reshape(1, N).astype(jnp.float32)

    tm, Mp = _pick_m_tile(M, tm_target)
    if Mp != M:
        x = jnp.pad(x, ((0, Mp - M), (0, 0)))

    kernel = functools.partial(_conv_dense_kernel, activation=activation)
    out = pl.pallas_call(
        kernel,
        out_shape=jax.ShapeDtypeStruct((Mp, N), out_dtype),
        grid_spec=pltpu.PrefetchScalarGridSpec(
            num_scalar_prefetch=0,
            grid=(Mp // tm,),
            in_specs=[
                pl.BlockSpec((tm, K), lambda i: (i, 0)),
                pl.BlockSpec((K, N), lambda i: (0, 0)),
                pl.BlockSpec((1, N), lambda i: (0, 0)),
            ],
            out_specs=pl.BlockSpec((tm, N), lambda i: (i, 0)),
        ),
        compiler_params=pltpu.CompilerParams(
            dimension_semantics=("parallel",)
        ),
    )(x, w, b2)
    return out[:M] if Mp != M else out


# ----------------------------------------------------------------------------
# Kernel 2: fused conv2 (3x3 as GEMM over im2col cols) + add_on layers:
#   sigmoid( relu( relu(cols @ Wc + bc) @ W1 + b1 ) @ W2 + b2 )
# M-tiled ("parallel"); all three weight matrices VMEM-resident; the (tm,256)
# and (tm,128) intermediates never leave VMEM.
# ----------------------------------------------------------------------------
def _conv2_addon_kernel(x_ref, wc_ref, bc_ref, w1_ref, b1_ref, w2_ref, b2_ref,
                        o_ref):
    f = jnp.dot(x_ref[...], wc_ref[...], preferred_element_type=jnp.float32)
    f = jnp.maximum(f + bc_ref[...], 0.0)                       # conv2 + ReLU
    h = jnp.dot(f.astype(jnp.bfloat16), w1_ref[...],
                preferred_element_type=jnp.float32)
    h = jnp.maximum(h + b1_ref[...], 0.0)                       # add_on conv1 + ReLU
    y = jnp.dot(h.astype(jnp.bfloat16), w2_ref[...],
                preferred_element_type=jnp.float32)
    y = jax.nn.sigmoid(y + b2_ref[...])                         # add_on conv2 + Sigmoid
    o_ref[...] = y.astype(o_ref.dtype)


def conv2_addon_fused(cols, wc, bc, w1, b1, w2, b2, *,
                      tm_target=512, out_dtype=jnp.bfloat16):
    M, K = cols.shape
    Nc = wc.shape[1]
    N1 = w1.shape[1]
    N2 = w2.shape[1]

    cols = cols.astype(jnp.bfloat16)
    wc = wc.astype(jnp.bfloat16)
    w1 = w1.astype(jnp.bfloat16)
    w2 = w2.astype(jnp.bfloat16)
    bcv = bc.reshape(1, Nc).astype(jnp.float32)
    b1v = b1.reshape(1, N1).astype(jnp.float32)
    b2v = b2.reshape(1, N2).astype(jnp.float32)

    tm, Mp = _pick_m_tile(M, tm_target)
    if Mp != M:
        cols = jnp.pad(cols, ((0, Mp - M), (0, 0)))

    out = pl.pallas_call(
        _conv2_addon_kernel,
        out_shape=jax.ShapeDtypeStruct((Mp, N2), out_dtype),
        grid_spec=pltpu.PrefetchScalarGridSpec(
            num_scalar_prefetch=0,
            grid=(Mp // tm,),
            in_specs=[
                pl.BlockSpec((tm, K), lambda i: (i, 0)),
                pl.BlockSpec((K, Nc), lambda i: (0, 0)),
                pl.BlockSpec((1, Nc), lambda i: (0, 0)),
                pl.BlockSpec((Nc, N1), lambda i: (0, 0)),
                pl.BlockSpec((1, N1), lambda i: (0, 0)),
                pl.BlockSpec((N1, N2), lambda i: (0, 0)),
                pl.BlockSpec((1, N2), lambda i: (0, 0)),
            ],
            out_specs=pl.BlockSpec((tm, N2), lambda i: (i, 0)),
        ),
        compiler_params=pltpu.CompilerParams(
            dimension_semantics=("parallel",)
        ),
    )(cols, wc, bcv, w1, b1v, w2, b2v)
    return out[:M] if Mp != M else out


# ----------------------------------------------------------------------------
# Kernel 3: fused head: fc3(sigmoid(fc2(sigmoid(fc1(x))))).
# fc1 is K-tiled (exact divisor of 75264, no pad); fc2/fc3 live in the
# last-K-step epilogue so there are no extra tiny kernel launches.
# ----------------------------------------------------------------------------
def _head_kernel(x_ref, w1_ref, b1_ref, w2_ref, b2_ref, w3_ref, b3_ref,
                 o_ref, acc_ref):
    kk = pl.program_id(0)

    @pl.when(kk == 0)
    def _():
        acc_ref[...] = jnp.zeros_like(acc_ref)

    acc_ref[...] += jnp.dot(x_ref[...], w1_ref[...],
                            preferred_element_type=jnp.float32)

    @pl.when(kk == pl.num_programs(0) - 1)
    def _():
        h1 = jax.nn.sigmoid(acc_ref[...] + b1_ref[...])
        h2 = jax.nn.sigmoid(
            jnp.dot(h1, w2_ref[...], preferred_element_type=jnp.float32)
            + b2_ref[...])
        y = jnp.dot(h2, w3_ref[...], preferred_element_type=jnp.float32)
        y = y + b3_ref[...]
        o_ref[...] = y.astype(o_ref.dtype)


def head_fused(x, w1, b1, w2, b2, w3, b3, *, tk_target=6272):
    B, K = x.shape
    N1 = w1.shape[1]
    N2 = w2.shape[1]
    N3 = w3.shape[1]

    x = x.astype(jnp.bfloat16)
    w1 = w1.astype(jnp.bfloat16)

    tk = _pick_k_tile(K, tk_target)
    if tk is None:
        # TODO(synk): generic-K fallback pads K; never taken for this model
        # (75264 = 12 * 6272).
        tk = tk_target - (tk_target % 128)
        Kp = pl.cdiv(K, tk) * tk
        x = jnp.pad(x, ((0, 0), (0, Kp - K)))
        w1 = jnp.pad(w1, ((0, Kp - K), (0, 0)))
        K = Kp

    return pl.pallas_call(
        _head_kernel,
        out_shape=jax.ShapeDtypeStruct((B, N3), jnp.float32),
        grid_spec=pltpu.PrefetchScalarGridSpec(
            num_scalar_prefetch=0,
            grid=(K // tk,),
            in_specs=[
                pl.BlockSpec((B, tk), lambda k: (0, k)),
                pl.BlockSpec((tk, N1), lambda k: (k, 0)),
                pl.BlockSpec((1, N1), lambda k: (0, 0)),
                pl.BlockSpec((N1, N2), lambda k: (0, 0)),
                pl.BlockSpec((1, N2), lambda k: (0, 0)),
                pl.BlockSpec((N2, N3), lambda k: (0, 0)),
                pl.BlockSpec((1, N3), lambda k: (0, 0)),
            ],
            out_specs=pl.BlockSpec((B, N3), lambda k: (0, 0)),
            scratch_shapes=[pltpu.VMEM((B, N1), jnp.float32)],
        ),
        compiler_params=pltpu.CompilerParams(
            dimension_semantics=("arbitrary",)
        ),
    )(
        x, w1,
        b1.reshape(1, N1).astype(jnp.float32),
        w2.astype(jnp.float32),
        b2.reshape(1, N2).astype(jnp.float32),
        w3.astype(jnp.float32),
        b3.reshape(1, N3).astype(jnp.float32),
    )


# ----------------------------------------------------------------------------
# JAX glue: im2col for 3x3/same-pad convs, 2x2 maxpool, layout plumbing.
# ----------------------------------------------------------------------------
def im2col_3x3(x):  # x: (N, H, W, C) -> (N*H*W, 9*C), same padding, stride 1
    # TODO(synk): fuse the 9 (dy,dx) taps into the conv kernel (grid axis over
    # taps reading shifted windows) to avoid materializing the 9x-expanded
    # patch matrix in HBM; kept in JAX (bf16, small at these shapes).
    N, H, W, C = x.shape
    xp = jnp.pad(x, ((0, 0), (1, 1), (1, 1), (0, 0)))
    cols = [xp[:, dy:dy + H, dx:dx + W, :] for dy in range(3) for dx in range(3)]
    patches = jnp.concatenate(cols, axis=-1)           # (N, H, W, 9*C)
    return patches.reshape(N * H * W, 9 * C)


def maxpool2(x):  # (N, H, W, C) -> (N, H/2, W/2, C)
    # TODO(synk): tiny reduction kept in plain JAX (layout glue, not hot path).
    N, H, W, C = x.shape
    return x.reshape(N, H // 2, 2, W // 2, 2, C).max(axis=(2, 4))


# ----------------------------------------------------------------------------
# Parameters (deterministic synthetic init; no checkpoint loading).
# ----------------------------------------------------------------------------
def init_params(key):
    ks = jax.random.split(key, 7)

    def kaiming(k, shape, fan_out):
        return jax.random.normal(k, shape, jnp.float32) * math.sqrt(2.0 / fan_out)

    def fc_init(k, fan_in, fan_out):
        return jax.random.normal(k, (fan_in, fan_out), jnp.float32) / math.sqrt(fan_in)

    return {
        # backbone "features" (VGG-like), conv weights in HWIO
        "w_conv1": kaiming(ks[0], (3, 3, 3, 64), 64 * 9),
        "b_conv1": jnp.zeros((64,), jnp.float32),
        "w_conv2": kaiming(ks[1], (3, 3, 64, FEAT_CH), FEAT_CH * 9),
        "b_conv2": jnp.zeros((FEAT_CH,), jnp.float32),
        # add_on_layers (1x1 convs as matrices), kaiming fan_out, zero bias
        "w_add1": kaiming(ks[2], (FEAT_CH, PROTO_CH), PROTO_CH),
        "b_add1": jnp.zeros((PROTO_CH,), jnp.float32),
        "w_add2": kaiming(ks[3], (PROTO_CH, PROTO_CH), PROTO_CH),
        "b_add2": jnp.zeros((PROTO_CH,), jnp.float32),
        # fully-connected head
        "w_fc1": fc_init(ks[4], FC1_IN, 120),
        "b_fc1": jnp.zeros((120,), jnp.float32),
        "w_fc2": fc_init(ks[5], 120, 20),
        "b_fc2": jnp.zeros((20,), jnp.float32),
        "w_fc3": fc_init(ks[6], 20, 1),
        "b_fc3": jnp.zeros((1,), jnp.float32),
    }


def prepare_params(p):
    """One-time inference prep: reshape conv weights to GEMM matrices and cast
    matmul operands to bf16 (so no per-forward 36 MB weight convert/pad)."""
    return {
        "w_conv1": p["w_conv1"].reshape(-1, p["w_conv1"].shape[-1]).astype(jnp.bfloat16),
        "b_conv1": p["b_conv1"].astype(jnp.float32),
        "w_conv2": p["w_conv2"].reshape(-1, p["w_conv2"].shape[-1]).astype(jnp.bfloat16),
        "b_conv2": p["b_conv2"].astype(jnp.float32),
        "w_add1": p["w_add1"].astype(jnp.bfloat16),
        "b_add1": p["b_add1"].astype(jnp.float32),
        "w_add2": p["w_add2"].astype(jnp.bfloat16),
        "b_add2": p["b_add2"].astype(jnp.float32),
        "w_fc1": p["w_fc1"].astype(jnp.bfloat16),
        "b_fc1": p["b_fc1"].astype(jnp.float32),
        "w_fc2": p["w_fc2"].astype(jnp.float32),
        "b_fc2": p["b_fc2"].astype(jnp.float32),
        "w_fc3": p["w_fc3"].astype(jnp.float32),
        "b_fc3": p["b_fc3"].astype(jnp.float32),
    }


# ----------------------------------------------------------------------------
# Forward pass (matches PrefNet.forward semantics).
# ----------------------------------------------------------------------------
def prefnet_forward(params, x_nchw):
    B = x_nchw.shape[0]
    k, S = K_STRIPS, IMG_SIZE
    assert x_nchw.shape == (B, 3, k * S, S)

    # conv_features: split H into k strips; strips are independent, so stack
    # them into the batch dimension and run backbone + add_on once.
    x = x_nchw.reshape(B, 3, k, S, S).transpose(0, 2, 1, 3, 4)   # (B,k,3,S,S)
    x = x.reshape(B * k, 3, S, S).transpose(0, 2, 3, 1)          # NHWC (B*k,S,S,3)
    x = x.astype(jnp.bfloat16)

    # features, stage 1: conv3x3(3->64)+ReLU, then 2x2 maxpool
    cols1 = im2col_3x3(x)                                        # (B*k*784, 27)
    y1 = dense_act(cols1, params["w_conv1"], params["b_conv1"],
                   activation="relu")                            # (B*k*784, 64)
    y1 = y1.reshape(B * k, S, S, 64)
    y1 = maxpool2(y1)                                            # (B*k,14,14,64)

    # features stage 2 + add_on, fused in one kernel:
    # conv3x3(64->256)+ReLU -> conv1x1(256->128)+ReLU -> conv1x1(128->128)+Sigmoid
    cols2 = im2col_3x3(y1)                                       # (B*k*196, 576)
    x = conv2_addon_fused(cols2,
                          params["w_conv2"], params["b_conv2"],
                          params["w_add1"], params["b_add1"],
                          params["w_add2"], params["b_add2"])    # (B*k*196, 128)

    # torch.cat(arr, axis=1) over strips, then torch.flatten(x, 1) (NCHW order)
    x = x.reshape(B, k, 14, 14, PROTO_CH).transpose(0, 1, 4, 2, 3)  # (B,k,128,14,14)
    x = x.reshape(B, FC1_IN)                                        # (B, 75264)

    # fused head: sigmoid(fc1), sigmoid(fc2), fc3 — one Pallas kernel
    return head_fused(x,
                      params["w_fc1"], params["b_fc1"],
                      params["w_fc2"], params["b_fc2"],
                      params["w_fc3"], params["b_fc3"])            # (B, 1) f32


if __name__ == "__main__":
    key = jax.random.PRNGKey(0)
    params = prepare_params(init_params(key))

    B = 2
    x = jax.random.normal(
        jax.random.fold_in(key, 1234), (B, 3, K_STRIPS * IMG_SIZE, IMG_SIZE),
        dtype=jnp.float32,
    )

    out = jax.jit(prefnet_forward)(params, x)
    out = jax.block_until_ready(out)
    assert out.shape == (B, 1) and out.dtype == jnp.float32
    assert bool(jnp.all(jnp.isfinite(out)))
    print("KERNEL_OK")
</pallas_src>

<mosaic_0001>
module attributes {stable_mosaic.version = 11 : i64} {
  func.func @_conv_dense_kernel(%arg0: i32, %arg1: memref<336x27xbf16, #tpu.memory_space<vmem>>, %arg2: memref<27x64xbf16, #tpu.memory_space<vmem>>, %arg3: memref<1x64xf32, #tpu.memory_space<vmem>>, %arg4: memref<336x64xbf16, #tpu.memory_space<vmem>>) attributes {dimension_semantics = [#tpu.dimension_semantics<parallel>], iteration_bounds = array<i64: 14>, scalar_prefetch = 0 : i64, scratch_operands = 0 : i64, tpu.core_type = #tpu.core_type<tc>, window_params = [{transform_indices = @transform_0, window_bounds = array<i64: 336, 27>}, {pipeline_mode = #tpu.pipeline_mode<synchronous>, transform_indices = @transform_1, window_bounds = array<i64: 27, 64>}, {pipeline_mode = #tpu.pipeline_mode<synchronous>, transform_indices = @transform_2, window_bounds = array<i64: 1, 64>}, {transform_indices = @transform_3, window_bounds = array<i64: 336, 64>}]} {
    %c0 = arith.constant 0 : index
    %c0_0 = arith.constant 0 : index
    %0 = vector.load %arg1[%c0, %c0_0] : memref<336x27xbf16, #tpu.memory_space<vmem>>, vector<336x27xbf16>
    %c0_1 = arith.constant 0 : index
    %c0_2 = arith.constant 0 : index
    %1 = vector.load %arg2[%c0_1, %c0_2] : memref<27x64xbf16, #tpu.memory_space<vmem>>, vector<27x64xbf16>
    %cst = arith.constant dense<0.000000e+00> : vector<336x64xf32>
    %2 = tpu.matmul %0, %1, %cst {dimension_numbers = #tpu.dot_dimension_numbers<[1], [0], [0], [1], [0, 0, 1, 1], [], []>} : vector<336x27xbf16>, vector<27x64xbf16>, vector<336x64xf32> -> vector<336x64xf32>
    %c0_3 = arith.constant 0 : index
    %c0_4 = arith.constant 0 : index
    %3 = vector.load %arg3[%c0_3, %c0_4] : memref<1x64xf32, #tpu.memory_space<vmem>>, vector<1x64xf32>
    %4 = vector.broadcast %3 : vector<1x64xf32> to vector<336x64xf32>
    %5 = arith.addf %2, %4 : vector<336x64xf32>
    %cst_5 = arith.constant 0.000000e+00 : f32
    %6 = vector.broadcast %cst_5 : f32 to vector<336x64xf32>
    %7 = arith.maximumf %5, %6 : vector<336x64xf32>
    %8 = arith.truncf %7 : vector<336x64xf32> to vector<336x64xbf16>
    %c0_6 = arith.constant 0 : index
    %c0_7 = arith.constant 0 : index
    %9 = vector.load %arg4[%c0_6, %c0_7] : memref<336x64xbf16, #tpu.memory_space<vmem>>, vector<336x64xbf16>
    tpu.vector_store %arg4[%c0_6, %c0_7], %8 {strides = array<i32>} : memref<336x64xbf16, #tpu.memory_space<vmem>>, vector<336x64xbf16>,
    return
  }
  func.func @transform_0(%arg0: i32) -> (i32, i32) {
    %c0_i32 = arith.constant 0 : i32
    %c0_i32_0 = arith.constant 0 : i32
    return %arg0, %c0_i32 : i32, i32
  }
  func.func @transform_1(%arg0: i32) -> (i32, i32) {
    %c0_i32 = arith.constant 0 : i32
    %c0_i32_0 = arith.constant 0 : i32
    %c0_i32_1 = arith.constant 0 : i32
    return %c0_i32, %c0_i32_0 : i32, i32
  }
  func.func @transform_2(%arg0: i32) -> (i32, i32) {
    %c0_i32 = arith.constant 0 : i32
    %c0_i32_0 = arith.constant 0 : i32
    %c0_i32_1 = arith.constant 0 : i32
    return %c0_i32, %c0_i32_0 : i32, i32
  }
  func.func @transform_3(%arg0: i32) -> (i32, i32) {
    %c0_i32 = arith.constant 0 : i32
    %c0_i32_0 = arith.constant 0 : i32
    return %arg0, %c0_i32 : i32, i32
  }
}

module attributes {stable_mosaic.version = 11 : i64} {
  func.func @_conv2_addon_kernel(%arg0: i32, %arg1: memref<392x576xbf16, #tpu.memory_space<vmem>>, %arg2: memref<576x256xbf16, #tpu.memory_space<vmem>>, %arg3: memref<1x256xf32, #tpu.memory_space<vmem>>, %arg4: memref<256x128xbf16, #tpu.memory_space<vmem>>, %arg5: memref<1x128xf32, #tpu.memory_space<vmem>>, %arg6: memref<128x128xbf16, #tpu.memory_space<vmem>>, %arg7: memref<1x128xf32, #tpu.memory_space<vmem>>, %arg8: memref<392x128xbf16, #tpu.memory_space<vmem>>) attributes {dimension_semantics = [#tpu.dimension_semantics<parallel>], iteration_bounds = array<i64: 3>, scalar_prefetch = 0 : i64, scratch_operands = 0 : i64, tpu.core_type = #tpu.core_type<tc>, window_params = [{transform_indices = @transform_0, window_bounds = array<i64: 392, 576>}, {pipeline_mode = #tpu.pipeline_mode<synchronous>, transform_indices = @transform_1, window_bounds = array<i64: 576, 256>}, {pipeline_mode = #tpu.pipeline_mode<synchronous>, transform_indices = @transform_2, window_bounds = array<i64: 1, 256>}, {pipeline_mode = #tpu.pipeline_mode<synchronous>, transform_indices = @transform_3, window_bounds = array<i64: 256, 128>}, {pipeline_mode = #tpu.pipeline_mode<synchronous>, transform_indices = @transform_4, window_bounds = array<i64: 1, 128>}, {pipeline_mode = #tpu.pipeline_mode<synchronous>, transform_indices = @transform_5, window_bounds = array<i64: 128, 128>}, {pipeline_mode = #tpu.pipeline_mode<synchronous>, transform_indices = @transform_6, window_bounds = array<i64: 1, 128>}, {transform_indices = @transform_7, window_bounds = array<i64: 392, 128>}]} {
    %c0 = arith.constant 0 : index
    %c0_0 = arith.constant 0 : index
    %0 = vector.load %arg1[%c0, %c0_0] : memref<392x576xbf16, #tpu.memory_space<vmem>>, vector<392x576xbf16>
    %c0_1 = arith.constant 0 : index
    %c0_2 = arith.constant 0 : index
    %1 = vector.load %arg2[%c0_1, %c0_2] : memref<576x256xbf16, #tpu.memory_space<vmem>>, vector<576x256xbf16>
    %cst = arith.constant dense<0.000000e+00> : vector<392x256xf32>
    %2 = tpu.matmul %0, %1, %cst {dimension_numbers = #tpu.dot_dimension_numbers<[1], [0], [0], [1], [0, 0, 1, 1], [], []>} : vector<392x576xbf16>, vector<576x256xbf16>, vector<392x256xf32> -> vector<392x256xf32>
    %c0_3 = arith.constant 0 : index
    %c0_4 = arith.constant 0 : index
    %3 = vector.load %arg3[%c0_3, %c0_4] : memref<1x256xf32, #tpu.memory_space<vmem>>, vector<1x256xf32>
    %4 = vector.broadcast %3 : vector<1x256xf32> to vector<392x256xf32>
    %5 = arith.addf %2, %4 : vector<392x256xf32>
    %cst_5 = arith.constant 0.000000e+00 : f32
    %6 = vector.broadcast %cst_5 : f32 to vector<392x256xf32>
    %7 = arith.maximumf %5, %6 : vector<392x256xf32>
    %8 = arith.truncf %7 : vector<392x256xf32> to vector<392x256xbf16>
    %c0_6 = arith.constant 0 : index
    %c0_7 = arith.constant 0 : index
    %9 = vector.load %arg4[%c0_6, %c0_7] : memref<256x128xbf16, #tpu.memory_space<vmem>>, vector<256x128xbf16>
    %cst_8 = arith.constant dense<0.000000e+00> : vector<392x128xf32>
    %10 = tpu.matmul %8, %9, %cst_8 {dimension_numbers = #tpu.dot_dimension_numbers<[1], [0], [0], [1], [0, 0, 1, 1], [], []>} : vector<392x256xbf16>, vector<256x128xbf16>, vector<392x128xf32> -> vector<392x128xf32>
    %c0_9 = arith.constant 0 : index
    %c0_10 = arith.constant 0 : index
    %11 = vector.load %arg5[%c0_9, %c0_10] : memref<1x128xf32, #tpu.memory_space<vmem>>, vector<1x128xf32>
    %12 = vector.broadcast %11 : vector<1x128xf32> to vector<392x128xf32>
    %13 = arith.addf %10, %12 : vector<392x128xf32>
    %cst_11 = arith.constant 0.000000e+00 : f32
    %14 = vector.broadcast %cst_11 : f32 to vector<392x128xf32>
    %15 = arith.maximumf %13, %14 : vector<392x128xf32>
    %16 = arith.truncf %15 : vector<392x128xf32> to vector<392x128xbf16>
    %c0_12 = arith.constant 0 : index
    %c0_13 = arith.constant 0 : index
    %17 = vector.load %arg6[%c0_12, %c0_13] : memref<128x128xbf16, #tpu.memory_space<vmem>>, vector<128x128xbf16>
    %cst_14 = arith.constant dense<0.000000e+00> : vector<392x128xf32>
    %18 = tpu.matmul %16, %17, %cst_14 {dimension_numbers = #tpu.dot_dimension_numbers<[1], [0], [0], [1], [0, 0, 1, 1], [], []>} : vector<392x128xbf16>, vector<128x128xbf16>, vector<392x128xf32> -> vector<392x128xf32>
    %c0_15 = arith.constant 0 : index
    %c0_16 = arith.constant 0 : index
    %19 = vector.load %arg7[%c0_15, %c0_16] : memref<1x128xf32, #tpu.memory_space<vmem>>, vector<1x128xf32>
    %20 = vector.broadcast %19 : vector<1x128xf32> to vector<392x128xf32>
    %21 = arith.addf %18, %20 : vector<392x128xf32>
    %22 = arith.negf %21 : vector<392x128xf32>
    %23 = math.exp %22 : vector<392x128xf32>
    %cst_17 = arith.constant 1.000000e+00 : f32
    %24 = vector.broadcast %cst_17 : f32 to vector<392x128xf32>
    %25 = arith.addf %24, %23 : vector<392x128xf32>
    %26 = arith.divf %24, %25 : vector<392x128xf32>
    %27 = arith.truncf %26 : vector<392x128xf32> to vector<392x128xbf16>
    %c0_18 = arith.constant 0 : index
    %c0_19 = arith.constant 0 : index
    %28 = vector.load %arg8[%c0_18, %c0_19] : memref<392x128xbf16, #tpu.memory_space<vmem>>, vector<392x128xbf16>
    tpu.vector_store %arg8[%c0_18, %c0_19], %27 {strides = array<i32>} : memref<392x128xbf16, #tpu.memory_space<vmem>>, vector<392x128xbf16>,
    return
  }
  func.func @transform_0(%arg0: i32) -> (i32, i32) {
    %c0_i32 = arith.constant 0 : i32
    %c0_i32_0 = arith.constant 0 : i32
    return %arg0, %c0_i32 : i32, i32
  }
  func.func @transform_1(%arg0: i32) -> (i32, i32) {
    %c0_i32 = arith.constant 0 : i32
    %c0_i32_0 = arith.constant 0 : i32
    %c0_i32_1 = arith.constant 0 : i32
    return %c0_i32, %c0_i32_0 : i32, i32
  }
  func.func @transform_2(%arg0: i32) -> (i32, i32) {
    %c0_i32 = arith.constant 0 : i32
    %c0_i32_0 = arith.constant 0 : i32
    %c0_i32_1 = arith.constant 0 : i32
    return %c0_i32, %c0_i32_0 : i32, i32
  }
  func.func @transform_3(%arg0: i32) -> (i32, i32) {
    %c0_i32 = arith.constant 0 : i32
    %c0_i32_0 = arith.constant 0 : i32
    %c0_i32_1 = arith.constant 0 : i32
    return %c0_i32, %c0_i32_0 : i32, i32
  }
  func.func @transform_4(%arg0: i32) -> (i32, i32) {
    %c0_i32 = arith.constant 0 : i32
    %c0_i32_0 = arith.constant 0 : i32
    %c0_i32_1 = arith.constant 0 : i32
    return %c0_i32, %c0_i32_0 : i32, i32
  }
  func.func @transform_5(%arg0: i32) -> (i32, i32) {
    %c0_i32 = arith.constant 0 : i32
    %c0_i32_0 = arith.constant 0 : i32
    %c0_i32_1 = arith.constant 0 : i32
    return %c0_i32, %c0_i32_0 : i32, i32
  }
  func.func @transform_6(%arg0: i32) -> (i32, i32) {
    %c0_i32 = arith.constant 0 : i32
    %c0_i32_0 = arith.constant 0 : i32
    %c0_i32_1 = arith.constant 0 : i32
    return %c0_i32, %c0_i32_0 : i32, i32
  }
  func.func @transform_7(%arg0: i32) -> (i32, i32) {
    %c0_i32 = arith.constant 0 : i32
    %c0_i32_0 = arith.constant 0 : i32
    return %arg0, %c0_i32 : i32, i32
  }
}

module attributes {stable_mosaic.version = 11 : i64} {
  func.func @_head_kernel(%arg0: i32, %arg1: memref<2x6272xbf16, #tpu.memory_space<vmem>>, %arg2: memref<6272x120xbf16, #tpu.memory_space<vmem>>, %arg3: memref<1x120xf32, #tpu.memory_space<vmem>>, %arg4: memref<120x20xf32, #tpu.memory_space<vmem>>, %arg5: memref<1x20xf32, #tpu.memory_space<vmem>>, %arg6: memref<20x1xf32, #tpu.memory_space<vmem>>, %arg7: memref<1x1xf32, #tpu.memory_space<vmem>>, %arg8: memref<2x1xf32, #tpu.memory_space<vmem>>, %arg9: memref<2x120xf32, #tpu.memory_space<vmem>>) attributes {dimension_semantics = [#tpu.dimension_semantics<arbitrary>], iteration_bounds = array<i64: 12>, scalar_prefetch = 0 : i64, scratch_operands = 1 : i64, tpu.core_type = #tpu.core_type<tc>, window_params = [{transform_indices = @transform_0, window_bounds = array<i64: 2, 6272>}, {transform_indices = @transform_1, window_bounds = array<i64: 6272, 120>}, {pipeline_mode = #tpu.pipeline_mode<synchronous>, transform_indices = @transform_2, window_bounds = array<i64: 1, 120>}, {pipeline_mode = #tpu.pipeline_mode<synchronous>, transform_indices = @transform_3, window_bounds = array<i64: 120, 20>}, {pipeline_mode = #tpu.pipeline_mode<synchronous>, transform_indices = @transform_4, window_bounds = array<i64: 1, 20>}, {pipeline_mode = #tpu.pipeline_mode<synchronous>, transform_indices = @transform_5, window_bounds = array<i64: 20, 1>}, {pipeline_mode = #tpu.pipeline_mode<synchronous>, transform_indices = @transform_6, window_bounds = array<i64: 1, 1>}, {pipeline_mode = #tpu.pipeline_mode<synchronous>, transform_indices = @transform_7, window_bounds = array<i64: 2, 1>}]} {
    %c0_i32 = arith.constant 0 : i32
    %0 = arith.cmpi eq, %arg0, %c0_i32 : i32
    %1 = arith.extui %0 : i1 to i32
    %c0_i32_0 = arith.constant 0 : i32
    %2 = arith.cmpi ne, %1, %c0_i32_0 : i32
    scf.if %2 {
      %cst_9 = arith.constant 0.000000e+00 : f32
      %12 = vector.broadcast %cst_9 : f32 to vector<2x120xf32>
      %c0_10 = arith.constant 0 : index
      %c0_11 = arith.constant 0 : index
      %13 = vector.load %arg9[%c0_10, %c0_11] : memref<2x120xf32, #tpu.memory_space<vmem>>, vector<2x120xf32>
      tpu.vector_store %arg9[%c0_10, %c0_11], %12 {strides = array<i32>} : memref<2x120xf32, #tpu.memory_space<vmem>>, vector<2x120xf32>,
    } else {
    }
    %c0 = arith.constant 0 : index
    %c0_1 = arith.constant 0 : index
    %3 = vector.load %arg9[%c0, %c0_1] : memref<2x120xf32, #tpu.memory_space<vmem>>, vector<2x120xf32>
    %c0_2 = arith.constant 0 : index
    %c0_3 = arith.constant 0 : index
    %4 = vector.load %arg1[%c0_2, %c0_3] : memref<2x6272xbf16, #tpu.memory_space<vmem>>, vector<2x6272xbf16>
    %c0_4 = arith.constant 0 : index
    %c0_5 = arith.constant 0 : index
    %5 = vector.load %arg2[%c0_4, %c0_5] : memref<6272x120xbf16, #tpu.memory_space<vmem>>, vector<6272x120xbf16>
    %cst = arith.constant dense<0.000000e+00> : vector<2x120xf32>
    %6 = tpu.matmul %4, %5, %cst {dimension_numbers = #tpu.dot_dimension_numbers<[1], [0], [0], [1], [0, 0, 1, 1], [], []>} : vector<2x6272xbf16>, vector<6272x120xbf16>, vector<2x120xf32> -> vector<2x120xf32>
    %7 = arith.addf %3, %6 : vector<2x120xf32>
    %c0_6 = arith.constant 0 : index
    %c0_7 = arith.constant 0 : index
    %8 = vector.load %arg9[%c0_6, %c0_7] : memref<2x120xf32, #tpu.memory_space<vmem>>, vector<2x120xf32>
    tpu.vector_store %arg9[%c0_6, %c0_7], %7 {strides = array<i32>} : memref<2x120xf32, #tpu.memory_space<vmem>>, vector<2x120xf32>,
    %c11_i32 = arith.constant 11 : i32
    %9 = arith.cmpi eq, %arg0, %c11_i32 : i32
    %10 = arith.extui %9 : i1 to i32
    %c0_i32_8 = arith.constant 0 : i32
    %11 = arith.cmpi ne, %10, %c0_i32_8 : i32
    scf.if %11 {
      %c0_9 = arith.constant 0 : index
      %c0_10 = arith.constant 0 : index
      %12 = vector.load %arg9[%c0_9, %c0_10] : memref<2x120xf32, #tpu.memory_space<vmem>>, vector<2x120xf32>
      %c0_11 = arith.constant 0 : index
      %c0_12 = arith.constant 0 : index
      %13 = vector.load %arg3[%c0_11, %c0_12] : memref<1x120xf32, #tpu.memory_space<vmem>>, vector<1x120xf32>
      %14 = vector.broadcast %13 : vector<1x120xf32> to vector<2x120xf32>
      %15 = arith.addf %12, %14 : vector<2x120xf32>
      %16 = arith.negf %15 : vector<2x120xf32>
      %17 = math.exp %16 : vector<2x120xf32>
      %cst_13 = arith.constant 1.000000e+00 : f32
      %18 = vector.broadcast %cst_13 : f32 to vector<2x120xf32>
      %19 = arith.addf %18, %17 : vector<2x120xf32>
      %20 = arith.divf %18, %19 : vector<2x120xf32>
      %c0_14 = arith.constant 0 : index
      %c0_15 = arith.constant 0 : index
      %21 = vector.load %arg4[%c0_14, %c0_15] : memref<120x20xf32, #tpu.memory_space<vmem>>, vector<120x20xf32>
      %cst_16 = arith.constant dense<0.000000e+00> : vector<2x20xf32>
      %22 = tpu.matmul %20, %21, %cst_16 {dimension_numbers = #tpu.dot_dimension_numbers<[1], [0], [0], [1], [0, 0, 1, 1], [], []>} : vector<2x120xf32>, vector<120x20xf32>, vector<2x20xf32> -> vector<2x20xf32>
      %c0_17 = arith.constant 0 : index
      %c0_18 = arith.constant 0 : index
      %23 = vector.load %arg5[%c0_17, %c0_18] : memref<1x20xf32, #tpu.memory_space<vmem>>, vector<1x20xf32>
      %24 = vector.broadcast %23 : vector<1x20xf32> to vector<2x20xf32>
      %25 = arith.addf %22, %24 : vector<2x20xf32>
      %26 = arith.negf %25 : vector<2x20xf32>
      %27 = math.exp %26 : vector<2x20xf32>
      %cst_19 = arith.constant 1.000000e+00 : f32
      %28 = vector.broadcast %cst_19 : f32 to vector<2x20xf32>
      %29 = arith.addf %28, %27 : vector<2x20xf32>
      %30 = arith.divf %28, %29 : vector<2x20xf32>
      %c0_20 = arith.constant 0 : index
      %c0_21 = arith.constant 0 : index
      %31 = vector.load %arg6[%c0_20, %c0_21] : memref<20x1xf32, #tpu.memory_space<vmem>>, vector<20x1xf32>
      %cst_22 = arith.constant dense<0.000000e+00> : vector<2x1xf32>
      %32 = tpu.matmul %30, %31, %cst_22 {dimension_numbers = #tpu.dot_dimension_numbers<[1], [0], [0], [1], [0, 0, 1, 1], [], []>} : vector<2x20xf32>, vector<20x1xf32>, vector<2x1xf32> -> vector<2x1xf32>
      %c0_23 = arith.constant 0 : index
      %c0_24 = arith.constant 0 : index
      %33 = vector.load %arg7[%c0_23, %c0_24] : memref<1x1xf32, #tpu.memory_space<vmem>>, vector<1x1xf32>
      %34 = vector.broadcast %33 : vector<1x1xf32> to vector<2x1xf32>
      %35 = arith.addf %32, %34 : vector<2x1xf32>
      %c0_25 = arith.constant 0 : index
      %c0_26 = arith.constant 0 : index
      %36 = vector.load %arg8[%c0_25, %c0_26] : memref<2x1xf32, #tpu.memory_space<vmem>>, vector<2x1xf32>
      tpu.vector_store %arg8[%c0_25, %c0_26], %35 {strides = array<i32>} : memref<2x1xf32, #tpu.memory_space<vmem>>, vector<2x1xf32>,
    } else {
    }
    return
  }
  func.func @transform_0(%arg0: i32) -> (i32, i32) {
    %c0_i32 = arith.constant 0 : i32
    %c0_i32_0 = arith.constant 0 : i32
    return %c0_i32, %arg0 : i32, i32
  }
  func.func @transform_1(%arg0: i32) -> (i32, i32) {
    %c0_i32 = arith.constant 0 : i32
    %c0_i32_0 = arith.constant 0 : i32
    return %arg0, %c0_i32 : i32, i32
  }
  func.func @transform_2(%arg0: i32) -> (i32, i32) {
    %c0_i32 = arith.constant 0 : i32
    %c0_i32_0 = arith.constant 0 : i32
    %c0_i32_1 = arith.constant 0 : i32
    return %c0_i32, %c0_i32_0 : i32, i32
  }
  func.func @transform_3(%arg0: i32) -> (i32, i32) {
    %c0_i32 = arith.constant 0 : i32
    %c0_i32_0 = arith.constant 0 : i32
    %c0_i32_1 = arith.constant 0 : i32
    return %c0_i32, %c0_i32_0 : i32, i32
  }
  func.func @transform_4(%arg0: i32) -> (i32, i32) {
    %c0_i32 = arith.constant 0 : i32
    %c0_i32_0 = arith.constant 0 : i32
    %c0_i32_1 = arith.constant 0 : i32
    return %c0_i32, %c0_i32_0 : i32, i32
  }
  func.func @transform_5(%arg0: i32) -> (i32, i32) {
    %c0_i32 = arith.constant 0 : i32
    %c0_i32_0 = arith.constant 0 : i32
    %c0_i32_1 = arith.constant 0 : i32
    return %c0_i32, %c0_i32_0 : i32, i32
  }
  func.func @transform_6(%arg0: i32) -> (i32, i32) {
    %c0_i32 = arith.constant 0 : i32
    %c0_i32_0 = arith.constant 0 : i32
    %c0_i32_1 = arith.constant 0 : i32
    return %c0_i32, %c0_i32_0 : i32, i32
  }
  func.func @transform_7(%arg0: i32) -> (i32, i32) {
    %c0_i32 = arith.constant 0 : i32
    %c0_i32_0 = arith.constant 0 : i32
    %c0_i32_1 = arith.constant 0 : i32
    return %c0_i32, %c0_i32_0 : i32, i32
  }
}

</mosaic_0001>

<llo_original>
// kernel: prefnet_forward.3
$region0: #{prefnet_forward.3}
  #allocation0 [shape = 'u32[]', space=smem, size = 0x4, offset = 0x4, fixed_abs, tag = 'smem constant byte address 0x4 - core index']
  #allocation1 [shape = 'u32[144,128]{1,0:T(1,128)}', space=vmem, size = 0x12000, scoped, tag = 'internal scratch']
  %s0 = inlined_call_operand.vmem [shape: bf16[4704,27], index: 0, kind: input, shape index: {}]
  %s1 = inlined_call_operand.vmem [shape: bf16[27,64], index: 1, kind: input, shape index: {}]
  %s2 = inlined_call_operand.vmem [shape: f32[1,64], index: 2, kind: input, shape index: {}]
  %s3 = inlined_call_operand.vmem [shape: bf16[4704,64], index: 3, kind: output, shape index: {}]
  %s4 = sld [smem:[#allocation0]]
  $region45: #{prefnet_forward.3} parent=0
    _
  %s6 = ssub.s32 1, %s4
  %s7 = scalar_select 0, %s6, %s4
  loop: start=0, step=1, limit=16
  $region2: #{prefnet_forward.3} parent=0 // loop_pre_header
    _
  $region3: #{prefnet_forward.3} parent=0 // loop_header
    %s9 = sphi 0, %s13
    %p10 = scmp.ge.s32.totalorder %s9, 16
    %s19 = sphi 0, %s21
    %s22 = sphi 0, %s19
    %s23 = sphi 0, %s22
    %s39 = sphi 0, %s23
    %s43 = sphi 0, %s43
    %s45 = sphi 0, %s43
    %s46 = sphi 0, %s45
    %s60 = sphi 0, %s46
    %s64 = sphi 0, %s64
    %s66 = sphi 0, %s64
    %s67 = sphi 0, %s66
    %s81 = sphi 0, %s67
    %s87 = sphi 0, %s89
    %s90 = sphi 0, %s87
    %s91 = sphi 0, %s90
    %s107 = sphi 0, %s91
  $region4: #{prefnet_forward.3} parent=0 // loop_header_branch
    %12 = sbr.rel (%p10) target = $region8
  $region5: #{prefnet_forward.3} parent=0 // loop_body
    %s14 = ssub.s32 %s9, 1
    %s15 = ssub.s32 %s9, 2
    %s16 = sadd.s32 %s9, 1
    %s17 = ssub.s32 %s9, %s16
    %p18 = scmp.eq.s32.totalorder %s17, 0
    %s20 = sadd.s32 %s19, 1
    %s21 = scalar_select %p18, %s19, %s20
    %p24 = pneg %p18
    %p25 = scmp.eq.s32.totalorder %s9, 13
    %p26 = por %p24, %p25
    %p27 = scmp.ne.s32.totalorder %s19, %s22
    %p28 = scmp.eq.s32.totalorder %s9, 0
    %p29 = por %p27, %p28
    %p30 = scmp.ne.s32.totalorder %s19, %s22
    %p31 = scmp.eq.s32.totalorder %s14, 13
    %p32 = por %p30, %p31
    %p33 = scmp.ne.s32.totalorder %s22, %s23
    %p34 = scmp.eq.s32.totalorder %s14, 0
    %p35 = por %p33, %p34
    %p36 = scmp.ne.s32.totalorder %s22, %s23
    %p37 = scmp.eq.s32.totalorder %s15, 13
    %p38 = por %p36, %p37
    %p40 = scmp.ne.s32.totalorder %s23, %s39
    %p41 = scmp.eq.s32.totalorder %s15, 0
    %p42 = por %p40, %p41
    %s44 = sadd.s32 %s43, 1
    %p47 = scmp.eq.s32.totalorder %s9, 13
    %p48 = scmp.ne.s32.totalorder %s43, %s45
    %p49 = scmp.eq.s32.totalorder %s9, 0
    %p50 = por %p48, %p49
    %p51 = scmp.ne.s32.totalorder %s43, %s45
    %p52 = scmp.eq.s32.totalorder %s14, 13
    %p53 = por %p51, %p52
    %p54 = scmp.ne.s32.totalorder %s45, %s46
    %p55 = scmp.eq.s32.totalorder %s14, 0
    %p56 = por %p54, %p55
    %p57 = scmp.ne.s32.totalorder %s45, %s46
    %p58 = scmp.eq.s32.totalorder %s15, 13
    %p59 = por %p57, %p58
    %p61 = scmp.ne.s32.totalorder %s46, %s60
    %p62 = scmp.eq.s32.totalorder %s15, 0
    %p63 = por %p61, %p62
    %s65 = sadd.s32 %s64, 1
    %p68 = scmp.eq.s32.totalorder %s9, 13
    %p69 = scmp.ne.s32.totalorder %s64, %s66
    %p70 = scmp.eq.s32.totalorder %s9, 0
    %p71 = por %p69, %p70
    %p72 = scmp.ne.s32.totalorder %s64, %s66
    %p73 = scmp.eq.s32.totalorder %s14, 13
    %p74 = por %p72, %p73
    %p75 = scmp.ne.s32.totalorder %s66, %s67
    %p76 = scmp.eq.s32.totalorder %s14, 0
    %p77 = por %p75, %p76
    %p78 = scmp.ne.s32.totalorder %s66, %s67
    %p79 = scmp.eq.s32.totalorder %s15, 13
    %p80 = por %p78, %p79
    %p82 = scmp.ne.s32.totalorder %s67, %s81
    %p83 = scmp.eq.s32.totalorder %s15, 0
    %p84 = por %p82, %p83
    %s85 = ssub.s32 %s9, %s16
    %p86 = scmp.eq.s32.totalorder %s85, 0
    %s88 = sadd.s32 %s87, 1
    %s89 = scalar_select %p86, %s87, %s88
    %p92 = pneg %p86
    %p93 = scmp.eq.s32.totalorder %s9, 13
    %p94 = por %p92, %p93
    %p95 = scmp.ne.s32.totalorder %s87, %s90
    %p96 = scmp.eq.s32.totalorder %s9, 0
    %p97 = por %p95, %p96
    %p98 = scmp.ne.s32.totalorder %s87, %s90
    %p99 = scmp.eq.s32.totalorder %s14, 13
    %p100 = por %p98, %p99
    %p101 = scmp.ne.s32.totalorder %s90, %s91
    %p102 = scmp.eq.s32.totalorder %s14, 0
    %p103 = por %p101, %p102
    %p104 = scmp.ne.s32.totalorder %s90, %s91
    %p105 = scmp.eq.s32.totalorder %s15, 13
    %p106 = por %p104, %p105
    %p108 = scmp.ne.s32.totalorder %s91, %s107
    %p109 = scmp.eq.s32.totalorder %s15, 0
    %p110 = por %p108, %p109
    %p111 = scmp.le.s32.totalorder 1, %s9
    %p112 = scmp.lt.s32.totalorder %s9, 15
    %p113 = pnand %p111, %p112
    %p114 = pneg %p113
    // Predicated region
    $region9: #{prefnet_forward.3} parent=5 // pred_check
      _
    $region10: #{prefnet_forward.3} parent=5 // pred_check_branch
      %116 = sbr.rel (%p113) target = $region12
    $region11: #{prefnet_forward.3} parent=5 // pred_region
      %s117 = ssub.s32 %s9, 1
      // Predicated region
      $region13: #{prefnet_forward.3} parent=11 // pred_check
        %p118 = pneg %p56
      $region14: #{prefnet_forward.3} parent=11 // pred_check_branch
        %120 = sbr.rel (%p118) target = $region16
      $region15: #{prefnet_forward.3} parent=11 // pred_region
        _
      $region16: #{prefnet_forward.3} parent=11 // pred_fallthru
        _
      // Predicated region
      $region17: #{prefnet_forward.3} parent=11 // pred_check
        %p121 = pneg %p77
      $region18: #{prefnet_forward.3} parent=11 // pred_check_branch
        %123 = sbr.rel (%p121) target = $region20
      $region19: #{prefnet_forward.3} parent=11 // pred_region
        _
      $region20: #{prefnet_forward.3} parent=11 // pred_fallthru
        _
    $region12: #{prefnet_forward.3} parent=5 // pred_fallthru
      _
    %p124 = scmp.lt.s32.totalorder %s9, 14
    // Predicated region
    $region21: #{prefnet_forward.3} parent=5 // pred_check
      %p125 = pneg %p124
    $region22: #{prefnet_forward.3} parent=5 // pred_check_branch
      %127 = sbr.rel (%p125) target = $region24
    $region23: #{prefnet_forward.3} parent=5 // pred_region
      // Predicated region
      $region25: #{prefnet_forward.3} parent=23 // pred_check
        %p128 = pneg %p29
      $region26: #{prefnet_forward.3} parent=23 // pred_check_branch
        %130 = sbr.rel (%p128) target = $region28
      $region27: #{prefnet_forward.3} parent=23 // pred_region
        %s131 = smul.u32 42, %s9
        %p132 = scmp.lt.s32.totalorder %s131, 587
        %s133 = scalar_select %p132, %s131, 587
        %s134 = smul.addr %s133, 4
        %s135 = scalar_lea.vmem %s0, %s134
        %s136 = smul.u32 42, %s9
      $region28: #{prefnet_forward.3} parent=23 // pred_fallthru
        _
    $region24: #{prefnet_forward.3} parent=5 // pred_fallthru
      _
    %p137 = scmp.le.s32.totalorder 1, %s9
    %p138 = scmp.lt.s32.totalorder %s9, 15
    %p139 = pnand %p137, %p138
    %p140 = pneg %p139
    // Predicated region
    $region29: #{prefnet_forward.3} parent=5 // pred_check
      _
    $region30: #{prefnet_forward.3} parent=5 // pred_check_branch
      %142 = sbr.rel (%p139) target = $region32
    $region31: #{prefnet_forward.3} parent=5 // pred_region
      %s143 = ssub.s32 %s9, 1
      %s144 = smul.u32 42, %s14
      %p145 = scmp.lt.s32.totalorder %s144, 587
      %s146 = scalar_select %p145, %s144, 587
      %s147 = smul.addr %s146, 4
      %s148 = scalar_lea.vmem %s0, %s147
      %p149 = pneg %p35
      %p150 = pneg %p32
      %p151 = pneg %p56
      %p152 = pneg %p53
      %p153 = pneg %p77
      %p154 = pneg %p74
      %p155 = pneg %p103
      %p156 = pneg %p100
      %s157 = smul.u32 42, %s14
      %p158 = scmp.lt.s32.totalorder %s157, 587
      %s159 = scalar_select %p158, %s157, 587
      %s160 = smul.addr %s159, 4
      %s161 = scalar_lea.vmem %s3, %s160
      %s162 = smul.u32 42, %s14
      %p163 = scmp.lt.s32.totalorder %s162, 587
      %s164 = scalar_select %p163, %s162, 587
      %s165 = smul.addr %s164, 4
      %s166 = scalar_lea.vmem %s0, %s165
      %s167 = smul.u32 42, %s14
      %s168 = smul.u32 42, %s14
      %p169 = scmp.lt.s32.totalorder %s168, 587
      %s170 = scalar_select %p169, %s168, 587
      %s171 = smul.addr %s170, 4
      %s172 = scalar_lea.vmem %s3, %s171
      %s173 = smul.u32 42, %s14
      %v175 = vld [vmem:[%s166] sm:$0xf]
      %v176 = vld [vmem:[%s166 + $0x4] sm:$0xf]
      %v177 = vld [vmem:[%s166 + $0x8] sm:$0xf]
      %v178 = vld [vmem:[%s166 + $0xc] sm:$0xf]
      %v179 = vld [vmem:[%s166 + $0x10] sm:$0xf]
      %v180 = vld [vmem:[%s166 + $0x14] sm:$0xf]
      %v181 = vld [vmem:[%s166 + $0x18] sm:$0xf]
      %v182 = vld [vmem:[%s166 + $0x1c] sm:$0xf]
      %v183 = vld [vmem:[%s166 + $0x20] sm:$0xf]
      %v184 = vld [vmem:[%s166 + $0x24] sm:$0xf]
      %v185 = vld [vmem:[%s166 + $0x28] sm:$0xf]
      %v186 = vld [vmem:[%s166 + $0x2c] sm:$0xf]
      %v187 = vld [vmem:[%s166 + $0x30] sm:$0xf]
      %v188 = vld [vmem:[%s166 + $0x34] sm:$0xf]
      %v189 = vld [vmem:[%s166 + $0x38] sm:$0xf]
      %v190 = vld [vmem:[%s166 + $0x3c] sm:$0xf]
      %v191 = vld [vmem:[%s166 + $0x40] sm:$0xf]
      %v192 = vld [vmem:[%s166 + $0x44] sm:$0xf]
      %v193 = vld [vmem:[%s166 + $0x48] sm:$0xf]
      %v194 = vld [vmem:[%s166 + $0x4c] sm:$0xf]
      %v195 = vld [vmem:[%s166 + $0x50] sm:$0xf]
      %v196 = vld [vmem:[%s166 + $0x54] sm:$0xf]
      %v197 = vld [vmem:[%s166 + $0x58] sm:$0xf]
      %v198 = vld [vmem:[%s166 + $0x5c] sm:$0xf]
      %v199 = vld [vmem:[%s166 + $0x60] sm:$0xf]
      %v200 = vld [vmem:[%s166 + $0x64] sm:$0xf]
      %v201 = vld [vmem:[%s166 + $0x68] sm:$0xf]
      %v202 = vld [vmem:[%s166 + $0x6c] sm:$0xf]
      %v203 = vld [vmem:[%s166 + $0x70] sm:$0xf]
      %v204 = vld [vmem:[%s166 + $0x74] sm:$0xf]
      %v205 = vld [vmem:[%s166 + $0x78] sm:$0xf]
      %v206 = vld [vmem:[%s166 + $0x7c] sm:$0xf]
      %v207 = vld [vmem:[%s166 + $0x80] sm:$0xf]
      %v208 = vld [vmem:[%s166 + $0x84] sm:$0xf]
      %v209 = vld [vmem:[%s166 + $0x88] sm:$0xf]
      %v210 = vld [vmem:[%s166 + $0x8c] sm:$0xf]
      %v211 = vld [vmem:[%s166 + $0x90] sm:$0xf]
      %v212 = vld [vmem:[%s166 + $0x94] sm:$0xf]
      %v213 = vld [vmem:[%s166 + $0x98] sm:$0xf]
      %v214 = vld [vmem:[%s166 + $0x9c] sm:$0xf]
      %v215 = vld [vmem:[%s166 + $0xa0] sm:$0xf]
      %v216 = vld [vmem:[%s166 + $0xa4] sm:$0xf]
      %v217 = vld [vmem:[%s1] sm:$0xf]
      %v218 = vld [vmem:[%s1 + $0x4] sm:$0xf]
      %v219 = vld [vmem:[%s1 + $0x8] sm:$0xf]
      %v220 = vld [vmem:[%s1 + $0xc] sm:$0x3]
      %v221 = vld [vmem:[%s2] sm:$0x1]
      %v223 = vlaneseq
      %v224 = vshrl.u32 %v223, 7
      %v225 = vsub.s32 0, %v224
      %v226 = vrot.slane %v221, %v225
      %v270 = vunpack.c.l.b16 %v175
      %v271 = vunpack.c.l.b16 %v176
      %v272 = vunpack.c.l.b16 %v177
      %v273 = vunpack.c.l.b16 %v178
      %v274 = vunpack.c.l.b16 %v179
      %v275 = vunpack.c.l.b16 %v180
      %v276 = vunpack.c.l.b16 %v181
      %v277 = vunpack.c.l.b16 %v182
      %v278 = vunpack.c.l.b16 %v183
      %v279 = vunpack.c.l.b16 %v184
      %v280 = vunpack.c.l.b16 %v185
      %v281 = vunpack.c.l.b16 %v186
      %v282 = vunpack.c.l.b16 %v187
      %v283 = vunpack.c.l.b16 %v188
      %v284 = vunpack.c.l.b16 %v189
      %v285 = vunpack.c.l.b16 %v190
      %v286 = vunpack.c.l.b16 %v191
      %v287 = vunpack.c.l.b16 %v192
      %v288 = vunpack.c.l.b16 %v193
      %v289 = vunpack.c.l.b16 %v194
      %v290 = vunpack.c.l.b16 %v195
      %v291 = vunpack.c.l.b16 %v196
      %v292 = vunpack.c.l.b16 %v197
      %v293 = vunpack.c.l.b16 %v198
      %v294 = vunpack.c.l.b16 %v199
      %v295 = vunpack.c.l.b16 %v200
      %v296 = vunpack.c.l.b16 %v201
      %v297 = vunpack.c.l.b16 %v202
      %v298 = vunpack.c.l.b16 %v203
      %v299 = vunpack.c.l.b16 %v204
      %v300 = vunpack.c.l.b16 %v205
      %v301 = vunpack.c.l.b16 %v206
      %v302 = vunpack.c.l.b16 %v207
      %v303 = vunpack.c.l.b16 %v208
      %v304 = vunpack.c.l.b16 %v209
      %v305 = vunpack.c.l.b16 %v210
      %v306 = vunpack.c.l.b16 %v211
      %v307 = vunpack.c.l.b16 %v212
      %v308 = vunpack.c.l.b16 %v213
      %v309 = vunpack.c.l.b16 %v214
      %v310 = vunpack.c.l.b16 %v215
      %v311 = vunpack.c.l.b16 %v216
      %v312 = vpack.c.b16 %v271, %v270
      %v313 = vpack.c.b16 %v273, %v272
      %v314 = vpack.c.b16 %v275, %v274
      %v315 = vpack.c.b16 %v277, %v276
      %v316 = vpack.c.b16 %v279, %v278
      %v317 = vpack.c.b16 %v281, %v280
      %v318 = vpack.c.b16 %v283, %v282
      %v319 = vpack.c.b16 %v285, %v284
      %v320 = vpack.c.b16 %v287, %v286
      %v321 = vpack.c.b16 %v289, %v288
      %v322 = vpack.c.b16 %v291, %v290
      %v323 = vpack.c.b16 %v293, %v292
      %v324 = vpack.c.b16 %v295, %v294
      %v325 = vpack.c.b16 %v297, %v296
      %v326 = vpack.c.b16 %v299, %v298
      %v327 = vpack.c.b16 %v301, %v300
      %v328 = vpack.c.b16 %v303, %v302
      %v329 = vpack.c.b16 %v305, %v304
      %v330 = vpack.c.b16 %v307, %v306
      %v331 = vpack.c.b16 %v309, %v308
      %v332 = vpack.c.b16 %v311, %v310
      %v337 = vunpack.c.l.b16 %v217
      %v338 = vunpack.c.l.b16 %v218
      %v339 = vunpack.c.l.b16 %v219
      %v340 = vunpack.c.l.b16 %v220
      %v341 = vpack.c.b16 %v338, %v337
      %v342 = vpack.c.b16 %v340, %v339
      %vm344 = vcmask 220160
      %v346 = vsel %vm344, %v312, 0
      %v349 = vsel %vm344, %v313, 0
      %v352 = vsel %vm344, %v314, 0
      %v355 = vsel %vm344, %v315, 0
      %v358 = vsel %vm344, %v316, 0
      %v361 = vsel %vm344, %v317, 0
      %v364 = vsel %vm344, %v318, 0
      %v367 = vsel %vm344, %v319, 0
      %v370 = vsel %vm344, %v320, 0
      %v373 = vsel %vm344, %v321, 0
      %v376 = vsel %vm344, %v322, 0
      %v379 = vsel %vm344, %v323, 0
      %v382 = vsel %vm344, %v324, 0
      %v385 = vsel %vm344, %v325, 0
      %v388 = vsel %vm344, %v326, 0
      %v391 = vsel %vm344, %v327, 0
      %v394 = vsel %vm344, %v328, 0
      %v397 = vsel %vm344, %v329, 0
      %v400 = vsel %vm344, %v330, 0
      %v403 = vsel %vm344, %v331, 0
      %v406 = vsel %vm344, %v332, 0
      %vm408 = vcmask 1044480
      %vm409 = vcmask 1045504
      %v410 = vsel %vm408, 4294967295, 65535
      %v411 = vsel %vm409, %v410, 0
      %v413 = vand.u32 %v342, %v411
      %415 = vmatprep.subr.bf16.mxu0 0
      %416 = vmatpush1.bf16.msra.mxu0 0
      %417 = vmatprep.subr.bf16.mxu0 0
      %418 = vmatpush1.bf16.msra.mxu0 0
      %419 = vmatprep.subr.bf16.mxu0 0
      %420 = vmatpush1.bf16.msra.mxu0 0
      %421 = vmatprep.subr.bf16.mxu0 0
      %422 = vmatpush1.bf16.msra.mxu0 0
      %423 = vmatprep.subr.bf16.mxu0 0
      %424 = vmatpush1.bf16.msra.mxu0 0
      %425 = vmatprep.subr.bf16.mxu0 0
      %426 = vmatpush1.bf16.msra.mxu0 0
      %427 = vmatprep.subr.bf16.mxu0 0
      %428 = vmatpush1.bf16.msra.mxu0 %v413
      %429 = vmatprep.subr.bf16.mxu0 0
      %430 = vmatpush1.bf16.msra.mxu0 %v341
      %431 = vmatprep.subr.bf16.mxu0 0
      %432 = vmatpush2.bf16.msra.mxu0 0
      %433 = vmatprep.subr.bf16.mxu0 0
      %434 = vmatpush2.bf16.msra.mxu0 0
      %435 = vmatprep.subr.bf16.mxu0 0
      %436 = vmatpush2.bf16.msra.mxu0 0
      %437 = vmatprep.subr.bf16.mxu0 0
      %438 = vmatpush2.bf16.msra.mxu0 0
      %439 = vmatprep.subr.bf16.mxu0 0
      %440 = vmatpush2.bf16.msra.mxu0 0
      %441 = vmatprep.subr.bf16.mxu0 0
      %442 = vmatpush2.bf16.msra.mxu0 0
      %443 = vmatprep.subr.bf16.mxu0 0
      %444 = vmatpush2.bf16.msra.mxu0 0
      %445 = vmatprep.subr.bf16.mxu0 0
      %446 = vmatpush2.bf16.msra.mxu0 0
      %447 = vmatprep.mubr.bf16.mxu0 0
      %448 = vmatmul.mubr.bf16.gmra.mxu0 %v346
      %v449 = vpop.f32.mrf.mxu0
      %v450 = vadd.f32 %v226, %v449
      %v451 = vpop.f32.mrf.mxu0
      %v452 = vpop.f32.mrf.mxu0
      %v453 = vadd.f32 %v226, %v452
      %v454 = vpop.f32.mrf.mxu0
      %455 = vmatprep.mubr.bf16.mxu0 0
      %456 = vmatmul.mubr.bf16.gmra.mxu0 %v349
      %v457 = vpop.f32.mrf.mxu0
      %v458 = vadd.f32 %v226, %v457
      %v459 = vpop.f32.mrf.mxu0
      %v460 = vpop.f32.mrf.mxu0
      %v461 = vadd.f32 %v226, %v460
      %v462 = vpop.f32.mrf.mxu0
      %463 = vmatprep.mubr.bf16.mxu0 0
      %464 = vmatmul.mubr.bf16.gmra.mxu0 %v352
      %v465 = vpop.f32.mrf.mxu0
      %v466 = vadd.f32 %v226, %v465
      %v467 = vpop.f32.mrf.mxu0
      %v468 = vpop.f32.mrf.mxu0
      %v469 = vadd.f32 %v226, %v468
      %v470 = vpop.f32.mrf.mxu0
      %471 = vmatprep.mubr.bf16.mxu0 0
      %472 = vmatmul.mubr.bf16.gmra.mxu0 %v355
      %v473 = vpop.f32.mrf.mxu0
      %v474 = vadd.f32 %v226, %v473
      %v475 = vpop.f32.mrf.mxu0
      %v476 = vpop.f32.mrf.mxu0
      %v477 = vadd.f32 %v226, %v476
      %v478 = vpop.f32.mrf.mxu0
      %479 = vmatprep.mubr.bf16.mxu0 0
      %480 = vmatmul.mubr.bf16.gmra.mxu0 %v358
      %v481 = vpop.f32.mrf.mxu0
      %v482 = vadd.f32 %v226, %v481
      %v483 = vpop.f32.mrf.mxu0
      %v484 = vpop.f32.mrf.mxu0
      %v485 = vadd.f32 %v226, %v484
      %v486 = vpop.f32.mrf.mxu0
      %487 = vmatprep.mubr.bf16.mxu0 0
      %488 = vmatmul.mubr.bf16.gmra.mxu0 %v361
      %v489 = vpop.f32.mrf.mxu0
      %v490 = vadd.f32 %v226, %v489
      %v491 = vpop.f32.mrf.mxu0
      %v492 = vpop.f32.mrf.mxu0
      %v493 = vadd.f32 %v226, %v492
      %v494 = vpop.f32.mrf.mxu0
      %495 = vmatprep.mubr.bf16.mxu0 0
      %496 = vmatmul.mubr.bf16.gmra.mxu0 %v364
      %v497 = vpop.f32.mrf.mxu0
      %v498 = vadd.f32 %v226, %v497
      %v499 = vpop.f32.mrf.mxu0
      %v500 = vpop.f32.mrf.mxu0
      %v501 = vadd.f32 %v226, %v500
      %v502 = vpop.f32.mrf.mxu0
      %503 = vmatprep.mubr.bf16.mxu0 0
      %504 = vmatmul.mubr.bf16.gmra.mxu0 %v367
      %v505 = vpop.f32.mrf.mxu0
      %v506 = vadd.f32 %v226, %v505
      %v507 = vpop.f32.mrf.mxu0
      %v508 = vpop.f32.mrf.mxu0
      %v509 = vadd.f32 %v226, %v508
      %v510 = vpop.f32.mrf.mxu0
      %511 = vmatprep.mubr.bf16.mxu0 0
      %512 = vmatmul.mubr.bf16.gmra.mxu0 %v370
      %v513 = vpop.f32.mrf.mxu0
      %v514 = vadd.f32 %v226, %v513
      %v515 = vpop.f32.mrf.mxu0
      %v516 = vpop.f32.mrf.mxu0
      %v517 = vadd.f32 %v226, %v516
      %v518 = vpop.f32.mrf.mxu0
      %519 = vmatprep.mubr.bf16.mxu0 0
      %520 = vmatmul.mubr.bf16.gmra.mxu0 %v373
      %v521 = vpop.f32.mrf.mxu0
      %v522 = vadd.f32 %v226, %v521
      %v523 = vpop.f32.mrf.mxu0
      %v524 = vpop.f32.mrf.mxu0
      %v525 = vadd.f32 %v226, %v524
      %v526 = vpop.f32.mrf.mxu0
      %527 = vmatprep.mubr.bf16.mxu0 0
      %528 = vmatmul.mubr.bf16.gmra.mxu0 %v376
      %v529 = vpop.f32.mrf.mxu0
      %v530 = vadd.f32 %v226, %v529
      %v531 = vpop.f32.mrf.mxu0
      %v532 = vpop.f32.mrf.mxu0
      %v533 = vadd.f32 %v226, %v532
      %v534 = vpop.f32.mrf.mxu0
      %535 = vmatprep.mubr.bf16.mxu0 0
      %536 = vmatmul.mubr.bf16.gmra.mxu0 %v379
      %v537 = vpop.f32.mrf.mxu0
      %v538 = vadd.f32 %v226, %v537
      %v539 = vpop.f32.mrf.mxu0
      %v540 = vpop.f32.mrf.mxu0
      %v541 = vadd.f32 %v226, %v540
      %v542 = vpop.f32.mrf.mxu0
      %543 = vmatprep.mubr.bf16.mxu0 0
      %544 = vmatmul.mubr.bf16.gmra.mxu0 %v382
      %v545 = vpop.f32.mrf.mxu0
      %v546 = vadd.f32 %v226, %v545
      %v547 = vpop.f32.mrf.mxu0
      %v548 = vpop.f32.mrf.mxu0
      %v549 = vadd.f32 %v226, %v548
      %v550 = vpop.f32.mrf.mxu0
      %551 = vmatprep.mubr.bf16.mxu0 0
      %552 = vmatmul.mubr.bf16.gmra.mxu0 %v385
      %v553 = vpop.f32.mrf.mxu0
      %v554 = vadd.f32 %v226, %v553
      %v555 = vpop.f32.mrf.mxu0
      %v556 = vpop.f32.mrf.mxu0
      %v557 = vadd.f32 %v226, %v556
      %v558 = vpop.f32.mrf.mxu0
      %559 = vmatprep.mubr.bf16.mxu0 0
      %560 = vmatmul.mubr.bf16.gmra.mxu0 %v388
      %v561 = vpop.f32.mrf.mxu0
      %v562 = vadd.f32 %v226, %v561
      %v563 = vpop.f32.mrf.mxu0
      %v564 = vpop.f32.mrf.mxu0
      %v565 = vadd.f32 %v226, %v564
      %v566 = vpop.f32.mrf.mxu0
      %567 = vmatprep.mubr.bf16.mxu0 0
      %568 = vmatmul.mubr.bf16.gmra.mxu0 %v391
      %v569 = vpop.f32.mrf.mxu0
      %v570 = vadd.f32 %v226, %v569
      %v571 = vpop.f32.mrf.mxu0
      %v572 = vpop.f32.mrf.mxu0
      %v573 = vadd.f32 %v226, %v572
      %v574 = vpop.f32.mrf.mxu0
      %575 = vmatprep.mubr.bf16.mxu0 0
      %576 = vmatmul.mubr.bf16.gmra.mxu0 %v394
      %v577 = vpop.f32.mrf.mxu0
      %v578 = vadd.f32 %v226, %v577
      %v579 = vpop.f32.mrf.mxu0
      %v580 = vpop.f32.mrf.mxu0
      %v581 = vadd.f32 %v226, %v580
      %v582 = vpop.f32.mrf.mxu0
      %583 = vmatprep.mubr.bf16.mxu0 0
      %584 = vmatmul.mubr.bf16.gmra.mxu0 %v397
      %v585 = vpop.f32.mrf.mxu0
      %v586 = vadd.f32 %v226, %v585
      %v587 = vpop.f32.mrf.mxu0
      %v588 = vpop.f32.mrf.mxu0
      %v589 = vadd.f32 %v226, %v588
      %v590 = vpop.f32.mrf.mxu0
      %591 = vmatprep.mubr.bf16.mxu0 0
      %592 = vmatmul.mubr.bf16.gmra.mxu0 %v400
      %v593 = vpop.f32.mrf.mxu0
      %v594 = vadd.f32 %v226, %v593
      %v595 = vpop.f32.mrf.mxu0
      %v596 = vpop.f32.mrf.mxu0
      %v597 = vadd.f32 %v226, %v596
      %v598 = vpop.f32.mrf.mxu0
      %599 = vmatprep.mubr.bf16.mxu0 0
      %600 = vmatmul.mubr.bf16.gmra.mxu0 %v403
      %v601 = vpop.f32.mrf.mxu0
      %v602 = vadd.f32 %v226, %v601
      %v603 = vpop.f32.mrf.mxu0
      %v604 = vpop.f32.mrf.mxu0
      %v605 = vadd.f32 %v226, %v604
      %v606 = vpop.f32.mrf.mxu0
      %607 = vmatprep.mubr.bf16.mxu0 0
      %608 = vmatmul.mubr.bf16.gmra.mxu0 %v406
      %v609 = vpop.f32.mrf.mxu0
      %v610 = vadd.f32 %v226, %v609
      %v611 = vpop.f32.mrf.mxu0
      %v612 = vpop.f32.mrf.mxu0
      %v613 = vadd.f32 %v226, %v612
      %v614 = vpop.f32.mrf.mxu0
      %615 = vdwg.mxu0
      %v616 = vmax.f32 %v450, 0.0
      %v617 = vmax.f32 %v453, 0.0
      %v618 = vmax.f32 %v458, 0.0
      %v619 = vmax.f32 %v461, 0.0
      %v620 = vmax.f32 %v466, 0.0
      %v621 = vmax.f32 %v469, 0.0
      %v622 = vmax.f32 %v474, 0.0
      %v623 = vmax.f32 %v477, 0.0
      %v624 = vmax.f32 %v482, 0.0
      %v625 = vmax.f32 %v485, 0.0
      %v626 = vmax.f32 %v490, 0.0
      %v627 = vmax.f32 %v493, 0.0
      %v628 = vmax.f32 %v498, 0.0
      %v629 = vmax.f32 %v501, 0.0
      %v630 = vmax.f32 %v506, 0.0
      %v631 = vmax.f32 %v509, 0.0
      %v632 = vmax.f32 %v514, 0.0
      %v633 = vmax.f32 %v517, 0.0
      %v634 = vmax.f32 %v522, 0.0
      %v635 = vmax.f32 %v525, 0.0
      %v636 = vmax.f32 %v530, 0.0
      %v637 = vmax.f32 %v533, 0.0
      %v638 = vmax.f32 %v538, 0.0
      %v639 = vmax.f32 %v541, 0.0
      %v640 = vmax.f32 %v546, 0.0
      %v641 = vmax.f32 %v549, 0.0
      %v642 = vmax.f32 %v554, 0.0
      %v643 = vmax.f32 %v557, 0.0
      %v644 = vmax.f32 %v562, 0.0
      %v645 = vmax.f32 %v565, 0.0
      %v646 = vmax.f32 %v570, 0.0
      %v647 = vmax.f32 %v573, 0.0
      %v648 = vmax.f32 %v578, 0.0
      %v649 = vmax.f32 %v581, 0.0
      %v650 = vmax.f32 %v586, 0.0
      %v651 = vmax.f32 %v589, 0.0
      %v652 = vmax.f32 %v594, 0.0
      %v653 = vmax.f32 %v597, 0.0
      %v654 = vmax.f32 %v602, 0.0
      %v655 = vmax.f32 %v605, 0.0
      %v656 = vmax.f32 %v610, 0.0
      %v657 = vmax.f32 %v613, 0.0
      %v658 = vpack.c.bf16 %v617, %v616
      %v659 = vpack.c.bf16 %v619, %v618
      %v660 = vpack.c.bf16 %v621, %v620
      %v661 = vpack.c.bf16 %v623, %v622
      %v662 = vpack.c.bf16 %v625, %v624
      %v663 = vpack.c.bf16 %v627, %v626
      %v664 = vpack.c.bf16 %v629, %v628
      %v665 = vpack.c.bf16 %v631, %v630
      %v666 = vpack.c.bf16 %v633, %v632
      %v667 = vpack.c.bf16 %v635, %v634
      %v668 = vpack.c.bf16 %v637, %v636
      %v669 = vpack.c.bf16 %v639, %v638
      %v670 = vpack.c.bf16 %v641, %v640
      %v671 = vpack.c.bf16 %v643, %v642
      %v672 = vpack.c.bf16 %v645, %v644
      %v673 = vpack.c.bf16 %v647, %v646
      %v674 = vpack.c.bf16 %v649, %v648
      %v675 = vpack.c.bf16 %v651, %v650
      %v676 = vpack.c.bf16 %v653, %v652
      %v677 = vpack.c.bf16 %v655, %v654
      %v678 = vpack.c.bf16 %v657, %v656
      %v700 = vunpack.c.l.b16 %v658
      %v701 = vunpack.c.h.b16 %v658
      %v702 = vunpack.c.l.b16 %v659
      %v703 = vunpack.c.h.b16 %v659
      %v704 = vunpack.c.l.b16 %v660
      %v705 = vunpack.c.h.b16 %v660
      %v706 = vunpack.c.l.b16 %v661
      %v707 = vunpack.c.h.b16 %v661
      %v708 = vunpack.c.l.b16 %v662
      %v709 = vunpack.c.h.b16 %v662
      %v710 = vunpack.c.l.b16 %v663
      %v711 = vunpack.c.h.b16 %v663
      %v712 = vunpack.c.l.b16 %v664
      %v713 = vunpack.c.h.b16 %v664
      %v714 = vunpack.c.l.b16 %v665
      %v715 = vunpack.c.h.b16 %v665
      %v716 = vunpack.c.l.b16 %v666
      %v717 = vunpack.c.h.b16 %v666
      %v718 = vunpack.c.l.b16 %v667
      %v719 = vunpack.c.h.b16 %v667
      %v720 = vunpack.c.l.b16 %v668
      %v721 = vunpack.c.h.b16 %v668
      %v722 = vunpack.c.l.b16 %v669
      %v723 = vunpack.c.h.b16 %v669
      %v724 = vunpack.c.l.b16 %v670
      %v725 = vunpack.c.h.b16 %v670
      %v726 = vunpack.c.l.b16 %v671
      %v727 = vunpack.c.h.b16 %v671
      %v728 = vunpack.c.l.b16 %v672
      %v729 = vunpack.c.h.b16 %v672
      %v730 = vunpack.c.l.b16 %v673
      %v731 = vunpack.c.h.b16 %v673
      %v732 = vunpack.c.l.b16 %v674
      %v733 = vunpack.c.h.b16 %v674
      %v734 = vunpack.c.l.b16 %v675
      %v735 = vunpack.c.h.b16 %v675
      %v736 = vunpack.c.l.b16 %v676
      %v737 = vunpack.c.h.b16 %v676
      %v738 = vunpack.c.l.b16 %v677
      %v739 = vunpack.c.h.b16 %v677
      %v740 = vunpack.c.l.b16 %v678
      %v741 = vunpack.c.h.b16 %v678
      %v742 = vpack.c.b16 %v700, %v700
      %v743 = vpack.c.b16 %v701, %v701
      %v744 = vpack.c.b16 %v702, %v702
      %v745 = vpack.c.b16 %v703, %v703
      %v746 = vpack.c.b16 %v704, %v704
      %v747 = vpack.c.b16 %v705, %v705
      %v748 = vpack.c.b16 %v706, %v706
      %v749 = vpack.c.b16 %v707, %v707
      %v750 = vpack.c.b16 %v708, %v708
      %v751 = vpack.c.b16 %v709, %v709
      %v752 = vpack.c.b16 %v710, %v710
      %v753 = vpack.c.b16 %v711, %v711
      %v754 = vpack.c.b16 %v712, %v712
      %v755 = vpack.c.b16 %v713, %v713
      %v756 = vpack.c.b16 %v714, %v714
      %v757 = vpack.c.b16 %v715, %v715
      %v758 = vpack.c.b16 %v716, %v716
      %v759 = vpack.c.b16 %v717, %v717
      %v760 = vpack.c.b16 %v718, %v718
      %v761 = vpack.c.b16 %v719, %v719
      %v762 = vpack.c.b16 %v720, %v720
      %v763 = vpack.c.b16 %v721, %v721
      %v764 = vpack.c.b16 %v722, %v722
      %v765 = vpack.c.b16 %v723, %v723
      %v766 = vpack.c.b16 %v724, %v724
      %v767 = vpack.c.b16 %v725, %v725
      %v768 = vpack.c.b16 %v726, %v726
      %v769 = vpack.c.b16 %v727, %v727
      %v770 = vpack.c.b16 %v728, %v728
      %v771 = vpack.c.b16 %v729, %v729
      %v772 = vpack.c.b16 %v730, %v730
      %v773 = vpack.c.b16 %v731, %v731
      %v774 = vpack.c.b16 %v732, %v732
      %v775 = vpack.c.b16 %v733, %v733
      %v776 = vpack.c.b16 %v734, %v734
      %v777 = vpack.c.b16 %v735, %v735
      %v778 = vpack.c.b16 %v736, %v736
      %v779 = vpack.c.b16 %v737, %v737
      %v780 = vpack.c.b16 %v738, %v738
      %v781 = vpack.c.b16 %v739, %v739
      %v782 = vpack.c.b16 %v740, %v740
      %v783 = vpack.c.b16 %v741, %v741
      %vm826 = vcmask 519168
      %827 = vst.msk [vmem:[%s172] sm:$0xf] %vm826, %v742
      %828 = vst.msk [vmem:[%s172 + $0x4] sm:$0xf] %vm826, %v743
      %829 = vst.msk [vmem:[%s172 + $0x8] sm:$0xf] %vm826, %v744
      %830 = vst.msk [vmem:[%s172 + $0xc] sm:$0xf] %vm826, %v745
      %831 = vst.msk [vmem:[%s172 + $0x10] sm:$0xf] %vm826, %v746
      %832 = vst.msk [vmem:[%s172 + $0x14] sm:$0xf] %vm826, %v747
      %833 = vst.msk [vmem:[%s172 + $0x18] sm:$0xf] %vm826, %v748
      %834 = vst.msk [vmem:[%s172 + $0x1c] sm:$0xf] %vm826, %v749
      %835 = vst.msk [vmem:[%s172 + $0x20] sm:$0xf] %vm826, %v750
      %836 = vst.msk [vmem:[%s172 + $0x24] sm:$0xf] %vm826, %v751
      %837 = vst.msk [vmem:[%s172 + $0x28] sm:$0xf] %vm826, %v752
      %838 = vst.msk [vmem:[%s172 + $0x2c] sm:$0xf] %vm826, %v753
      %839 = vst.msk [vmem:[%s172 + $0x30] sm:$0xf] %vm826, %v754
      %840 = vst.msk [vmem:[%s172 + $0x34] sm:$0xf] %vm826, %v755
      %841 = vst.msk [vmem:[%s172 + $0x38] sm:$0xf] %vm826, %v756
      %842 = vst.msk [vmem:[%s172 + $0x3c] sm:$0xf] %vm826, %v757
      %843 = vst.msk [vmem:[%s172 + $0x40] sm:$0xf] %vm826, %v758
      %844 = vst.msk [vmem:[%s172 + $0x44] sm:$0xf] %vm826, %v759
      %845 = vst.msk [vmem:[%s172 + $0x48] sm:$0xf] %vm826, %v760
      %846 = vst.msk [vmem:[%s172 + $0x4c] sm:$0xf] %vm826, %v761
      %847 = vst.msk [vmem:[%s172 + $0x50] sm:$0xf] %vm826, %v762
      %848 = vst.msk [vmem:[%s172 + $0x54] sm:$0xf] %vm826, %v763
      %849 = vst.msk [vmem:[%s172 + $0x58] sm:$0xf] %vm826, %v764
      %850 = vst.msk [vmem:[%s172 + $0x5c] sm:$0xf] %vm826, %v765
      %851 = vst.msk [vmem:[%s172 + $0x60] sm:$0xf] %vm826, %v766
      %852 = vst.msk [vmem:[%s172 + $0x64] sm:$0xf] %vm826, %v767
      %853 = vst.msk [vmem:[%s172 + $0x68] sm:$0xf] %vm826, %v768
      %854 = vst.msk [vmem:[%s172 + $0x6c] sm:$0xf] %vm826, %v769
      %855 = vst.msk [vmem:[%s172 + $0x70] sm:$0xf] %vm826, %v770
      %856 = vst.msk [vmem:[%s172 + $0x74] sm:$0xf] %vm826, %v771
      %857 = vst.msk [vmem:[%s172 + $0x78] sm:$0xf] %vm826, %v772
      %858 = vst.msk [vmem:[%s172 + $0x7c] sm:$0xf] %vm826, %v773
      %859 = vst.msk [vmem:[%s172 + $0x80] sm:$0xf] %vm826, %v774
      %860 = vst.msk [vmem:[%s172 + $0x84] sm:$0xf] %vm826, %v775
      %861 = vst.msk [vmem:[%s172 + $0x88] sm:$0xf] %vm826, %v776
      %862 = vst.msk [vmem:[%s172 + $0x8c] sm:$0xf] %vm826, %v777
      %863 = vst.msk [vmem:[%s172 + $0x90] sm:$0xf] %vm826, %v778
      %864 = vst.msk [vmem:[%s172 + $0x94] sm:$0xf] %vm826, %v779
      %865 = vst.msk [vmem:[%s172 + $0x98] sm:$0xf] %vm826, %v780
      %866 = vst.msk [vmem:[%s172 + $0x9c] sm:$0xf] %vm826, %v781
      %867 = vst.msk [vmem:[%s172 + $0xa0] sm:$0xf] %vm826, %v782
      %868 = vst.msk [vmem:[%s172 + $0xa4] sm:$0xf] %vm826, %v783
      %s869 = smul.u32 42, %s14
      %p870 = scmp.lt.s32.totalorder %s869, 587
      %s871 = scalar_select %p870, %s869, 587
      %s872 = smul.addr %s871, 4
      %s873 = scalar_lea.vmem %s3, %s872
      // Predicated region
      $region33: #{prefnet_forward.3} parent=31 // pred_check
        %p874 = pneg %p100
      $region34: #{prefnet_forward.3} parent=31 // pred_check_branch
        %876 = sbr.rel (%p874) target = $region36
      $region35: #{prefnet_forward.3} parent=31 // pred_region
        %s877 = smul.u32 42, %s14
      $region36: #{prefnet_forward.3} parent=31 // pred_fallthru
        _
    $region32: #{prefnet_forward.3} parent=5 // pred_fallthru
      _
    %p878 = scmp.le.s32.totalorder 2, %s9
    // Predicated region
    $region37: #{prefnet_forward.3} parent=5 // pred_check
      %p879 = pneg %p878
    $region38: #{prefnet_forward.3} parent=5 // pred_check_branch
      %881 = sbr.rel (%p879) target = $region40
    $region39: #{prefnet_forward.3} parent=5 // pred_region
      %s882 = ssub.s32 %s9, 2
      // Predicated region
      $region41: #{prefnet_forward.3} parent=39 // pred_check
        %p883 = pneg %p106
      $region42: #{prefnet_forward.3} parent=39 // pred_check_branch
        %885 = sbr.rel (%p883) target = $region44
      $region43: #{prefnet_forward.3} parent=39 // pred_region
        %s886 = smul.u32 42, %s15
        %p887 = scmp.lt.s32.totalorder %s886, 587
        %s888 = scalar_select %p887, %s886, 587
        %s889 = smul.addr %s888, 4
        %s890 = scalar_lea.vmem %s3, %s889
      $region44: #{prefnet_forward.3} parent=39 // pred_fallthru
        _
    $region40: #{prefnet_forward.3} parent=5 // pred_fallthru
      _
  $region6: #{prefnet_forward.3} parent=0 // loop_footer
    %s13 = sadd.s32 1, %s9
  $region7: #{prefnet_forward.3} parent=0 // loop_footer_branch
    %8 = sbr.rel target = $region3
  $region8: #{prefnet_forward.3} parent=0 // loop_exit
    _

// kernel: prefnet_forward.4
$region0: #{prefnet_forward.4}
  #allocation0 [shape = 'u32[]', space=smem, size = 0x4, offset = 0x4, fixed_abs, tag = 'smem constant byte address 0x4 - core index']
  #allocation1 [shape = 'u32[144,128]{1,0:T(1,128)}', space=vmem, size = 0x12000, scoped, tag = 'internal scratch']
  %s0 = inlined_call_operand.vmem [shape: bf16[1176,576], index: 0, kind: input, shape index: {}]
  %s1 = inlined_call_operand.vmem [shape: bf16[576,256], index: 1, kind: input, shape index: {}]
  %s2 = inlined_call_operand.vmem [shape: f32[1,256], index: 2, kind: input, shape index: {}]
  %s3 = inlined_call_operand.vmem [shape: bf16[256,128], index: 3, kind: input, shape index: {}]
  %s4 = inlined_call_operand.vmem [shape: f32[1,128], index: 4, kind: input, shape index: {}]
  %s5 = inlined_call_operand.vmem [shape: bf16[128,128], index: 5, kind: input, shape index: {}]
  %s6 = inlined_call_operand.vmem [shape: f32[1,128], index: 6, kind: input, shape index: {}]
  %s7 = inlined_call_operand.vmem [shape: bf16[1176,128], index: 7, kind: output, shape index: {}]
  %s8 = sld [smem:[#allocation0]]
  $region61: #{prefnet_forward.4} parent=0
    _
  %s10 = ssub.s32 1, %s8
  %s11 = scalar_select 0, %s10, %s8
  loop: start=0, step=1, limit=5
  $region2: #{prefnet_forward.4} parent=0 // loop_pre_header
    _
  $region3: #{prefnet_forward.4} parent=0 // loop_header
    %s13 = sphi 0, %s17
    %p14 = scmp.ge.s32.totalorder %s13, 5
    %s23 = sphi 0, %s25
    %s26 = sphi 0, %s23
    %s27 = sphi 0, %s26
    %s43 = sphi 0, %s27
    %s47 = sphi 0, %s47
    %s49 = sphi 0, %s47
    %s50 = sphi 0, %s49
    %s64 = sphi 0, %s50
    %s68 = sphi 0, %s68
    %s70 = sphi 0, %s68
    %s71 = sphi 0, %s70
    %s85 = sphi 0, %s71
    %s89 = sphi 0, %s89
    %s91 = sphi 0, %s89
    %s92 = sphi 0, %s91
    %s106 = sphi 0, %s92
    %s110 = sphi 0, %s110
    %s112 = sphi 0, %s110
    %s113 = sphi 0, %s112
    %s127 = sphi 0, %s113
    %s131 = sphi 0, %s131
    %s133 = sphi 0, %s131
    %s134 = sphi 0, %s133
    %s148 = sphi 0, %s134
    %s152 = sphi 0, %s152
    %s154 = sphi 0, %s152
    %s155 = sphi 0, %s154
    %s169 = sphi 0, %s155
    %s175 = sphi 0, %s177
    %s178 = sphi 0, %s175
    %s179 = sphi 0, %s178
    %s195 = sphi 0, %s179
  $region4: #{prefnet_forward.4} parent=0 // loop_header_branch
    %16 = sbr.rel (%p14) target = $region8
  $region5: #{prefnet_forward.4} parent=0 // loop_body
    %s18 = ssub.s32 %s13, 1
    %s19 = ssub.s32 %s13, 2
    %s20 = sadd.s32 %s13, 1
    %s21 = ssub.s32 %s13, %s20
    %p22 = scmp.eq.s32.totalorder %s21, 0
    %s24 = sadd.s32 %s23, 1
    %s25 = scalar_select %p22, %s23, %s24
    %p28 = pneg %p22
    %p29 = scmp.eq.s32.totalorder %s13, 2
    %p30 = por %p28, %p29
    %p31 = scmp.ne.s32.totalorder %s23, %s26
    %p32 = scmp.eq.s32.totalorder %s13, 0
    %p33 = por %p31, %p32
    %p34 = scmp.ne.s32.totalorder %s23, %s26
    %p35 = scmp.eq.s32.totalorder %s18, 2
    %p36 = por %p34, %p35
    %p37 = scmp.ne.s32.totalorder %s26, %s27
    %p38 = scmp.eq.s32.totalorder %s18, 0
    %p39 = por %p37, %p38
    %p40 = scmp.ne.s32.totalorder %s26, %s27
    %p41 = scmp.eq.s32.totalorder %s19, 2
    %p42 = por %p40, %p41
    %p44 = scmp.ne.s32.totalorder %s27, %s43
    %p45 = scmp.eq.s32.totalorder %s19, 0
    %p46 = por %p44, %p45
    %s48 = sadd.s32 %s47, 1
    %p51 = scmp.eq.s32.totalorder %s13, 2
    %p52 = scmp.ne.s32.totalorder %s47, %s49
    %p53 = scmp.eq.s32.totalorder %s13, 0
    %p54 = por %p52, %p53
    %p55 = scmp.ne.s32.totalorder %s47, %s49
    %p56 = scmp.eq.s32.totalorder %s18, 2
    %p57 = por %p55, %p56
    %p58 = scmp.ne.s32.totalorder %s49, %s50
    %p59 = scmp.eq.s32.totalorder %s18, 0
    %p60 = por %p58, %p59
    %p61 = scmp.ne.s32.totalorder %s49, %s50
    %p62 = scmp.eq.s32.totalorder %s19, 2
    %p63 = por %p61, %p62
    %p65 = scmp.ne.s32.totalorder %s50, %s64
    %p66 = scmp.eq.s32.totalorder %s19, 0
    %p67 = por %p65, %p66
    %s69 = sadd.s32 %s68, 1
    %p72 = scmp.eq.s32.totalorder %s13, 2
    %p73 = scmp.ne.s32.totalorder %s68, %s70
    %p74 = scmp.eq.s32.totalorder %s13, 0
    %p75 = por %p73, %p74
    %p76 = scmp.ne.s32.totalorder %s68, %s70
    %p77 = scmp.eq.s32.totalorder %s18, 2
    %p78 = por %p76, %p77
    %p79 = scmp.ne.s32.totalorder %s70, %s71
    %p80 = scmp.eq.s32.totalorder %s18, 0
    %p81 = por %p79, %p80
    %p82 = scmp.ne.s32.totalorder %s70, %s71
    %p83 = scmp.eq.s32.totalorder %s19, 2
    %p84 = por %p82, %p83
    %p86 = scmp.ne.s32.totalorder %s71, %s85
    %p87 = scmp.eq.s32.totalorder %s19, 0
    %p88 = por %p86, %p87
    %s90 = sadd.s32 %s89, 1
    %p93 = scmp.eq.s32.totalorder %s13, 2
    %p94 = scmp.ne.s32.totalorder %s89, %s91
    %p95 = scmp.eq.s32.totalorder %s13, 0
    %p96 = por %p94, %p95
    %p97 = scmp.ne.s32.totalorder %s89, %s91
    %p98 = scmp.eq.s32.totalorder %s18, 2
    %p99 = por %p97, %p98
    %p100 = scmp.ne.s32.totalorder %s91, %s92
    %p101 = scmp.eq.s32.totalorder %s18, 0
    %p102 = por %p100, %p101
    %p103 = scmp.ne.s32.totalorder %s91, %s92
    %p104 = scmp.eq.s32.totalorder %s19, 2
    %p105 = por %p103, %p104
    %p107 = scmp.ne.s32.totalorder %s92, %s106
    %p108 = scmp.eq.s32.totalorder %s19, 0
    %p109 = por %p107, %p108
    %s111 = sadd.s32 %s110, 1
    %p114 = scmp.eq.s32.totalorder %s13, 2
    %p115 = scmp.ne.s32.totalorder %s110, %s112
    %p116 = scmp.eq.s32.totalorder %s13, 0
    %p117 = por %p115, %p116
    %p118 = scmp.ne.s32.totalorder %s110, %s112
    %p119 = scmp.eq.s32.totalorder %s18, 2
    %p120 = por %p118, %p119
    %p121 = scmp.ne.s32.totalorder %s112, %s113
    %p122 = scmp.eq.s32.totalorder %s18, 0
    %p123 = por %p121, %p122
    %p124 = scmp.ne.s32.totalorder %s112, %s113
    %p125 = scmp.eq.s32.totalorder %s19, 2
    %p126 = por %p124, %p125
    %p128 = scmp.ne.s32.totalorder %s113, %s127
    %p129 = scmp.eq.s32.totalorder %s19, 0
    %p130 = por %p128, %p129
    %s132 = sadd.s32 %s131, 1
    %p135 = scmp.eq.s32.totalorder %s13, 2
    %p136 = scmp.ne.s32.totalorder %s131, %s133
    %p137 = scmp.eq.s32.totalorder %s13, 0
    %p138 = por %p136, %p137
    %p139 = scmp.ne.s32.totalorder %s131, %s133
    %p140 = scmp.eq.s32.totalorder %s18, 2
    %p141 = por %p139, %p140
    %p142 = scmp.ne.s32.totalorder %s133, %s134
    %p143 = scmp.eq.s32.totalorder %s18, 0
    %p144 = por %p142, %p143
    %p145 = scmp.ne.s32.totalorder %s133, %s134
    %p146 = scmp.eq.s32.totalorder %s19, 2
    %p147 = por %p145, %p146
    %p149 = scmp.ne.s32.totalorder %s134, %s148
    %p150 = scmp.eq.s32.totalorder %s19, 0
    %p151 = por %p149, %p150
    %s153 = sadd.s32 %s152, 1
    %p156 = scmp.eq.s32.totalorder %s13, 2
    %p157 = scmp.ne.s32.totalorder %s152, %s154
    %p158 = scmp.eq.s32.totalorder %s13, 0
    %p159 = por %p157, %p158
    %p160 = scmp.ne.s32.totalorder %s152, %s154
    %p161 = scmp.eq.s32.totalorder %s18, 2
    %p162 = por %p160, %p161
    %p163 = scmp.ne.s32.totalorder %s154, %s155
    %p164 = scmp.eq.s32.totalorder %s18, 0
    %p165 = por %p163, %p164
    %p166 = scmp.ne.s32.totalorder %s154, %s155
    %p167 = scmp.eq.s32.totalorder %s19, 2
    %p168 = por %p166, %p167
    %p170 = scmp.ne.s32.totalorder %s155, %s169
    %p171 = scmp.eq.s32.totalorder %s19, 0
    %p172 = por %p170, %p171
    %s173 = ssub.s32 %s13, %s20
    %p174 = scmp.eq.s32.totalorder %s173, 0
    %s176 = sadd.s32 %s175, 1
    %s177 = scalar_select %p174, %s175, %s176
    %p180 = pneg %p174
    %p181 = scmp.eq.s32.totalorder %s13, 2
    %p182 = por %p180, %p181
    %p183 = scmp.ne.s32.totalorder %s175, %s178
    %p184 = scmp.eq.s32.totalorder %s13, 0
    %p185 = por %p183, %p184
    %p186 = scmp.ne.s32.totalorder %s175, %s178
    %p187 = scmp.eq.s32.totalorder %s18, 2
    %p188 = por %p186, %p187
    %p189 = scmp.ne.s32.totalorder %s178, %s179
    %p190 = scmp.eq.s32.totalorder %s18, 0
    %p191 = por %p189, %p190
    %p192 = scmp.ne.s32.totalorder %s178, %s179
    %p193 = scmp.eq.s32.totalorder %s19, 2
    %p194 = por %p192, %p193
    %p196 = scmp.ne.s32.totalorder %s179, %s195
    %p197 = scmp.eq.s32.totalorder %s19, 0
    %p198 = por %p196, %p197
    %p199 = scmp.le.s32.totalorder 1, %s13
    %p200 = scmp.lt.s32.totalorder %s13, 4
    %p201 = pnand %p199, %p200
    %p202 = pneg %p201
    // Predicated region
    $region9: #{prefnet_forward.4} parent=5 // pred_check
      _
    $region10: #{prefnet_forward.4} parent=5 // pred_check_branch
      %204 = sbr.rel (%p201) target = $region12
    $region11: #{prefnet_forward.4} parent=5 // pred_region
      %s205 = ssub.s32 %s13, 1
      // Predicated region
      $region13: #{prefnet_forward.4} parent=11 // pred_check
        %p206 = pneg %p60
      $region14: #{prefnet_forward.4} parent=11 // pred_check_branch
        %208 = sbr.rel (%p206) target = $region16
      $region15: #{prefnet_forward.4} parent=11 // pred_region
        _
      $region16: #{prefnet_forward.4} parent=11 // pred_fallthru
        _
      // Predicated region
      $region17: #{prefnet_forward.4} parent=11 // pred_check
        %p209 = pneg %p81
      $region18: #{prefnet_forward.4} parent=11 // pred_check_branch
        %211 = sbr.rel (%p209) target = $region20
      $region19: #{prefnet_forward.4} parent=11 // pred_region
        _
      $region20: #{prefnet_forward.4} parent=11 // pred_fallthru
        _
      // Predicated region
      $region21: #{prefnet_forward.4} parent=11 // pred_check
        %p212 = pneg %p102
      $region22: #{prefnet_forward.4} parent=11 // pred_check_branch
        %214 = sbr.rel (%p212) target = $region24
      $region23: #{prefnet_forward.4} parent=11 // pred_region
        _
      $region24: #{prefnet_forward.4} parent=11 // pred_fallthru
        _
      // Predicated region
      $region25: #{prefnet_forward.4} parent=11 // pred_check
        %p215 = pneg %p123
      $region26: #{prefnet_forward.4} parent=11 // pred_check_branch
        %217 = sbr.rel (%p215) target = $region28
      $region27: #{prefnet_forward.4} parent=11 // pred_region
        _
      $region28: #{prefnet_forward.4} parent=11 // pred_fallthru
        _
      // Predicated region
      $region29: #{prefnet_forward.4} parent=11 // pred_check
        %p218 = pneg %p144
      $region30: #{prefnet_forward.4} parent=11 // pred_check_branch
        %220 = sbr.rel (%p218) target = $region32
      $region31: #{prefnet_forward.4} parent=11 // pred_region
        _
      $region32: #{prefnet_forward.4} parent=11 // pred_fallthru
        _
      // Predicated region
      $region33: #{prefnet_forward.4} parent=11 // pred_check
        %p221 = pneg %p165
      $region34: #{prefnet_forward.4} parent=11 // pred_check_branch
        %223 = sbr.rel (%p221) target = $region36
      $region35: #{prefnet_forward.4} parent=11 // pred_region
        _
      $region36: #{prefnet_forward.4} parent=11 // pred_fallthru
        _
    $region12: #{prefnet_forward.4} parent=5 // pred_fallthru
      _
    %p224 = scmp.lt.s32.totalorder %s13, 3
    // Predicated region
    $region37: #{prefnet_forward.4} parent=5 // pred_check
      %p225 = pneg %p224
    $region38: #{prefnet_forward.4} parent=5 // pred_check_branch
      %227 = sbr.rel (%p225) target = $region40
    $region39: #{prefnet_forward.4} parent=5 // pred_region
      // Predicated region
      $region41: #{prefnet_forward.4} parent=39 // pred_check
        %p228 = pneg %p33
      $region42: #{prefnet_forward.4} parent=39 // pred_check_branch
        %230 = sbr.rel (%p228) target = $region44
      $region43: #{prefnet_forward.4} parent=39 // pred_region
        %s231 = smul.u32 49, %s13
        %p232 = scmp.lt.s32.totalorder %s231, 146
        %s233 = scalar_select %p232, %s231, 146
        %s234 = smul.addr %s233, 5
        %s235 = smul.addr %s234, 4
        %s236 = scalar_lea.vmem %s0, %s235
        %s237 = smul.u32 49, %s13
      $region44: #{prefnet_forward.4} parent=39 // pred_fallthru
        _
    $region40: #{prefnet_forward.4} parent=5 // pred_fallthru
      _
    %p238 = scmp.le.s32.totalorder 1, %s13
    %p239 = scmp.lt.s32.totalorder %s13, 4
    %p240 = pnand %p238, %p239
    %p241 = pneg %p240
    // Predicated region
    $region45: #{prefnet_forward.4} parent=5 // pred_check
      _
    $region46: #{prefnet_forward.4} parent=5 // pred_check_branch
      %243 = sbr.rel (%p240) target = $region48
    $region47: #{prefnet_forward.4} parent=5 // pred_region
      %s244 = ssub.s32 %s13, 1
      %s245 = smul.u32 49, %s18
      %p246 = scmp.lt.s32.totalorder %s245, 146
      %s247 = scalar_select %p246, %s245, 146
      %s248 = smul.addr %s247, 5
      %s249 = smul.addr %s248, 4
      %s250 = scalar_lea.vmem %s0, %s249
      %p251 = pneg %p39
      %p252 = pneg %p36
      %p253 = pneg %p60
      %p254 = pneg %p57
      %p255 = pneg %p81
      %p256 = pneg %p78
      %p257 = pneg %p102
      %p258 = pneg %p99
      %p259 = pneg %p123
      %p260 = pneg %p120
      %p261 = pneg %p144
      %p262 = pneg %p141
      %p263 = pneg %p165
      %p264 = pneg %p162
      %p265 = pneg %p191
      %p266 = pneg %p188
      %s267 = smul.u32 49, %s18
      %p268 = scmp.lt.s32.totalorder %s267, 146
      %s269 = scalar_select %p268, %s267, 146
      %s270 = smul.addr %s269, 4
      %s271 = scalar_lea.vmem %s7, %s270
      %s272 = smul.u32 49, %s18
      %p273 = scmp.lt.s32.totalorder %s272, 146
      %s274 = scalar_select %p273, %s272, 146
      %s275 = smul.addr %s274, 5
      %s276 = smul.addr %s275, 4
      %s277 = scalar_lea.vmem %s0, %s276
      %s278 = smul.u32 49, %s18
      %s279 = smul.u32 49, %s18
      %p280 = scmp.lt.s32.totalorder %s279, 146
      %s281 = scalar_select %p280, %s279, 146
      %s282 = smul.addr %s281, 4
      %s283 = scalar_lea.vmem %s7, %s282
      %s284 = smul.u32 49, %s18
      %v286 = vld [vmem:[%s277] sm:$0xff]
      %v287 = vld [vmem:[%s277 + $0x8] sm:$0xff]
      %v288 = vld [vmem:[%s277 + $0x10] sm:$0xf]
      %v289 = vld [vmem:[%s277 + $0x14] sm:$0xff]
      %v290 = vld [vmem:[%s277 + $0x1c] sm:$0xff]
      %v291 = vld [vmem:[%s277 + $0x24] sm:$0xf]
      %v292 = vld [vmem:[%s277 + $0x28] sm:$0xff]
      %v293 = vld [vmem:[%s277 + $0x30] sm:$0xff]
      %v294 = vld [vmem:[%s277 + $0x38] sm:$0xf]
      %v295 = vld [vmem:[%s277 + $0x3c] sm:$0xff]
      %v296 = vld [vmem:[%s277 + $0x44] sm:$0xff]
      %v297 = vld [vmem:[%s277 + $0x4c] sm:$0xf]
      %v298 = vld [vmem:[%s277 + $0x50] sm:$0xff]
      %v299 = vld [vmem:[%s277 + $0x58] sm:$0xff]
      %v300 = vld [vmem:[%s277 + $0x60] sm:$0xf]
      %v301 = vld [vmem:[%s277 + $0x64] sm:$0xff]
      %v302 = vld [vmem:[%s277 + $0x6c] sm:$0xff]
      %v303 = vld [vmem:[%s277 + $0x74] sm:$0xf]
      %v304 = vld [vmem:[%s277 + $0x78] sm:$0xff]
      %v305 = vld [vmem:[%s277 + $0x80] sm:$0xff]
      %v306 = vld [vmem:[%s277 + $0x88] sm:$0xf]
      %v307 = vld [vmem:[%s277 + $0x8c] sm:$0xff]
      %v308 = vld [vmem:[%s277 + $0x94] sm:$0xff]
      %v309 = vld [vmem:[%s277 + $0x9c] sm:$0xf]
      %v310 = vld [vmem:[%s277 + $0xa0] sm:$0xff]
      %v311 = vld [vmem:[%s277 + $0xa8] sm:$0xff]
      %v312 = vld [vmem:[%s277 + $0xb0] sm:$0xf]
      %v313 = vld [vmem:[%s277 + $0xb4] sm:$0xff]
      %v314 = vld [vmem:[%s277 + $0xbc] sm:$0xff]
      %v315 = vld [vmem:[%s277 + $0xc4] sm:$0xf]
      %v316 = vld [vmem:[%s277 + $0xc8] sm:$0xff]
      %v317 = vld [vmem:[%s277 + $0xd0] sm:$0xff]
      %v318 = vld [vmem:[%s277 + $0xd8] sm:$0xf]
      %v319 = vld [vmem:[%s277 + $0xdc] sm:$0xff]
      %v320 = vld [vmem:[%s277 + $0xe4] sm:$0xff]
      %v321 = vld [vmem:[%s277 + $0xec] sm:$0xf]
      %v322 = vld [vmem:[%s277 + $0xf0] sm:$0xff]
      %v323 = vld [vmem:[%s277 + $0xf8] sm:$0xff]
      %v324 = vld [vmem:[%s277 + $0x100] sm:$0xf]
      %v325 = vld [vmem:[%s277 + $0x104] sm:$0xff]
      %v326 = vld [vmem:[%s277 + $0x10c] sm:$0xff]
      %v327 = vld [vmem:[%s277 + $0x114] sm:$0xf]
      %v328 = vld [vmem:[%s277 + $0x118] sm:$0xff]
      %v329 = vld [vmem:[%s277 + $0x120] sm:$0xff]
      %v330 = vld [vmem:[%s277 + $0x128] sm:$0xf]
      %v331 = vld [vmem:[%s277 + $0x12c] sm:$0xff]
      %v332 = vld [vmem:[%s277 + $0x134] sm:$0xff]
      %v333 = vld [vmem:[%s277 + $0x13c] sm:$0xf]
      %v334 = vld [vmem:[%s277 + $0x140] sm:$0xff]
      %v335 = vld [vmem:[%s277 + $0x148] sm:$0xff]
      %v336 = vld [vmem:[%s277 + $0x150] sm:$0xf]
      %v337 = vld [vmem:[%s277 + $0x154] sm:$0xff]
      %v338 = vld [vmem:[%s277 + $0x15c] sm:$0xff]
      %v339 = vld [vmem:[%s277 + $0x164] sm:$0xf]
      %v340 = vld [vmem:[%s277 + $0x168] sm:$0xff]
      %v341 = vld [vmem:[%s277 + $0x170] sm:$0xff]
      %v342 = vld [vmem:[%s277 + $0x178] sm:$0xf]
      %v343 = vld [vmem:[%s277 + $0x17c] sm:$0xff]
      %v344 = vld [vmem:[%s277 + $0x184] sm:$0xff]
      %v345 = vld [vmem:[%s277 + $0x18c] sm:$0xf]
      %v346 = vld [vmem:[%s277 + $0x190] sm:$0xff]
      %v347 = vld [vmem:[%s277 + $0x198] sm:$0xff]
      %v348 = vld [vmem:[%s277 + $0x1a0] sm:$0xf]
      %v349 = vld [vmem:[%s277 + $0x1a4] sm:$0xff]
      %v350 = vld [vmem:[%s277 + $0x1ac] sm:$0xff]
      %v351 = vld [vmem:[%s277 + $0x1b4] sm:$0xf]
      %v352 = vld [vmem:[%s277 + $0x1b8] sm:$0xff]
      %v353 = vld [vmem:[%s277 + $0x1c0] sm:$0xff]
      %v354 = vld [vmem:[%s277 + $0x1c8] sm:$0xf]
      %v355 = vld [vmem:[%s277 + $0x1cc] sm:$0xff]
      %v356 = vld [vmem:[%s277 + $0x1d4] sm:$0xff]
      %v357 = vld [vmem:[%s277 + $0x1dc] sm:$0xf]
      %v358 = vld [vmem:[%s277 + $0x1e0] sm:$0xff]
      %v359 = vld [vmem:[%s277 + $0x1e8] sm:$0xff]
      %v360 = vld [vmem:[%s277 + $0x1f0] sm:$0xf]
      %v361 = vld [vmem:[%s277 + $0x1f4] sm:$0xff]
      %v362 = vld [vmem:[%s277 + $0x1fc] sm:$0xff]
      %v363 = vld [vmem:[%s277 + $0x204] sm:$0xf]
      %v364 = vld [vmem:[%s277 + $0x208] sm:$0xff]
      %v365 = vld [vmem:[%s277 + $0x210] sm:$0xff]
      %v366 = vld [vmem:[%s277 + $0x218] sm:$0xf]
      %v367 = vld [vmem:[%s277 + $0x21c] sm:$0xff]
      %v368 = vld [vmem:[%s277 + $0x224] sm:$0xff]
      %v369 = vld [vmem:[%s277 + $0x22c] sm:$0xf]
      %v370 = vld [vmem:[%s277 + $0x230] sm:$0xff]
      %v371 = vld [vmem:[%s277 + $0x238] sm:$0xff]
      %v372 = vld [vmem:[%s277 + $0x240] sm:$0xf]
      %v373 = vld [vmem:[%s277 + $0x244] sm:$0xff]
      %v374 = vld [vmem:[%s277 + $0x24c] sm:$0xff]
      %v375 = vld [vmem:[%s277 + $0x254] sm:$0xf]
      %v376 = vld [vmem:[%s277 + $0x258] sm:$0xff]
      %v377 = vld [vmem:[%s277 + $0x260] sm:$0xff]
      %v378 = vld [vmem:[%s277 + $0x268] sm:$0xf]
      %v379 = vld [vmem:[%s277 + $0x26c] sm:$0xff]
      %v380 = vld [vmem:[%s277 + $0x274] sm:$0xff]
      %v381 = vld [vmem:[%s277 + $0x27c] sm:$0xf]
      %v382 = vld [vmem:[%s277 + $0x280] sm:$0xff]
      %v383 = vld [vmem:[%s277 + $0x288] sm:$0xff]
      %v384 = vld [vmem:[%s277 + $0x290] sm:$0xf]
      %v385 = vld [vmem:[%s277 + $0x294] sm:$0xff]
      %v386 = vld [vmem:[%s277 + $0x29c] sm:$0xff]
      %v387 = vld [vmem:[%s277 + $0x2a4] sm:$0xf]
      %v388 = vld [vmem:[%s277 + $0x2a8] sm:$0xff]
      %v389 = vld [vmem:[%s277 + $0x2b0] sm:$0xff]
      %v390 = vld [vmem:[%s277 + $0x2b8] sm:$0xf]
      %v391 = vld [vmem:[%s277 + $0x2bc] sm:$0xff]
      %v392 = vld [vmem:[%s277 + $0x2c4] sm:$0xff]
      %v393 = vld [vmem:[%s277 + $0x2cc] sm:$0xf]
      %v394 = vld [vmem:[%s277 + $0x2d0] sm:$0xff]
      %v395 = vld [vmem:[%s277 + $0x2d8] sm:$0xff]
      %v396 = vld [vmem:[%s277 + $0x2e0] sm:$0xf]
      %v397 = vld [vmem:[%s277 + $0x2e4] sm:$0xff]
      %v398 = vld [vmem:[%s277 + $0x2ec] sm:$0xff]
      %v399 = vld [vmem:[%s277 + $0x2f4] sm:$0xf]
      %v400 = vld [vmem:[%s277 + $0x2f8] sm:$0xff]
      %v401 = vld [vmem:[%s277 + $0x300] sm:$0xff]
      %v402 = vld [vmem:[%s277 + $0x308] sm:$0xf]
      %v403 = vld [vmem:[%s277 + $0x30c] sm:$0xff]
      %v404 = vld [vmem:[%s277 + $0x314] sm:$0xff]
      %v405 = vld [vmem:[%s277 + $0x31c] sm:$0xf]
      %v406 = vld [vmem:[%s277 + $0x320] sm:$0xff]
      %v407 = vld [vmem:[%s277 + $0x328] sm:$0xff]
      %v408 = vld [vmem:[%s277 + $0x330] sm:$0xf]
      %v409 = vld [vmem:[%s277 + $0x334] sm:$0xff]
      %v410 = vld [vmem:[%s277 + $0x33c] sm:$0xff]
      %v411 = vld [vmem:[%s277 + $0x344] sm:$0xf]
      %v412 = vld [vmem:[%s277 + $0x348] sm:$0xff]
      %v413 = vld [vmem:[%s277 + $0x350] sm:$0xff]
      %v414 = vld [vmem:[%s277 + $0x358] sm:$0xf]
      %v415 = vld [vmem:[%s277 + $0x35c] sm:$0xff]
      %v416 = vld [vmem:[%s277 + $0x364] sm:$0xff]
      %v417 = vld [vmem:[%s277 + $0x36c] sm:$0xf]
      %v418 = vld [vmem:[%s277 + $0x370] sm:$0xff]
      %v419 = vld [vmem:[%s277 + $0x378] sm:$0xff]
      %v420 = vld [vmem:[%s277 + $0x380] sm:$0xf]
      %v421 = vld [vmem:[%s277 + $0x384] sm:$0xff]
      %v422 = vld [vmem:[%s277 + $0x38c] sm:$0xff]
      %v423 = vld [vmem:[%s277 + $0x394] sm:$0xf]
      %v424 = vld [vmem:[%s277 + $0x398] sm:$0xff]
      %v425 = vld [vmem:[%s277 + $0x3a0] sm:$0xff]
      %v426 = vld [vmem:[%s277 + $0x3a8] sm:$0xf]
      %v427 = vld [vmem:[%s277 + $0x3ac] sm:$0xff]
      %v428 = vld [vmem:[%s277 + $0x3b4] sm:$0xff]
      %v429 = vld [vmem:[%s277 + $0x3bc] sm:$0xf]
      %v430 = vld [vmem:[%s277 + $0x3c0] sm:$0xff]
      %v431 = vld [vmem:[%s277 + $0x3c8] sm:$0xff]
      %v432 = vld [vmem:[%s277 + $0x3d0] sm:$0xf]
      %v433 = vld [vmem:[%s1] sm:$0xff]
      %v434 = vld [vmem:[%s1 + $0x8] sm:$0xff]
      %v435 = vld [vmem:[%s1 + $0x10] sm:$0xff]
      %v436 = vld [vmem:[%s1 + $0x18] sm:$0xff]
      %v437 = vld [vmem:[%s1 + $0x20] sm:$0xff]
      %v438 = vld [vmem:[%s1 + $0x28] sm:$0xff]
      %v439 = vld [vmem:[%s1 + $0x30] sm:$0xff]
      %v440 = vld [vmem:[%s1 + $0x38] sm:$0xff]
      %v441 = vld [vmem:[%s1 + $0x40] sm:$0xff]
      %v442 = vld [vmem:[%s1 + $0x48] sm:$0xff]
      %v443 = vld [vmem:[%s1 + $0x50] sm:$0xff]
      %v444 = vld [vmem:[%s1 + $0x58] sm:$0xff]
      %v445 = vld [vmem:[%s1 + $0x60] sm:$0xff]
      %v446 = vld [vmem:[%s1 + $0x68] sm:$0xff]
      %v447 = vld [vmem:[%s1 + $0x70] sm:$0xff]
      %v448 = vld [vmem:[%s1 + $0x78] sm:$0xff]
      %v449 = vld [vmem:[%s1 + $0x80] sm:$0xff]
      %v450 = vld [vmem:[%s1 + $0x88] sm:$0xff]
      %v451 = vld [vmem:[%s1 + $0x90] sm:$0xff]
      %v452 = vld [vmem:[%s1 + $0x98] sm:$0xff]
      %v453 = vld [vmem:[%s1 + $0xa0] sm:$0xff]
      %v454 = vld [vmem:[%s1 + $0xa8] sm:$0xff]
      %v455 = vld [vmem:[%s1 + $0xb0] sm:$0xff]
      %v456 = vld [vmem:[%s1 + $0xb8] sm:$0xff]
      %v457 = vld [vmem:[%s1 + $0xc0] sm:$0xff]
      %v458 = vld [vmem:[%s1 + $0xc8] sm:$0xff]
      %v459 = vld [vmem:[%s1 + $0xd0] sm:$0xff]
      %v460 = vld [vmem:[%s1 + $0xd8] sm:$0xff]
      %v461 = vld [vmem:[%s1 + $0xe0] sm:$0xff]
      %v462 = vld [vmem:[%s1 + $0xe8] sm:$0xff]
      %v463 = vld [vmem:[%s1 + $0xf0] sm:$0xff]
      %v464 = vld [vmem:[%s1 + $0xf8] sm:$0xff]
      %v465 = vld [vmem:[%s1 + $0x100] sm:$0xff]
      %v466 = vld [vmem:[%s1 + $0x108] sm:$0xff]
      %v467 = vld [vmem:[%s1 + $0x110] sm:$0xff]
      %v468 = vld [vmem:[%s1 + $0x118] sm:$0xff]
      %v469 = vld [vmem:[%s1 + $0x120] sm:$0xff]
      %v470 = vld [vmem:[%s1 + $0x128] sm:$0xff]
      %v471 = vld [vmem:[%s1 + $0x130] sm:$0xff]
      %v472 = vld [vmem:[%s1 + $0x138] sm:$0xff]
      %v473 = vld [vmem:[%s1 + $0x140] sm:$0xff]
      %v474 = vld [vmem:[%s1 + $0x148] sm:$0xff]
      %v475 = vld [vmem:[%s1 + $0x150] sm:$0xff]
      %v476 = vld [vmem:[%s1 + $0x158] sm:$0xff]
      %v477 = vld [vmem:[%s1 + $0x160] sm:$0xff]
      %v478 = vld [vmem:[%s1 + $0x168] sm:$0xff]
      %v479 = vld [vmem:[%s1 + $0x170] sm:$0xff]
      %v480 = vld [vmem:[%s1 + $0x178] sm:$0xff]
      %v481 = vld [vmem:[%s1 + $0x180] sm:$0xff]
      %v482 = vld [vmem:[%s1 + $0x188] sm:$0xff]
      %v483 = vld [vmem:[%s1 + $0x190] sm:$0xff]
      %v484 = vld [vmem:[%s1 + $0x198] sm:$0xff]
      %v485 = vld [vmem:[%s1 + $0x1a0] sm:$0xff]
      %v486 = vld [vmem:[%s1 + $0x1a8] sm:$0xff]
      %v487 = vld [vmem:[%s1 + $0x1b0] sm:$0xff]
      %v488 = vld [vmem:[%s1 + $0x1b8] sm:$0xff]
      %v489 = vld [vmem:[%s1 + $0x1c0] sm:$0xff]
      %v490 = vld [vmem:[%s1 + $0x1c8] sm:$0xff]
      %v491 = vld [vmem:[%s1 + $0x1d0] sm:$0xff]
      %v492 = vld [vmem:[%s1 + $0x1d8] sm:$0xff]
      %v493 = vld [vmem:[%s1 + $0x1e0] sm:$0xff]
      %v494 = vld [vmem:[%s1 + $0x1e8] sm:$0xff]
      %v495 = vld [vmem:[%s1 + $0x1f0] sm:$0xff]
      %v496 = vld [vmem:[%s1 + $0x1f8] sm:$0xff]
      %v497 = vld [vmem:[%s1 + $0x200] sm:$0xff]
      %v498 = vld [vmem:[%s1 + $0x208] sm:$0xff]
      %v499 = vld [vmem:[%s1 + $0x210] sm:$0xff]
      %v500 = vld [vmem:[%s1 + $0x218] sm:$0xff]
      %v501 = vld [vmem:[%s1 + $0x220] sm:$0xff]
      %v502 = vld [vmem:[%s1 + $0x228] sm:$0xff]
      %v503 = vld [vmem:[%s1 + $0x230] sm:$0xff]
      %v504 = vld [vmem:[%s1 + $0x238] sm:$0xff]
      %v505 = vld [vmem:[%s2] sm:$0x3]
      %v507 = vlaneseq
      %v508 = vshrl.u32 %v507, 7
      %v509 = vsub.s32 0, %v508
      %v510 = vrot.slane %v505, %v509
      %v511 = vlaneseq
      %v512 = vshrl.u32 %v511, 7
      %v513 = vsub.s32 1, %v512
      %v514 = vrot.slane %v505, %v513
      %v664 = vunpack.c.l.b16 %v286
      %v665 = vunpack.c.h.b16 %v286
      %v666 = vunpack.c.l.b16 %v287
      %v667 = vunpack.c.h.b16 %v287
      %v668 = vunpack.c.l.b16 %v288
      %v669 = vunpack.c.l.b16 %v289
      %v670 = vunpack.c.h.b16 %v289
      %v671 = vunpack.c.l.b16 %v290
      %v672 = vunpack.c.h.b16 %v290
      %v673 = vunpack.c.l.b16 %v291
      %v674 = vunpack.c.l.b16 %v292
      %v675 = vunpack.c.h.b16 %v292
      %v676 = vunpack.c.l.b16 %v293
      %v677 = vunpack.c.h.b16 %v293
      %v678 = vunpack.c.l.b16 %v294
      %v679 = vunpack.c.l.b16 %v295
      %v680 = vunpack.c.h.b16 %v295
      %v681 = vunpack.c.l.b16 %v296
      %v682 = vunpack.c.h.b16 %v296
      %v683 = vunpack.c.l.b16 %v297
      %v684 = vunpack.c.l.b16 %v298
      %v685 = vunpack.c.h.b16 %v298
      %v686 = vunpack.c.l.b16 %v299
      %v687 = vunpack.c.h.b16 %v299
      %v688 = vunpack.c.l.b16 %v300
      %v689 = vunpack.c.l.b16 %v301
      %v690 = vunpack.c.h.b16 %v301
      %v691 = vunpack.c.l.b16 %v302
      %v692 = vunpack.c.h.b16 %v302
      %v693 = vunpack.c.l.b16 %v303
      %v694 = vunpack.c.l.b16 %v304
      %v695 = vunpack.c.h.b16 %v304
      %v696 = vunpack.c.l.b16 %v305
      %v697 = vunpack.c.h.b16 %v305
      %v698 = vunpack.c.l.b16 %v306
      %v699 = vunpack.c.l.b16 %v307
      %v700 = vunpack.c.h.b16 %v307
      %v701 = vunpack.c.l.b16 %v308
      %v702 = vunpack.c.h.b16 %v308
      %v703 = vunpack.c.l.b16 %v309
      %v704 = vunpack.c.l.b16 %v310
      %v705 = vunpack.c.h.b16 %v310
      %v706 = vunpack.c.l.b16 %v311
      %v707 = vunpack.c.h.b16 %v311
      %v708 = vunpack.c.l.b16 %v312
      %v709 = vunpack.c.l.b16 %v313
      %v710 = vunpack.c.h.b16 %v313
      %v711 = vunpack.c.l.b16 %v314
      %v712 = vunpack.c.h.b16 %v314
      %v713 = vunpack.c.l.b16 %v315
      %v714 = vunpack.c.l.b16 %v316
      %v715 = vunpack.c.h.b16 %v316
      %v716 = vunpack.c.l.b16 %v317
      %v717 = vunpack.c.h.b16 %v317
      %v718 = vunpack.c.l.b16 %v318
      %v719 = vunpack.c.l.b16 %v319
      %v720 = vunpack.c.h.b16 %v319
      %v721 = vunpack.c.l.b16 %v320
      %v722 = vunpack.c.h.b16 %v320
      %v723 = vunpack.c.l.b16 %v321
      %v724 = vunpack.c.l.b16 %v322
      %v725 = vunpack.c.h.b16 %v322
      %v726 = vunpack.c.l.b16 %v323
      %v727 = vunpack.c.h.b16 %v323
      %v728 = vunpack.c.l.b16 %v324
      %v729 = vunpack.c.l.b16 %v325
      %v730 = vunpack.c.h.b16 %v325
      %v731 = vunpack.c.l.b16 %v326
      %v732 = vunpack.c.h.b16 %v326
      %v733 = vunpack.c.l.b16 %v327
      %v734 = vunpack.c.l.b16 %v328
      %v735 = vunpack.c.h.b16 %v328
      %v736 = vunpack.c.l.b16 %v329
      %v737 = vunpack.c.h.b16 %v329
      %v738 = vunpack.c.l.b16 %v330
      %v739 = vunpack.c.l.b16 %v331
      %v740 = vunpack.c.h.b16 %v331
      %v741 = vunpack.c.l.b16 %v332
      %v742 = vunpack.c.h.b16 %v332
      %v743 = vunpack.c.l.b16 %v333
      %v744 = vunpack.c.l.b16 %v334
      %v745 = vunpack.c.h.b16 %v334
      %v746 = vunpack.c.l.b16 %v335
      %v747 = vunpack.c.h.b16 %v335
      %v748 = vunpack.c.l.b16 %v336
      %v749 = vunpack.c.l.b16 %v337
      %v750 = vunpack.c.h.b16 %v337
      %v751 = vunpack.c.l.b16 %v338
      %v752 = vunpack.c.h.b16 %v338
      %v753 = vunpack.c.l.b16 %v339
      %v754 = vunpack.c.l.b16 %v340
      %v755 = vunpack.c.h.b16 %v340
      %v756 = vunpack.c.l.b16 %v341
      %v757 = vunpack.c.h.b16 %v341
      %v758 = vunpack.c.l.b16 %v342
      %v759 = vunpack.c.l.b16 %v343
      %v760 = vunpack.c.h.b16 %v343
      %v761 = vunpack.c.l.b16 %v344
      %v762 = vunpack.c.h.b16 %v344
      %v763 = vunpack.c.l.b16 %v345
      %v764 = vunpack.c.l.b16 %v346
      %v765 = vunpack.c.h.b16 %v346
      %v766 = vunpack.c.l.b16 %v347
      %v767 = vunpack.c.h.b16 %v347
      %v768 = vunpack.c.l.b16 %v348
      %v769 = vunpack.c.l.b16 %v349
      %v770 = vunpack.c.h.b16 %v349
      %v771 = vunpack.c.l.b16 %v350
      %v772 = vunpack.c.h.b16 %v350
      %v773 = vunpack.c.l.b16 %v351
      %v774 = vunpack.c.l.b16 %v352
      %v775 = vunpack.c.h.b16 %v352
      %v776 = vunpack.c.l.b16 %v353
      %v777 = vunpack.c.h.b16 %v353
      %v778 = vunpack.c.l.b16 %v354
      %v779 = vunpack.c.l.b16 %v355
      %v780 = vunpack.c.h.b16 %v355
      %v781 = vunpack.c.l.b16 %v356
      %v782 = vunpack.c.h.b16 %v356
      %v783 = vunpack.c.l.b16 %v357
      %v784 = vunpack.c.l.b16 %v358
      %v785 = vunpack.c.h.b16 %v358
      %v786 = vunpack.c.l.b16 %v359
      %v787 = vunpack.c.h.b16 %v359
      %v788 = vunpack.c.l.b16 %v360
      %v789 = vunpack.c.l.b16 %v361
      %v790 = vunpack.c.h.b16 %v361
      %v791 = vunpack.c.l.b16 %v362
      %v792 = vunpack.c.h.b16 %v362
      %v793 = vunpack.c.l.b16 %v363
      %v794 = vunpack.c.l.b16 %v364
      %v795 = vunpack.c.h.b16 %v364
      %v796 = vunpack.c.l.b16 %v365
      %v797 = vunpack.c.h.b16 %v365
      %v798 = vunpack.c.l.b16 %v366
      %v799 = vunpack.c.l.b16 %v367
      %v800 = vunpack.c.h.b16 %v367
      %v801 = vunpack.c.l.b16 %v368
      %v802 = vunpack.c.h.b16 %v368
      %v803 = vunpack.c.l.b16 %v369
      %v804 = vunpack.c.l.b16 %v370
      %v805 = vunpack.c.h.b16 %v370
      %v806 = vunpack.c.l.b16 %v371
      %v807 = vunpack.c.h.b16 %v371
      %v808 = vunpack.c.l.b16 %v372
      %v809 = vunpack.c.l.b16 %v373
      %v810 = vunpack.c.h.b16 %v373
      %v811 = vunpack.c.l.b16 %v374
      %v812 = vunpack.c.h.b16 %v374
      %v813 = vunpack.c.l.b16 %v375
      %v814 = vunpack.c.l.b16 %v376
      %v815 = vunpack.c.h.b16 %v376
      %v816 = vunpack.c.l.b16 %v377
      %v817 = vunpack.c.h.b16 %v377
      %v818 = vunpack.c.l.b16 %v378
      %v819 = vunpack.c.l.b16 %v379
      %v820 = vunpack.c.h.b16 %v379
      %v821 = vunpack.c.l.b16 %v380
      %v822 = vunpack.c.h.b16 %v380
      %v823 = vunpack.c.l.b16 %v381
      %v824 = vunpack.c.l.b16 %v382
      %v825 = vunpack.c.h.b16 %v382
      %v826 = vunpack.c.l.b16 %v383
      %v827 = vunpack.c.h.b16 %v383
      %v828 = vunpack.c.l.b16 %v384
      %v829 = vunpack.c.l.b16 %v385
      %v830 = vunpack.c.h.b16 %v385
      %v831 = vunpack.c.l.b16 %v386
      %v832 = vunpack.c.h.b16 %v386
      %v833 = vunpack.c.l.b16 %v387
      %v834 = vunpack.c.l.b16 %v388
      %v835 = vunpack.c.h.b16 %v388
      %v836 = vunpack.c.l.b16 %v389
      %v837 = vunpack.c.h.b16 %v389
      %v838 = vunpack.c.l.b16 %v390
      %v839 = vunpack.c.l.b16 %v391
      %v840 = vunpack.c.h.b16 %v391
      %v841 = vunpack.c.l.b16 %v392
      %v842 = vunpack.c.h.b16 %v392
      %v843 = vunpack.c.l.b16 %v393
      %v844 = vunpack.c.l.b16 %v394
      %v845 = vunpack.c.h.b16 %v394
      %v846 = vunpack.c.l.b16 %v395
      %v847 = vunpack.c.h.b16 %v395
      %v848 = vunpack.c.l.b16 %v396
      %v849 = vunpack.c.l.b16 %v397
      %v850 = vunpack.c.h.b16 %v397
      %v851 = vunpack.c.l.b16 %v398
      %v852 = vunpack.c.h.b16 %v398
      %v853 = vunpack.c.l.b16 %v399
      %v854 = vunpack.c.l.b16 %v400
      %v855 = vunpack.c.h.b16 %v400
      %v856 = vunpack.c.l.b16 %v401
      %v857 = vunpack.c.h.b16 %v401
      %v858 = vunpack.c.l.b16 %v402
      %v859 = vunpack.c.l.b16 %v403
      %v860 = vunpack.c.h.b16 %v403
      %v861 = vunpack.c.l.b16 %v404
      %v862 = vunpack.c.h.b16 %v404
      %v863 = vunpack.c.l.b16 %v405
      %v864 = vunpack.c.l.b16 %v406
      %v865 = vunpack.c.h.b16 %v406
      %v866 = vunpack.c.l.b16 %v407
      %v867 = vunpack.c.h.b16 %v407
      %v868 = vunpack.c.l.b16 %v408
      %v869 = vunpack.c.l.b16 %v409
      %v870 = vunpack.c.h.b16 %v409
      %v871 = vunpack.c.l.b16 %v410
      %v872 = vunpack.c.h.b16 %v410
      %v873 = vunpack.c.l.b16 %v411
      %v874 = vunpack.c.l.b16 %v412
      %v875 = vunpack.c.h.b16 %v412
      %v876 = vunpack.c.l.b16 %v413
      %v877 = vunpack.c.h.b16 %v413
      %v878 = vunpack.c.l.b16 %v414
      %v879 = vunpack.c.l.b16 %v415
      %v880 = vunpack.c.h.b16 %v415
      %v881 = vunpack.c.l.b16 %v416
      %v882 = vunpack.c.h.b16 %v416
      %v883 = vunpack.c.l.b16 %v417
      %v884 = vunpack.c.l.b16 %v418
      %v885 = vunpack.c.h.b16 %v418
      %v886 = vunpack.c.l.b16 %v419
      %v887 = vunpack.c.h.b16 %v419
      %v888 = vunpack.c.l.b16 %v420
      %v889 = vunpack.c.l.b16 %v421
      %v890 = vunpack.c.h.b16 %v421
      %v891 = vunpack.c.l.b16 %v422
      %v892 = vunpack.c.h.b16 %v422
      %v893 = vunpack.c.l.b16 %v423
      %v894 = vunpack.c.l.b16 %v424
      %v895 = vunpack.c.h.b16 %v424
      %v896 = vunpack.c.l.b16 %v425
      %v897 = vunpack.c.h.b16 %v425
      %v898 = vunpack.c.l.b16 %v426
      %v899 = vunpack.c.l.b16 %v427
      %v900 = vunpack.c.h.b16 %v427
      %v901 = vunpack.c.l.b16 %v428
      %v902 = vunpack.c.h.b16 %v428
      %v903 = vunpack.c.l.b16 %v429
      %v904 = vunpack.c.l.b16 %v430
      %v905 = vunpack.c.h.b16 %v430
      %v906 = vunpack.c.l.b16 %v431
      %v907 = vunpack.c.h.b16 %v431
      %v908 = vunpack.c.l.b16 %v432
      %v909 = vpack.c.b16 %v669, %v664
      %v910 = vpack.c.b16 %v670, %v665
      %v911 = vpack.c.b16 %v671, %v666
      %v912 = vpack.c.b16 %v672, %v667
      %v913 = vpack.c.b16 %v673, %v668
      %v914 = vpack.c.b16 %v679, %v674
      %v915 = vpack.c.b16 %v680, %v675
      %v916 = vpack.c.b16 %v681, %v676
      %v917 = vpack.c.b16 %v682, %v677
      %v918 = vpack.c.b16 %v683, %v678
      %v919 = vpack.c.b16 %v689, %v684
      %v920 = vpack.c.b16 %v690, %v685
      %v921 = vpack.c.b16 %v691, %v686
      %v922 = vpack.c.b16 %v692, %v687
      %v923 = vpack.c.b16 %v693, %v688
      %v924 = vpack.c.b16 %v699, %v694
      %v925 = vpack.c.b16 %v700, %v695
      %v926 = vpack.c.b16 %v701, %v696
      %v927 = vpack.c.b16 %v702, %v697
      %v928 = vpack.c.b16 %v703, %v698
      %v929 = vpack.c.b16 %v709, %v704
      %v930 = vpack.c.b16 %v710, %v705
      %v931 = vpack.c.b16 %v711, %v706
      %v932 = vpack.c.b16 %v712, %v707
      %v933 = vpack.c.b16 %v713, %v708
      %v934 = vpack.c.b16 %v719, %v714
      %v935 = vpack.c.b16 %v720, %v715
      %v936 = vpack.c.b16 %v721, %v716
      %v937 = vpack.c.b16 %v722, %v717
      %v938 = vpack.c.b16 %v723, %v718
      %v939 = vpack.c.b16 %v729, %v724
      %v940 = vpack.c.b16 %v730, %v725
      %v941 = vpack.c.b16 %v731, %v726
      %v942 = vpack.c.b16 %v732, %v727
      %v943 = vpack.c.b16 %v733, %v728
      %v944 = vpack.c.b16 %v739, %v734
      %v945 = vpack.c.b16 %v740, %v735
      %v946 = vpack.c.b16 %v741, %v736
      %v947 = vpack.c.b16 %v742, %v737
      %v948 = vpack.c.b16 %v743, %v738
      %v949 = vpack.c.b16 %v749, %v744
      %v950 = vpack.c.b16 %v750, %v745
      %v951 = vpack.c.b16 %v751, %v746
      %v952 = vpack.c.b16 %v752, %v747
      %v953 = vpack.c.b16 %v753, %v748
      %v954 = vpack.c.b16 %v759, %v754
      %v955 = vpack.c.b16 %v760, %v755
      %v956 = vpack.c.b16 %v761, %v756
      %v957 = vpack.c.b16 %v762, %v757
      %v958 = vpack.c.b16 %v763, %v758
      %v959 = vpack.c.b16 %v769, %v764
      %v960 = vpack.c.b16 %v770, %v765
      %v961 = vpack.c.b16 %v771, %v766
      %v962 = vpack.c.b16 %v772, %v767
      %v963 = vpack.c.b16 %v773, %v768
      %v964 = vpack.c.b16 %v779, %v774
      %v965 = vpack.c.b16 %v780, %v775
      %v966 = vpack.c.b16 %v781, %v776
      %v967 = vpack.c.b16 %v782, %v777
      %v968 = vpack.c.b16 %v783, %v778
      %v969 = vpack.c.b16 %v789, %v784
      %v970 = vpack.c.b16 %v790, %v785
      %v971 = vpack.c.b16 %v791, %v786
      %v972 = vpack.c.b16 %v792, %v787
      %v973 = vpack.c.b16 %v793, %v788
      %v974 = vpack.c.b16 %v799, %v794
      %v975 = vpack.c.b16 %v800, %v795
      %v976 = vpack.c.b16 %v801, %v796
      %v977 = vpack.c.b16 %v802, %v797
      %v978 = vpack.c.b16 %v803, %v798
      %v979 = vpack.c.b16 %v809, %v804
      %v980 = vpack.c.b16 %v810, %v805
      %v981 = vpack.c.b16 %v811, %v806
      %v982 = vpack.c.b16 %v812, %v807
      %v983 = vpack.c.b16 %v813, %v808
      %v984 = vpack.c.b16 %v819, %v814
      %v985 = vpack.c.b16 %v820, %v815
      %v986 = vpack.c.b16 %v821, %v816
      %v987 = vpack.c.b16 %v822, %v817
      %v988 = vpack.c.b16 %v823, %v818
      %v989 = vpack.c.b16 %v829, %v824
      %v990 = vpack.c.b16 %v830, %v825
      %v991 = vpack.c.b16 %v831, %v826
      %v992 = vpack.c.b16 %v832, %v827
      %v993 = vpack.c.b16 %v833, %v828
      %v994 = vpack.c.b16 %v839, %v834
      %v995 = vpack.c.b16 %v840, %v835
      %v996 = vpack.c.b16 %v841, %v836
      %v997 = vpack.c.b16 %v842, %v837
      %v998 = vpack.c.b16 %v843, %v838
      %v999 = vpack.c.b16 %v849, %v844
      %v1000 = vpack.c.b16 %v850, %v845
      %v1001 = vpack.c.b16 %v851, %v846
      %v1002 = vpack.c.b16 %v852, %v847
      %v1003 = vpack.c.b16 %v853, %v848
      %v1004 = vpack.c.b16 %v859, %v854
      %v1005 = vpack.c.b16 %v860, %v855
      %v1006 = vpack.c.b16 %v861, %v856
      %v1007 = vpack.c.b16 %v862, %v857
      %v1008 = vpack.c.b16 %v863, %v858
      %v1009 = vpack.c.b16 %v869, %v864
      %v1010 = vpack.c.b16 %v870, %v865
      %v1011 = vpack.c.b16 %v871, %v866
      %v1012 = vpack.c.b16 %v872, %v867
      %v1013 = vpack.c.b16 %v873, %v868
      %v1014 = vpack.c.b16 %v879, %v874
      %v1015 = vpack.c.b16 %v880, %v875
      %v1016 = vpack.c.b16 %v881, %v876
      %v1017 = vpack.c.b16 %v882, %v877
      %v1018 = vpack.c.b16 %v883, %v878
      %v1019 = vpack.c.b16 %v889, %v884
      %v1020 = vpack.c.b16 %v890, %v885
      %v1021 = vpack.c.b16 %v891, %v886
      %v1022 = vpack.c.b16 %v892, %v887
      %v1023 = vpack.c.b16 %v893, %v888
      %v1024 = vpack.c.b16 %v899, %v894
      %v1025 = vpack.c.b16 %v900, %v895
      %v1026 = vpack.c.b16 %v901, %v896
      %v1027 = vpack.c.b16 %v902, %v897
      %v1028 = vpack.c.b16 %v903, %v898
      %v1029 = vpack.c.b16 %v904, %v904
      %v1030 = vpack.c.b16 %v905, %v905
      %v1031 = vpack.c.b16 %v906, %v906
      %v1032 = vpack.c.b16 %v907, %v907
      %v1033 = vpack.c.b16 %v908, %v908
      %v1206 = vunpack.c.l.b16 %v433
      %v1207 = vunpack.c.h.b16 %v433
      %v1208 = vunpack.c.l.b16 %v434
      %v1209 = vunpack.c.h.b16 %v434
      %v1210 = vunpack.c.l.b16 %v435
      %v1211 = vunpack.c.h.b16 %v435
      %v1212 = vunpack.c.l.b16 %v436
      %v1213 = vunpack.c.h.b16 %v436
      %v1214 = vunpack.c.l.b16 %v437
      %v1215 = vunpack.c.h.b16 %v437
      %v1216 = vunpack.c.l.b16 %v438
      %v1217 = vunpack.c.h.b16 %v438
      %v1218 = vunpack.c.l.b16 %v439
      %v1219 = vunpack.c.h.b16 %v439
      %v1220 = vunpack.c.l.b16 %v440
      %v1221 = vunpack.c.h.b16 %v440
      %v1222 = vunpack.c.l.b16 %v441
      %v1223 = vunpack.c.h.b16 %v441
      %v1224 = vunpack.c.l.b16 %v442
      %v1225 = vunpack.c.h.b16 %v442
      %v1226 = vunpack.c.l.b16 %v443
      %v1227 = vunpack.c.h.b16 %v443
      %v1228 = vunpack.c.l.b16 %v444
      %v1229 = vunpack.c.h.b16 %v444
      %v1230 = vunpack.c.l.b16 %v445
      %v1231 = vunpack.c.h.b16 %v445
      %v1232 = vunpack.c.l.b16 %v446
      %v1233 = vunpack.c.h.b16 %v446
      %v1234 = vunpack.c.l.b16 %v447
      %v1235 = vunpack.c.h.b16 %v447
      %v1236 = vunpack.c.l.b16 %v448
      %v1237 = vunpack.c.h.b16 %v448
      %v1238 = vunpack.c.l.b16 %v449
      %v1239 = vunpack.c.h.b16 %v449
      %v1240 = vunpack.c.l.b16 %v450
      %v1241 = vunpack.c.h.b16 %v450
      %v1242 = vunpack.c.l.b16 %v451
      %v1243 = vunpack.c.h.b16 %v451
      %v1244 = vunpack.c.l.b16 %v452
      %v1245 = vunpack.c.h.b16 %v452
      %v1246 = vunpack.c.l.b16 %v453
      %v1247 = vunpack.c.h.b16 %v453
      %v1248 = vunpack.c.l.b16 %v454
      %v1249 = vunpack.c.h.b16 %v454
      %v1250 = vunpack.c.l.b16 %v455
      %v1251 = vunpack.c.h.b16 %v455
      %v1252 = vunpack.c.l.b16 %v456
      %v1253 = vunpack.c.h.b16 %v456
      %v1254 = vunpack.c.l.b16 %v457
      %v1255 = vunpack.c.h.b16 %v457
      %v1256 = vunpack.c.l.b16 %v458
      %v1257 = vunpack.c.h.b16 %v458
      %v1258 = vunpack.c.l.b16 %v459
      %v1259 = vunpack.c.h.b16 %v459
      %v1260 = vunpack.c.l.b16 %v460
      %v1261 = vunpack.c.h.b16 %v460
      %v1262 = vunpack.c.l.b16 %v461
      %v1263 = vunpack.c.h.b16 %v461
      %v1264 = vunpack.c.l.b16 %v462
      %v1265 = vunpack.c.h.b16 %v462
      %v1266 = vunpack.c.l.b16 %v463
      %v1267 = vunpack.c.h.b16 %v463
      %v1268 = vunpack.c.l.b16 %v464
      %v1269 = vunpack.c.h.b16 %v464
      %v1270 = vunpack.c.l.b16 %v465
      %v1271 = vunpack.c.h.b16 %v465
      %v1272 = vunpack.c.l.b16 %v466
      %v1273 = vunpack.c.h.b16 %v466
      %v1274 = vunpack.c.l.b16 %v467
      %v1275 = vunpack.c.h.b16 %v467
      %v1276 = vunpack.c.l.b16 %v468
      %v1277 = vunpack.c.h.b16 %v468
      %v1278 = vunpack.c.l.b16 %v469
      %v1279 = vunpack.c.h.b16 %v469
      %v1280 = vunpack.c.l.b16 %v470
      %v1281 = vunpack.c.h.b16 %v470
      %v1282 = vunpack.c.l.b16 %v471
      %v1283 = vunpack.c.h.b16 %v471
      %v1284 = vunpack.c.l.b16 %v472
      %v1285 = vunpack.c.h.b16 %v472
      %v1286 = vunpack.c.l.b16 %v473
      %v1287 = vunpack.c.h.b16 %v473
      %v1288 = vunpack.c.l.b16 %v474
      %v1289 = vunpack.c.h.b16 %v474
      %v1290 = vunpack.c.l.b16 %v475
      %v1291 = vunpack.c.h.b16 %v475
      %v1292 = vunpack.c.l.b16 %v476
      %v1293 = vunpack.c.h.b16 %v476
      %v1294 = vunpack.c.l.b16 %v477
      %v1295 = vunpack.c.h.b16 %v477
      %v1296 = vunpack.c.l.b16 %v478
      %v1297 = vunpack.c.h.b16 %v478
      %v1298 = vunpack.c.l.b16 %v479
      %v1299 = vunpack.c.h.b16 %v479
      %v1300 = vunpack.c.l.b16 %v480
      %v1301 = vunpack.c.h.b16 %v480
      %v1302 = vunpack.c.l.b16 %v481
      %v1303 = vunpack.c.h.b16 %v481
      %v1304 = vunpack.c.l.b16 %v482
      %v1305 = vunpack.c.h.b16 %v482
      %v1306 = vunpack.c.l.b16 %v483
      %v1307 = vunpack.c.h.b16 %v483
      %v1308 = vunpack.c.l.b16 %v484
      %v1309 = vunpack.c.h.b16 %v484
      %v1310 = vunpack.c.l.b16 %v485
      %v1311 = vunpack.c.h.b16 %v485
      %v1312 = vunpack.c.l.b16 %v486
      %v1313 = vunpack.c.h.b16 %v486
      %v1314 = vunpack.c.l.b16 %v487
      %v1315 = vunpack.c.h.b16 %v487
      %v1316 = vunpack.c.l.b16 %v488
      %v1317 = vunpack.c.h.b16 %v488
      %v1318 = vunpack.c.l.b16 %v489
      %v1319 = vunpack.c.h.b16 %v489
      %v1320 = vunpack.c.l.b16 %v490
      %v1321 = vunpack.c.h.b16 %v490
      %v1322 = vunpack.c.l.b16 %v491
      %v1323 = vunpack.c.h.b16 %v491
      %v1324 = vunpack.c.l.b16 %v492
      %v1325 = vunpack.c.h.b16 %v492
      %v1326 = vunpack.c.l.b16 %v493
      %v1327 = vunpack.c.h.b16 %v493
      %v1328 = vunpack.c.l.b16 %v494
      %v1329 = vunpack.c.h.b16 %v494
      %v1330 = vunpack.c.l.b16 %v495
      %v1331 = vunpack.c.h.b16 %v495
      %v1332 = vunpack.c.l.b16 %v496
      %v1333 = vunpack.c.h.b16 %v496
      %v1334 = vunpack.c.l.b16 %v497
      %v1335 = vunpack.c.h.b16 %v497
      %v1336 = vunpack.c.l.b16 %v498
      %v1337 = vunpack.c.h.b16 %v498
      %v1338 = vunpack.c.l.b16 %v499
      %v1339 = vunpack.c.h.b16 %v499
      %v1340 = vunpack.c.l.b16 %v500
      %v1341 = vunpack.c.h.b16 %v500
      %v1342 = vunpack.c.l.b16 %v501
      %v1343 = vunpack.c.h.b16 %v501
      %v1344 = vunpack.c.l.b16 %v502
      %v1345 = vunpack.c.h.b16 %v502
      %v1346 = vunpack.c.l.b16 %v503
      %v1347 = vunpack.c.h.b16 %v503
      %v1348 = vunpack.c.l.b16 %v504
      %v1349 = vunpack.c.h.b16 %v504
      %v1350 = vpack.c.b16 %v1208, %v1206
      %v1351 = vpack.c.b16 %v1209, %v1207
      %v1352 = vpack.c.b16 %v1212, %v1210
      %v1353 = vpack.c.b16 %v1213, %v1211
      %v1354 = vpack.c.b16 %v1216, %v1214
      %v1355 = vpack.c.b16 %v1217, %v1215
      %v1356 = vpack.c.b16 %v1220, %v1218
      %v1357 = vpack.c.b16 %v1221, %v1219
      %v1358 = vpack.c.b16 %v1224, %v1222
      %v1359 = vpack.c.b16 %v1225, %v1223
      %v1360 = vpack.c.b16 %v1228, %v1226
      %v1361 = vpack.c.b16 %v1229, %v1227
      %v1362 = vpack.c.b16 %v1232, %v1230
      %v1363 = vpack.c.b16 %v1233, %v1231
      %v1364 = vpack.c.b16 %v1236, %v1234
      %v1365 = vpack.c.b16 %v1237, %v1235
      %v1366 = vpack.c.b16 %v1240, %v1238
      %v1367 = vpack.c.b16 %v1241, %v1239
      %v1368 = vpack.c.b16 %v1244, %v1242
      %v1369 = vpack.c.b16 %v1245, %v1243
      %v1370 = vpack.c.b16 %v1248, %v1246
      %v1371 = vpack.c.b16 %v1249, %v1247
      %v1372 = vpack.c.b16 %v1252, %v1250
      %v1373 = vpack.c.b16 %v1253, %v1251
      %v1374 = vpack.c.b16 %v1256, %v1254
      %v1375 = vpack.c.b16 %v1257, %v1255
      %v1376 = vpack.c.b16 %v1260, %v1258
      %v1377 = vpack.c.b16 %v1261, %v1259
      %v1378 = vpack.c.b16 %v1264, %v1262
      %v1379 = vpack.c.b16 %v1265, %v1263
      %v1380 = vpack.c.b16 %v1268, %v1266
      %v1381 = vpack.c.b16 %v1269, %v1267
      %v1382 = vpack.c.b16 %v1272, %v1270
      %v1383 = vpack.c.b16 %v1273, %v1271
      %v1384 = vpack.c.b16 %v1276, %v1274
      %v1385 = vpack.c.b16 %v1277, %v1275
      %v1386 = vpack.c.b16 %v1280, %v1278
      %v1387 = vpack.c.b16 %v1281, %v1279
      %v1388 = vpack.c.b16 %v1284, %v1282
      %v1389 = vpack.c.b16 %v1285, %v1283
      %v1390 = vpack.c.b16 %v1288, %v1286
      %v1391 = vpack.c.b16 %v1289, %v1287
      %v1392 = vpack.c.b16 %v1292, %v1290
      %v1393 = vpack.c.b16 %v1293, %v1291
      %v1394 = vpack.c.b16 %v1296, %v1294
      %v1395 = vpack.c.b16 %v1297, %v1295
      %v1396 = vpack.c.b16 %v1300, %v1298
      %v1397 = vpack.c.b16 %v1301, %v1299
      %v1398 = vpack.c.b16 %v1304, %v1302
      %v1399 = vpack.c.b16 %v1305, %v1303
      %v1400 = vpack.c.b16 %v1308, %v1306
      %v1401 = vpack.c.b16 %v1309, %v1307
      %v1402 = vpack.c.b16 %v1312, %v1310
      %v1403 = vpack.c.b16 %v1313, %v1311
      %v1404 = vpack.c.b16 %v1316, %v1314
      %v1405 = vpack.c.b16 %v1317, %v1315
      %v1406 = vpack.c.b16 %v1320, %v1318
      %v1407 = vpack.c.b16 %v1321, %v1319
      %v1408 = vpack.c.b16 %v1324, %v1322
      %v1409 = vpack.c.b16 %v1325, %v1323
      %v1410 = vpack.c.b16 %v1328, %v1326
      %v1411 = vpack.c.b16 %v1329, %v1327
      %v1412 = vpack.c.b16 %v1332, %v1330
      %v1413 = vpack.c.b16 %v1333, %v1331
      %v1414 = vpack.c.b16 %v1336, %v1334
      %v1415 = vpack.c.b16 %v1337, %v1335
      %v1416 = vpack.c.b16 %v1340, %v1338
      %v1417 = vpack.c.b16 %v1341, %v1339
      %v1418 = vpack.c.b16 %v1344, %v1342
      %v1419 = vpack.c.b16 %v1345, %v1343
      %v1420 = vpack.c.b16 %v1348, %v1346
      %v1421 = vpack.c.b16 %v1349, %v1347
      %vm1494 = vcmask 523264
      %v1496 = vsel %vm1494, %v913, 0
      %v1499 = vsel %vm1494, %v918, 0
      %v1502 = vsel %vm1494, %v923, 0
      %v1505 = vsel %vm1494, %v928, 0
      %v1508 = vsel %vm1494, %v933, 0
      %v1511 = vsel %vm1494, %v938, 0
      %v1514 = vsel %vm1494, %v943, 0
      %v1517 = vsel %vm1494, %v948, 0
      %v1520 = vsel %vm1494, %v953, 0
      %v1523 = vsel %vm1494, %v958, 0
      %v1526 = vsel %vm1494, %v963, 0
      %v1529 = vsel %vm1494, %v968, 0
      %v1532 = vsel %vm1494, %v973, 0
      %v1535 = vsel %vm1494, %v978, 0
      %v1538 = vsel %vm1494, %v983, 0
      %v1541 = vsel %vm1494, %v988, 0
      %v1544 = vsel %vm1494, %v993, 0
      %v1547 = vsel %vm1494, %v998, 0
      %v1550 = vsel %vm1494, %v1003, 0
      %v1553 = vsel %vm1494, %v1008, 0
      %v1556 = vsel %vm1494, %v1013, 0
      %v1559 = vsel %vm1494, %v1018, 0
      %v1562 = vsel %vm1494, %v1023, 0
      %v1565 = vsel %vm1494, %v1028, 0
      %v1568 = vsel %vm1494, %v1033, 0
      %1570 = vmatprep.subr.bf16.mxu0 %v1365
      %1571 = vmatpush1.bf16.msra.mxu0 %v1364
      %1572 = vmatprep.subr.bf16.mxu0 %v1363
      %1573 = vmatpush1.bf16.msra.mxu0 %v1362
      %1574 = vmatprep.subr.bf16.mxu0 %v1361
      %1575 = vmatpush1.bf16.msra.mxu0 %v1360
      %1576 = vmatprep.subr.bf16.mxu0 %v1359
      %1577 = vmatpush1.bf16.msra.mxu0 %v1358
      %1578 = vmatprep.subr.bf16.mxu0 %v1357
      %1579 = vmatpush1.bf16.msra.mxu0 %v1356
      %1580 = vmatprep.subr.bf16.mxu0 %v1355
      %1581 = vmatpush1.bf16.msra.mxu0 %v1354
      %1582 = vmatprep.subr.bf16.mxu0 %v1353
      %1583 = vmatpush1.bf16.msra.mxu0 %v1352
      %1584 = vmatprep.subr.bf16.mxu0 %v1351
      %1585 = vmatpush1.bf16.msra.mxu0 %v1350
      %1586 = vmatprep.subr.bf16.mxu0 %v1381
      %1587 = vmatpush2.bf16.msra.mxu0 %v1380
      %1588 = vmatprep.subr.bf16.mxu0 %v1379
      %1589 = vmatpush2.bf16.msra.mxu0 %v1378
      %1590 = vmatprep.subr.bf16.mxu0 %v1377
      %1591 = vmatpush2.bf16.msra.mxu0 %v1376
      %1592 = vmatprep.subr.bf16.mxu0 %v1375
      %1593 = vmatpush2.bf16.msra.mxu0 %v1374
      %1594 = vmatprep.subr.bf16.mxu0 %v1373
      %1595 = vmatpush2.bf16.msra.mxu0 %v1372
      %1596 = vmatprep.subr.bf16.mxu0 %v1371
      %1597 = vmatpush2.bf16.msra.mxu0 %v1370
      %1598 = vmatprep.subr.bf16.mxu0 %v1369
      %1599 = vmatpush2.bf16.msra.mxu0 %v1368
      %1600 = vmatprep.subr.bf16.mxu0 %v1367
      %1601 = vmatpush2.bf16.msra.mxu0 %v1366
      %1602 = vmatprep.mubr.bf16.mxu0 %v910
      %1603 = vmatmul.mubr.bf16.gmra.mxu0 %v909
      %v1604 = vpop.f32.mrf.mxu0
      %v1605 = vadd.f32 %v510, %v1604
      %v1606 = vpop.f32.mrf.mxu0
      %v1607 = vadd.f32 %v514, %v1606
      %v1608 = vpop.f32.mrf.mxu0
      %v1609 = vadd.f32 %v510, %v1608
      %v1610 = vpop.f32.mrf.mxu0
      %v1611 = vadd.f32 %v514, %v1610
      %1612 = vmatprep.mubr.bf16.mxu0 %v915
      %1613 = vmatmul.mubr.bf16.gmra.mxu0 %v914
      %v1614 = vpop.f32.mrf.mxu0
      %v1615 = vadd.f32 %v510, %v1614
      %v1616 = vpop.f32.mrf.mxu0
      %v1617 = vadd.f32 %v514, %v1616
      %v1618 = vpop.f32.mrf.mxu0
      %v1619 = vadd.f32 %v510, %v1618
      %v1620 = vpop.f32.mrf.mxu0
      %v1621 = vadd.f32 %v514, %v1620
      %1622 = vmatprep.mubr.bf16.mxu0 %v920
      %1623 = vmatmul.mubr.bf16.gmra.mxu0 %v919
      %v1624 = vpop.f32.mrf.mxu0
      %v1625 = vadd.f32 %v510, %v1624
      %v1626 = vpop.f32.mrf.mxu0
      %v1627 = vadd.f32 %v514, %v1626
      %v1628 = vpop.f32.mrf.mxu0
      %v1629 = vadd.f32 %v510, %v1628
      %v1630 = vpop.f32.mrf.mxu0
      %v1631 = vadd.f32 %v514, %v1630
      %1632 = vmatprep.mubr.bf16.mxu0 %v925
      %1633 = vmatmul.mubr.bf16.gmra.mxu0 %v924
      %v1634 = vpop.f32.mrf.mxu0
      %v1635 = vadd.f32 %v510, %v1634
      %v1636 = vpop.f32.mrf.mxu0
      %v1637 = vadd.f32 %v514, %v1636
      %v1638 = vpop.f32.mrf.mxu0
      %v1639 = vadd.f32 %v510, %v1638
      %v1640 = vpop.f32.mrf.mxu0
      %v1641 = vadd.f32 %v514, %v1640
      %1642 = vmatprep.mubr.bf16.mxu0 %v930
      %1643 = vmatmul.mubr.bf16.gmra.mxu0 %v929
      %v1644 = vpop.f32.mrf.mxu0
      %v1645 = vadd.f32 %v510, %v1644
      %v1646 = vpop.f32.mrf.mxu0
      %v1647 = vadd.f32 %v514, %v1646
      %v1648 = vpop.f32.mrf.mxu0
      %v1649 = vadd.f32 %v510, %v1648
      %v1650 = vpop.f32.mrf.mxu0
      %v1651 = vadd.f32 %v514, %v1650
      %1652 = vmatprep.mubr.bf16.mxu0 %v935
      %1653 = vmatmul.mubr.bf16.gmra.mxu0 %v934
      %v1654 = vpop.f32.mrf.mxu0
      %v1655 = vadd.f32 %v510, %v1654
      %v1656 = vpop.f32.mrf.mxu0
      %v1657 = vadd.f32 %v514, %v1656
      %v1658 = vpop.f32.mrf.mxu0
      %v1659 = vadd.f32 %v510, %v1658
      %v1660 = vpop.f32.mrf.mxu0
      %v1661 = vadd.f32 %v514, %v1660
      %1662 = vmatprep.mubr.bf16.mxu0 %v940
      %1663 = vmatmul.mubr.bf16.gmra.mxu0 %v939
      %v1664 = vpop.f32.mrf.mxu0
      %v1665 = vadd.f32 %v510, %v1664
      %v1666 = vpop.f32.mrf.mxu0
      %v1667 = vadd.f32 %v514, %v1666
      %v1668 = vpop.f32.mrf.mxu0
      %v1669 = vadd.f32 %v510, %v1668
      %v1670 = vpop.f32.mrf.mxu0
      %v1671 = vadd.f32 %v514, %v1670
      %1672 = vmatprep.mubr.bf16.mxu0 %v945
      %1673 = vmatmul.mubr.bf16.gmra.mxu0 %v944
      %v1674 = vpop.f32.mrf.mxu0
      %v1675 = vadd.f32 %v510, %v1674
      %v1676 = vpop.f32.mrf.mxu0
      %v1677 = vadd.f32 %v514, %v1676
      %v1678 = vpop.f32.mrf.mxu0
      %v1679 = vadd.f32 %v510, %v1678
      %v1680 = vpop.f32.mrf.mxu0
      %v1681 = vadd.f32 %v514, %v1680
      %1682 = vmatprep.mubr.bf16.mxu0 %v950
      %1683 = vmatmul.mubr.bf16.gmra.mxu0 %v949
      %v1684 = vpop.f32.mrf.mxu0
      %v1685 = vadd.f32 %v510, %v1684
      %v1686 = vpop.f32.mrf.mxu0
      %v1687 = vadd.f32 %v514, %v1686
      %v1688 = vpop.f32.mrf.mxu0
      %v1689 = vadd.f32 %v510, %v1688
      %v1690 = vpop.f32.mrf.mxu0
      %v1691 = vadd.f32 %v514, %v1690
      %1692 = vmatprep.mubr.bf16.mxu0 %v955
      %1693 = vmatmul.mubr.bf16.gmra.mxu0 %v954
      %v1694 = vpop.f32.mrf.mxu0
      %v1695 = vadd.f32 %v510, %v1694
      %v1696 = vpop.f32.mrf.mxu0
      %v1697 = vadd.f32 %v514, %v1696
      %v1698 = vpop.f32.mrf.mxu0
      %v1699 = vadd.f32 %v510, %v1698
      %v1700 = vpop.f32.mrf.mxu0
      %v1701 = vadd.f32 %v514, %v1700
      %1702 = vmatprep.mubr.bf16.mxu0 %v960
      %1703 = vmatmul.mubr.bf16.gmra.mxu0 %v959
      %v1704 = vpop.f32.mrf.mxu0
      %v1705 = vadd.f32 %v510, %v1704
      %v1706 = vpop.f32.mrf.mxu0
      %v1707 = vadd.f32 %v514, %v1706
      %v1708 = vpop.f32.mrf.mxu0
      %v1709 = vadd.f32 %v510, %v1708
      %v1710 = vpop.f32.mrf.mxu0
      %v1711 = vadd.f32 %v514, %v1710
      %1712 = vmatprep.mubr.bf16.mxu0 %v965
      %1713 = vmatmul.mubr.bf16.gmra.mxu0 %v964
      %v1714 = vpop.f32.mrf.mxu0
      %v1715 = vadd.f32 %v510, %v1714
      %v1716 = vpop.f32.mrf.mxu0
      %v1717 = vadd.f32 %v514, %v1716
      %v1718 = vpop.f32.mrf.mxu0
      %v1719 = vadd.f32 %v510, %v1718
      %v1720 = vpop.f32.mrf.mxu0
      %v1721 = vadd.f32 %v514, %v1720
      %1722 = vmatprep.mubr.bf16.mxu0 %v970
      %1723 = vmatmul.mubr.bf16.gmra.mxu0 %v969
      %v1724 = vpop.f32.mrf.mxu0
      %v1725 = vadd.f32 %v510, %v1724
      %v1726 = vpop.f32.mrf.mxu0
      %v1727 = vadd.f32 %v514, %v1726
      %v1728 = vpop.f32.mrf.mxu0
      %v1729 = vadd.f32 %v510, %v1728
      %v1730 = vpop.f32.mrf.mxu0
      %v1731 = vadd.f32 %v514, %v1730
      %1732 = vmatprep.mubr.bf16.mxu0 %v975
      %1733 = vmatmul.mubr.bf16.gmra.mxu0 %v974
      %v1734 = vpop.f32.mrf.mxu0
      %v1735 = vadd.f32 %v510, %v1734
      %v1736 = vpop.f32.mrf.mxu0
      %v1737 = vadd.f32 %v514, %v1736
      %v1738 = vpop.f32.mrf.mxu0
      %v1739 = vadd.f32 %v510, %v1738
      %v1740 = vpop.f32.mrf.mxu0
      %v1741 = vadd.f32 %v514, %v1740
      %1742 = vmatprep.mubr.bf16.mxu0 %v980
      %1743 = vmatmul.mubr.bf16.gmra.mxu0 %v979
      %v1744 = vpop.f32.mrf.mxu0
      %v1745 = vadd.f32 %v510, %v1744
      %v1746 = vpop.f32.mrf.mxu0
      %v1747 = vadd.f32 %v514, %v1746
      %v1748 = vpop.f32.mrf.mxu0
      %v1749 = vadd.f32 %v510, %v1748
      %v1750 = vpop.f32.mrf.mxu0
      %v1751 = vadd.f32 %v514, %v1750
      %1752 = vmatprep.mubr.bf16.mxu0 %v985
      %1753 = vmatmul.mubr.bf16.gmra.mxu0 %v984
      %v1754 = vpop.f32.mrf.mxu0
      %v1755 = vadd.f32 %v510, %v1754
      %v1756 = vpop.f32.mrf.mxu0
      %v1757 = vadd.f32 %v514, %v1756
      %v1758 = vpop.f32.mrf.mxu0
      %v1759 = vadd.f32 %v510, %v1758
      %v1760 = vpop.f32.mrf.mxu0
      %v1761 = vadd.f32 %v514, %v1760
      %1762 = vmatprep.mubr.bf16.mxu0 %v990
      %1763 = vmatmul.mubr.bf16.gmra.mxu0 %v989
      %v1764 = vpop.f32.mrf.mxu0
      %v1765 = vadd.f32 %v510, %v1764
      %v1766 = vpop.f32.mrf.mxu0
      %v1767 = vadd.f32 %v514, %v1766
      %v1768 = vpop.f32.mrf.mxu0
      %v1769 = vadd.f32 %v510, %v1768
      %v1770 = vpop.f32.mrf.mxu0
      %v1771 = vadd.f32 %v514, %v1770
      %1772 = vmatprep.mubr.bf16.mxu0 %v995
      %1773 = vmatmul.mubr.bf16.gmra.mxu0 %v994
      %v1774 = vpop.f32.mrf.mxu0
      %v1775 = vadd.f32 %v510, %v1774
      %v1776 = vpop.f32.mrf.mxu0
      %v1777 = vadd.f32 %v514, %v1776
      %v1778 = vpop.f32.mrf.mxu0
      %v1779 = vadd.f32 %v510, %v1778
      %v1780 = vpop.f32.mrf.mxu0
      %v1781 = vadd.f32 %v514, %v1780
      %1782 = vmatprep.mubr.bf16.mxu0 %v1000
      %1783 = vmatmul.mubr.bf16.gmra.mxu0 %v999
      %v1784 = vpop.f32.mrf.mxu0
      %v1785 = vadd.f32 %v510, %v1784
      %v1786 = vpop.f32.mrf.mxu0
      %v1787 = vadd.f32 %v514, %v1786
      %v1788 = vpop.f32.mrf.mxu0
      %v1789 = vadd.f32 %v510, %v1788
      %v1790 = vpop.f32.mrf.mxu0
      %v1791 = vadd.f32 %v514, %v1790
      %1792 = vmatprep.mubr.bf16.mxu0 %v1005
      %1793 = vmatmul.mubr.bf16.gmra.mxu0 %v1004
      %v1794 = vpop.f32.mrf.mxu0
      %v1795 = vadd.f32 %v510, %v1794
      %v1796 = vpop.f32.mrf.mxu0
      %v1797 = vadd.f32 %v514, %v1796
      %v1798 = vpop.f32.mrf.mxu0
      %v1799 = vadd.f32 %v510, %v1798
      %v1800 = vpop.f32.mrf.mxu0
      %v1801 = vadd.f32 %v514, %v1800
      %1802 = vmatprep.mubr.bf16.mxu0 %v1010
      %1803 = vmatmul.mubr.bf16.gmra.mxu0 %v1009
      %v1804 = vpop.f32.mrf.mxu0
      %v1805 = vadd.f32 %v510, %v1804
      %v1806 = vpop.f32.mrf.mxu0
      %v1807 = vadd.f32 %v514, %v1806
      %v1808 = vpop.f32.mrf.mxu0
      %v1809 = vadd.f32 %v510, %v1808
      %v1810 = vpop.f32.mrf.mxu0
      %v1811 = vadd.f32 %v514, %v1810
      %1812 = vmatprep.mubr.bf16.mxu0 %v1015
      %1813 = vmatmul.mubr.bf16.gmra.mxu0 %v1014
      %v1814 = vpop.f32.mrf.mxu0
      %v1815 = vadd.f32 %v510, %v1814
      %v1816 = vpop.f32.mrf.mxu0
      %v1817 = vadd.f32 %v514, %v1816
      %v1818 = vpop.f32.mrf.mxu0
      %v1819 = vadd.f32 %v510, %v1818
      %v1820 = vpop.f32.mrf.mxu0
      %v1821 = vadd.f32 %v514, %v1820
      %1822 = vmatprep.mubr.bf16.mxu0 %v1020
      %1823 = vmatmul.mubr.bf16.gmra.mxu0 %v1019
      %v1824 = vpop.f32.mrf.mxu0
      %v1825 = vadd.f32 %v510, %v1824
      %v1826 = vpop.f32.mrf.mxu0
      %v1827 = vadd.f32 %v514, %v1826
      %v1828 = vpop.f32.mrf.mxu0
      %v1829 = vadd.f32 %v510, %v1828
      %v1830 = vpop.f32.mrf.mxu0
      %v1831 = vadd.f32 %v514, %v1830
      %1832 = vmatprep.mubr.bf16.mxu0 %v1025
      %1833 = vmatmul.mubr.bf16.gmra.mxu0 %v1024
      %v1834 = vpop.f32.mrf.mxu0
      %v1835 = vadd.f32 %v510, %v1834
      %v1836 = vpop.f32.mrf.mxu0
      %v1837 = vadd.f32 %v514, %v1836
      %v1838 = vpop.f32.mrf.mxu0
      %v1839 = vadd.f32 %v510, %v1838
      %v1840 = vpop.f32.mrf.mxu0
      %v1841 = vadd.f32 %v514, %v1840
      %1842 = vmatprep.mubr.bf16.mxu0 %v1030
      %1843 = vmatmul.mubr.bf16.gmra.mxu0 %v1029
      %v1844 = vpop.f32.mrf.mxu0
      %v1845 = vadd.f32 %v510, %v1844
      %v1846 = vpop.f32.mrf.mxu0
      %v1847 = vadd.f32 %v514, %v1846
      %v1848 = vpop.f32.mrf.mxu0
      %v1849 = vpop.f32.mrf.mxu0
      %1850 = vdwg.mxu0
      %1851 = vmatprep.subr.bf16.mxu0 %v1397
      %1852 = vmatpush1.bf16.msra.mxu0 %v1396
      %1853 = vmatprep.subr.bf16.mxu0 %v1395
      %1854 = vmatpush1.bf16.msra.mxu0 %v1394
      %1855 = vmatprep.subr.bf16.mxu0 %v1393
      %1856 = vmatpush1.bf16.msra.mxu0 %v1392
      %1857 = vmatprep.subr.bf16.mxu0 %v1391
      %1858 = vmatpush1.bf16.msra.mxu0 %v1390
      %1859 = vmatprep.subr.bf16.mxu0 %v1389
      %1860 = vmatpush1.bf16.msra.mxu0 %v1388
      %1861 = vmatprep.subr.bf16.mxu0 %v1387
      %1862 = vmatpush1.bf16.msra.mxu0 %v1386
      %1863 = vmatprep.subr.bf16.mxu0 %v1385
      %1864 = vmatpush1.bf16.msra.mxu0 %v1384
      %1865 = vmatprep.subr.bf16.mxu0 %v1383
      %1866 = vmatpush1.bf16.msra.mxu0 %v1382
      %1867 = vmatprep.subr.bf16.mxu0 %v1413
      %1868 = vmatpush2.bf16.msra.mxu0 %v1412
      %1869 = vmatprep.subr.bf16.mxu0 %v1411
      %1870 = vmatpush2.bf16.msra.mxu0 %v1410
      %1871 = vmatprep.subr.bf16.mxu0 %v1409
      %1872 = vmatpush2.bf16.msra.mxu0 %v1408
      %1873 = vmatprep.subr.bf16.mxu0 %v1407
      %1874 = vmatpush2.bf16.msra.mxu0 %v1406
      %1875 = vmatprep.subr.bf16.mxu0 %v1405
      %1876 = vmatpush2.bf16.msra.mxu0 %v1404
      %1877 = vmatprep.subr.bf16.mxu0 %v1403
      %1878 = vmatpush2.bf16.msra.mxu0 %v1402
      %1879 = vmatprep.subr.bf16.mxu0 %v1401
      %1880 = vmatpush2.bf16.msra.mxu0 %v1400
      %1881 = vmatprep.subr.bf16.mxu0 %v1399
      %1882 = vmatpush2.bf16.msra.mxu0 %v1398
      %1883 = vmatprep.mubr.bf16.mxu0 %v912
      %1884 = vmatmul.mubr.bf16.gmra.mxu0 %v911
      %v1885 = vpop.f32.mrf.mxu0
      %v1886 = vadd.f32 %v1605, %v1885
      %v1887 = vpop.f32.mrf.mxu0
      %v1888 = vadd.f32 %v1607, %v1887
      %v1889 = vpop.f32.mrf.mxu0
      %v1890 = vadd.f32 %v1609, %v1889
      %v1891 = vpop.f32.mrf.mxu0
      %v1892 = vadd.f32 %v1611, %v1891
      %1893 = vmatprep.mubr.bf16.mxu0 %v917
      %1894 = vmatmul.mubr.bf16.gmra.mxu0 %v916
      %v1895 = vpop.f32.mrf.mxu0
      %v1896 = vadd.f32 %v1615, %v1895
      %v1897 = vpop.f32.mrf.mxu0
      %v1898 = vadd.f32 %v1617, %v1897
      %v1899 = vpop.f32.mrf.mxu0
      %v1900 = vadd.f32 %v1619, %v1899
      %v1901 = vpop.f32.mrf.mxu0
      %v1902 = vadd.f32 %v1621, %v1901
      %1903 = vmatprep.mubr.bf16.mxu0 %v922
      %1904 = vmatmul.mubr.bf16.gmra.mxu0 %v921
      %v1905 = vpop.f32.mrf.mxu0
      %v1906 = vadd.f32 %v1625, %v1905
      %v1907 = vpop.f32.mrf.mxu0
      %v1908 = vadd.f32 %v1627, %v1907
      %v1909 = vpop.f32.mrf.mxu0
      %v1910 = vadd.f32 %v1629, %v1909
      %v1911 = vpop.f32.mrf.mxu0
      %v1912 = vadd.f32 %v1631, %v1911
      %1913 = vmatprep.mubr.bf16.mxu0 %v927
      %1914 = vmatmul.mubr.bf16.gmra.mxu0 %v926
      %v1915 = vpop.f32.mrf.mxu0
      %v1916 = vadd.f32 %v1635, %v1915
      %v1917 = vpop.f32.mrf.mxu0
      %v1918 = vadd.f32 %v1637, %v1917
      %v1919 = vpop.f32.mrf.mxu0
      %v1920 = vadd.f32 %v1639, %v1919
      %v1921 = vpop.f32.mrf.mxu0
      %v1922 = vadd.f32 %v1641, %v1921
      %1923 = vmatprep.mubr.bf16.mxu0 %v932
      %1924 = vmatmul.mubr.bf16.gmra.mxu0 %v931
      %v1925 = vpop.f32.mrf.mxu0
      %v1926 = vadd.f32 %v1645, %v1925
      %v1927 = vpop.f32.mrf.mxu0
      %v1928 = vadd.f32 %v1647, %v1927
      %v1929 = vpop.f32.mrf.mxu0
      %v1930 = vadd.f32 %v1649, %v1929
      %v1931 = vpop.f32.mrf.mxu0
      %v1932 = vadd.f32 %v1651, %v1931
      %1933 = vmatprep.mubr.bf16.mxu0 %v937
      %1934 = vmatmul.mubr.bf16.gmra.mxu0 %v936
      %v1935 = vpop.f32.mrf.mxu0
      %v1936 = vadd.f32 %v1655, %v1935
      %v1937 = vpop.f32.mrf.mxu0
      %v1938 = vadd.f32 %v1657, %v1937
      %v1939 = vpop.f32.mrf.mxu0
      %v1940 = vadd.f32 %v1659, %v1939
      %v1941 = vpop.f32.mrf.mxu0
      %v1942 = vadd.f32 %v1661, %v1941
      %1943 = vmatprep.mubr.bf16.mxu0 %v942
      %1944 = vmatmul.mubr.bf16.gmra.mxu0 %v941
      %v1945 = vpop.f32.mrf.mxu0
      %v1946 = vadd.f32 %v1665, %v1945
      %v1947 = vpop.f32.mrf.mxu0
      %v1948 = vadd.f32 %v1667, %v1947
      %v1949 = vpop.f32.mrf.mxu0
      %v1950 = vadd.f32 %v1669, %v1949
      %v1951 = vpop.f32.mrf.mxu0
      %v1952 = vadd.f32 %v1671, %v1951
      %1953 = vmatprep.mubr.bf16.mxu0 %v947
      %1954 = vmatmul.mubr.bf16.gmra.mxu0 %v946
      %v1955 = vpop.f32.mrf.mxu0
      %v1956 = vadd.f32 %v1675, %v1955
      %v1957 = vpop.f32.mrf.mxu0
      %v1958 = vadd.f32 %v1677, %v1957
      %v1959 = vpop.f32.mrf.mxu0
      %v1960 = vadd.f32 %v1679, %v1959
      %v1961 = vpop.f32.mrf.mxu0
      %v1962 = vadd.f32 %v1681, %v1961
      %1963 = vmatprep.mubr.bf16.mxu0 %v952
      %1964 = vmatmul.mubr.bf16.gmra.mxu0 %v951
      %v1965 = vpop.f32.mrf.mxu0
      %v1966 = vadd.f32 %v1685, %v1965
      %v1967 = vpop.f32.mrf.mxu0
      %v1968 = vadd.f32 %v1687, %v1967
      %v1969 = vpop.f32.mrf.mxu0
      %v1970 = vadd.f32 %v1689, %v1969
      %v1971 = vpop.f32.mrf.mxu0
      %v1972 = vadd.f32 %v1691, %v1971
      %1973 = vmatprep.mubr.bf16.mxu0 %v957
      %1974 = vmatmul.mubr.bf16.gmra.mxu0 %v956
      %v1975 = vpop.f32.mrf.mxu0
      %v1976 = vadd.f32 %v1695, %v1975
      %v1977 = vpop.f32.mrf.mxu0
      %v1978 = vadd.f32 %v1697, %v1977
      %v1979 = vpop.f32.mrf.mxu0
      %v1980 = vadd.f32 %v1699, %v1979
      %v1981 = vpop.f32.mrf.mxu0
      %v1982 = vadd.f32 %v1701, %v1981
      %1983 = vmatprep.mubr.bf16.mxu0 %v962
      %1984 = vmatmul.mubr.bf16.gmra.mxu0 %v961
      %v1985 = vpop.f32.mrf.mxu0
      %v1986 = vadd.f32 %v1705, %v1985
      %v1987 = vpop.f32.mrf.mxu0
      %v1988 = vadd.f32 %v1707, %v1987
      %v1989 = vpop.f32.mrf.mxu0
      %v1990 = vadd.f32 %v1709, %v1989
      %v1991 = vpop.f32.mrf.mxu0
      %v1992 = vadd.f32 %v1711, %v1991
      %1993 = vmatprep.mubr.bf16.mxu0 %v967
      %1994 = vmatmul.mubr.bf16.gmra.mxu0 %v966
      %v1995 = vpop.f32.mrf.mxu0
      %v1996 = vadd.f32 %v1715, %v1995
      %v1997 = vpop.f32.mrf.mxu0
      %v1998 = vadd.f32 %v1717, %v1997
      %v1999 = vpop.f32.mrf.mxu0
      %v2000 = vadd.f32 %v1719, %v1999
      %v2001 = vpop.f32.mrf.mxu0
      %v2002 = vadd.f32 %v1721, %v2001
      %2003 = vmatprep.mubr.bf16.mxu0 %v972
      %2004 = vmatmul.mubr.bf16.gmra.mxu0 %v971
      %v2005 = vpop.f32.mrf.mxu0
      %v2006 = vadd.f32 %v1725, %v2005
      %v2007 = vpop.f32.mrf.mxu0
      %v2008 = vadd.f32 %v1727, %v2007
      %v2009 = vpop.f32.mrf.mxu0
      %v2010 = vadd.f32 %v1729, %v2009
      %v2011 = vpop.f32.mrf.mxu0
      %v2012 = vadd.f32 %v1731, %v2011
      %2013 = vmatprep.mubr.bf16.mxu0 %v977
      %2014 = vmatmul.mubr.bf16.gmra.mxu0 %v976
      %v2015 = vpop.f32.mrf.mxu0
      %v2016 = vadd.f32 %v1735, %v2015
      %v2017 = vpop.f32.mrf.mxu0
      %v2018 = vadd.f32 %v1737, %v2017
      %v2019 = vpop.f32.mrf.mxu0
      %v2020 = vadd.f32 %v1739, %v2019
      %v2021 = vpop.f32.mrf.mxu0
      %v2022 = vadd.f32 %v1741, %v2021
      %2023 = vmatprep.mubr.bf16.mxu0 %v982
      %2024 = vmatmul.mubr.bf16.gmra.mxu0 %v981
      %v2025 = vpop.f32.mrf.mxu0
      %v2026 = vadd.f32 %v1745, %v2025
      %v2027 = vpop.f32.mrf.mxu0
      %v2028 = vadd.f32 %v1747, %v2027
      %v2029 = vpop.f32.mrf.mxu0
      %v2030 = vadd.f32 %v1749, %v2029
      %v2031 = vpop.f32.mrf.mxu0
      %v2032 = vadd.f32 %v1751, %v2031
      %2033 = vmatprep.mubr.bf16.mxu0 %v987
      %2034 = vmatmul.mubr.bf16.gmra.mxu0 %v986
      %v2035 = vpop.f32.mrf.mxu0
      %v2036 = vadd.f32 %v1755, %v2035
      %v2037 = vpop.f32.mrf.mxu0
      %v2038 = vadd.f32 %v1757, %v2037
      %v2039 = vpop.f32.mrf.mxu0
      %v2040 = vadd.f32 %v1759, %v2039
      %v2041 = vpop.f32.mrf.mxu0
      %v2042 = vadd.f32 %v1761, %v2041
      %2043 = vmatprep.mubr.bf16.mxu0 %v992
      %2044 = vmatmul.mubr.bf16.gmra.mxu0 %v991
      %v2045 = vpop.f32.mrf.mxu0
      %v2046 = vadd.f32 %v1765, %v2045
      %v2047 = vpop.f32.mrf.mxu0
      %v2048 = vadd.f32 %v1767, %v2047
      %v2049 = vpop.f32.mrf.mxu0
      %v2050 = vadd.f32 %v1769, %v2049
      %v2051 = vpop.f32.mrf.mxu0
      %v2052 = vadd.f32 %v1771, %v2051
      %2053 = vmatprep.mubr.bf16.mxu0 %v997
      %2054 = vmatmul.mubr.bf16.gmra.mxu0 %v996
      %v2055 = vpop.f32.mrf.mxu0
      %v2056 = vadd.f32 %v1775, %v2055
      %v2057 = vpop.f32.mrf.mxu0
      %v2058 = vadd.f32 %v1777, %v2057
      %v2059 = vpop.f32.mrf.mxu0
      %v2060 = vadd.f32 %v1779, %v2059
      %v2061 = vpop.f32.mrf.mxu0
      %v2062 = vadd.f32 %v1781, %v2061
      %2063 = vmatprep.mubr.bf16.mxu0 %v1002
      %2064 = vmatmul.mubr.bf16.gmra.mxu0 %v1001
      %v2065 = vpop.f32.mrf.mxu0
      %v2066 = vadd.f32 %v1785, %v2065
      %v2067 = vpop.f32.mrf.mxu0
      %v2068 = vadd.f32 %v1787, %v2067
      %v2069 = vpop.f32.mrf.mxu0
      %v2070 = vadd.f32 %v1789, %v2069
      %v2071 = vpop.f32.mrf.mxu0
      %v2072 = vadd.f32 %v1791, %v2071
      %2073 = vmatprep.mubr.bf16.mxu0 %v1007
      %2074 = vmatmul.mubr.bf16.gmra.mxu0 %v1006
      %v2075 = vpop.f32.mrf.mxu0
      %v2076 = vadd.f32 %v1795, %v2075
      %v2077 = vpop.f32.mrf.mxu0
      %v2078 = vadd.f32 %v1797, %v2077
      %v2079 = vpop.f32.mrf.mxu0
      %v2080 = vadd.f32 %v1799, %v2079
      %v2081 = vpop.f32.mrf.mxu0
      %v2082 = vadd.f32 %v1801, %v2081
      %2083 = vmatprep.mubr.bf16.mxu0 %v1012
      %2084 = vmatmul.mubr.bf16.gmra.mxu0 %v1011
      %v2085 = vpop.f32.mrf.mxu0
      %v2086 = vadd.f32 %v1805, %v2085
      %v2087 = vpop.f32.mrf.mxu0
      %v2088 = vadd.f32 %v1807, %v2087
      %v2089 = vpop.f32.mrf.mxu0
      %v2090 = vadd.f32 %v1809, %v2089
      %v2091 = vpop.f32.mrf.mxu0
      %v2092 = vadd.f32 %v1811, %v2091
      %2093 = vmatprep.mubr.bf16.mxu0 %v1017
      %2094 = vmatmul.mubr.bf16.gmra.mxu0 %v1016
      %v2095 = vpop.f32.mrf.mxu0
      %v2096 = vadd.f32 %v1815, %v2095
      %v2097 = vpop.f32.mrf.mxu0
      %v2098 = vadd.f32 %v1817, %v2097
      %v2099 = vpop.f32.mrf.mxu0
      %v2100 = vadd.f32 %v1819, %v2099
      %v2101 = vpop.f32.mrf.mxu0
      %v2102 = vadd.f32 %v1821, %v2101
      %2103 = vmatprep.mubr.bf16.mxu0 %v1022
      %2104 = vmatmul.mubr.bf16.gmra.mxu0 %v1021
      %v2105 = vpop.f32.mrf.mxu0
      %v2106 = vadd.f32 %v1825, %v2105
      %v2107 = vpop.f32.mrf.mxu0
      %v2108 = vadd.f32 %v1827, %v2107
      %v2109 = vpop.f32.mrf.mxu0
      %v2110 = vadd.f32 %v1829, %v2109
      %v2111 = vpop.f32.mrf.mxu0
      %v2112 = vadd.f32 %v1831, %v2111
      %2113 = vmatprep.mubr.bf16.mxu0 %v1027
      %2114 = vmatmul.mubr.bf16.gmra.mxu0 %v1026
      %v2115 = vpop.f32.mrf.mxu0
      %v2116 = vadd.f32 %v1835, %v2115
      %v2117 = vpop.f32.mrf.mxu0
      %v2118 = vadd.f32 %v1837, %v2117
      %v2119 = vpop.f32.mrf.mxu0
      %v2120 = vadd.f32 %v1839, %v2119
      %v2121 = vpop.f32.mrf.mxu0
      %v2122 = vadd.f32 %v1841, %v2121
      %2123 = vmatprep.mubr.bf16.mxu0 %v1032
      %2124 = vmatmul.mubr.bf16.gmra.mxu0 %v1031
      %v2125 = vpop.f32.mrf.mxu0
      %v2126 = vadd.f32 %v1845, %v2125
      %v2127 = vpop.f32.mrf.mxu0
      %v2128 = vadd.f32 %v1847, %v2127
      %v2129 = vpop.f32.mrf.mxu0
      %v2130 = vpop.f32.mrf.mxu0
      %2131 = vdwg.mxu0
      %2132 = vmatprep.subr.bf16.mxu0 0
      %2133 = vmatpush1.bf16.msra.mxu0 0
      %2134 = vmatprep.subr.bf16.mxu0 0
      %2135 = vmatpush1.bf16.msra.mxu0 0
      %2136 = vmatprep.subr.bf16.mxu0 0
      %2137 = vmatpush1.bf16.msra.mxu0 0
      %2138 = vmatprep.subr.bf16.mxu0 0
      %2139 = vmatpush1.bf16.msra.mxu0 0
      %2140 = vmatprep.subr.bf16.mxu0 %v1421
      %2141 = vmatpush1.bf16.msra.mxu0 %v1420
      %2142 = vmatprep.subr.bf16.mxu0 %v1419
      %2143 = vmatpush1.bf16.msra.mxu0 %v1418
      %2144 = vmatprep.subr.bf16.mxu0 %v1417
      %2145 = vmatpush1.bf16.msra.mxu0 %v1416
      %2146 = vmatprep.subr.bf16.mxu0 %v1415
      %2147 = vmatpush1.bf16.msra.mxu0 %v1414
      %2148 = vmatprep.subr.bf16.mxu0 0
      %2149 = vmatpush2.bf16.msra.mxu0 0
      %2150 = vmatprep.subr.bf16.mxu0 0
      %2151 = vmatpush2.bf16.msra.mxu0 0
      %2152 = vmatprep.subr.bf16.mxu0 0
      %2153 = vmatpush2.bf16.msra.mxu0 0
      %2154 = vmatprep.subr.bf16.mxu0 0
      %2155 = vmatpush2.bf16.msra.mxu0 0
      %2156 = vmatprep.subr.bf16.mxu0 0
      %2157 = vmatpush2.bf16.msra.mxu0 0
      %2158 = vmatprep.subr.bf16.mxu0 0
      %2159 = vmatpush2.bf16.msra.mxu0 0
      %2160 = vmatprep.subr.bf16.mxu0 0
      %2161 = vmatpush2.bf16.msra.mxu0 0
      %2162 = vmatprep.subr.bf16.mxu0 0
      %2163 = vmatpush2.bf16.msra.mxu0 0
      %2164 = vmatprep.mubr.bf16.mxu0 0
      %2165 = vmatmul.mubr.bf16.gmra.mxu0 %v1496
      %v2166 = vpop.f32.mrf.mxu0
      %v2167 = vadd.f32 %v1886, %v2166
      %v2168 = vpop.f32.mrf.mxu0
      %v2169 = vadd.f32 %v1888, %v2168
      %v2170 = vpop.f32.mrf.mxu0
      %v2171 = vadd.f32 %v1890, %v2170
      %v2172 = vpop.f32.mrf.mxu0
      %v2173 = vadd.f32 %v1892, %v2172
      %2174 = vmatprep.mubr.bf16.mxu0 0
      %2175 = vmatmul.mubr.bf16.gmra.mxu0 %v1499
      %v2176 = vpop.f32.mrf.mxu0
      %v2177 = vadd.f32 %v1896, %v2176
      %v2178 = vpop.f32.mrf.mxu0
      %v2179 = vadd.f32 %v1898, %v2178
      %v2180 = vpop.f32.mrf.mxu0
      %v2181 = vadd.f32 %v1900, %v2180
      %v2182 = vpop.f32.mrf.mxu0
      %v2183 = vadd.f32 %v1902, %v2182
      %2184 = vmatprep.mubr.bf16.mxu0 0
      %2185 = vmatmul.mubr.bf16.gmra.mxu0 %v1502
      %v2186 = vpop.f32.mrf.mxu0
      %v2187 = vadd.f32 %v1906, %v2186
      %v2188 = vpop.f32.mrf.mxu0
      %v2189 = vadd.f32 %v1908, %v2188
      %v2190 = vpop.f32.mrf.mxu0
      %v2191 = vadd.f32 %v1910, %v2190
      %v2192 = vpop.f32.mrf.mxu0
      %v2193 = vadd.f32 %v1912, %v2192
      %2194 = vmatprep.mubr.bf16.mxu0 0
      %2195 = vmatmul.mubr.bf16.gmra.mxu0 %v1505
      %v2196 = vpop.f32.mrf.mxu0
      %v2197 = vadd.f32 %v1916, %v2196
      %v2198 = vpop.f32.mrf.mxu0
      %v2199 = vadd.f32 %v1918, %v2198
      %v2200 = vpop.f32.mrf.mxu0
      %v2201 = vadd.f32 %v1920, %v2200
      %v2202 = vpop.f32.mrf.mxu0
      %v2203 = vadd.f32 %v1922, %v2202
      %2204 = vmatprep.mubr.bf16.mxu0 0
      %2205 = vmatmul.mubr.bf16.gmra.mxu0 %v1508
      %v2206 = vpop.f32.mrf.mxu0
      %v2207 = vadd.f32 %v1926, %v2206
      %v2208 = vpop.f32.mrf.mxu0
      %v2209 = vadd.f32 %v1928, %v2208
      %v2210 = vpop.f32.mrf.mxu0
      %v2211 = vadd.f32 %v1930, %v2210
      %v2212 = vpop.f32.mrf.mxu0
      %v2213 = vadd.f32 %v1932, %v2212
      %2214 = vmatprep.mubr.bf16.mxu0 0
      %2215 = vmatmul.mubr.bf16.gmra.mxu0 %v1511
      %v2216 = vpop.f32.mrf.mxu0
      %v2217 = vadd.f32 %v1936, %v2216
      %v2218 = vpop.f32.mrf.mxu0
      %v2219 = vadd.f32 %v1938, %v2218
      %v2220 = vpop.f32.mrf.mxu0
      %v2221 = vadd.f32 %v1940, %v2220
      %v2222 = vpop.f32.mrf.mxu0
      %v2223 = vadd.f32 %v1942, %v2222
      %2224 = vmatprep.mubr.bf16.mxu0 0
      %2225 = vmatmul.mubr.bf16.gmra.mxu0 %v1514
      %v2226 = vpop.f32.mrf.mxu0
      %v2227 = vadd.f32 %v1946, %v2226
      %v2228 = vpop.f32.mrf.mxu0
      %v2229 = vadd.f32 %v1948, %v2228
      %v2230 = vpop.f32.mrf.mxu0
      %v2231 = vadd.f32 %v1950, %v2230
      %v2232 = vpop.f32.mrf.mxu0
      %v2233 = vadd.f32 %v1952, %v2232
      %2234 = vmatprep.mubr.bf16.mxu0 0
      %2235 = vmatmul.mubr.bf16.gmra.mxu0 %v1517
      %v2236 = vpop.f32.mrf.mxu0
      %v2237 = vadd.f32 %v1956, %v2236
      %v2238 = vpop.f32.mrf.mxu0
      %v2239 = vadd.f32 %v1958, %v2238
      %v2240 = vpop.f32.mrf.mxu0
      %v2241 = vadd.f32 %v1960, %v2240
      %v2242 = vpop.f32.mrf.mxu0
      %v2243 = vadd.f32 %v1962, %v2242
      %2244 = vmatprep.mubr.bf16.mxu0 0
      %2245 = vmatmul.mubr.bf16.gmra.mxu0 %v1520
      %v2246 = vpop.f32.mrf.mxu0
      %v2247 = vadd.f32 %v1966, %v2246
      %v2248 = vpop.f32.mrf.mxu0
      %v2249 = vadd.f32 %v1968, %v2248
      %v2250 = vpop.f32.mrf.mxu0
      %v2251 = vadd.f32 %v1970, %v2250
      %v2252 = vpop.f32.mrf.mxu0
      %v2253 = vadd.f32 %v1972, %v2252
      %2254 = vmatprep.mubr.bf16.mxu0 0
      %2255 = vmatmul.mubr.bf16.gmra.mxu0 %v1523
      %v2256 = vpop.f32.mrf.mxu0
      %v2257 = vadd.f32 %v1976, %v2256
      %v2258 = vpop.f32.mrf.mxu0
      %v2259 = vadd.f32 %v1978, %v2258
      %v2260 = vpop.f32.mrf.mxu0
      %v2261 = vadd.f32 %v1980, %v2260
      %v2262 = vpop.f32.mrf.mxu0
      %v2263 = vadd.f32 %v1982, %v2262
      %2264 = vmatprep.mubr.bf16.mxu0 0
      %2265 = vmatmul.mubr.bf16.gmra.mxu0 %v1526
      %v2266 = vpop.f32.mrf.mxu0
      %v2267 = vadd.f32 %v1986, %v2266
      %v2268 = vpop.f32.mrf.mxu0
      %v2269 = vadd.f32 %v1988, %v2268
      %v2270 = vpop.f32.mrf.mxu0
      %v2271 = vadd.f32 %v1990, %v2270
      %v2272 = vpop.f32.mrf.mxu0
      %v2273 = vadd.f32 %v1992, %v2272
      %2274 = vmatprep.mubr.bf16.mxu0 0
      %2275 = vmatmul.mubr.bf16.gmra.mxu0 %v1529
      %v2276 = vpop.f32.mrf.mxu0
      %v2277 = vadd.f32 %v1996, %v2276
      %v2278 = vpop.f32.mrf.mxu0
      %v2279 = vadd.f32 %v1998, %v2278
      %v2280 = vpop.f32.mrf.mxu0
      %v2281 = vadd.f32 %v2000, %v2280
      %v2282 = vpop.f32.mrf.mxu0
      %v2283 = vadd.f32 %v2002, %v2282
      %2284 = vmatprep.mubr.bf16.mxu0 0
      %2285 = vmatmul.mubr.bf16.gmra.mxu0 %v1532
      %v2286 = vpop.f32.mrf.mxu0
      %v2287 = vadd.f32 %v2006, %v2286
      %v2288 = vpop.f32.mrf.mxu0
      %v2289 = vadd.f32 %v2008, %v2288
      %v2290 = vpop.f32.mrf.mxu0
      %v2291 = vadd.f32 %v2010, %v2290
      %v2292 = vpop.f32.mrf.mxu0
      %v2293 = vadd.f32 %v2012, %v2292
      %2294 = vmatprep.mubr.bf16.mxu0 0
      %2295 = vmatmul.mubr.bf16.gmra.mxu0 %v1535
      %v2296 = vpop.f32.mrf.mxu0
      %v2297 = vadd.f32 %v2016, %v2296
      %v2298 = vpop.f32.mrf.mxu0
      %v2299 = vadd.f32 %v2018, %v2298
      %v2300 = vpop.f32.mrf.mxu0
      %v2301 = vadd.f32 %v2020, %v2300
      %v2302 = vpop.f32.mrf.mxu0
      %v2303 = vadd.f32 %v2022, %v2302
      %2304 = vmatprep.mubr.bf16.mxu0 0
      %2305 = vmatmul.mubr.bf16.gmra.mxu0 %v1538
      %v2306 = vpop.f32.mrf.mxu0
      %v2307 = vadd.f32 %v2026, %v2306
      %v2308 = vpop.f32.mrf.mxu0
      %v2309 = vadd.f32 %v2028, %v2308
      %v2310 = vpop.f32.mrf.mxu0
      %v2311 = vadd.f32 %v2030, %v2310
      %v2312 = vpop.f32.mrf.mxu0
      %v2313 = vadd.f32 %v2032, %v2312
      %2314 = vmatprep.mubr.bf16.mxu0 0
      %2315 = vmatmul.mubr.bf16.gmra.mxu0 %v1541
      %v2316 = vpop.f32.mrf.mxu0
      %v2317 = vadd.f32 %v2036, %v2316
      %v2318 = vpop.f32.mrf.mxu0
      %v2319 = vadd.f32 %v2038, %v2318
      %v2320 = vpop.f32.mrf.mxu0
      %v2321 = vadd.f32 %v2040, %v2320
      %v2322 = vpop.f32.mrf.mxu0
      %v2323 = vadd.f32 %v2042, %v2322
      %2324 = vmatprep.mubr.bf16.mxu0 0
      %2325 = vmatmul.mubr.bf16.gmra.mxu0 %v1544
      %v2326 = vpop.f32.mrf.mxu0
      %v2327 = vadd.f32 %v2046, %v2326
      %v2328 = vpop.f32.mrf.mxu0
      %v2329 = vadd.f32 %v2048, %v2328
      %v2330 = vpop.f32.mrf.mxu0
      %v2331 = vadd.f32 %v2050, %v2330
      %v2332 = vpop.f32.mrf.mxu0
      %v2333 = vadd.f32 %v2052, %v2332
      %2334 = vmatprep.mubr.bf16.mxu0 0
      %2335 = vmatmul.mubr.bf16.gmra.mxu0 %v1547
      %v2336 = vpop.f32.mrf.mxu0
      %v2337 = vadd.f32 %v2056, %v2336
      %v2338 = vpop.f32.mrf.mxu0
      %v2339 = vadd.f32 %v2058, %v2338
      %v2340 = vpop.f32.mrf.mxu0
      %v2341 = vadd.f32 %v2060, %v2340
      %v2342 = vpop.f32.mrf.mxu0
      %v2343 = vadd.f32 %v2062, %v2342
      %2344 = vmatprep.mubr.bf16.mxu0 0
      %2345 = vmatmul.mubr.bf16.gmra.mxu0 %v1550
      %v2346 = vpop.f32.mrf.mxu0
      %v2347 = vadd.f32 %v2066, %v2346
      %v2348 = vpop.f32.mrf.mxu0
      %v2349 = vadd.f32 %v2068, %v2348
      %v2350 = vpop.f32.mrf.mxu0
      %v2351 = vadd.f32 %v2070, %v2350
      %v2352 = vpop.f32.mrf.mxu0
      %v2353 = vadd.f32 %v2072, %v2352
      %2354 = vmatprep.mubr.bf16.mxu0 0
      %2355 = vmatmul.mubr.bf16.gmra.mxu0 %v1553
      %v2356 = vpop.f32.mrf.mxu0
      %v2357 = vadd.f32 %v2076, %v2356
      %v2358 = vpop.f32.mrf.mxu0
      %v2359 = vadd.f32 %v2078, %v2358
      %v2360 = vpop.f32.mrf.mxu0
      %v2361 = vadd.f32 %v2080, %v2360
      %v2362 = vpop.f32.mrf.mxu0
      %v2363 = vadd.f32 %v2082, %v2362
      %2364 = vmatprep.mubr.bf16.mxu0 0
      %2365 = vmatmul.mubr.bf16.gmra.mxu0 %v1556
      %v2366 = vpop.f32.mrf.mxu0
      %v2367 = vadd.f32 %v2086, %v2366
      %v2368 = vpop.f32.mrf.mxu0
      %v2369 = vadd.f32 %v2088, %v2368
      %v2370 = vpop.f32.mrf.mxu0
      %v2371 = vadd.f32 %v2090, %v2370
      %v2372 = vpop.f32.mrf.mxu0
      %v2373 = vadd.f32 %v2092, %v2372
      %2374 = vmatprep.mubr.bf16.mxu0 0
      %2375 = vmatmul.mubr.bf16.gmra.mxu0 %v1559
      %v2376 = vpop.f32.mrf.mxu0
      %v2377 = vadd.f32 %v2096, %v2376
      %v2378 = vpop.f32.mrf.mxu0
      %v2379 = vadd.f32 %v2098, %v2378
      %v2380 = vpop.f32.mrf.mxu0
      %v2381 = vadd.f32 %v2100, %v2380
      %v2382 = vpop.f32.mrf.mxu0
      %v2383 = vadd.f32 %v2102, %v2382
      %2384 = vmatprep.mubr.bf16.mxu0 0
      %2385 = vmatmul.mubr.bf16.gmra.mxu0 %v1562
      %v2386 = vpop.f32.mrf.mxu0
      %v2387 = vadd.f32 %v2106, %v2386
      %v2388 = vpop.f32.mrf.mxu0
      %v2389 = vadd.f32 %v2108, %v2388
      %v2390 = vpop.f32.mrf.mxu0
      %v2391 = vadd.f32 %v2110, %v2390
      %v2392 = vpop.f32.mrf.mxu0
      %v2393 = vadd.f32 %v2112, %v2392
      %2394 = vmatprep.mubr.bf16.mxu0 0
      %2395 = vmatmul.mubr.bf16.gmra.mxu0 %v1565
      %v2396 = vpop.f32.mrf.mxu0
      %v2397 = vadd.f32 %v2116, %v2396
      %v2398 = vpop.f32.mrf.mxu0
      %v2399 = vadd.f32 %v2118, %v2398
      %v2400 = vpop.f32.mrf.mxu0
      %v2401 = vadd.f32 %v2120, %v2400
      %v2402 = vpop.f32.mrf.mxu0
      %v2403 = vadd.f32 %v2122, %v2402
      %2404 = vmatprep.mubr.bf16.mxu0 0
      %2405 = vmatmul.mubr.bf16.gmra.mxu0 %v1568
      %v2406 = vpop.f32.mrf.mxu0
      %v2407 = vadd.f32 %v2126, %v2406
      %v2408 = vpop.f32.mrf.mxu0
      %v2409 = vadd.f32 %v2128, %v2408
      %v2410 = vpop.f32.mrf.mxu0
      %v2411 = vpop.f32.mrf.mxu0
      %2412 = vdwg.mxu0
      %v2413 = vmax.f32 %v2167, 0.0
      %v2414 = vmax.f32 %v2169, 0.0
      %v2415 = vmax.f32 %v2171, 0.0
      %v2416 = vmax.f32 %v2173, 0.0
      %v2417 = vmax.f32 %v2177, 0.0
      %v2418 = vmax.f32 %v2179, 0.0
      %v2419 = vmax.f32 %v2181, 0.0
      %v2420 = vmax.f32 %v2183, 0.0
      %v2421 = vmax.f32 %v2187, 0.0
      %v2422 = vmax.f32 %v2189, 0.0
      %v2423 = vmax.f32 %v2191, 0.0
      %v2424 = vmax.f32 %v2193, 0.0
      %v2425 = vmax.f32 %v2197, 0.0
      %v2426 = vmax.f32 %v2199, 0.0
      %v2427 = vmax.f32 %v2201, 0.0
      %v2428 = vmax.f32 %v2203, 0.0
      %v2429 = vmax.f32 %v2207, 0.0
      %v2430 = vmax.f32 %v2209, 0.0
      %v2431 = vmax.f32 %v2211, 0.0
      %v2432 = vmax.f32 %v2213, 0.0
      %v2433 = vmax.f32 %v2217, 0.0
      %v2434 = vmax.f32 %v2219, 0.0
      %v2435 = vmax.f32 %v2221, 0.0
      %v2436 = vmax.f32 %v2223, 0.0
      %v2437 = vmax.f32 %v2227, 0.0
      %v2438 = vmax.f32 %v2229, 0.0
      %v2439 = vmax.f32 %v2231, 0.0
      %v2440 = vmax.f32 %v2233, 0.0
      %v2441 = vmax.f32 %v2237, 0.0
      %v2442 = vmax.f32 %v2239, 0.0
      %v2443 = vmax.f32 %v2241, 0.0
      %v2444 = vmax.f32 %v2243, 0.0
      %v2445 = vmax.f32 %v2247, 0.0
      %v2446 = vmax.f32 %v2249, 0.0
      %v2447 = vmax.f32 %v2251, 0.0
      %v2448 = vmax.f32 %v2253, 0.0
      %v2449 = vmax.f32 %v2257, 0.0
      %v2450 = vmax.f32 %v2259, 0.0
      %v2451 = vmax.f32 %v2261, 0.0
      %v2452 = vmax.f32 %v2263, 0.0
      %v2453 = vmax.f32 %v2267, 0.0
      %v2454 = vmax.f32 %v2269, 0.0
      %v2455 = vmax.f32 %v2271, 0.0
      %v2456 = vmax.f32 %v2273, 0.0
      %v2457 = vmax.f32 %v2277, 0.0
      %v2458 = vmax.f32 %v2279, 0.0
      %v2459 = vmax.f32 %v2281, 0.0
      %v2460 = vmax.f32 %v2283, 0.0
      %v2461 = vmax.f32 %v2287, 0.0
      %v2462 = vmax.f32 %v2289, 0.0
      %v2463 = vmax.f32 %v2291, 0.0
      %v2464 = vmax.f32 %v2293, 0.0
      %v2465 = vmax.f32 %v2297, 0.0
      %v2466 = vmax.f32 %v2299, 0.0
      %v2467 = vmax.f32 %v2301, 0.0
      %v2468 = vmax.f32 %v2303, 0.0
      %v2469 = vmax.f32 %v2307, 0.0
      %v2470 = vmax.f32 %v2309, 0.0
      %v2471 = vmax.f32 %v2311, 0.0
      %v2472 = vmax.f32 %v2313, 0.0
      %v2473 = vmax.f32 %v2317, 0.0
      %v2474 = vmax.f32 %v2319, 0.0
      %v2475 = vmax.f32 %v2321, 0.0
      %v2476 = vmax.f32 %v2323, 0.0
      %v2477 = vmax.f32 %v2327, 0.0
      %v2478 = vmax.f32 %v2329, 0.0
      %v2479 = vmax.f32 %v2331, 0.0
      %v2480 = vmax.f32 %v2333, 0.0
      %v2481 = vmax.f32 %v2337, 0.0
      %v2482 = vmax.f32 %v2339, 0.0
      %v2483 = vmax.f32 %v2341, 0.0
      %v2484 = vmax.f32 %v2343, 0.0
      %v2485 = vmax.f32 %v2347, 0.0
      %v2486 = vmax.f32 %v2349, 0.0
      %v2487 = vmax.f32 %v2351, 0.0
      %v2488 = vmax.f32 %v2353, 0.0
      %v2489 = vmax.f32 %v2357, 0.0
      %v2490 = vmax.f32 %v2359, 0.0
      %v2491 = vmax.f32 %v2361, 0.0
      %v2492 = vmax.f32 %v2363, 0.0
      %v2493 = vmax.f32 %v2367, 0.0
      %v2494 = vmax.f32 %v2369, 0.0
      %v2495 = vmax.f32 %v2371, 0.0
      %v2496 = vmax.f32 %v2373, 0.0
      %v2497 = vmax.f32 %v2377, 0.0
      %v2498 = vmax.f32 %v2379, 0.0
      %v2499 = vmax.f32 %v2381, 0.0
      %v2500 = vmax.f32 %v2383, 0.0
      %v2501 = vmax.f32 %v2387, 0.0
      %v2502 = vmax.f32 %v2389, 0.0
      %v2503 = vmax.f32 %v2391, 0.0
      %v2504 = vmax.f32 %v2393, 0.0
      %v2505 = vmax.f32 %v2397, 0.0
      %v2506 = vmax.f32 %v2399, 0.0
      %v2507 = vmax.f32 %v2401, 0.0
      %v2508 = vmax.f32 %v2403, 0.0
      %v2509 = vmax.f32 %v2407, 0.0
      %v2510 = vmax.f32 %v2409, 0.0
      %v2511 = vpack.c.bf16 %v2415, %v2413
      %v2512 = vpack.c.bf16 %v2416, %v2414
      %v2513 = vpack.c.bf16 %v2419, %v2417
      %v2514 = vpack.c.bf16 %v2420, %v2418
      %v2515 = vpack.c.bf16 %v2423, %v2421
      %v2516 = vpack.c.bf16 %v2424, %v2422
      %v2517 = vpack.c.bf16 %v2427, %v2425
      %v2518 = vpack.c.bf16 %v2428, %v2426
      %v2519 = vpack.c.bf16 %v2431, %v2429
      %v2520 = vpack.c.bf16 %v2432, %v2430
      %v2521 = vpack.c.bf16 %v2435, %v2433
      %v2522 = vpack.c.bf16 %v2436, %v2434
      %v2523 = vpack.c.bf16 %v2439, %v2437
      %v2524 = vpack.c.bf16 %v2440, %v2438
      %v2525 = vpack.c.bf16 %v2443, %v2441
      %v2526 = vpack.c.bf16 %v2444, %v2442
      %v2527 = vpack.c.bf16 %v2447, %v2445
      %v2528 = vpack.c.bf16 %v2448, %v2446
      %v2529 = vpack.c.bf16 %v2451, %v2449
      %v2530 = vpack.c.bf16 %v2452, %v2450
      %v2531 = vpack.c.bf16 %v2455, %v2453
      %v2532 = vpack.c.bf16 %v2456, %v2454
      %v2533 = vpack.c.bf16 %v2459, %v2457
      %v2534 = vpack.c.bf16 %v2460, %v2458
      %v2535 = vpack.c.bf16 %v2463, %v2461
      %v2536 = vpack.c.bf16 %v2464, %v2462
      %v2537 = vpack.c.bf16 %v2467, %v2465
      %v2538 = vpack.c.bf16 %v2468, %v2466
      %v2539 = vpack.c.bf16 %v2471, %v2469
      %v2540 = vpack.c.bf16 %v2472, %v2470
      %v2541 = vpack.c.bf16 %v2475, %v2473
      %v2542 = vpack.c.bf16 %v2476, %v2474
      %v2543 = vpack.c.bf16 %v2479, %v2477
      %v2544 = vpack.c.bf16 %v2480, %v2478
      %v2545 = vpack.c.bf16 %v2483, %v2481
      %v2546 = vpack.c.bf16 %v2484, %v2482
      %v2547 = vpack.c.bf16 %v2487, %v2485
      %v2548 = vpack.c.bf16 %v2488, %v2486
      %v2549 = vpack.c.bf16 %v2491, %v2489
      %v2550 = vpack.c.bf16 %v2492, %v2490
      %v2551 = vpack.c.bf16 %v2495, %v2493
      %v2552 = vpack.c.bf16 %v2496, %v2494
      %v2553 = vpack.c.bf16 %v2499, %v2497
      %v2554 = vpack.c.bf16 %v2500, %v2498
      %v2555 = vpack.c.bf16 %v2503, %v2501
      %v2556 = vpack.c.bf16 %v2504, %v2502
      %v2557 = vpack.c.bf16 %v2507, %v2505
      %v2558 = vpack.c.bf16 %v2508, %v2506
      %v2559 = vpack.c.bf16 %v2509, %v2509
      %v2560 = vpack.c.bf16 %v2510, %v2510
      %v2561 = vld [vmem:[%s3] sm:$0xf]
      %v2562 = vld [vmem:[%s3 + $0x4] sm:$0xf]
      %v2563 = vld [vmem:[%s3 + $0x8] sm:$0xf]
      %v2564 = vld [vmem:[%s3 + $0xc] sm:$0xf]
      %v2565 = vld [vmem:[%s3 + $0x10] sm:$0xf]
      %v2566 = vld [vmem:[%s3 + $0x14] sm:$0xf]
      %v2567 = vld [vmem:[%s3 + $0x18] sm:$0xf]
      %v2568 = vld [vmem:[%s3 + $0x1c] sm:$0xf]
      %v2569 = vld [vmem:[%s3 + $0x20] sm:$0xf]
      %v2570 = vld [vmem:[%s3 + $0x24] sm:$0xf]
      %v2571 = vld [vmem:[%s3 + $0x28] sm:$0xf]
      %v2572 = vld [vmem:[%s3 + $0x2c] sm:$0xf]
      %v2573 = vld [vmem:[%s3 + $0x30] sm:$0xf]
      %v2574 = vld [vmem:[%s3 + $0x34] sm:$0xf]
      %v2575 = vld [vmem:[%s3 + $0x38] sm:$0xf]
      %v2576 = vld [vmem:[%s3 + $0x3c] sm:$0xf]
      %v2577 = vld [vmem:[%s3 + $0x40] sm:$0xf]
      %v2578 = vld [vmem:[%s3 + $0x44] sm:$0xf]
      %v2579 = vld [vmem:[%s3 + $0x48] sm:$0xf]
      %v2580 = vld [vmem:[%s3 + $0x4c] sm:$0xf]
      %v2581 = vld [vmem:[%s3 + $0x50] sm:$0xf]
      %v2582 = vld [vmem:[%s3 + $0x54] sm:$0xf]
      %v2583 = vld [vmem:[%s3 + $0x58] sm:$0xf]
      %v2584 = vld [vmem:[%s3 + $0x5c] sm:$0xf]
      %v2585 = vld [vmem:[%s3 + $0x60] sm:$0xf]
      %v2586 = vld [vmem:[%s3 + $0x64] sm:$0xf]
      %v2587 = vld [vmem:[%s3 + $0x68] sm:$0xf]
      %v2588 = vld [vmem:[%s3 + $0x6c] sm:$0xf]
      %v2589 = vld [vmem:[%s3 + $0x70] sm:$0xf]
      %v2590 = vld [vmem:[%s3 + $0x74] sm:$0xf]
      %v2591 = vld [vmem:[%s3 + $0x78] sm:$0xf]
      %v2592 = vld [vmem:[%s3 + $0x7c] sm:$0xf]
      %v2593 = vld [vmem:[%s4] sm:$0x1]
      %v2595 = vlaneseq
      %v2596 = vshrl.u32 %v2595, 7
      %v2597 = vsub.s32 0, %v2596
      %v2598 = vrot.slane %v2593, %v2597
      %v2632 = vunpack.c.l.b16 %v2561
      %v2633 = vunpack.c.l.b16 %v2562
      %v2634 = vunpack.c.l.b16 %v2563
      %v2635 = vunpack.c.l.b16 %v2564
      %v2636 = vunpack.c.l.b16 %v2565
      %v2637 = vunpack.c.l.b16 %v2566
      %v2638 = vunpack.c.l.b16 %v2567
      %v2639 = vunpack.c.l.b16 %v2568
      %v2640 = vunpack.c.l.b16 %v2569
      %v2641 = vunpack.c.l.b16 %v2570
      %v2642 = vunpack.c.l.b16 %v2571
      %v2643 = vunpack.c.l.b16 %v2572
      %v2644 = vunpack.c.l.b16 %v2573
      %v2645 = vunpack.c.l.b16 %v2574
      %v2646 = vunpack.c.l.b16 %v2575
      %v2647 = vunpack.c.l.b16 %v2576
      %v2648 = vunpack.c.l.b16 %v2577
      %v2649 = vunpack.c.l.b16 %v2578
      %v2650 = vunpack.c.l.b16 %v2579
      %v2651 = vunpack.c.l.b16 %v2580
      %v2652 = vunpack.c.l.b16 %v2581
      %v2653 = vunpack.c.l.b16 %v2582
      %v2654 = vunpack.c.l.b16 %v2583
      %v2655 = vunpack.c.l.b16 %v2584
      %v2656 = vunpack.c.l.b16 %v2585
      %v2657 = vunpack.c.l.b16 %v2586
      %v2658 = vunpack.c.l.b16 %v2587
      %v2659 = vunpack.c.l.b16 %v2588
      %v2660 = vunpack.c.l.b16 %v2589
      %v2661 = vunpack.c.l.b16 %v2590
      %v2662 = vunpack.c.l.b16 %v2591
      %v2663 = vunpack.c.l.b16 %v2592
      %v2664 = vpack.c.b16 %v2633, %v2632
      %v2665 = vpack.c.b16 %v2635, %v2634
      %v2666 = vpack.c.b16 %v2637, %v2636
      %v2667 = vpack.c.b16 %v2639, %v2638
      %v2668 = vpack.c.b16 %v2641, %v2640
      %v2669 = vpack.c.b16 %v2643, %v2642
      %v2670 = vpack.c.b16 %v2645, %v2644
      %v2671 = vpack.c.b16 %v2647, %v2646
      %v2672 = vpack.c.b16 %v2649, %v2648
      %v2673 = vpack.c.b16 %v2651, %v2650
      %v2674 = vpack.c.b16 %v2653, %v2652
      %v2675 = vpack.c.b16 %v2655, %v2654
      %v2676 = vpack.c.b16 %v2657, %v2656
      %v2677 = vpack.c.b16 %v2659, %v2658
      %v2678 = vpack.c.b16 %v2661, %v2660
      %v2679 = vpack.c.b16 %v2663, %v2662
      %2696 = vmatprep.subr.bf16.mxu0 0
      %2697 = vmatpush1.bf16.msra.mxu0 %v2671
      %2698 = vmatprep.subr.bf16.mxu0 0
      %2699 = vmatpush1.bf16.msra.mxu0 %v2670
      %2700 = vmatprep.subr.bf16.mxu0 0
      %2701 = vmatpush1.bf16.msra.mxu0 %v2669
      %2702 = vmatprep.subr.bf16.mxu0 0
      %2703 = vmatpush1.bf16.msra.mxu0 %v2668
      %2704 = vmatprep.subr.bf16.mxu0 0
      %2705 = vmatpush1.bf16.msra.mxu0 %v2667
      %2706 = vmatprep.subr.bf16.mxu0 0
      %2707 = vmatpush1.bf16.msra.mxu0 %v2666
      %2708 = vmatprep.subr.bf16.mxu0 0
      %2709 = vmatpush1.bf16.msra.mxu0 %v2665
      %2710 = vmatprep.subr.bf16.mxu0 0
      %2711 = vmatpush1.bf16.msra.mxu0 %v2664
      %2712 = vmatprep.subr.bf16.mxu0 0
      %2713 = vmatpush2.bf16.msra.mxu0 %v2679
      %2714 = vmatprep.subr.bf16.mxu0 0
      %2715 = vmatpush2.bf16.msra.mxu0 %v2678
      %2716 = vmatprep.subr.bf16.mxu0 0
      %2717 = vmatpush2.bf16.msra.mxu0 %v2677
      %2718 = vmatprep.subr.bf16.mxu0 0
      %2719 = vmatpush2.bf16.msra.mxu0 %v2676
      %2720 = vmatprep.subr.bf16.mxu0 0
      %2721 = vmatpush2.bf16.msra.mxu0 %v2675
      %2722 = vmatprep.subr.bf16.mxu0 0
      %2723 = vmatpush2.bf16.msra.mxu0 %v2674
      %2724 = vmatprep.subr.bf16.mxu0 0
      %2725 = vmatpush2.bf16.msra.mxu0 %v2673
      %2726 = vmatprep.subr.bf16.mxu0 0
      %2727 = vmatpush2.bf16.msra.mxu0 %v2672
      %2728 = vmatprep.mubr.bf16.mxu0 %v2512
      %2729 = vmatmul.mubr.bf16.gmra.mxu0 %v2511
      %v2730 = vpop.f32.mrf.mxu0
      %v2731 = vadd.f32 %v2598, %v2730
      %v2732 = vpop.f32.mrf.mxu0
      %v2733 = vpop.f32.mrf.mxu0
      %v2734 = vadd.f32 %v2598, %v2733
      %v2735 = vpop.f32.mrf.mxu0
      %2736 = vmatprep.mubr.bf16.mxu0 %v2514
      %2737 = vmatmul.mubr.bf16.gmra.mxu0 %v2513
      %v2738 = vpop.f32.mrf.mxu0
      %v2739 = vadd.f32 %v2598, %v2738
      %v2740 = vpop.f32.mrf.mxu0
      %v2741 = vpop.f32.mrf.mxu0
      %v2742 = vadd.f32 %v2598, %v2741
      %v2743 = vpop.f32.mrf.mxu0
      %2744 = vmatprep.mubr.bf16.mxu0 %v2516
      %2745 = vmatmul.mubr.bf16.gmra.mxu0 %v2515
      %v2746 = vpop.f32.mrf.mxu0
      %v2747 = vadd.f32 %v2598, %v2746
      %v2748 = vpop.f32.mrf.mxu0
      %v2749 = vpop.f32.mrf.mxu0
      %v2750 = vadd.f32 %v2598, %v2749
      %v2751 = vpop.f32.mrf.mxu0
      %2752 = vmatprep.mubr.bf16.mxu0 %v2518
      %2753 = vmatmul.mubr.bf16.gmra.mxu0 %v2517
      %v2754 = vpop.f32.mrf.mxu0
      %v2755 = vadd.f32 %v2598, %v2754
      %v2756 = vpop.f32.mrf.mxu0
      %v2757 = vpop.f32.mrf.mxu0
      %v2758 = vadd.f32 %v2598, %v2757
      %v2759 = vpop.f32.mrf.mxu0
      %2760 = vmatprep.mubr.bf16.mxu0 %v2520
      %2761 = vmatmul.mubr.bf16.gmra.mxu0 %v2519
      %v2762 = vpop.f32.mrf.mxu0
      %v2763 = vadd.f32 %v2598, %v2762
      %v2764 = vpop.f32.mrf.mxu0
      %v2765 = vpop.f32.mrf.mxu0
      %v2766 = vadd.f32 %v2598, %v2765
      %v2767 = vpop.f32.mrf.mxu0
      %2768 = vmatprep.mubr.bf16.mxu0 %v2522
      %2769 = vmatmul.mubr.bf16.gmra.mxu0 %v2521
      %v2770 = vpop.f32.mrf.mxu0
      %v2771 = vadd.f32 %v2598, %v2770
      %v2772 = vpop.f32.mrf.mxu0
      %v2773 = vpop.f32.mrf.mxu0
      %v2774 = vadd.f32 %v2598, %v2773
      %v2775 = vpop.f32.mrf.mxu0
      %2776 = vmatprep.mubr.bf16.mxu0 %v2524
      %2777 = vmatmul.mubr.bf16.gmra.mxu0 %v2523
      %v2778 = vpop.f32.mrf.mxu0
      %v2779 = vadd.f32 %v2598, %v2778
      %v2780 = vpop.f32.mrf.mxu0
      %v2781 = vpop.f32.mrf.mxu0
      %v2782 = vadd.f32 %v2598, %v2781
      %v2783 = vpop.f32.mrf.mxu0
      %2784 = vmatprep.mubr.bf16.mxu0 %v2526
      %2785 = vmatmul.mubr.bf16.gmra.mxu0 %v2525
      %v2786 = vpop.f32.mrf.mxu0
      %v2787 = vadd.f32 %v2598, %v2786
      %v2788 = vpop.f32.mrf.mxu0
      %v2789 = vpop.f32.mrf.mxu0
      %v2790 = vadd.f32 %v2598, %v2789
      %v2791 = vpop.f32.mrf.mxu0
      %2792 = vmatprep.mubr.bf16.mxu0 %v2528
      %2793 = vmatmul.mubr.bf16.gmra.mxu0 %v2527
      %v2794 = vpop.f32.mrf.mxu0
      %v2795 = vadd.f32 %v2598, %v2794
      %v2796 = vpop.f32.mrf.mxu0
      %v2797 = vpop.f32.mrf.mxu0
      %v2798 = vadd.f32 %v2598, %v2797
      %v2799 = vpop.f32.mrf.mxu0
      %2800 = vmatprep.mubr.bf16.mxu0 %v2530
      %2801 = vmatmul.mubr.bf16.gmra.mxu0 %v2529
      %v2802 = vpop.f32.mrf.mxu0
      %v2803 = vadd.f32 %v2598, %v2802
      %v2804 = vpop.f32.mrf.mxu0
      %v2805 = vpop.f32.mrf.mxu0
      %v2806 = vadd.f32 %v2598, %v2805
      %v2807 = vpop.f32.mrf.mxu0
      %2808 = vmatprep.mubr.bf16.mxu0 %v2532
      %2809 = vmatmul.mubr.bf16.gmra.mxu0 %v2531
      %v2810 = vpop.f32.mrf.mxu0
      %v2811 = vadd.f32 %v2598, %v2810
      %v2812 = vpop.f32.mrf.mxu0
      %v2813 = vpop.f32.mrf.mxu0
      %v2814 = vadd.f32 %v2598, %v2813
      %v2815 = vpop.f32.mrf.mxu0
      %2816 = vmatprep.mubr.bf16.mxu0 %v2534
      %2817 = vmatmul.mubr.bf16.gmra.mxu0 %v2533
      %v2818 = vpop.f32.mrf.mxu0
      %v2819 = vadd.f32 %v2598, %v2818
      %v2820 = vpop.f32.mrf.mxu0
      %v2821 = vpop.f32.mrf.mxu0
      %v2822 = vadd.f32 %v2598, %v2821
      %v2823 = vpop.f32.mrf.mxu0
      %2824 = vmatprep.mubr.bf16.mxu0 %v2536
      %2825 = vmatmul.mubr.bf16.gmra.mxu0 %v2535
      %v2826 = vpop.f32.mrf.mxu0
      %v2827 = vadd.f32 %v2598, %v2826
      %v2828 = vpop.f32.mrf.mxu0
      %v2829 = vpop.f32.mrf.mxu0
      %v2830 = vadd.f32 %v2598, %v2829
      %v2831 = vpop.f32.mrf.mxu0
      %2832 = vmatprep.mubr.bf16.mxu0 %v2538
      %2833 = vmatmul.mubr.bf16.gmra.mxu0 %v2537
      %v2834 = vpop.f32.mrf.mxu0
      %v2835 = vadd.f32 %v2598, %v2834
      %v2836 = vpop.f32.mrf.mxu0
      %v2837 = vpop.f32.mrf.mxu0
      %v2838 = vadd.f32 %v2598, %v2837
      %v2839 = vpop.f32.mrf.mxu0
      %2840 = vmatprep.mubr.bf16.mxu0 %v2540
      %2841 = vmatmul.mubr.bf16.gmra.mxu0 %v2539
      %v2842 = vpop.f32.mrf.mxu0
      %v2843 = vadd.f32 %v2598, %v2842
      %v2844 = vpop.f32.mrf.mxu0
      %v2845 = vpop.f32.mrf.mxu0
      %v2846 = vadd.f32 %v2598, %v2845
      %v2847 = vpop.f32.mrf.mxu0
      %2848 = vmatprep.mubr.bf16.mxu0 %v2542
      %2849 = vmatmul.mubr.bf16.gmra.mxu0 %v2541
      %v2850 = vpop.f32.mrf.mxu0
      %v2851 = vadd.f32 %v2598, %v2850
      %v2852 = vpop.f32.mrf.mxu0
      %v2853 = vpop.f32.mrf.mxu0
      %v2854 = vadd.f32 %v2598, %v2853
      %v2855 = vpop.f32.mrf.mxu0
      %2856 = vmatprep.mubr.bf16.mxu0 %v2544
      %2857 = vmatmul.mubr.bf16.gmra.mxu0 %v2543
      %v2858 = vpop.f32.mrf.mxu0
      %v2859 = vadd.f32 %v2598, %v2858
      %v2860 = vpop.f32.mrf.mxu0
      %v2861 = vpop.f32.mrf.mxu0
      %v2862 = vadd.f32 %v2598, %v2861
      %v2863 = vpop.f32.mrf.mxu0
      %2864 = vmatprep.mubr.bf16.mxu0 %v2546
      %2865 = vmatmul.mubr.bf16.gmra.mxu0 %v2545
      %v2866 = vpop.f32.mrf.mxu0
      %v2867 = vadd.f32 %v2598, %v2866
      %v2868 = vpop.f32.mrf.mxu0
      %v2869 = vpop.f32.mrf.mxu0
      %v2870 = vadd.f32 %v2598, %v2869
      %v2871 = vpop.f32.mrf.mxu0
      %2872 = vmatprep.mubr.bf16.mxu0 %v2548
      %2873 = vmatmul.mubr.bf16.gmra.mxu0 %v2547
      %v2874 = vpop.f32.mrf.mxu0
      %v2875 = vadd.f32 %v2598, %v2874
      %v2876 = vpop.f32.mrf.mxu0
      %v2877 = vpop.f32.mrf.mxu0
      %v2878 = vadd.f32 %v2598, %v2877
      %v2879 = vpop.f32.mrf.mxu0
      %2880 = vmatprep.mubr.bf16.mxu0 %v2550
      %2881 = vmatmul.mubr.bf16.gmra.mxu0 %v2549
      %v2882 = vpop.f32.mrf.mxu0
      %v2883 = vadd.f32 %v2598, %v2882
      %v2884 = vpop.f32.mrf.mxu0
      %v2885 = vpop.f32.mrf.mxu0
      %v2886 = vadd.f32 %v2598, %v2885
      %v2887 = vpop.f32.mrf.mxu0
      %2888 = vmatprep.mubr.bf16.mxu0 %v2552
      %2889 = vmatmul.mubr.bf16.gmra.mxu0 %v2551
      %v2890 = vpop.f32.mrf.mxu0
      %v2891 = vadd.f32 %v2598, %v2890
      %v2892 = vpop.f32.mrf.mxu0
      %v2893 = vpop.f32.mrf.mxu0
      %v2894 = vadd.f32 %v2598, %v2893
      %v2895 = vpop.f32.mrf.mxu0
      %2896 = vmatprep.mubr.bf16.mxu0 %v2554
      %2897 = vmatmul.mubr.bf16.gmra.mxu0 %v2553
      %v2898 = vpop.f32.mrf.mxu0
      %v2899 = vadd.f32 %v2598, %v2898
      %v2900 = vpop.f32.mrf.mxu0
      %v2901 = vpop.f32.mrf.mxu0
      %v2902 = vadd.f32 %v2598, %v2901
      %v2903 = vpop.f32.mrf.mxu0
      %2904 = vmatprep.mubr.bf16.mxu0 %v2556
      %2905 = vmatmul.mubr.bf16.gmra.mxu0 %v2555
      %v2906 = vpop.f32.mrf.mxu0
      %v2907 = vadd.f32 %v2598, %v2906
      %v2908 = vpop.f32.mrf.mxu0
      %v2909 = vpop.f32.mrf.mxu0
      %v2910 = vadd.f32 %v2598, %v2909
      %v2911 = vpop.f32.mrf.mxu0
      %2912 = vmatprep.mubr.bf16.mxu0 %v2558
      %2913 = vmatmul.mubr.bf16.gmra.mxu0 %v2557
      %v2914 = vpop.f32.mrf.mxu0
      %v2915 = vadd.f32 %v2598, %v2914
      %v2916 = vpop.f32.mrf.mxu0
      %v2917 = vpop.f32.mrf.mxu0
      %v2918 = vadd.f32 %v2598, %v2917
      %v2919 = vpop.f32.mrf.mxu0
      %2920 = vmatprep.mubr.bf16.mxu0 %v2560
      %2921 = vmatmul.mubr.bf16.gmra.mxu0 %v2559
      %v2922 = vpop.f32.mrf.mxu0
      %v2923 = vadd.f32 %v2598, %v2922
      %v2924 = vpop.f32.mrf.mxu0
      %v2925 = vpop.f32.mrf.mxu0
      %v2926 = vpop.f32.mrf.mxu0
      %2927 = vdwg.mxu0
      %v2928 = vmax.f32 %v2731, 0.0
      %v2929 = vmax.f32 %v2734, 0.0
      %v2930 = vmax.f32 %v2739, 0.0
      %v2931 = vmax.f32 %v2742, 0.0
      %v2932 = vmax.f32 %v2747, 0.0
      %v2933 = vmax.f32 %v2750, 0.0
      %v2934 = vmax.f32 %v2755, 0.0
      %v2935 = vmax.f32 %v2758, 0.0
      %v2936 = vmax.f32 %v2763, 0.0
      %v2937 = vmax.f32 %v2766, 0.0
      %v2938 = vmax.f32 %v2771, 0.0
      %v2939 = vmax.f32 %v2774, 0.0
      %v2940 = vmax.f32 %v2779, 0.0
      %v2941 = vmax.f32 %v2782, 0.0
      %v2942 = vmax.f32 %v2787, 0.0
      %v2943 = vmax.f32 %v2790, 0.0
      %v2944 = vmax.f32 %v2795, 0.0
      %v2945 = vmax.f32 %v2798, 0.0
      %v2946 = vmax.f32 %v2803, 0.0
      %v2947 = vmax.f32 %v2806, 0.0
      %v2948 = vmax.f32 %v2811, 0.0
      %v2949 = vmax.f32 %v2814, 0.0
      %v2950 = vmax.f32 %v2819, 0.0
      %v2951 = vmax.f32 %v2822, 0.0
      %v2952 = vmax.f32 %v2827, 0.0
      %v2953 = vmax.f32 %v2830, 0.0
      %v2954 = vmax.f32 %v2835, 0.0
      %v2955 = vmax.f32 %v2838, 0.0
      %v2956 = vmax.f32 %v2843, 0.0
      %v2957 = vmax.f32 %v2846, 0.0
      %v2958 = vmax.f32 %v2851, 0.0
      %v2959 = vmax.f32 %v2854, 0.0
      %v2960 = vmax.f32 %v2859, 0.0
      %v2961 = vmax.f32 %v2862, 0.0
      %v2962 = vmax.f32 %v2867, 0.0
      %v2963 = vmax.f32 %v2870, 0.0
      %v2964 = vmax.f32 %v2875, 0.0
      %v2965 = vmax.f32 %v2878, 0.0
      %v2966 = vmax.f32 %v2883, 0.0
      %v2967 = vmax.f32 %v2886, 0.0
      %v2968 = vmax.f32 %v2891, 0.0
      %v2969 = vmax.f32 %v2894, 0.0
      %v2970 = vmax.f32 %v2899, 0.0
      %v2971 = vmax.f32 %v2902, 0.0
      %v2972 = vmax.f32 %v2907, 0.0
      %v2973 = vmax.f32 %v2910, 0.0
      %v2974 = vmax.f32 %v2915, 0.0
      %v2975 = vmax.f32 %v2918, 0.0
      %v2976 = vmax.f32 %v2923, 0.0
      %v2977 = vpack.c.bf16 %v2929, %v2928
      %v2978 = vpack.c.bf16 %v2931, %v2930
      %v2979 = vpack.c.bf16 %v2933, %v2932
      %v2980 = vpack.c.bf16 %v2935, %v2934
      %v2981 = vpack.c.bf16 %v2937, %v2936
      %v2982 = vpack.c.bf16 %v2939, %v2938
      %v2983 = vpack.c.bf16 %v2941, %v2940
      %v2984 = vpack.c.bf16 %v2943, %v2942
      %v2985 = vpack.c.bf16 %v2945, %v2944
      %v2986 = vpack.c.bf16 %v2947, %v2946
      %v2987 = vpack.c.bf16 %v2949, %v2948
      %v2988 = vpack.c.bf16 %v2951, %v2950
      %v2989 = vpack.c.bf16 %v2953, %v2952
      %v2990 = vpack.c.bf16 %v2955, %v2954
      %v2991 = vpack.c.bf16 %v2957, %v2956
      %v2992 = vpack.c.bf16 %v2959, %v2958
      %v2993 = vpack.c.bf16 %v2961, %v2960
      %v2994 = vpack.c.bf16 %v2963, %v2962
      %v2995 = vpack.c.bf16 %v2965, %v2964
      %v2996 = vpack.c.bf16 %v2967, %v2966
      %v2997 = vpack.c.bf16 %v2969, %v2968
      %v2998 = vpack.c.bf16 %v2971, %v2970
      %v2999 = vpack.c.bf16 %v2973, %v2972
      %v3000 = vpack.c.bf16 %v2975, %v2974
      %v3001 = vpack.c.bf16 %v2976, %v2976
      %v3002 = vld [vmem:[%s5] sm:$0xf]
      %v3003 = vld [vmem:[%s5 + $0x4] sm:$0xf]
      %v3004 = vld [vmem:[%s5 + $0x8] sm:$0xf]
      %v3005 = vld [vmem:[%s5 + $0xc] sm:$0xf]
      %v3006 = vld [vmem:[%s5 + $0x10] sm:$0xf]
      %v3007 = vld [vmem:[%s5 + $0x14] sm:$0xf]
      %v3008 = vld [vmem:[%s5 + $0x18] sm:$0xf]
      %v3009 = vld [vmem:[%s5 + $0x1c] sm:$0xf]
      %v3010 = vld [vmem:[%s5 + $0x20] sm:$0xf]
      %v3011 = vld [vmem:[%s5 + $0x24] sm:$0xf]
      %v3012 = vld [vmem:[%s5 + $0x28] sm:$0xf]
      %v3013 = vld [vmem:[%s5 + $0x2c] sm:$0xf]
      %v3014 = vld [vmem:[%s5 + $0x30] sm:$0xf]
      %v3015 = vld [vmem:[%s5 + $0x34] sm:$0xf]
      %v3016 = vld [vmem:[%s5 + $0x38] sm:$0xf]
      %v3017 = vld [vmem:[%s5 + $0x3c] sm:$0xf]
      %v3018 = vld [vmem:[%s6] sm:$0x1]
      %v3020 = vlaneseq
      %v3021 = vshrl.u32 %v3020, 7
      %v3022 = vsub.s32 0, %v3021
      %v3023 = vrot.slane %v3018, %v3022
      %v3041 = vunpack.c.l.b16 %v3002
      %v3042 = vunpack.c.l.b16 %v3003
      %v3043 = vunpack.c.l.b16 %v3004
      %v3044 = vunpack.c.l.b16 %v3005
      %v3045 = vunpack.c.l.b16 %v3006
      %v3046 = vunpack.c.l.b16 %v3007
      %v3047 = vunpack.c.l.b16 %v3008
      %v3048 = vunpack.c.l.b16 %v3009
      %v3049 = vunpack.c.l.b16 %v3010
      %v3050 = vunpack.c.l.b16 %v3011
      %v3051 = vunpack.c.l.b16 %v3012
      %v3052 = vunpack.c.l.b16 %v3013
      %v3053 = vunpack.c.l.b16 %v3014
      %v3054 = vunpack.c.l.b16 %v3015
      %v3055 = vunpack.c.l.b16 %v3016
      %v3056 = vunpack.c.l.b16 %v3017
      %v3057 = vpack.c.b16 %v3042, %v3041
      %v3058 = vpack.c.b16 %v3044, %v3043
      %v3059 = vpack.c.b16 %v3046, %v3045
      %v3060 = vpack.c.b16 %v3048, %v3047
      %v3061 = vpack.c.b16 %v3050, %v3049
      %v3062 = vpack.c.b16 %v3052, %v3051
      %v3063 = vpack.c.b16 %v3054, %v3053
      %v3064 = vpack.c.b16 %v3056, %v3055
      %3073 = vmatprep.subr.bf16.mxu0 0
      %3074 = vmatpush1.bf16.msra.mxu0 %v3064
      %3075 = vmatprep.subr.bf16.mxu0 0
      %3076 = vmatpush1.bf16.msra.mxu0 %v3063
      %3077 = vmatprep.subr.bf16.mxu0 0
      %3078 = vmatpush1.bf16.msra.mxu0 %v3062
      %3079 = vmatprep.subr.bf16.mxu0 0
      %3080 = vmatpush1.bf16.msra.mxu0 %v3061
      %3081 = vmatprep.subr.bf16.mxu0 0
      %3082 = vmatpush1.bf16.msra.mxu0 %v3060
      %3083 = vmatprep.subr.bf16.mxu0 0
      %3084 = vmatpush1.bf16.msra.mxu0 %v3059
      %3085 = vmatprep.subr.bf16.mxu0 0
      %3086 = vmatpush1.bf16.msra.mxu0 %v3058
      %3087 = vmatprep.subr.bf16.mxu0 0
      %3088 = vmatpush1.bf16.msra.mxu0 %v3057
      %3089 = vmatprep.subr.bf16.mxu0 0
      %3090 = vmatpush2.bf16.msra.mxu0 0
      %3091 = vmatprep.subr.bf16.mxu0 0
      %3092 = vmatpush2.bf16.msra.mxu0 0
      %3093 = vmatprep.subr.bf16.mxu0 0
      %3094 = vmatpush2.bf16.msra.mxu0 0
      %3095 = vmatprep.subr.bf16.mxu0 0
      %3096 = vmatpush2.bf16.msra.mxu0 0
      %3097 = vmatprep.subr.bf16.mxu0 0
      %3098 = vmatpush2.bf16.msra.mxu0 0
      %3099 = vmatprep.subr.bf16.mxu0 0
      %3100 = vmatpush2.bf16.msra.mxu0 0
      %3101 = vmatprep.subr.bf16.mxu0 0
      %3102 = vmatpush2.bf16.msra.mxu0 0
      %3103 = vmatprep.subr.bf16.mxu0 0
      %3104 = vmatpush2.bf16.msra.mxu0 0
      %3105 = vmatprep.mubr.bf16.mxu0 0
      %3106 = vmatmul.mubr.bf16.gmra.mxu0 %v2977
      %v3107 = vpop.f32.mrf.mxu0
      %v3108 = vadd.f32 %v3023, %v3107
      %v3109 = vpop.f32.mrf.mxu0
      %v3110 = vpop.f32.mrf.mxu0
      %v3111 = vadd.f32 %v3023, %v3110
      %v3112 = vpop.f32.mrf.mxu0
      %3113 = vmatprep.mubr.bf16.mxu0 0
      %3114 = vmatmul.mubr.bf16.gmra.mxu0 %v2978
      %v3115 = vpop.f32.mrf.mxu0
      %v3116 = vadd.f32 %v3023, %v3115
      %v3117 = vpop.f32.mrf.mxu0
      %v3118 = vpop.f32.mrf.mxu0
      %v3119 = vadd.f32 %v3023, %v3118
      %v3120 = vpop.f32.mrf.mxu0
      %3121 = vmatprep.mubr.bf16.mxu0 0
      %3122 = vmatmul.mubr.bf16.gmra.mxu0 %v2979
      %v3123 = vpop.f32.mrf.mxu0
      %v3124 = vadd.f32 %v3023, %v3123
      %v3125 = vpop.f32.mrf.mxu0
      %v3126 = vpop.f32.mrf.mxu0
      %v3127 = vadd.f32 %v3023, %v3126
      %v3128 = vpop.f32.mrf.mxu0
      %3129 = vmatprep.mubr.bf16.mxu0 0
      %3130 = vmatmul.mubr.bf16.gmra.mxu0 %v2980
      %v3131 = vpop.f32.mrf.mxu0
      %v3132 = vadd.f32 %v3023, %v3131
      %v3133 = vpop.f32.mrf.mxu0
      %v3134 = vpop.f32.mrf.mxu0
      %v3135 = vadd.f32 %v3023, %v3134
      %v3136 = vpop.f32.mrf.mxu0
      %3137 = vmatprep.mubr.bf16.mxu0 0
      %3138 = vmatmul.mubr.bf16.gmra.mxu0 %v2981
      %v3139 = vpop.f32.mrf.mxu0
      %v3140 = vadd.f32 %v3023, %v3139
      %v3141 = vpop.f32.mrf.mxu0
      %v3142 = vpop.f32.mrf.mxu0
      %v3143 = vadd.f32 %v3023, %v3142
      %v3144 = vpop.f32.mrf.mxu0
      %3145 = vmatprep.mubr.bf16.mxu0 0
      %3146 = vmatmul.mubr.bf16.gmra.mxu0 %v2982
      %v3147 = vpop.f32.mrf.mxu0
      %v3148 = vadd.f32 %v3023, %v3147
      %v3149 = vpop.f32.mrf.mxu0
      %v3150 = vpop.f32.mrf.mxu0
      %v3151 = vadd.f32 %v3023, %v3150
      %v3152 = vpop.f32.mrf.mxu0
      %3153 = vmatprep.mubr.bf16.mxu0 0
      %3154 = vmatmul.mubr.bf16.gmra.mxu0 %v2983
      %v3155 = vpop.f32.mrf.mxu0
      %v3156 = vadd.f32 %v3023, %v3155
      %v3157 = vpop.f32.mrf.mxu0
      %v3158 = vpop.f32.mrf.mxu0
      %v3159 = vadd.f32 %v3023, %v3158
      %v3160 = vpop.f32.mrf.mxu0
      %3161 = vmatprep.mubr.bf16.mxu0 0
      %3162 = vmatmul.mubr.bf16.gmra.mxu0 %v2984
      %v3163 = vpop.f32.mrf.mxu0
      %v3164 = vadd.f32 %v3023, %v3163
      %v3165 = vpop.f32.mrf.mxu0
      %v3166 = vpop.f32.mrf.mxu0
      %v3167 = vadd.f32 %v3023, %v3166
      %v3168 = vpop.f32.mrf.mxu0
      %3169 = vmatprep.mubr.bf16.mxu0 0
      %3170 = vmatmul.mubr.bf16.gmra.mxu0 %v2985
      %v3171 = vpop.f32.mrf.mxu0
      %v3172 = vadd.f32 %v3023, %v3171
      %v3173 = vpop.f32.mrf.mxu0
      %v3174 = vpop.f32.mrf.mxu0
      %v3175 = vadd.f32 %v3023, %v3174
      %v3176 = vpop.f32.mrf.mxu0
      %3177 = vmatprep.mubr.bf16.mxu0 0
      %3178 = vmatmul.mubr.bf16.gmra.mxu0 %v2986
      %v3179 = vpop.f32.mrf.mxu0
      %v3180 = vadd.f32 %v3023, %v3179
      %v3181 = vpop.f32.mrf.mxu0
      %v3182 = vpop.f32.mrf.mxu0
      %v3183 = vadd.f32 %v3023, %v3182
      %v3184 = vpop.f32.mrf.mxu0
      %3185 = vmatprep.mubr.bf16.mxu0 0
      %3186 = vmatmul.mubr.bf16.gmra.mxu0 %v2987
      %v3187 = vpop.f32.mrf.mxu0
      %v3188 = vadd.f32 %v3023, %v3187
      %v3189 = vpop.f32.mrf.mxu0
      %v3190 = vpop.f32.mrf.mxu0
      %v3191 = vadd.f32 %v3023, %v3190
      %v3192 = vpop.f32.mrf.mxu0
      %3193 = vmatprep.mubr.bf16.mxu0 0
      %3194 = vmatmul.mubr.bf16.gmra.mxu0 %v2988
      %v3195 = vpop.f32.mrf.mxu0
      %v3196 = vadd.f32 %v3023, %v3195
      %v3197 = vpop.f32.mrf.mxu0
      %v3198 = vpop.f32.mrf.mxu0
      %v3199 = vadd.f32 %v3023, %v3198
      %v3200 = vpop.f32.mrf.mxu0
      %3201 = vmatprep.mubr.bf16.mxu0 0
      %3202 = vmatmul.mubr.bf16.gmra.mxu0 %v2989
      %v3203 = vpop.f32.mrf.mxu0
      %v3204 = vadd.f32 %v3023, %v3203
      %v3205 = vpop.f32.mrf.mxu0
      %v3206 = vpop.f32.mrf.mxu0
      %v3207 = vadd.f32 %v3023, %v3206
      %v3208 = vpop.f32.mrf.mxu0
      %3209 = vmatprep.mubr.bf16.mxu0 0
      %3210 = vmatmul.mubr.bf16.gmra.mxu0 %v2990
      %v3211 = vpop.f32.mrf.mxu0
      %v3212 = vadd.f32 %v3023, %v3211
      %v3213 = vpop.f32.mrf.mxu0
      %v3214 = vpop.f32.mrf.mxu0
      %v3215 = vadd.f32 %v3023, %v3214
      %v3216 = vpop.f32.mrf.mxu0
      %3217 = vmatprep.mubr.bf16.mxu0 0
      %3218 = vmatmul.mubr.bf16.gmra.mxu0 %v2991
      %v3219 = vpop.f32.mrf.mxu0
      %v3220 = vadd.f32 %v3023, %v3219
      %v3221 = vpop.f32.mrf.mxu0
      %v3222 = vpop.f32.mrf.mxu0
      %v3223 = vadd.f32 %v3023, %v3222
      %v3224 = vpop.f32.mrf.mxu0
      %3225 = vmatprep.mubr.bf16.mxu0 0
      %3226 = vmatmul.mubr.bf16.gmra.mxu0 %v2992
      %v3227 = vpop.f32.mrf.mxu0
      %v3228 = vadd.f32 %v3023, %v3227
      %v3229 = vpop.f32.mrf.mxu0
      %v3230 = vpop.f32.mrf.mxu0
      %v3231 = vadd.f32 %v3023, %v3230
      %v3232 = vpop.f32.mrf.mxu0
      %3233 = vmatprep.mubr.bf16.mxu0 0
      %3234 = vmatmul.mubr.bf16.gmra.mxu0 %v2993
      %v3235 = vpop.f32.mrf.mxu0
      %v3236 = vadd.f32 %v3023, %v3235
      %v3237 = vpop.f32.mrf.mxu0
      %v3238 = vpop.f32.mrf.mxu0
      %v3239 = vadd.f32 %v3023, %v3238
      %v3240 = vpop.f32.mrf.mxu0
      %3241 = vmatprep.mubr.bf16.mxu0 0
      %3242 = vmatmul.mubr.bf16.gmra.mxu0 %v2994
      %v3243 = vpop.f32.mrf.mxu0
      %v3244 = vadd.f32 %v3023, %v3243
      %v3245 = vpop.f32.mrf.mxu0
      %v3246 = vpop.f32.mrf.mxu0
      %v3247 = vadd.f32 %v3023, %v3246
      %v3248 = vpop.f32.mrf.mxu0
      %3249 = vmatprep.mubr.bf16.mxu0 0
      %3250 = vmatmul.mubr.bf16.gmra.mxu0 %v2995
      %v3251 = vpop.f32.mrf.mxu0
      %v3252 = vadd.f32 %v3023, %v3251
      %v3253 = vpop.f32.mrf.mxu0
      %v3254 = vpop.f32.mrf.mxu0
      %v3255 = vadd.f32 %v3023, %v3254
      %v3256 = vpop.f32.mrf.mxu0
      %3257 = vmatprep.mubr.bf16.mxu0 0
      %3258 = vmatmul.mubr.bf16.gmra.mxu0 %v2996
      %v3259 = vpop.f32.mrf.mxu0
      %v3260 = vadd.f32 %v3023, %v3259
      %v3261 = vpop.f32.mrf.mxu0
      %v3262 = vpop.f32.mrf.mxu0
      %v3263 = vadd.f32 %v3023, %v3262
      %v3264 = vpop.f32.mrf.mxu0
      %3265 = vmatprep.mubr.bf16.mxu0 0
      %3266 = vmatmul.mubr.bf16.gmra.mxu0 %v2997
      %v3267 = vpop.f32.mrf.mxu0
      %v3268 = vadd.f32 %v3023, %v3267
      %v3269 = vpop.f32.mrf.mxu0
      %v3270 = vpop.f32.mrf.mxu0
      %v3271 = vadd.f32 %v3023, %v3270
      %v3272 = vpop.f32.mrf.mxu0
      %3273 = vmatprep.mubr.bf16.mxu0 0
      %3274 = vmatmul.mubr.bf16.gmra.mxu0 %v2998
      %v3275 = vpop.f32.mrf.mxu0
      %v3276 = vadd.f32 %v3023, %v3275
      %v3277 = vpop.f32.mrf.mxu0
      %v3278 = vpop.f32.mrf.mxu0
      %v3279 = vadd.f32 %v3023, %v3278
      %v3280 = vpop.f32.mrf.mxu0
      %3281 = vmatprep.mubr.bf16.mxu0 0
      %3282 = vmatmul.mubr.bf16.gmra.mxu0 %v2999
      %v3283 = vpop.f32.mrf.mxu0
      %v3284 = vadd.f32 %v3023, %v3283
      %v3285 = vpop.f32.mrf.mxu0
      %v3286 = vpop.f32.mrf.mxu0
      %v3287 = vadd.f32 %v3023, %v3286
      %v3288 = vpop.f32.mrf.mxu0
      %3289 = vmatprep.mubr.bf16.mxu0 0
      %3290 = vmatmul.mubr.bf16.gmra.mxu0 %v3000
      %v3291 = vpop.f32.mrf.mxu0
      %v3292 = vadd.f32 %v3023, %v3291
      %v3293 = vpop.f32.mrf.mxu0
      %v3294 = vpop.f32.mrf.mxu0
      %v3295 = vadd.f32 %v3023, %v3294
      %v3296 = vpop.f32.mrf.mxu0
      %3297 = vmatprep.mubr.bf16.mxu0 0
      %3298 = vmatmul.mubr.bf16.gmra.mxu0 %v3001
      %v3299 = vpop.f32.mrf.mxu0
      %v3300 = vadd.f32 %v3023, %v3299
      %v3301 = vpop.f32.mrf.mxu0
      %v3302 = vpop.f32.mrf.mxu0
      %v3303 = vpop.f32.mrf.mxu0
      %3304 = vdwg.mxu0
      %v3305 = vxor.u32 %v3108, 2147483648
      %v3306 = vxor.u32 %v3111, 2147483648
      %v3307 = vxor.u32 %v3116, 2147483648
      %v3308 = vxor.u32 %v3119, 2147483648
      %v3309 = vxor.u32 %v3124, 2147483648
      %v3310 = vxor.u32 %v3127, 2147483648
      %v3311 = vxor.u32 %v3132, 2147483648
      %v3312 = vxor.u32 %v3135, 2147483648
      %v3313 = vxor.u32 %v3140, 2147483648
      %v3314 = vxor.u32 %v3143, 2147483648
      %v3315 = vxor.u32 %v3148, 2147483648
      %v3316 = vxor.u32 %v3151, 2147483648
      %v3317 = vxor.u32 %v3156, 2147483648
      %v3318 = vxor.u32 %v3159, 2147483648
      %v3319 = vxor.u32 %v3164, 2147483648
      %v3320 = vxor.u32 %v3167, 2147483648
      %v3321 = vxor.u32 %v3172, 2147483648
      %v3322 = vxor.u32 %v3175, 2147483648
      %v3323 = vxor.u32 %v3180, 2147483648
      %v3324 = vxor.u32 %v3183, 2147483648
      %v3325 = vxor.u32 %v3188, 2147483648
      %v3326 = vxor.u32 %v3191, 2147483648
      %v3327 = vxor.u32 %v3196, 2147483648
      %v3328 = vxor.u32 %v3199, 2147483648
      %v3329 = vxor.u32 %v3204, 2147483648
      %v3330 = vxor.u32 %v3207, 2147483648
      %v3331 = vxor.u32 %v3212, 2147483648
      %v3332 = vxor.u32 %v3215, 2147483648
      %v3333 = vxor.u32 %v3220, 2147483648
      %v3334 = vxor.u32 %v3223, 2147483648
      %v3335 = vxor.u32 %v3228, 2147483648
      %v3336 = vxor.u32 %v3231, 2147483648
      %v3337 = vxor.u32 %v3236, 2147483648
      %v3338 = vxor.u32 %v3239, 2147483648
      %v3339 = vxor.u32 %v3244, 2147483648
      %v3340 = vxor.u32 %v3247, 2147483648
      %v3341 = vxor.u32 %v3252, 2147483648
      %v3342 = vxor.u32 %v3255, 2147483648
      %v3343 = vxor.u32 %v3260, 2147483648
      %v3344 = vxor.u32 %v3263, 2147483648
      %v3345 = vxor.u32 %v3268, 2147483648
      %v3346 = vxor.u32 %v3271, 2147483648
      %v3347 = vxor.u32 %v3276, 2147483648
      %v3348 = vxor.u32 %v3279, 2147483648
      %v3349 = vxor.u32 %v3284, 2147483648
      %v3350 = vxor.u32 %v3287, 2147483648
      %v3351 = vxor.u32 %v3292, 2147483648
      %v3352 = vxor.u32 %v3295, 2147483648
      %v3353 = vxor.u32 %v3300, 2147483648
      %v3354 = vmul.f32 %v3305, 1.442695
      %v3355 = vpow.pop %v3354
      %v3356 = vmul.f32 %v3306, 1.442695
      %v3357 = vpow.pop %v3356
      %v3358 = vmul.f32 %v3307, 1.442695
      %v3359 = vpow.pop %v3358
      %v3360 = vmul.f32 %v3308, 1.442695
      %v3361 = vpow.pop %v3360
      %v3362 = vmul.f32 %v3309, 1.442695
      %v3363 = vpow.pop %v3362
      %v3364 = vmul.f32 %v3310, 1.442695
      %v3365 = vpow.pop %v3364
      %v3366 = vmul.f32 %v3311, 1.442695
      %v3367 = vpow.pop %v3366
      %v3368 = vmul.f32 %v3312, 1.442695
      %v3369 = vpow.pop %v3368
      %v3370 = vmul.f32 %v3313, 1.442695
      %v3371 = vpow.pop %v3370
      %v3372 = vmul.f32 %v3314, 1.442695
      %v3373 = vpow.pop %v3372
      %v3374 = vmul.f32 %v3315, 1.442695
      %v3375 = vpow.pop %v3374
      %v3376 = vmul.f32 %v3316, 1.442695
      %v3377 = vpow.pop %v3376
      %v3378 = vmul.f32 %v3317, 1.442695
      %v3379 = vpow.pop %v3378
      %v3380 = vmul.f32 %v3318, 1.442695
      %v3381 = vpow.pop %v3380
      %v3382 = vmul.f32 %v3319, 1.442695
      %v3383 = vpow.pop %v3382
      %v3384 = vmul.f32 %v3320, 1.442695
      %v3385 = vpow.pop %v3384
      %v3386 = vmul.f32 %v3321, 1.442695
      %v3387 = vpow.pop %v3386
      %v3388 = vmul.f32 %v3322, 1.442695
      %v3389 = vpow.pop %v3388
      %v3390 = vmul.f32 %v3323, 1.442695
      %v3391 = vpow.pop %v3390
      %v3392 = vmul.f32 %v3324, 1.442695
      %v3393 = vpow.pop %v3392
      %v3394 = vmul.f32 %v3325, 1.442695
      %v3395 = vpow.pop %v3394
      %v3396 = vmul.f32 %v3326, 1.442695
      %v3397 = vpow.pop %v3396
      %v3398 = vmul.f32 %v3327, 1.442695
      %v3399 = vpow.pop %v3398
      %v3400 = vmul.f32 %v3328, 1.442695
      %v3401 = vpow.pop %v3400
      %v3402 = vmul.f32 %v3329, 1.442695
      %v3403 = vpow.pop %v3402
      %v3404 = vmul.f32 %v3330, 1.442695
      %v3405 = vpow.pop %v3404
      %v3406 = vmul.f32 %v3331, 1.442695
      %v3407 = vpow.pop %v3406
      %v3408 = vmul.f32 %v3332, 1.442695
      %v3409 = vpow.pop %v3408
      %v3410 = vmul.f32 %v3333, 1.442695
      %v3411 = vpow.pop %v3410
      %v3412 = vmul.f32 %v3334, 1.442695
      %v3413 = vpow.pop %v3412
      %v3414 = vmul.f32 %v3335, 1.442695
      %v3415 = vpow.pop %v3414
      %v3416 = vmul.f32 %v3336, 1.442695
      %v3417 = vpow.pop %v3416
      %v3418 = vmul.f32 %v3337, 1.442695
      %v3419 = vpow.pop %v3418
      %v3420 = vmul.f32 %v3338, 1.442695
      %v3421 = vpow.pop %v3420
      %v3422 = vmul.f32 %v3339, 1.442695
      %v3423 = vpow.pop %v3422
      %v3424 = vmul.f32 %v3340, 1.442695
      %v3425 = vpow.pop %v3424
      %v3426 = vmul.f32 %v3341, 1.442695
      %v3427 = vpow.pop %v3426
      %v3428 = vmul.f32 %v3342, 1.442695
      %v3429 = vpow.pop %v3428
      %v3430 = vmul.f32 %v3343, 1.442695
      %v3431 = vpow.pop %v3430
      %v3432 = vmul.f32 %v3344, 1.442695
      %v3433 = vpow.pop %v3432
      %v3434 = vmul.f32 %v3345, 1.442695
      %v3435 = vpow.pop %v3434
      %v3436 = vmul.f32 %v3346, 1.442695
      %v3437 = vpow.pop %v3436
      %v3438 = vmul.f32 %v3347, 1.442695
      %v3439 = vpow.pop %v3438
      %v3440 = vmul.f32 %v3348, 1.442695
      %v3441 = vpow.pop %v3440
      %v3442 = vmul.f32 %v3349, 1.442695
      %v3443 = vpow.pop %v3442
      %v3444 = vmul.f32 %v3350, 1.442695
      %v3445 = vpow.pop %v3444
      %v3446 = vmul.f32 %v3351, 1.442695
      %v3447 = vpow.pop %v3446
      %v3448 = vmul.f32 %v3352, 1.442695
      %v3449 = vpow.pop %v3448
      %v3450 = vmul.f32 %v3353, 1.442695
      %v3451 = vpow.pop %v3450
      %v3452 = vadd.f32 %v3355, 1.0
      %v3453 = vadd.f32 %v3357, 1.0
      %v3454 = vadd.f32 %v3359, 1.0
      %v3455 = vadd.f32 %v3361, 1.0
      %v3456 = vadd.f32 %v3363, 1.0
      %v3457 = vadd.f32 %v3365, 1.0
      %v3458 = vadd.f32 %v3367, 1.0
      %v3459 = vadd.f32 %v3369, 1.0
      %v3460 = vadd.f32 %v3371, 1.0
      %v3461 = vadd.f32 %v3373, 1.0
      %v3462 = vadd.f32 %v3375, 1.0
      %v3463 = vadd.f32 %v3377, 1.0
      %v3464 = vadd.f32 %v3379, 1.0
      %v3465 = vadd.f32 %v3381, 1.0
      %v3466 = vadd.f32 %v3383, 1.0
      %v3467 = vadd.f32 %v3385, 1.0
      %v3468 = vadd.f32 %v3387, 1.0
      %v3469 = vadd.f32 %v3389, 1.0
      %v3470 = vadd.f32 %v3391, 1.0
      %v3471 = vadd.f32 %v3393, 1.0
      %v3472 = vadd.f32 %v3395, 1.0
      %v3473 = vadd.f32 %v3397, 1.0
      %v3474 = vadd.f32 %v3399, 1.0
      %v3475 = vadd.f32 %v3401, 1.0
      %v3476 = vadd.f32 %v3403, 1.0
      %v3477 = vadd.f32 %v3405, 1.0
      %v3478 = vadd.f32 %v3407, 1.0
      %v3479 = vadd.f32 %v3409, 1.0
      %v3480 = vadd.f32 %v3411, 1.0
      %v3481 = vadd.f32 %v3413, 1.0
      %v3482 = vadd.f32 %v3415, 1.0
      %v3483 = vadd.f32 %v3417, 1.0
      %v3484 = vadd.f32 %v3419, 1.0
      %v3485 = vadd.f32 %v3421, 1.0
      %v3486 = vadd.f32 %v3423, 1.0
      %v3487 = vadd.f32 %v3425, 1.0
      %v3488 = vadd.f32 %v3427, 1.0
      %v3489 = vadd.f32 %v3429, 1.0
      %v3490 = vadd.f32 %v3431, 1.0
      %v3491 = vadd.f32 %v3433, 1.0
      %v3492 = vadd.f32 %v3435, 1.0
      %v3493 = vadd.f32 %v3437, 1.0
      %v3494 = vadd.f32 %v3439, 1.0
      %v3495 = vadd.f32 %v3441, 1.0
      %v3496 = vadd.f32 %v3443, 1.0
      %v3497 = vadd.f32 %v3445, 1.0
      %v3498 = vadd.f32 %v3447, 1.0
      %v3499 = vadd.f32 %v3449, 1.0
      %v3500 = vadd.f32 %v3451, 1.0
      %v3501 = vrcp.pop %v3452
      %v3502 = vmul.f32 1.0, %v3501
      %v3503 = vrcp.pop %v3453
      %v3504 = vmul.f32 1.0, %v3503
      %v3505 = vrcp.pop %v3454
      %v3506 = vmul.f32 1.0, %v3505
      %v3507 = vrcp.pop %v3455
      %v3508 = vmul.f32 1.0, %v3507
      %v3509 = vrcp.pop %v3456
      %v3510 = vmul.f32 1.0, %v3509
      %v3511 = vrcp.pop %v3457
      %v3512 = vmul.f32 1.0, %v3511
      %v3513 = vrcp.pop %v3458
      %v3514 = vmul.f32 1.0, %v3513
      %v3515 = vrcp.pop %v3459
      %v3516 = vmul.f32 1.0, %v3515
      %v3517 = vrcp.pop %v3460
      %v3518 = vmul.f32 1.0, %v3517
      %v3519 = vrcp.pop %v3461
      %v3520 = vmul.f32 1.0, %v3519
      %v3521 = vrcp.pop %v3462
      %v3522 = vmul.f32 1.0, %v3521
      %v3523 = vrcp.pop %v3463
      %v3524 = vmul.f32 1.0, %v3523
      %v3525 = vrcp.pop %v3464
      %v3526 = vmul.f32 1.0, %v3525
      %v3527 = vrcp.pop %v3465
      %v3528 = vmul.f32 1.0, %v3527
      %v3529 = vrcp.pop %v3466
      %v3530 = vmul.f32 1.0, %v3529
      %v3531 = vrcp.pop %v3467
      %v3532 = vmul.f32 1.0, %v3531
      %v3533 = vrcp.pop %v3468
      %v3534 = vmul.f32 1.0, %v3533
      %v3535 = vrcp.pop %v3469
      %v3536 = vmul.f32 1.0, %v3535
      %v3537 = vrcp.pop %v3470
      %v3538 = vmul.f32 1.0, %v3537
      %v3539 = vrcp.pop %v3471
      %v3540 = vmul.f32 1.0, %v3539
      %v3541 = vrcp.pop %v3472
      %v3542 = vmul.f32 1.0, %v3541
      %v3543 = vrcp.pop %v3473
      %v3544 = vmul.f32 1.0, %v3543
      %v3545 = vrcp.pop %v3474
      %v3546 = vmul.f32 1.0, %v3545
      %v3547 = vrcp.pop %v3475
      %v3548 = vmul.f32 1.0, %v3547
      %v3549 = vrcp.pop %v3476
      %v3550 = vmul.f32 1.0, %v3549
      %v3551 = vrcp.pop %v3477
      %v3552 = vmul.f32 1.0, %v3551
      %v3553 = vrcp.pop %v3478
      %v3554 = vmul.f32 1.0, %v3553
      %v3555 = vrcp.pop %v3479
      %v3556 = vmul.f32 1.0, %v3555
      %v3557 = vrcp.pop %v3480
      %v3558 = vmul.f32 1.0, %v3557
      %v3559 = vrcp.pop %v3481
      %v3560 = vmul.f32 1.0, %v3559
      %v3561 = vrcp.pop %v3482
      %v3562 = vmul.f32 1.0, %v3561
      %v3563 = vrcp.pop %v3483
      %v3564 = vmul.f32 1.0, %v3563
      %v3565 = vrcp.pop %v3484
      %v3566 = vmul.f32 1.0, %v3565
      %v3567 = vrcp.pop %v3485
      %v3568 = vmul.f32 1.0, %v3567
      %v3569 = vrcp.pop %v3486
      %v3570 = vmul.f32 1.0, %v3569
      %v3571 = vrcp.pop %v3487
      %v3572 = vmul.f32 1.0, %v3571
      %v3573 = vrcp.pop %v3488
      %v3574 = vmul.f32 1.0, %v3573
      %v3575 = vrcp.pop %v3489
      %v3576 = vmul.f32 1.0, %v3575
      %v3577 = vrcp.pop %v3490
      %v3578 = vmul.f32 1.0, %v3577
      %v3579 = vrcp.pop %v3491
      %v3580 = vmul.f32 1.0, %v3579
      %v3581 = vrcp.pop %v3492
      %v3582 = vmul.f32 1.0, %v3581
      %v3583 = vrcp.pop %v3493
      %v3584 = vmul.f32 1.0, %v3583
      %v3585 = vrcp.pop %v3494
      %v3586 = vmul.f32 1.0, %v3585
      %v3587 = vrcp.pop %v3495
      %v3588 = vmul.f32 1.0, %v3587
      %v3589 = vrcp.pop %v3496
      %v3590 = vmul.f32 1.0, %v3589
      %v3591 = vrcp.pop %v3497
      %v3592 = vmul.f32 1.0, %v3591
      %v3593 = vrcp.pop %v3498
      %v3594 = vmul.f32 1.0, %v3593
      %v3595 = vrcp.pop %v3499
      %v3596 = vmul.f32 1.0, %v3595
      %v3597 = vrcp.pop %v3500
      %v3598 = vmul.f32 1.0, %v3597
      %v3599 = vpack.c.bf16 %v3504, %v3502
      %v3600 = vpack.c.bf16 %v3508, %v3506
      %v3601 = vpack.c.bf16 %v3512, %v3510
      %v3602 = vpack.c.bf16 %v3516, %v3514
      %v3603 = vpack.c.bf16 %v3520, %v3518
      %v3604 = vpack.c.bf16 %v3524, %v3522
      %v3605 = vpack.c.bf16 %v3528, %v3526
      %v3606 = vpack.c.bf16 %v3532, %v3530
      %v3607 = vpack.c.bf16 %v3536, %v3534
      %v3608 = vpack.c.bf16 %v3540, %v3538
      %v3609 = vpack.c.bf16 %v3544, %v3542
      %v3610 = vpack.c.bf16 %v3548, %v3546
      %v3611 = vpack.c.bf16 %v3552, %v3550
      %v3612 = vpack.c.bf16 %v3556, %v3554
      %v3613 = vpack.c.bf16 %v3560, %v3558
      %v3614 = vpack.c.bf16 %v3564, %v3562
      %v3615 = vpack.c.bf16 %v3568, %v3566
      %v3616 = vpack.c.bf16 %v3572, %v3570
      %v3617 = vpack.c.bf16 %v3576, %v3574
      %v3618 = vpack.c.bf16 %v3580, %v3578
      %v3619 = vpack.c.bf16 %v3584, %v3582
      %v3620 = vpack.c.bf16 %v3588, %v3586
      %v3621 = vpack.c.bf16 %v3592, %v3590
      %v3622 = vpack.c.bf16 %v3596, %v3594
      %v3623 = vpack.c.bf16 %v3598, %v3598
      %v3649 = vunpack.c.l.b16 %v3599
      %v3650 = vunpack.c.h.b16 %v3599
      %v3651 = vunpack.c.l.b16 %v3600
      %v3652 = vunpack.c.h.b16 %v3600
      %v3653 = vunpack.c.l.b16 %v3601
      %v3654 = vunpack.c.h.b16 %v3601
      %v3655 = vunpack.c.l.b16 %v3602
      %v3656 = vunpack.c.h.b16 %v3602
      %v3657 = vunpack.c.l.b16 %v3603
      %v3658 = vunpack.c.h.b16 %v3603
      %v3659 = vunpack.c.l.b16 %v3604
      %v3660 = vunpack.c.h.b16 %v3604
      %v3661 = vunpack.c.l.b16 %v3605
      %v3662 = vunpack.c.h.b16 %v3605
      %v3663 = vunpack.c.l.b16 %v3606
      %v3664 = vunpack.c.h.b16 %v3606
      %v3665 = vunpack.c.l.b16 %v3607
      %v3666 = vunpack.c.h.b16 %v3607
      %v3667 = vunpack.c.l.b16 %v3608
      %v3668 = vunpack.c.h.b16 %v3608
      %v3669 = vunpack.c.l.b16 %v3609
      %v3670 = vunpack.c.h.b16 %v3609
      %v3671 = vunpack.c.l.b16 %v3610
      %v3672 = vunpack.c.h.b16 %v3610
      %v3673 = vunpack.c.l.b16 %v3611
      %v3674 = vunpack.c.h.b16 %v3611
      %v3675 = vunpack.c.l.b16 %v3612
      %v3676 = vunpack.c.h.b16 %v3612
      %v3677 = vunpack.c.l.b16 %v3613
      %v3678 = vunpack.c.h.b16 %v3613
      %v3679 = vunpack.c.l.b16 %v3614
      %v3680 = vunpack.c.h.b16 %v3614
      %v3681 = vunpack.c.l.b16 %v3615
      %v3682 = vunpack.c.h.b16 %v3615
      %v3683 = vunpack.c.l.b16 %v3616
      %v3684 = vunpack.c.h.b16 %v3616
      %v3685 = vunpack.c.l.b16 %v3617
      %v3686 = vunpack.c.h.b16 %v3617
      %v3687 = vunpack.c.l.b16 %v3618
      %v3688 = vunpack.c.h.b16 %v3618
      %v3689 = vunpack.c.l.b16 %v3619
      %v3690 = vunpack.c.h.b16 %v3619
      %v3691 = vunpack.c.l.b16 %v3620
      %v3692 = vunpack.c.h.b16 %v3620
      %v3693 = vunpack.c.l.b16 %v3621
      %v3694 = vunpack.c.h.b16 %v3621
      %v3695 = vunpack.c.l.b16 %v3622
      %v3696 = vunpack.c.h.b16 %v3622
      %v3697 = vunpack.c.l.b16 %v3623
      %v3698 = vpack.c.b16 %v3649, %v3649
      %v3699 = vpack.c.b16 %v3650, %v3650
      %v3700 = vpack.c.b16 %v3651, %v3651
      %v3701 = vpack.c.b16 %v3652, %v3652
      %v3702 = vpack.c.b16 %v3653, %v3653
      %v3703 = vpack.c.b16 %v3654, %v3654
      %v3704 = vpack.c.b16 %v3655, %v3655
      %v3705 = vpack.c.b16 %v3656, %v3656
      %v3706 = vpack.c.b16 %v3657, %v3657
      %v3707 = vpack.c.b16 %v3658, %v3658
      %v3708 = vpack.c.b16 %v3659, %v3659
      %v3709 = vpack.c.b16 %v3660, %v3660
      %v3710 = vpack.c.b16 %v3661, %v3661
      %v3711 = vpack.c.b16 %v3662, %v3662
      %v3712 = vpack.c.b16 %v3663, %v3663
      %v3713 = vpack.c.b16 %v3664, %v3664
      %v3714 = vpack.c.b16 %v3665, %v3665
      %v3715 = vpack.c.b16 %v3666, %v3666
      %v3716 = vpack.c.b16 %v3667, %v3667
      %v3717 = vpack.c.b16 %v3668, %v3668
      %v3718 = vpack.c.b16 %v3669, %v3669
      %v3719 = vpack.c.b16 %v3670, %v3670
      %v3720 = vpack.c.b16 %v3671, %v3671
      %v3721 = vpack.c.b16 %v3672, %v3672
      %v3722 = vpack.c.b16 %v3673, %v3673
      %v3723 = vpack.c.b16 %v3674, %v3674
      %v3724 = vpack.c.b16 %v3675, %v3675
      %v3725 = vpack.c.b16 %v3676, %v3676
      %v3726 = vpack.c.b16 %v3677, %v3677
      %v3727 = vpack.c.b16 %v3678, %v3678
      %v3728 = vpack.c.b16 %v3679, %v3679
      %v3729 = vpack.c.b16 %v3680, %v3680
      %v3730 = vpack.c.b16 %v3681, %v3681
      %v3731 = vpack.c.b16 %v3682, %v3682
      %v3732 = vpack.c.b16 %v3683, %v3683
      %v3733 = vpack.c.b16 %v3684, %v3684
      %v3734 = vpack.c.b16 %v3685, %v3685
      %v3735 = vpack.c.b16 %v3686, %v3686
      %v3736 = vpack.c.b16 %v3687, %v3687
      %v3737 = vpack.c.b16 %v3688, %v3688
      %v3738 = vpack.c.b16 %v3689, %v3689
      %v3739 = vpack.c.b16 %v3690, %v3690
      %v3740 = vpack.c.b16 %v3691, %v3691
      %v3741 = vpack.c.b16 %v3692, %v3692
      %v3742 = vpack.c.b16 %v3693, %v3693
      %v3743 = vpack.c.b16 %v3694, %v3694
      %v3744 = vpack.c.b16 %v3695, %v3695
      %v3745 = vpack.c.b16 %v3696, %v3696
      %v3746 = vpack.c.b16 %v3697, %v3697
      %3796 = vst [vmem:[%s283] sm:$0xf] %v3698
      %3797 = vst [vmem:[%s283 + $0x4] sm:$0xf] %v3699
      %3798 = vst [vmem:[%s283 + $0x8] sm:$0xf] %v3700
      %3799 = vst [vmem:[%s283 + $0xc] sm:$0xf] %v3701
      %3800 = vst [vmem:[%s283 + $0x10] sm:$0xf] %v3702
      %3801 = vst [vmem:[%s283 + $0x14] sm:$0xf] %v3703
      %3802 = vst [vmem:[%s283 + $0x18] sm:$0xf] %v3704
      %3803 = vst [vmem:[%s283 + $0x1c] sm:$0xf] %v3705
      %3804 = vst [vmem:[%s283 + $0x20] sm:$0xf] %v3706
      %3805 = vst [vmem:[%s283 + $0x24] sm:$0xf] %v3707
      %3806 = vst [vmem:[%s283 + $0x28] sm:$0xf] %v3708
      %3807 = vst [vmem:[%s283 + $0x2c] sm:$0xf] %v3709
      %3808 = vst [vmem:[%s283 + $0x30] sm:$0xf] %v3710
      %3809 = vst [vmem:[%s283 + $0x34] sm:$0xf] %v3711
      %3810 = vst [vmem:[%s283 + $0x38] sm:$0xf] %v3712
      %3811 = vst [vmem:[%s283 + $0x3c] sm:$0xf] %v3713
      %3812 = vst [vmem:[%s283 + $0x40] sm:$0xf] %v3714
      %3813 = vst [vmem:[%s283 + $0x44] sm:$0xf] %v3715
      %3814 = vst [vmem:[%s283 + $0x48] sm:$0xf] %v3716
      %3815 = vst [vmem:[%s283 + $0x4c] sm:$0xf] %v3717
      %3816 = vst [vmem:[%s283 + $0x50] sm:$0xf] %v3718
      %3817 = vst [vmem:[%s283 + $0x54] sm:$0xf] %v3719
      %3818 = vst [vmem:[%s283 + $0x58] sm:$0xf] %v3720
      %3819 = vst [vmem:[%s283 + $0x5c] sm:$0xf] %v3721
      %3820 = vst [vmem:[%s283 + $0x60] sm:$0xf] %v3722
      %3821 = vst [vmem:[%s283 + $0x64] sm:$0xf] %v3723
      %3822 = vst [vmem:[%s283 + $0x68] sm:$0xf] %v3724
      %3823 = vst [vmem:[%s283 + $0x6c] sm:$0xf] %v3725
      %3824 = vst [vmem:[%s283 + $0x70] sm:$0xf] %v3726
      %3825 = vst [vmem:[%s283 + $0x74] sm:$0xf] %v3727
      %3826 = vst [vmem:[%s283 + $0x78] sm:$0xf] %v3728
      %3827 = vst [vmem:[%s283 + $0x7c] sm:$0xf] %v3729
      %3828 = vst [vmem:[%s283 + $0x80] sm:$0xf] %v3730
      %3829 = vst [vmem:[%s283 + $0x84] sm:$0xf] %v3731
      %3830 = vst [vmem:[%s283 + $0x88] sm:$0xf] %v3732
      %3831 = vst [vmem:[%s283 + $0x8c] sm:$0xf] %v3733
      %3832 = vst [vmem:[%s283 + $0x90] sm:$0xf] %v3734
      %3833 = vst [vmem:[%s283 + $0x94] sm:$0xf] %v3735
      %3834 = vst [vmem:[%s283 + $0x98] sm:$0xf] %v3736
      %3835 = vst [vmem:[%s283 + $0x9c] sm:$0xf] %v3737
      %3836 = vst [vmem:[%s283 + $0xa0] sm:$0xf] %v3738
      %3837 = vst [vmem:[%s283 + $0xa4] sm:$0xf] %v3739
      %3838 = vst [vmem:[%s283 + $0xa8] sm:$0xf] %v3740
      %3839 = vst [vmem:[%s283 + $0xac] sm:$0xf] %v3741
      %3840 = vst [vmem:[%s283 + $0xb0] sm:$0xf] %v3742
      %3841 = vst [vmem:[%s283 + $0xb4] sm:$0xf] %v3743
      %3842 = vst [vmem:[%s283 + $0xb8] sm:$0xf] %v3744
      %3843 = vst [vmem:[%s283 + $0xbc] sm:$0xf] %v3745
      %3844 = vst [vmem:[%s283 + $0xc0] sm:$0xf] %v3746
      %s3845 = smul.u32 49, %s18
      %p3846 = scmp.lt.s32.totalorder %s3845, 146
      %s3847 = scalar_select %p3846, %s3845, 146
      %s3848 = smul.addr %s3847, 4
      %s3849 = scalar_lea.vmem %s7, %s3848
      // Predicated region
      $region49: #{prefnet_forward.4} parent=47 // pred_check
        %p3850 = pneg %p188
      $region50: #{prefnet_forward.4} parent=47 // pred_check_branch
        %3852 = sbr.rel (%p3850) target = $region52
      $region51: #{prefnet_forward.4} parent=47 // pred_region
        %s3853 = smul.u32 49, %s18
      $region52: #{prefnet_forward.4} parent=47 // pred_fallthru
        _
    $region48: #{prefnet_forward.4} parent=5 // pred_fallthru
      _
    %p3854 = scmp.le.s32.totalorder 2, %s13
    // Predicated region
    $region53: #{prefnet_forward.4} parent=5 // pred_check
      %p3855 = pneg %p3854
    $region54: #{prefnet_forward.4} parent=5 // pred_check_branch
      %3857 = sbr.rel (%p3855) target = $region56
    $region55: #{prefnet_forward.4} parent=5 // pred_region
      %s3858 = ssub.s32 %s13, 2
      // Predicated region
      $region57: #{prefnet_forward.4} parent=55 // pred_check
        %p3859 = pneg %p194
      $region58: #{prefnet_forward.4} parent=55 // pred_check_branch
        %3861 = sbr.rel (%p3859) target = $region60
      $region59: #{prefnet_forward.4} parent=55 // pred_region
        %s3862 = smul.u32 49, %s19
        %p3863 = scmp.lt.s32.totalorder %s3862, 146
        %s3864 = scalar_select %p3863, %s3862, 146
        %s3865 = smul.addr %s3864, 4
        %s3866 = scalar_lea.vmem %s7, %s3865
      $region60: #{prefnet_forward.4} parent=55 // pred_fallthru
        _
    $region56: #{prefnet_forward.4} parent=5 // pred_fallthru
      _
  $region6: #{prefnet_forward.4} parent=0 // loop_footer
    %s17 = sadd.s32 1, %s13
  $region7: #{prefnet_forward.4} parent=0 // loop_footer_branch
    %12 = sbr.rel target = $region3
  $region8: #{prefnet_forward.4} parent=0 // loop_exit
    _

// kernel: prefnet_forward.5
$region0: #{prefnet_forward.5}
  #allocation0 [shape = 'u32[]', space=smem, size = 0x4, offset = 0x4, fixed_abs, tag = 'smem constant byte address 0x4 - core index']
  #allocation1 [shape = 'u32[144,128]{1,0:T(1,128)}', space=vmem, size = 0x12000, scoped, tag = 'internal scratch']
  #allocation2 [shape = 'f32[2,120]{1,0:T(2,128)}', space=vmem, size = 0x400, scoped, tag = 'scratch operand']
  #allocation3 [shape = 'f32[1,1]{1,0:T(1,128)S(1)}', space=vmem, size = 0x200, scoped, tag = 'scoped memory for prefnet_forward.5']
  %s0 = inlined_call_operand.vmem [shape: bf16[2,75264], index: 0, kind: input, shape index: {}]
  %s1 = inlined_call_operand.vmem [shape: bf16[75264,120], index: 1, kind: input, shape index: {}]
  %s2 = inlined_call_operand.vmem [shape: f32[1,120], index: 2, kind: input, shape index: {}]
  %s3 = inlined_call_operand.vmem [shape: f32[120,20], index: 3, kind: input, shape index: {}]
  %s4 = inlined_call_operand.vmem [shape: f32[1,20], index: 4, kind: input, shape index: {}]
  %s5 = inlined_call_operand.vmem [shape: f32[20,1], index: 5, kind: input, shape index: {}]
  %s6 = inlined_call_operand.<no memory space> [shape: f32[1,1], index: 6, kind: input, shape index: {}]
  %s7 = inlined_call_operand.vmem [shape: f32[2,1], index: 7, kind: output, shape index: {}]
  %s8 = sld [smem:[#allocation0]]
  $region69: #{prefnet_forward.5} parent=0
    _
  %s10 = ssub.s32 1, %s8
  %s11 = scalar_select 0, %s10, %s8
  %v12 = vstv %s6
  %13 = vst [vmem:[#allocation3] sm:$0x1] %v12
  loop: start=0, step=1, limit=14
  $region2: #{prefnet_forward.5} parent=0 // loop_pre_header
    _
  $region3: #{prefnet_forward.5} parent=0 // loop_header
    %s15 = sphi 0, %s19
    %p16 = scmp.ge.s32.totalorder %s15, 14
    %s25 = sphi 0, %s27
    %s28 = sphi 0, %s25
    %s29 = sphi 0, %s28
    %s45 = sphi 0, %s29
    %s51 = sphi 0, %s53
    %s54 = sphi 0, %s51
    %s55 = sphi 0, %s54
    %s71 = sphi 0, %s55
    %s75 = sphi 0, %s75
    %s77 = sphi 0, %s75
    %s78 = sphi 0, %s77
    %s92 = sphi 0, %s78
    %s96 = sphi 0, %s96
    %s98 = sphi 0, %s96
    %s99 = sphi 0, %s98
    %s113 = sphi 0, %s99
    %s117 = sphi 0, %s117
    %s119 = sphi 0, %s117
    %s120 = sphi 0, %s119
    %s134 = sphi 0, %s120
    %s138 = sphi 0, %s138
    %s140 = sphi 0, %s138
    %s141 = sphi 0, %s140
    %s155 = sphi 0, %s141
    %s159 = sphi 0, %s159
    %s161 = sphi 0, %s159
    %s162 = sphi 0, %s161
    %s176 = sphi 0, %s162
    %s180 = sphi 0, %s180
    %s182 = sphi 0, %s180
    %s183 = sphi 0, %s182
    %s197 = sphi 0, %s183
  $region4: #{prefnet_forward.5} parent=0 // loop_header_branch
    %18 = sbr.rel (%p16) target = $region8
  $region5: #{prefnet_forward.5} parent=0 // loop_body
    %s20 = ssub.s32 %s15, 1
    %s21 = ssub.s32 %s15, 2
    %s22 = sadd.s32 %s15, 1
    %s23 = ssub.s32 %s15, %s22
    %p24 = scmp.eq.s32.totalorder %s23, 0
    %s26 = sadd.s32 %s25, 1
    %s27 = scalar_select %p24, %s25, %s26
    %p30 = pneg %p24
    %p31 = scmp.eq.s32.totalorder %s15, 11
    %p32 = por %p30, %p31
    %p33 = scmp.ne.s32.totalorder %s25, %s28
    %p34 = scmp.eq.s32.totalorder %s15, 0
    %p35 = por %p33, %p34
    %p36 = scmp.ne.s32.totalorder %s25, %s28
    %p37 = scmp.eq.s32.totalorder %s20, 11
    %p38 = por %p36, %p37
    %p39 = scmp.ne.s32.totalorder %s28, %s29
    %p40 = scmp.eq.s32.totalorder %s20, 0
    %p41 = por %p39, %p40
    %p42 = scmp.ne.s32.totalorder %s28, %s29
    %p43 = scmp.eq.s32.totalorder %s21, 11
    %p44 = por %p42, %p43
    %p46 = scmp.ne.s32.totalorder %s29, %s45
    %p47 = scmp.eq.s32.totalorder %s21, 0
    %p48 = por %p46, %p47
    %s49 = ssub.s32 %s15, %s22
    %p50 = scmp.eq.s32.totalorder %s49, 0
    %s52 = sadd.s32 %s51, 1
    %s53 = scalar_select %p50, %s51, %s52
    %p56 = pneg %p50
    %p57 = scmp.eq.s32.totalorder %s15, 11
    %p58 = por %p56, %p57
    %p59 = scmp.ne.s32.totalorder %s51, %s54
    %p60 = scmp.eq.s32.totalorder %s15, 0
    %p61 = por %p59, %p60
    %p62 = scmp.ne.s32.totalorder %s51, %s54
    %p63 = scmp.eq.s32.totalorder %s20, 11
    %p64 = por %p62, %p63
    %p65 = scmp.ne.s32.totalorder %s54, %s55
    %p66 = scmp.eq.s32.totalorder %s20, 0
    %p67 = por %p65, %p66
    %p68 = scmp.ne.s32.totalorder %s54, %s55
    %p69 = scmp.eq.s32.totalorder %s21, 11
    %p70 = por %p68, %p69
    %p72 = scmp.ne.s32.totalorder %s55, %s71
    %p73 = scmp.eq.s32.totalorder %s21, 0
    %p74 = por %p72, %p73
    %s76 = sadd.s32 %s75, 1
    %p79 = scmp.eq.s32.totalorder %s15, 11
    %p80 = scmp.ne.s32.totalorder %s75, %s77
    %p81 = scmp.eq.s32.totalorder %s15, 0
    %p82 = por %p80, %p81
    %p83 = scmp.ne.s32.totalorder %s75, %s77
    %p84 = scmp.eq.s32.totalorder %s20, 11
    %p85 = por %p83, %p84
    %p86 = scmp.ne.s32.totalorder %s77, %s78
    %p87 = scmp.eq.s32.totalorder %s20, 0
    %p88 = por %p86, %p87
    %p89 = scmp.ne.s32.totalorder %s77, %s78
    %p90 = scmp.eq.s32.totalorder %s21, 11
    %p91 = por %p89, %p90
    %p93 = scmp.ne.s32.totalorder %s78, %s92
    %p94 = scmp.eq.s32.totalorder %s21, 0
    %p95 = por %p93, %p94
    %s97 = sadd.s32 %s96, 1
    %p100 = scmp.eq.s32.totalorder %s15, 11
    %p101 = scmp.ne.s32.totalorder %s96, %s98
    %p102 = scmp.eq.s32.totalorder %s15, 0
    %p103 = por %p101, %p102
    %p104 = scmp.ne.s32.totalorder %s96, %s98
    %p105 = scmp.eq.s32.totalorder %s20, 11
    %p106 = por %p104, %p105
    %p107 = scmp.ne.s32.totalorder %s98, %s99
    %p108 = scmp.eq.s32.totalorder %s20, 0
    %p109 = por %p107, %p108
    %p110 = scmp.ne.s32.totalorder %s98, %s99
    %p111 = scmp.eq.s32.totalorder %s21, 11
    %p112 = por %p110, %p111
    %p114 = scmp.ne.s32.totalorder %s99, %s113
    %p115 = scmp.eq.s32.totalorder %s21, 0
    %p116 = por %p114, %p115
    %s118 = sadd.s32 %s117, 1
    %p121 = scmp.eq.s32.totalorder %s15, 11
    %p122 = scmp.ne.s32.totalorder %s117, %s119
    %p123 = scmp.eq.s32.totalorder %s15, 0
    %p124 = por %p122, %p123
    %p125 = scmp.ne.s32.totalorder %s117, %s119
    %p126 = scmp.eq.s32.totalorder %s20, 11
    %p127 = por %p125, %p126
    %p128 = scmp.ne.s32.totalorder %s119, %s120
    %p129 = scmp.eq.s32.totalorder %s20, 0
    %p130 = por %p128, %p129
    %p131 = scmp.ne.s32.totalorder %s119, %s120
    %p132 = scmp.eq.s32.totalorder %s21, 11
    %p133 = por %p131, %p132
    %p135 = scmp.ne.s32.totalorder %s120, %s134
    %p136 = scmp.eq.s32.totalorder %s21, 0
    %p137 = por %p135, %p136
    %s139 = sadd.s32 %s138, 1
    %p142 = scmp.eq.s32.totalorder %s15, 11
    %p143 = scmp.ne.s32.totalorder %s138, %s140
    %p144 = scmp.eq.s32.totalorder %s15, 0
    %p145 = por %p143, %p144
    %p146 = scmp.ne.s32.totalorder %s138, %s140
    %p147 = scmp.eq.s32.totalorder %s20, 11
    %p148 = por %p146, %p147
    %p149 = scmp.ne.s32.totalorder %s140, %s141
    %p150 = scmp.eq.s32.totalorder %s20, 0
    %p151 = por %p149, %p150
    %p152 = scmp.ne.s32.totalorder %s140, %s141
    %p153 = scmp.eq.s32.totalorder %s21, 11
    %p154 = por %p152, %p153
    %p156 = scmp.ne.s32.totalorder %s141, %s155
    %p157 = scmp.eq.s32.totalorder %s21, 0
    %p158 = por %p156, %p157
    %s160 = sadd.s32 %s159, 1
    %p163 = scmp.eq.s32.totalorder %s15, 11
    %p164 = scmp.ne.s32.totalorder %s159, %s161
    %p165 = scmp.eq.s32.totalorder %s15, 0
    %p166 = por %p164, %p165
    %p167 = scmp.ne.s32.totalorder %s159, %s161
    %p168 = scmp.eq.s32.totalorder %s20, 11
    %p169 = por %p167, %p168
    %p170 = scmp.ne.s32.totalorder %s161, %s162
    %p171 = scmp.eq.s32.totalorder %s20, 0
    %p172 = por %p170, %p171
    %p173 = scmp.ne.s32.totalorder %s161, %s162
    %p174 = scmp.eq.s32.totalorder %s21, 11
    %p175 = por %p173, %p174
    %p177 = scmp.ne.s32.totalorder %s162, %s176
    %p178 = scmp.eq.s32.totalorder %s21, 0
    %p179 = por %p177, %p178
    %s181 = sadd.s32 %s180, 1
    %p184 = scmp.eq.s32.totalorder %s15, 11
    %p185 = scmp.ne.s32.totalorder %s180, %s182
    %p186 = scmp.eq.s32.totalorder %s15, 0
    %p187 = por %p185, %p186
    %p188 = scmp.ne.s32.totalorder %s180, %s182
    %p189 = scmp.eq.s32.totalorder %s20, 11
    %p190 = por %p188, %p189
    %p191 = scmp.ne.s32.totalorder %s182, %s183
    %p192 = scmp.eq.s32.totalorder %s20, 0
    %p193 = por %p191, %p192
    %p194 = scmp.ne.s32.totalorder %s182, %s183
    %p195 = scmp.eq.s32.totalorder %s21, 11
    %p196 = por %p194, %p195
    %p198 = scmp.ne.s32.totalorder %s183, %s197
    %p199 = scmp.eq.s32.totalorder %s21, 0
    %p200 = por %p198, %p199
    %p201 = scmp.le.s32.totalorder 1, %s15
    %p202 = scmp.lt.s32.totalorder %s15, 13
    %p203 = pnand %p201, %p202
    %p204 = pneg %p203
    // Predicated region
    $region9: #{prefnet_forward.5} parent=5 // pred_check
      _
    $region10: #{prefnet_forward.5} parent=5 // pred_check_branch
      %206 = sbr.rel (%p203) target = $region12
    $region11: #{prefnet_forward.5} parent=5 // pred_region
      %s207 = ssub.s32 %s15, 1
      // Predicated region
      $region13: #{prefnet_forward.5} parent=11 // pred_check
        %p208 = pneg %p88
      $region14: #{prefnet_forward.5} parent=11 // pred_check_branch
        %210 = sbr.rel (%p208) target = $region16
      $region15: #{prefnet_forward.5} parent=11 // pred_region
        _
      $region16: #{prefnet_forward.5} parent=11 // pred_fallthru
        _
      // Predicated region
      $region17: #{prefnet_forward.5} parent=11 // pred_check
        %p211 = pneg %p109
      $region18: #{prefnet_forward.5} parent=11 // pred_check_branch
        %213 = sbr.rel (%p211) target = $region20
      $region19: #{prefnet_forward.5} parent=11 // pred_region
        _
      $region20: #{prefnet_forward.5} parent=11 // pred_fallthru
        _
      // Predicated region
      $region21: #{prefnet_forward.5} parent=11 // pred_check
        %p214 = pneg %p130
      $region22: #{prefnet_forward.5} parent=11 // pred_check_branch
        %216 = sbr.rel (%p214) target = $region24
      $region23: #{prefnet_forward.5} parent=11 // pred_region
        _
      $region24: #{prefnet_forward.5} parent=11 // pred_fallthru
        _
      // Predicated region
      $region25: #{prefnet_forward.5} parent=11 // pred_check
        %p217 = pneg %p151
      $region26: #{prefnet_forward.5} parent=11 // pred_check_branch
        %219 = sbr.rel (%p217) target = $region28
      $region27: #{prefnet_forward.5} parent=11 // pred_region
        _
      $region28: #{prefnet_forward.5} parent=11 // pred_fallthru
        _
      // Predicated region
      $region29: #{prefnet_forward.5} parent=11 // pred_check
        %p220 = pneg %p172
      $region30: #{prefnet_forward.5} parent=11 // pred_check_branch
        %222 = sbr.rel (%p220) target = $region32
      $region31: #{prefnet_forward.5} parent=11 // pred_region
        _
      $region32: #{prefnet_forward.5} parent=11 // pred_fallthru
        _
    $region12: #{prefnet_forward.5} parent=5 // pred_fallthru
      _
    %p223 = scmp.lt.s32.totalorder %s15, 12
    // Predicated region
    $region33: #{prefnet_forward.5} parent=5 // pred_check
      %p224 = pneg %p223
    $region34: #{prefnet_forward.5} parent=5 // pred_check_branch
      %226 = sbr.rel (%p224) target = $region36
    $region35: #{prefnet_forward.5} parent=5 // pred_region
      // Predicated region
      $region37: #{prefnet_forward.5} parent=35 // pred_check
        %p227 = pneg %p35
      $region38: #{prefnet_forward.5} parent=35 // pred_check_branch
        %229 = sbr.rel (%p227) target = $region40
      $region39: #{prefnet_forward.5} parent=35 // pred_region
        %s230 = smul.u32 49, %s15
        %p231 = scmp.lt.s32.totalorder %s230, 587
        %s232 = scalar_select %p231, %s230, 587
        %s233 = scalar_lea.vmem %s0, %s232
        %s234 = smul.u32 49, %s15
      $region40: #{prefnet_forward.5} parent=35 // pred_fallthru
        _
      // Predicated region
      $region41: #{prefnet_forward.5} parent=35 // pred_check
        %p235 = pneg %p61
      $region42: #{prefnet_forward.5} parent=35 // pred_check_branch
        %237 = sbr.rel (%p235) target = $region44
      $region43: #{prefnet_forward.5} parent=35 // pred_region
        %s238 = smul.u32 784, %s15
        %p239 = scmp.lt.s32.totalorder %s238, 9407
        %s240 = scalar_select %p239, %s238, 9407
        %s241 = smul.addr %s240, 4
        %s242 = scalar_lea.vmem %s1, %s241
        %s243 = smul.u32 784, %s15
      $region44: #{prefnet_forward.5} parent=35 // pred_fallthru
        _
    $region36: #{prefnet_forward.5} parent=5 // pred_fallthru
      _
    %p244 = scmp.le.s32.totalorder 1, %s15
    %p245 = scmp.lt.s32.totalorder %s15, 13
    %p246 = pnand %p244, %p245
    %p247 = pneg %p246
    // Predicated region
    $region45: #{prefnet_forward.5} parent=5 // pred_check
      _
    $region46: #{prefnet_forward.5} parent=5 // pred_check_branch
      %249 = sbr.rel (%p246) target = $region48
    $region47: #{prefnet_forward.5} parent=5 // pred_region
      %s250 = ssub.s32 %s15, 1
      %s251 = smul.u32 49, %s20
      %p252 = scmp.lt.s32.totalorder %s251, 587
      %s253 = scalar_select %p252, %s251, 587
      %s254 = scalar_lea.vmem %s0, %s253
      %p255 = pneg %p41
      %p256 = pneg %p38
      %s257 = smul.u32 784, %s20
      %p258 = scmp.lt.s32.totalorder %s257, 9407
      %s259 = scalar_select %p258, %s257, 9407
      %s260 = smul.addr %s259, 4
      %s261 = scalar_lea.vmem %s1, %s260
      %p262 = pneg %p67
      %p263 = pneg %p64
      %p264 = pneg %p88
      %p265 = pneg %p85
      %p266 = pneg %p109
      %p267 = pneg %p106
      %p268 = pneg %p130
      %p269 = pneg %p127
      %p270 = pneg %p151
      %p271 = pneg %p148
      %p272 = pneg %p172
      %p273 = pneg %p169
      %p274 = pneg %p193
      %p275 = pneg %p190
      %s276 = smul.u32 49, %s20
      %p277 = scmp.lt.s32.totalorder %s276, 587
      %s278 = scalar_select %p277, %s276, 587
      %s279 = scalar_lea.vmem %s0, %s278
      %s280 = smul.u32 49, %s20
      %s281 = smul.u32 784, %s20
      %p282 = scmp.lt.s32.totalorder %s281, 9407
      %s283 = scalar_select %p282, %s281, 9407
      %s284 = smul.addr %s283, 4
      %s285 = scalar_lea.vmem %s1, %s284
      %s286 = smul.u32 784, %s20
      %p288 = scmp.eq.s32.totalorder %s20, 0
      // Predicated region
      $region49: #{prefnet_forward.5} parent=47 // pred_check
        %p289 = pneg %p288
      $region50: #{prefnet_forward.5} parent=47 // pred_check_branch
        %291 = sbr.rel (%p289) target = $region52
      $region51: #{prefnet_forward.5} parent=47 // pred_region
        %vm292 = vcmask 975872
        %293 = vst.msk [vmem:[#allocation2] sm:$0x3] %vm292, 0.0
      $region52: #{prefnet_forward.5} parent=47 // pred_fallthru
        _
      %v294 = vld [vmem:[#allocation2] sm:$0x3]
      %v295 = vld [vmem:[%s279] sm:$0xff]
      %v296 = vld [vmem:[%s279 + $0x8] sm:$0xff]
      %v297 = vld [vmem:[%s279 + $0x10] sm:$0xff]
      %v298 = vld [vmem:[%s279 + $0x18] sm:$0xff]
      %v299 = vld [vmem:[%s279 + $0x20] sm:$0xff]
      %v300 = vld [vmem:[%s279 + $0x28] sm:$0xff]
      %v301 = vld [vmem:[%s279 + $0x30] sm:$0x1]
      %v302 = vld [vmem:[%s285] sm:$0xf]
      %v303 = vld [vmem:[%s285 + $0x4] sm:$0xf]
      %v304 = vld [vmem:[%s285 + $0x8] sm:$0xf]
      %v305 = vld [vmem:[%s285 + $0xc] sm:$0xf]
      %v306 = vld [vmem:[%s285 + $0x10] sm:$0xf]
      %v307 = vld [vmem:[%s285 + $0x14] sm:$0xf]
      %v308 = vld [vmem:[%s285 + $0x18] sm:$0xf]
      %v309 = vld [vmem:[%s285 + $0x1c] sm:$0xf]
      %v310 = vld [vmem:[%s285 + $0x20] sm:$0xf]
      %v311 = vld [vmem:[%s285 + $0x24] sm:$0xf]
      %v312 = vld [vmem:[%s285 + $0x28] sm:$0xf]
      %v313 = vld [vmem:[%s285 + $0x2c] sm:$0xf]
      %v314 = vld [vmem:[%s285 + $0x30] sm:$0xf]
      %v315 = vld [vmem:[%s285 + $0x34] sm:$0xf]
      %v316 = vld [vmem:[%s285 + $0x38] sm:$0xf]
      %v317 = vld [vmem:[%s285 + $0x3c] sm:$0xf]
      %v318 = vld [vmem:[%s285 + $0x40] sm:$0xf]
      %v319 = vld [vmem:[%s285 + $0x44] sm:$0xf]
      %v320 = vld [vmem:[%s285 + $0x48] sm:$0xf]
      %v321 = vld [vmem:[%s285 + $0x4c] sm:$0xf]
      %v322 = vld [vmem:[%s285 + $0x50] sm:$0xf]
      %v323 = vld [vmem:[%s285 + $0x54] sm:$0xf]
      %v324 = vld [vmem:[%s285 + $0x58] sm:$0xf]
      %v325 = vld [vmem:[%s285 + $0x5c] sm:$0xf]
      %v326 = vld [vmem:[%s285 + $0x60] sm:$0xf]
      %v327 = vld [vmem:[%s285 + $0x64] sm:$0xf]
      %v328 = vld [vmem:[%s285 + $0x68] sm:$0xf]
      %v329 = vld [vmem:[%s285 + $0x6c] sm:$0xf]
      %v330 = vld [vmem:[%s285 + $0x70] sm:$0xf]
      %v331 = vld [vmem:[%s285 + $0x74] sm:$0xf]
      %v332 = vld [vmem:[%s285 + $0x78] sm:$0xf]
      %v333 = vld [vmem:[%s285 + $0x7c] sm:$0xf]
      %v334 = vld [vmem:[%s285 + $0x80] sm:$0xf]
      %v335 = vld [vmem:[%s285 + $0x84] sm:$0xf]
      %v336 = vld [vmem:[%s285 + $0x88] sm:$0xf]
      %v337 = vld [vmem:[%s285 + $0x8c] sm:$0xf]
      %v338 = vld [vmem:[%s285 + $0x90] sm:$0xf]
      %v339 = vld [vmem:[%s285 + $0x94] sm:$0xf]
      %v340 = vld [vmem:[%s285 + $0x98] sm:$0xf]
      %v341 = vld [vmem:[%s285 + $0x9c] sm:$0xf]
      %v342 = vld [vmem:[%s285 + $0xa0] sm:$0xf]
      %v343 = vld [vmem:[%s285 + $0xa4] sm:$0xf]
      %v344 = vld [vmem:[%s285 + $0xa8] sm:$0xf]
      %v345 = vld [vmem:[%s285 + $0xac] sm:$0xf]
      %v346 = vld [vmem:[%s285 + $0xb0] sm:$0xf]
      %v347 = vld [vmem:[%s285 + $0xb4] sm:$0xf]
      %v348 = vld [vmem:[%s285 + $0xb8] sm:$0xf]
      %v349 = vld [vmem:[%s285 + $0xbc] sm:$0xf]
      %v350 = vld [vmem:[%s285 + $0xc0] sm:$0xf]
      %v351 = vld [vmem:[%s285 + $0xc4] sm:$0xf]
      %v352 = vld [vmem:[%s285 + $0xc8] sm:$0xf]
      %v353 = vld [vmem:[%s285 + $0xcc] sm:$0xf]
      %v354 = vld [vmem:[%s285 + $0xd0] sm:$0xf]
      %v355 = vld [vmem:[%s285 + $0xd4] sm:$0xf]
      %v356 = vld [vmem:[%s285 + $0xd8] sm:$0xf]
      %v357 = vld [vmem:[%s285 + $0xdc] sm:$0xf]
      %v358 = vld [vmem:[%s285 + $0xe0] sm:$0xf]
      %v359 = vld [vmem:[%s285 + $0xe4] sm:$0xf]
      %v360 = vld [vmem:[%s285 + $0xe8] sm:$0xf]
      %v361 = vld [vmem:[%s285 + $0xec] sm:$0xf]
      %v362 = vld [vmem:[%s285 + $0xf0] sm:$0xf]
      %v363 = vld [vmem:[%s285 + $0xf4] sm:$0xf]
      %v364 = vld [vmem:[%s285 + $0xf8] sm:$0xf]
      %v365 = vld [vmem:[%s285 + $0xfc] sm:$0xf]
      %v366 = vld [vmem:[%s285 + $0x100] sm:$0xf]
      %v367 = vld [vmem:[%s285 + $0x104] sm:$0xf]
      %v368 = vld [vmem:[%s285 + $0x108] sm:$0xf]
      %v369 = vld [vmem:[%s285 + $0x10c] sm:$0xf]
      %v370 = vld [vmem:[%s285 + $0x110] sm:$0xf]
      %v371 = vld [vmem:[%s285 + $0x114] sm:$0xf]
      %v372 = vld [vmem:[%s285 + $0x118] sm:$0xf]
      %v373 = vld [vmem:[%s285 + $0x11c] sm:$0xf]
      %v374 = vld [vmem:[%s285 + $0x120] sm:$0xf]
      %v375 = vld [vmem:[%s285 + $0x124] sm:$0xf]
      %v376 = vld [vmem:[%s285 + $0x128] sm:$0xf]
      %v377 = vld [vmem:[%s285 + $0x12c] sm:$0xf]
      %v378 = vld [vmem:[%s285 + $0x130] sm:$0xf]
      %v379 = vld [vmem:[%s285 + $0x134] sm:$0xf]
      %v380 = vld [vmem:[%s285 + $0x138] sm:$0xf]
      %v381 = vld [vmem:[%s285 + $0x13c] sm:$0xf]
      %v382 = vld [vmem:[%s285 + $0x140] sm:$0xf]
      %v383 = vld [vmem:[%s285 + $0x144] sm:$0xf]
      %v384 = vld [vmem:[%s285 + $0x148] sm:$0xf]
      %v385 = vld [vmem:[%s285 + $0x14c] sm:$0xf]
      %v386 = vld [vmem:[%s285 + $0x150] sm:$0xf]
      %v387 = vld [vmem:[%s285 + $0x154] sm:$0xf]
      %v388 = vld [vmem:[%s285 + $0x158] sm:$0xf]
      %v389 = vld [vmem:[%s285 + $0x15c] sm:$0xf]
      %v390 = vld [vmem:[%s285 + $0x160] sm:$0xf]
      %v391 = vld [vmem:[%s285 + $0x164] sm:$0xf]
      %v392 = vld [vmem:[%s285 + $0x168] sm:$0xf]
      %v393 = vld [vmem:[%s285 + $0x16c] sm:$0xf]
      %v394 = vld [vmem:[%s285 + $0x170] sm:$0xf]
      %v395 = vld [vmem:[%s285 + $0x174] sm:$0xf]
      %v396 = vld [vmem:[%s285 + $0x178] sm:$0xf]
      %v397 = vld [vmem:[%s285 + $0x17c] sm:$0xf]
      %v398 = vld [vmem:[%s285 + $0x180] sm:$0xf]
      %v399 = vld [vmem:[%s285 + $0x184] sm:$0xf]
      %v400 = vld [vmem:[%s285 + $0x188] sm:$0xf]
      %v401 = vld [vmem:[%s285 + $0x18c] sm:$0xf]
      %v402 = vld [vmem:[%s285 + $0x190] sm:$0xf]
      %v403 = vld [vmem:[%s285 + $0x194] sm:$0xf]
      %v404 = vld [vmem:[%s285 + $0x198] sm:$0xf]
      %v405 = vld [vmem:[%s285 + $0x19c] sm:$0xf]
      %v406 = vld [vmem:[%s285 + $0x1a0] sm:$0xf]
      %v407 = vld [vmem:[%s285 + $0x1a4] sm:$0xf]
      %v408 = vld [vmem:[%s285 + $0x1a8] sm:$0xf]
      %v409 = vld [vmem:[%s285 + $0x1ac] sm:$0xf]
      %v410 = vld [vmem:[%s285 + $0x1b0] sm:$0xf]
      %v411 = vld [vmem:[%s285 + $0x1b4] sm:$0xf]
      %v412 = vld [vmem:[%s285 + $0x1b8] sm:$0xf]
      %v413 = vld [vmem:[%s285 + $0x1bc] sm:$0xf]
      %v414 = vld [vmem:[%s285 + $0x1c0] sm:$0xf]
      %v415 = vld [vmem:[%s285 + $0x1c4] sm:$0xf]
      %v416 = vld [vmem:[%s285 + $0x1c8] sm:$0xf]
      %v417 = vld [vmem:[%s285 + $0x1cc] sm:$0xf]
      %v418 = vld [vmem:[%s285 + $0x1d0] sm:$0xf]
      %v419 = vld [vmem:[%s285 + $0x1d4] sm:$0xf]
      %v420 = vld [vmem:[%s285 + $0x1d8] sm:$0xf]
      %v421 = vld [vmem:[%s285 + $0x1dc] sm:$0xf]
      %v422 = vld [vmem:[%s285 + $0x1e0] sm:$0xf]
      %v423 = vld [vmem:[%s285 + $0x1e4] sm:$0xf]
      %v424 = vld [vmem:[%s285 + $0x1e8] sm:$0xf]
      %v425 = vld [vmem:[%s285 + $0x1ec] sm:$0xf]
      %v426 = vld [vmem:[%s285 + $0x1f0] sm:$0xf]
      %v427 = vld [vmem:[%s285 + $0x1f4] sm:$0xf]
      %v428 = vld [vmem:[%s285 + $0x1f8] sm:$0xf]
      %v429 = vld [vmem:[%s285 + $0x1fc] sm:$0xf]
      %v430 = vld [vmem:[%s285 + $0x200] sm:$0xf]
      %v431 = vld [vmem:[%s285 + $0x204] sm:$0xf]
      %v432 = vld [vmem:[%s285 + $0x208] sm:$0xf]
      %v433 = vld [vmem:[%s285 + $0x20c] sm:$0xf]
      %v434 = vld [vmem:[%s285 + $0x210] sm:$0xf]
      %v435 = vld [vmem:[%s285 + $0x214] sm:$0xf]
      %v436 = vld [vmem:[%s285 + $0x218] sm:$0xf]
      %v437 = vld [vmem:[%s285 + $0x21c] sm:$0xf]
      %v438 = vld [vmem:[%s285 + $0x220] sm:$0xf]
      %v439 = vld [vmem:[%s285 + $0x224] sm:$0xf]
      %v440 = vld [vmem:[%s285 + $0x228] sm:$0xf]
      %v441 = vld [vmem:[%s285 + $0x22c] sm:$0xf]
      %v442 = vld [vmem:[%s285 + $0x230] sm:$0xf]
      %v443 = vld [vmem:[%s285 + $0x234] sm:$0xf]
      %v444 = vld [vmem:[%s285 + $0x238] sm:$0xf]
      %v445 = vld [vmem:[%s285 + $0x23c] sm:$0xf]
      %v446 = vld [vmem:[%s285 + $0x240] sm:$0xf]
      %v447 = vld [vmem:[%s285 + $0x244] sm:$0xf]
      %v448 = vld [vmem:[%s285 + $0x248] sm:$0xf]
      %v449 = vld [vmem:[%s285 + $0x24c] sm:$0xf]
      %v450 = vld [vmem:[%s285 + $0x250] sm:$0xf]
      %v451 = vld [vmem:[%s285 + $0x254] sm:$0xf]
      %v452 = vld [vmem:[%s285 + $0x258] sm:$0xf]
      %v453 = vld [vmem:[%s285 + $0x25c] sm:$0xf]
      %v454 = vld [vmem:[%s285 + $0x260] sm:$0xf]
      %v455 = vld [vmem:[%s285 + $0x264] sm:$0xf]
      %v456 = vld [vmem:[%s285 + $0x268] sm:$0xf]
      %v457 = vld [vmem:[%s285 + $0x26c] sm:$0xf]
      %v458 = vld [vmem:[%s285 + $0x270] sm:$0xf]
      %v459 = vld [vmem:[%s285 + $0x274] sm:$0xf]
      %v460 = vld [vmem:[%s285 + $0x278] sm:$0xf]
      %v461 = vld [vmem:[%s285 + $0x27c] sm:$0xf]
      %v462 = vld [vmem:[%s285 + $0x280] sm:$0xf]
      %v463 = vld [vmem:[%s285 + $0x284] sm:$0xf]
      %v464 = vld [vmem:[%s285 + $0x288] sm:$0xf]
      %v465 = vld [vmem:[%s285 + $0x28c] sm:$0xf]
      %v466 = vld [vmem:[%s285 + $0x290] sm:$0xf]
      %v467 = vld [vmem:[%s285 + $0x294] sm:$0xf]
      %v468 = vld [vmem:[%s285 + $0x298] sm:$0xf]
      %v469 = vld [vmem:[%s285 + $0x29c] sm:$0xf]
      %v470 = vld [vmem:[%s285 + $0x2a0] sm:$0xf]
      %v471 = vld [vmem:[%s285 + $0x2a4] sm:$0xf]
      %v472 = vld [vmem:[%s285 + $0x2a8] sm:$0xf]
      %v473 = vld [vmem:[%s285 + $0x2ac] sm:$0xf]
      %v474 = vld [vmem:[%s285 + $0x2b0] sm:$0xf]
      %v475 = vld [vmem:[%s285 + $0x2b4] sm:$0xf]
      %v476 = vld [vmem:[%s285 + $0x2b8] sm:$0xf]
      %v477 = vld [vmem:[%s285 + $0x2bc] sm:$0xf]
      %v478 = vld [vmem:[%s285 + $0x2c0] sm:$0xf]
      %v479 = vld [vmem:[%s285 + $0x2c4] sm:$0xf]
      %v480 = vld [vmem:[%s285 + $0x2c8] sm:$0xf]
      %v481 = vld [vmem:[%s285 + $0x2cc] sm:$0xf]
      %v482 = vld [vmem:[%s285 + $0x2d0] sm:$0xf]
      %v483 = vld [vmem:[%s285 + $0x2d4] sm:$0xf]
      %v484 = vld [vmem:[%s285 + $0x2d8] sm:$0xf]
      %v485 = vld [vmem:[%s285 + $0x2dc] sm:$0xf]
      %v486 = vld [vmem:[%s285 + $0x2e0] sm:$0xf]
      %v487 = vld [vmem:[%s285 + $0x2e4] sm:$0xf]
      %v488 = vld [vmem:[%s285 + $0x2e8] sm:$0xf]
      %v489 = vld [vmem:[%s285 + $0x2ec] sm:$0xf]
      %v490 = vld [vmem:[%s285 + $0x2f0] sm:$0xf]
      %v491 = vld [vmem:[%s285 + $0x2f4] sm:$0xf]
      %v492 = vld [vmem:[%s285 + $0x2f8] sm:$0xf]
      %v493 = vld [vmem:[%s285 + $0x2fc] sm:$0xf]
      %v494 = vld [vmem:[%s285 + $0x300] sm:$0xf]
      %v495 = vld [vmem:[%s285 + $0x304] sm:$0xf]
      %v496 = vld [vmem:[%s285 + $0x308] sm:$0xf]
      %v497 = vld [vmem:[%s285 + $0x30c] sm:$0xf]
      %v498 = vld [vmem:[%s285 + $0x310] sm:$0xf]
      %v499 = vld [vmem:[%s285 + $0x314] sm:$0xf]
      %v500 = vld [vmem:[%s285 + $0x318] sm:$0xf]
      %v501 = vld [vmem:[%s285 + $0x31c] sm:$0xf]
      %v502 = vld [vmem:[%s285 + $0x320] sm:$0xf]
      %v503 = vld [vmem:[%s285 + $0x324] sm:$0xf]
      %v504 = vld [vmem:[%s285 + $0x328] sm:$0xf]
      %v505 = vld [vmem:[%s285 + $0x32c] sm:$0xf]
      %v506 = vld [vmem:[%s285 + $0x330] sm:$0xf]
      %v507 = vld [vmem:[%s285 + $0x334] sm:$0xf]
      %v508 = vld [vmem:[%s285 + $0x338] sm:$0xf]
      %v509 = vld [vmem:[%s285 + $0x33c] sm:$0xf]
      %v510 = vld [vmem:[%s285 + $0x340] sm:$0xf]
      %v511 = vld [vmem:[%s285 + $0x344] sm:$0xf]
      %v512 = vld [vmem:[%s285 + $0x348] sm:$0xf]
      %v513 = vld [vmem:[%s285 + $0x34c] sm:$0xf]
      %v514 = vld [vmem:[%s285 + $0x350] sm:$0xf]
      %v515 = vld [vmem:[%s285 + $0x354] sm:$0xf]
      %v516 = vld [vmem:[%s285 + $0x358] sm:$0xf]
      %v517 = vld [vmem:[%s285 + $0x35c] sm:$0xf]
      %v518 = vld [vmem:[%s285 + $0x360] sm:$0xf]
      %v519 = vld [vmem:[%s285 + $0x364] sm:$0xf]
      %v520 = vld [vmem:[%s285 + $0x368] sm:$0xf]
      %v521 = vld [vmem:[%s285 + $0x36c] sm:$0xf]
      %v522 = vld [vmem:[%s285 + $0x370] sm:$0xf]
      %v523 = vld [vmem:[%s285 + $0x374] sm:$0xf]
      %v524 = vld [vmem:[%s285 + $0x378] sm:$0xf]
      %v525 = vld [vmem:[%s285 + $0x37c] sm:$0xf]
      %v526 = vld [vmem:[%s285 + $0x380] sm:$0xf]
      %v527 = vld [vmem:[%s285 + $0x384] sm:$0xf]
      %v528 = vld [vmem:[%s285 + $0x388] sm:$0xf]
      %v529 = vld [vmem:[%s285 + $0x38c] sm:$0xf]
      %v530 = vld [vmem:[%s285 + $0x390] sm:$0xf]
      %v531 = vld [vmem:[%s285 + $0x394] sm:$0xf]
      %v532 = vld [vmem:[%s285 + $0x398] sm:$0xf]
      %v533 = vld [vmem:[%s285 + $0x39c] sm:$0xf]
      %v534 = vld [vmem:[%s285 + $0x3a0] sm:$0xf]
      %v535 = vld [vmem:[%s285 + $0x3a4] sm:$0xf]
      %v536 = vld [vmem:[%s285 + $0x3a8] sm:$0xf]
      %v537 = vld [vmem:[%s285 + $0x3ac] sm:$0xf]
      %v538 = vld [vmem:[%s285 + $0x3b0] sm:$0xf]
      %v539 = vld [vmem:[%s285 + $0x3b4] sm:$0xf]
      %v540 = vld [vmem:[%s285 + $0x3b8] sm:$0xf]
      %v541 = vld [vmem:[%s285 + $0x3bc] sm:$0xf]
      %v542 = vld [vmem:[%s285 + $0x3c0] sm:$0xf]
      %v543 = vld [vmem:[%s285 + $0x3c4] sm:$0xf]
      %v544 = vld [vmem:[%s285 + $0x3c8] sm:$0xf]
      %v545 = vld [vmem:[%s285 + $0x3cc] sm:$0xf]
      %v546 = vld [vmem:[%s285 + $0x3d0] sm:$0xf]
      %v547 = vld [vmem:[%s285 + $0x3d4] sm:$0xf]
      %v548 = vld [vmem:[%s285 + $0x3d8] sm:$0xf]
      %v549 = vld [vmem:[%s285 + $0x3dc] sm:$0xf]
      %v550 = vld [vmem:[%s285 + $0x3e0] sm:$0xf]
      %v551 = vld [vmem:[%s285 + $0x3e4] sm:$0xf]
      %v552 = vld [vmem:[%s285 + $0x3e8] sm:$0xf]
      %v553 = vld [vmem:[%s285 + $0x3ec] sm:$0xf]
      %v554 = vld [vmem:[%s285 + $0x3f0] sm:$0xf]
      %v555 = vld [vmem:[%s285 + $0x3f4] sm:$0xf]
      %v556 = vld [vmem:[%s285 + $0x3f8] sm:$0xf]
      %v557 = vld [vmem:[%s285 + $0x3fc] sm:$0xf]
      %v558 = vld [vmem:[%s285 + $0x400] sm:$0xf]
      %v559 = vld [vmem:[%s285 + $0x404] sm:$0xf]
      %v560 = vld [vmem:[%s285 + $0x408] sm:$0xf]
      %v561 = vld [vmem:[%s285 + $0x40c] sm:$0xf]
      %v562 = vld [vmem:[%s285 + $0x410] sm:$0xf]
      %v563 = vld [vmem:[%s285 + $0x414] sm:$0xf]
      %v564 = vld [vmem:[%s285 + $0x418] sm:$0xf]
      %v565 = vld [vmem:[%s285 + $0x41c] sm:$0xf]
      %v566 = vld [vmem:[%s285 + $0x420] sm:$0xf]
      %v567 = vld [vmem:[%s285 + $0x424] sm:$0xf]
      %v568 = vld [vmem:[%s285 + $0x428] sm:$0xf]
      %v569 = vld [vmem:[%s285 + $0x42c] sm:$0xf]
      %v570 = vld [vmem:[%s285 + $0x430] sm:$0xf]
      %v571 = vld [vmem:[%s285 + $0x434] sm:$0xf]
      %v572 = vld [vmem:[%s285 + $0x438] sm:$0xf]
      %v573 = vld [vmem:[%s285 + $0x43c] sm:$0xf]
      %v574 = vld [vmem:[%s285 + $0x440] sm:$0xf]
      %v575 = vld [vmem:[%s285 + $0x444] sm:$0xf]
      %v576 = vld [vmem:[%s285 + $0x448] sm:$0xf]
      %v577 = vld [vmem:[%s285 + $0x44c] sm:$0xf]
      %v578 = vld [vmem:[%s285 + $0x450] sm:$0xf]
      %v579 = vld [vmem:[%s285 + $0x454] sm:$0xf]
      %v580 = vld [vmem:[%s285 + $0x458] sm:$0xf]
      %v581 = vld [vmem:[%s285 + $0x45c] sm:$0xf]
      %v582 = vld [vmem:[%s285 + $0x460] sm:$0xf]
      %v583 = vld [vmem:[%s285 + $0x464] sm:$0xf]
      %v584 = vld [vmem:[%s285 + $0x468] sm:$0xf]
      %v585 = vld [vmem:[%s285 + $0x46c] sm:$0xf]
      %v586 = vld [vmem:[%s285 + $0x470] sm:$0xf]
      %v587 = vld [vmem:[%s285 + $0x474] sm:$0xf]
      %v588 = vld [vmem:[%s285 + $0x478] sm:$0xf]
      %v589 = vld [vmem:[%s285 + $0x47c] sm:$0xf]
      %v590 = vld [vmem:[%s285 + $0x480] sm:$0xf]
      %v591 = vld [vmem:[%s285 + $0x484] sm:$0xf]
      %v592 = vld [vmem:[%s285 + $0x488] sm:$0xf]
      %v593 = vld [vmem:[%s285 + $0x48c] sm:$0xf]
      %v594 = vld [vmem:[%s285 + $0x490] sm:$0xf]
      %v595 = vld [vmem:[%s285 + $0x494] sm:$0xf]
      %v596 = vld [vmem:[%s285 + $0x498] sm:$0xf]
      %v597 = vld [vmem:[%s285 + $0x49c] sm:$0xf]
      %v598 = vld [vmem:[%s285 + $0x4a0] sm:$0xf]
      %v599 = vld [vmem:[%s285 + $0x4a4] sm:$0xf]
      %v600 = vld [vmem:[%s285 + $0x4a8] sm:$0xf]
      %v601 = vld [vmem:[%s285 + $0x4ac] sm:$0xf]
      %v602 = vld [vmem:[%s285 + $0x4b0] sm:$0xf]
      %v603 = vld [vmem:[%s285 + $0x4b4] sm:$0xf]
      %v604 = vld [vmem:[%s285 + $0x4b8] sm:$0xf]
      %v605 = vld [vmem:[%s285 + $0x4bc] sm:$0xf]
      %v606 = vld [vmem:[%s285 + $0x4c0] sm:$0xf]
      %v607 = vld [vmem:[%s285 + $0x4c4] sm:$0xf]
      %v608 = vld [vmem:[%s285 + $0x4c8] sm:$0xf]
      %v609 = vld [vmem:[%s285 + $0x4cc] sm:$0xf]
      %v610 = vld [vmem:[%s285 + $0x4d0] sm:$0xf]
      %v611 = vld [vmem:[%s285 + $0x4d4] sm:$0xf]
      %v612 = vld [vmem:[%s285 + $0x4d8] sm:$0xf]
      %v613 = vld [vmem:[%s285 + $0x4dc] sm:$0xf]
      %v614 = vld [vmem:[%s285 + $0x4e0] sm:$0xf]
      %v615 = vld [vmem:[%s285 + $0x4e4] sm:$0xf]
      %v616 = vld [vmem:[%s285 + $0x4e8] sm:$0xf]
      %v617 = vld [vmem:[%s285 + $0x4ec] sm:$0xf]
      %v618 = vld [vmem:[%s285 + $0x4f0] sm:$0xf]
      %v619 = vld [vmem:[%s285 + $0x4f4] sm:$0xf]
      %v620 = vld [vmem:[%s285 + $0x4f8] sm:$0xf]
      %v621 = vld [vmem:[%s285 + $0x4fc] sm:$0xf]
      %v622 = vld [vmem:[%s285 + $0x500] sm:$0xf]
      %v623 = vld [vmem:[%s285 + $0x504] sm:$0xf]
      %v624 = vld [vmem:[%s285 + $0x508] sm:$0xf]
      %v625 = vld [vmem:[%s285 + $0x50c] sm:$0xf]
      %v626 = vld [vmem:[%s285 + $0x510] sm:$0xf]
      %v627 = vld [vmem:[%s285 + $0x514] sm:$0xf]
      %v628 = vld [vmem:[%s285 + $0x518] sm:$0xf]
      %v629 = vld [vmem:[%s285 + $0x51c] sm:$0xf]
      %v630 = vld [vmem:[%s285 + $0x520] sm:$0xf]
      %v631 = vld [vmem:[%s285 + $0x524] sm:$0xf]
      %v632 = vld [vmem:[%s285 + $0x528] sm:$0xf]
      %v633 = vld [vmem:[%s285 + $0x52c] sm:$0xf]
      %v634 = vld [vmem:[%s285 + $0x530] sm:$0xf]
      %v635 = vld [vmem:[%s285 + $0x534] sm:$0xf]
      %v636 = vld [vmem:[%s285 + $0x538] sm:$0xf]
      %v637 = vld [vmem:[%s285 + $0x53c] sm:$0xf]
      %v638 = vld [vmem:[%s285 + $0x540] sm:$0xf]
      %v639 = vld [vmem:[%s285 + $0x544] sm:$0xf]
      %v640 = vld [vmem:[%s285 + $0x548] sm:$0xf]
      %v641 = vld [vmem:[%s285 + $0x54c] sm:$0xf]
      %v642 = vld [vmem:[%s285 + $0x550] sm:$0xf]
      %v643 = vld [vmem:[%s285 + $0x554] sm:$0xf]
      %v644 = vld [vmem:[%s285 + $0x558] sm:$0xf]
      %v645 = vld [vmem:[%s285 + $0x55c] sm:$0xf]
      %v646 = vld [vmem:[%s285 + $0x560] sm:$0xf]
      %v647 = vld [vmem:[%s285 + $0x564] sm:$0xf]
      %v648 = vld [vmem:[%s285 + $0x568] sm:$0xf]
      %v649 = vld [vmem:[%s285 + $0x56c] sm:$0xf]
      %v650 = vld [vmem:[%s285 + $0x570] sm:$0xf]
      %v651 = vld [vmem:[%s285 + $0x574] sm:$0xf]
      %v652 = vld [vmem:[%s285 + $0x578] sm:$0xf]
      %v653 = vld [vmem:[%s285 + $0x57c] sm:$0xf]
      %v654 = vld [vmem:[%s285 + $0x580] sm:$0xf]
      %v655 = vld [vmem:[%s285 + $0x584] sm:$0xf]
      %v656 = vld [vmem:[%s285 + $0x588] sm:$0xf]
      %v657 = vld [vmem:[%s285 + $0x58c] sm:$0xf]
      %v658 = vld [vmem:[%s285 + $0x590] sm:$0xf]
      %v659 = vld [vmem:[%s285 + $0x594] sm:$0xf]
      %v660 = vld [vmem:[%s285 + $0x598] sm:$0xf]
      %v661 = vld [vmem:[%s285 + $0x59c] sm:$0xf]
      %v662 = vld [vmem:[%s285 + $0x5a0] sm:$0xf]
      %v663 = vld [vmem:[%s285 + $0x5a4] sm:$0xf]
      %v664 = vld [vmem:[%s285 + $0x5a8] sm:$0xf]
      %v665 = vld [vmem:[%s285 + $0x5ac] sm:$0xf]
      %v666 = vld [vmem:[%s285 + $0x5b0] sm:$0xf]
      %v667 = vld [vmem:[%s285 + $0x5b4] sm:$0xf]
      %v668 = vld [vmem:[%s285 + $0x5b8] sm:$0xf]
      %v669 = vld [vmem:[%s285 + $0x5bc] sm:$0xf]
      %v670 = vld [vmem:[%s285 + $0x5c0] sm:$0xf]
      %v671 = vld [vmem:[%s285 + $0x5c4] sm:$0xf]
      %v672 = vld [vmem:[%s285 + $0x5c8] sm:$0xf]
      %v673 = vld [vmem:[%s285 + $0x5cc] sm:$0xf]
      %v674 = vld [vmem:[%s285 + $0x5d0] sm:$0xf]
      %v675 = vld [vmem:[%s285 + $0x5d4] sm:$0xf]
      %v676 = vld [vmem:[%s285 + $0x5d8] sm:$0xf]
      %v677 = vld [vmem:[%s285 + $0x5dc] sm:$0xf]
      %v678 = vld [vmem:[%s285 + $0x5e0] sm:$0xf]
      %v679 = vld [vmem:[%s285 + $0x5e4] sm:$0xf]
      %v680 = vld [vmem:[%s285 + $0x5e8] sm:$0xf]
      %v681 = vld [vmem:[%s285 + $0x5ec] sm:$0xf]
      %v682 = vld [vmem:[%s285 + $0x5f0] sm:$0xf]
      %v683 = vld [vmem:[%s285 + $0x5f4] sm:$0xf]
      %v684 = vld [vmem:[%s285 + $0x5f8] sm:$0xf]
      %v685 = vld [vmem:[%s285 + $0x5fc] sm:$0xf]
      %v686 = vld [vmem:[%s285 + $0x600] sm:$0xf]
      %v687 = vld [vmem:[%s285 + $0x604] sm:$0xf]
      %v688 = vld [vmem:[%s285 + $0x608] sm:$0xf]
      %v689 = vld [vmem:[%s285 + $0x60c] sm:$0xf]
      %v690 = vld [vmem:[%s285 + $0x610] sm:$0xf]
      %v691 = vld [vmem:[%s285 + $0x614] sm:$0xf]
      %v692 = vld [vmem:[%s285 + $0x618] sm:$0xf]
      %v693 = vld [vmem:[%s285 + $0x61c] sm:$0xf]
      %v694 = vld [vmem:[%s285 + $0x620] sm:$0xf]
      %v695 = vld [vmem:[%s285 + $0x624] sm:$0xf]
      %v696 = vld [vmem:[%s285 + $0x628] sm:$0xf]
      %v697 = vld [vmem:[%s285 + $0x62c] sm:$0xf]
      %v698 = vld [vmem:[%s285 + $0x630] sm:$0xf]
      %v699 = vld [vmem:[%s285 + $0x634] sm:$0xf]
      %v700 = vld [vmem:[%s285 + $0x638] sm:$0xf]
      %v701 = vld [vmem:[%s285 + $0x63c] sm:$0xf]
      %v702 = vld [vmem:[%s285 + $0x640] sm:$0xf]
      %v703 = vld [vmem:[%s285 + $0x644] sm:$0xf]
      %v704 = vld [vmem:[%s285 + $0x648] sm:$0xf]
      %v705 = vld [vmem:[%s285 + $0x64c] sm:$0xf]
      %v706 = vld [vmem:[%s285 + $0x650] sm:$0xf]
      %v707 = vld [vmem:[%s285 + $0x654] sm:$0xf]
      %v708 = vld [vmem:[%s285 + $0x658] sm:$0xf]
      %v709 = vld [vmem:[%s285 + $0x65c] sm:$0xf]
      %v710 = vld [vmem:[%s285 + $0x660] sm:$0xf]
      %v711 = vld [vmem:[%s285 + $0x664] sm:$0xf]
      %v712 = vld [vmem:[%s285 + $0x668] sm:$0xf]
      %v713 = vld [vmem:[%s285 + $0x66c] sm:$0xf]
      %v714 = vld [vmem:[%s285 + $0x670] sm:$0xf]
      %v715 = vld [vmem:[%s285 + $0x674] sm:$0xf]
      %v716 = vld [vmem:[%s285 + $0x678] sm:$0xf]
      %v717 = vld [vmem:[%s285 + $0x67c] sm:$0xf]
      %v718 = vld [vmem:[%s285 + $0x680] sm:$0xf]
      %v719 = vld [vmem:[%s285 + $0x684] sm:$0xf]
      %v720 = vld [vmem:[%s285 + $0x688] sm:$0xf]
      %v721 = vld [vmem:[%s285 + $0x68c] sm:$0xf]
      %v722 = vld [vmem:[%s285 + $0x690] sm:$0xf]
      %v723 = vld [vmem:[%s285 + $0x694] sm:$0xf]
      %v724 = vld [vmem:[%s285 + $0x698] sm:$0xf]
      %v725 = vld [vmem:[%s285 + $0x69c] sm:$0xf]
      %v726 = vld [vmem:[%s285 + $0x6a0] sm:$0xf]
      %v727 = vld [vmem:[%s285 + $0x6a4] sm:$0xf]
      %v728 = vld [vmem:[%s285 + $0x6a8] sm:$0xf]
      %v729 = vld [vmem:[%s285 + $0x6ac] sm:$0xf]
      %v730 = vld [vmem:[%s285 + $0x6b0] sm:$0xf]
      %v731 = vld [vmem:[%s285 + $0x6b4] sm:$0xf]
      %v732 = vld [vmem:[%s285 + $0x6b8] sm:$0xf]
      %v733 = vld [vmem:[%s285 + $0x6bc] sm:$0xf]
      %v734 = vld [vmem:[%s285 + $0x6c0] sm:$0xf]
      %v735 = vld [vmem:[%s285 + $0x6c4] sm:$0xf]
      %v736 = vld [vmem:[%s285 + $0x6c8] sm:$0xf]
      %v737 = vld [vmem:[%s285 + $0x6cc] sm:$0xf]
      %v738 = vld [vmem:[%s285 + $0x6d0] sm:$0xf]
      %v739 = vld [vmem:[%s285 + $0x6d4] sm:$0xf]
      %v740 = vld [vmem:[%s285 + $0x6d8] sm:$0xf]
      %v741 = vld [vmem:[%s285 + $0x6dc] sm:$0xf]
      %v742 = vld [vmem:[%s285 + $0x6e0] sm:$0xf]
      %v743 = vld [vmem:[%s285 + $0x6e4] sm:$0xf]
      %v744 = vld [vmem:[%s285 + $0x6e8] sm:$0xf]
      %v745 = vld [vmem:[%s285 + $0x6ec] sm:$0xf]
      %v746 = vld [vmem:[%s285 + $0x6f0] sm:$0xf]
      %v747 = vld [vmem:[%s285 + $0x6f4] sm:$0xf]
      %v748 = vld [vmem:[%s285 + $0x6f8] sm:$0xf]
      %v749 = vld [vmem:[%s285 + $0x6fc] sm:$0xf]
      %v750 = vld [vmem:[%s285 + $0x700] sm:$0xf]
      %v751 = vld [vmem:[%s285 + $0x704] sm:$0xf]
      %v752 = vld [vmem:[%s285 + $0x708] sm:$0xf]
      %v753 = vld [vmem:[%s285 + $0x70c] sm:$0xf]
      %v754 = vld [vmem:[%s285 + $0x710] sm:$0xf]
      %v755 = vld [vmem:[%s285 + $0x714] sm:$0xf]
      %v756 = vld [vmem:[%s285 + $0x718] sm:$0xf]
      %v757 = vld [vmem:[%s285 + $0x71c] sm:$0xf]
      %v758 = vld [vmem:[%s285 + $0x720] sm:$0xf]
      %v759 = vld [vmem:[%s285 + $0x724] sm:$0xf]
      %v760 = vld [vmem:[%s285 + $0x728] sm:$0xf]
      %v761 = vld [vmem:[%s285 + $0x72c] sm:$0xf]
      %v762 = vld [vmem:[%s285 + $0x730] sm:$0xf]
      %v763 = vld [vmem:[%s285 + $0x734] sm:$0xf]
      %v764 = vld [vmem:[%s285 + $0x738] sm:$0xf]
      %v765 = vld [vmem:[%s285 + $0x73c] sm:$0xf]
      %v766 = vld [vmem:[%s285 + $0x740] sm:$0xf]
      %v767 = vld [vmem:[%s285 + $0x744] sm:$0xf]
      %v768 = vld [vmem:[%s285 + $0x748] sm:$0xf]
      %v769 = vld [vmem:[%s285 + $0x74c] sm:$0xf]
      %v770 = vld [vmem:[%s285 + $0x750] sm:$0xf]
      %v771 = vld [vmem:[%s285 + $0x754] sm:$0xf]
      %v772 = vld [vmem:[%s285 + $0x758] sm:$0xf]
      %v773 = vld [vmem:[%s285 + $0x75c] sm:$0xf]
      %v774 = vld [vmem:[%s285 + $0x760] sm:$0xf]
      %v775 = vld [vmem:[%s285 + $0x764] sm:$0xf]
      %v776 = vld [vmem:[%s285 + $0x768] sm:$0xf]
      %v777 = vld [vmem:[%s285 + $0x76c] sm:$0xf]
      %v778 = vld [vmem:[%s285 + $0x770] sm:$0xf]
      %v779 = vld [vmem:[%s285 + $0x774] sm:$0xf]
      %v780 = vld [vmem:[%s285 + $0x778] sm:$0xf]
      %v781 = vld [vmem:[%s285 + $0x77c] sm:$0xf]
      %v782 = vld [vmem:[%s285 + $0x780] sm:$0xf]
      %v783 = vld [vmem:[%s285 + $0x784] sm:$0xf]
      %v784 = vld [vmem:[%s285 + $0x788] sm:$0xf]
      %v785 = vld [vmem:[%s285 + $0x78c] sm:$0xf]
      %v786 = vld [vmem:[%s285 + $0x790] sm:$0xf]
      %v787 = vld [vmem:[%s285 + $0x794] sm:$0xf]
      %v788 = vld [vmem:[%s285 + $0x798] sm:$0xf]
      %v789 = vld [vmem:[%s285 + $0x79c] sm:$0xf]
      %v790 = vld [vmem:[%s285 + $0x7a0] sm:$0xf]
      %v791 = vld [vmem:[%s285 + $0x7a4] sm:$0xf]
      %v792 = vld [vmem:[%s285 + $0x7a8] sm:$0xf]
      %v793 = vld [vmem:[%s285 + $0x7ac] sm:$0xf]
      %v794 = vld [vmem:[%s285 + $0x7b0] sm:$0xf]
      %v795 = vld [vmem:[%s285 + $0x7b4] sm:$0xf]
      %v796 = vld [vmem:[%s285 + $0x7b8] sm:$0xf]
      %v797 = vld [vmem:[%s285 + $0x7bc] sm:$0xf]
      %v798 = vld [vmem:[%s285 + $0x7c0] sm:$0xf]
      %v799 = vld [vmem:[%s285 + $0x7c4] sm:$0xf]
      %v800 = vld [vmem:[%s285 + $0x7c8] sm:$0xf]
      %v801 = vld [vmem:[%s285 + $0x7cc] sm:$0xf]
      %v802 = vld [vmem:[%s285 + $0x7d0] sm:$0xf]
      %v803 = vld [vmem:[%s285 + $0x7d4] sm:$0xf]
      %v804 = vld [vmem:[%s285 + $0x7d8] sm:$0xf]
      %v805 = vld [vmem:[%s285 + $0x7dc] sm:$0xf]
      %v806 = vld [vmem:[%s285 + $0x7e0] sm:$0xf]
      %v807 = vld [vmem:[%s285 + $0x7e4] sm:$0xf]
      %v808 = vld [vmem:[%s285 + $0x7e8] sm:$0xf]
      %v809 = vld [vmem:[%s285 + $0x7ec] sm:$0xf]
      %v810 = vld [vmem:[%s285 + $0x7f0] sm:$0xf]
      %v811 = vld [vmem:[%s285 + $0x7f4] sm:$0xf]
      %v812 = vld [vmem:[%s285 + $0x7f8] sm:$0xf]
      %v813 = vld [vmem:[%s285 + $0x7fc] sm:$0xf]
      %v814 = vld [vmem:[%s285 + $0x800] sm:$0xf]
      %v815 = vld [vmem:[%s285 + $0x804] sm:$0xf]
      %v816 = vld [vmem:[%s285 + $0x808] sm:$0xf]
      %v817 = vld [vmem:[%s285 + $0x80c] sm:$0xf]
      %v818 = vld [vmem:[%s285 + $0x810] sm:$0xf]
      %v819 = vld [vmem:[%s285 + $0x814] sm:$0xf]
      %v820 = vld [vmem:[%s285 + $0x818] sm:$0xf]
      %v821 = vld [vmem:[%s285 + $0x81c] sm:$0xf]
      %v822 = vld [vmem:[%s285 + $0x820] sm:$0xf]
      %v823 = vld [vmem:[%s285 + $0x824] sm:$0xf]
      %v824 = vld [vmem:[%s285 + $0x828] sm:$0xf]
      %v825 = vld [vmem:[%s285 + $0x82c] sm:$0xf]
      %v826 = vld [vmem:[%s285 + $0x830] sm:$0xf]
      %v827 = vld [vmem:[%s285 + $0x834] sm:$0xf]
      %v828 = vld [vmem:[%s285 + $0x838] sm:$0xf]
      %v829 = vld [vmem:[%s285 + $0x83c] sm:$0xf]
      %v830 = vld [vmem:[%s285 + $0x840] sm:$0xf]
      %v831 = vld [vmem:[%s285 + $0x844] sm:$0xf]
      %v832 = vld [vmem:[%s285 + $0x848] sm:$0xf]
      %v833 = vld [vmem:[%s285 + $0x84c] sm:$0xf]
      %v834 = vld [vmem:[%s285 + $0x850] sm:$0xf]
      %v835 = vld [vmem:[%s285 + $0x854] sm:$0xf]
      %v836 = vld [vmem:[%s285 + $0x858] sm:$0xf]
      %v837 = vld [vmem:[%s285 + $0x85c] sm:$0xf]
      %v838 = vld [vmem:[%s285 + $0x860] sm:$0xf]
      %v839 = vld [vmem:[%s285 + $0x864] sm:$0xf]
      %v840 = vld [vmem:[%s285 + $0x868] sm:$0xf]
      %v841 = vld [vmem:[%s285 + $0x86c] sm:$0xf]
      %v842 = vld [vmem:[%s285 + $0x870] sm:$0xf]
      %v843 = vld [vmem:[%s285 + $0x874] sm:$0xf]
      %v844 = vld [vmem:[%s285 + $0x878] sm:$0xf]
      %v845 = vld [vmem:[%s285 + $0x87c] sm:$0xf]
      %v846 = vld [vmem:[%s285 + $0x880] sm:$0xf]
      %v847 = vld [vmem:[%s285 + $0x884] sm:$0xf]
      %v848 = vld [vmem:[%s285 + $0x888] sm:$0xf]
      %v849 = vld [vmem:[%s285 + $0x88c] sm:$0xf]
      %v850 = vld [vmem:[%s285 + $0x890] sm:$0xf]
      %v851 = vld [vmem:[%s285 + $0x894] sm:$0xf]
      %v852 = vld [vmem:[%s285 + $0x898] sm:$0xf]
      %v853 = vld [vmem:[%s285 + $0x89c] sm:$0xf]
      %v854 = vld [vmem:[%s285 + $0x8a0] sm:$0xf]
      %v855 = vld [vmem:[%s285 + $0x8a4] sm:$0xf]
      %v856 = vld [vmem:[%s285 + $0x8a8] sm:$0xf]
      %v857 = vld [vmem:[%s285 + $0x8ac] sm:$0xf]
      %v858 = vld [vmem:[%s285 + $0x8b0] sm:$0xf]
      %v859 = vld [vmem:[%s285 + $0x8b4] sm:$0xf]
      %v860 = vld [vmem:[%s285 + $0x8b8] sm:$0xf]
      %v861 = vld [vmem:[%s285 + $0x8bc] sm:$0xf]
      %v862 = vld [vmem:[%s285 + $0x8c0] sm:$0xf]
      %v863 = vld [vmem:[%s285 + $0x8c4] sm:$0xf]
      %v864 = vld [vmem:[%s285 + $0x8c8] sm:$0xf]
      %v865 = vld [vmem:[%s285 + $0x8cc] sm:$0xf]
      %v866 = vld [vmem:[%s285 + $0x8d0] sm:$0xf]
      %v867 = vld [vmem:[%s285 + $0x8d4] sm:$0xf]
      %v868 = vld [vmem:[%s285 + $0x8d8] sm:$0xf]
      %v869 = vld [vmem:[%s285 + $0x8dc] sm:$0xf]
      %v870 = vld [vmem:[%s285 + $0x8e0] sm:$0xf]
      %v871 = vld [vmem:[%s285 + $0x8e4] sm:$0xf]
      %v872 = vld [vmem:[%s285 + $0x8e8] sm:$0xf]
      %v873 = vld [vmem:[%s285 + $0x8ec] sm:$0xf]
      %v874 = vld [vmem:[%s285 + $0x8f0] sm:$0xf]
      %v875 = vld [vmem:[%s285 + $0x8f4] sm:$0xf]
      %v876 = vld [vmem:[%s285 + $0x8f8] sm:$0xf]
      %v877 = vld [vmem:[%s285 + $0x8fc] sm:$0xf]
      %v878 = vld [vmem:[%s285 + $0x900] sm:$0xf]
      %v879 = vld [vmem:[%s285 + $0x904] sm:$0xf]
      %v880 = vld [vmem:[%s285 + $0x908] sm:$0xf]
      %v881 = vld [vmem:[%s285 + $0x90c] sm:$0xf]
      %v882 = vld [vmem:[%s285 + $0x910] sm:$0xf]
      %v883 = vld [vmem:[%s285 + $0x914] sm:$0xf]
      %v884 = vld [vmem:[%s285 + $0x918] sm:$0xf]
      %v885 = vld [vmem:[%s285 + $0x91c] sm:$0xf]
      %v886 = vld [vmem:[%s285 + $0x920] sm:$0xf]
      %v887 = vld [vmem:[%s285 + $0x924] sm:$0xf]
      %v888 = vld [vmem:[%s285 + $0x928] sm:$0xf]
      %v889 = vld [vmem:[%s285 + $0x92c] sm:$0xf]
      %v890 = vld [vmem:[%s285 + $0x930] sm:$0xf]
      %v891 = vld [vmem:[%s285 + $0x934] sm:$0xf]
      %v892 = vld [vmem:[%s285 + $0x938] sm:$0xf]
      %v893 = vld [vmem:[%s285 + $0x93c] sm:$0xf]
      %v894 = vld [vmem:[%s285 + $0x940] sm:$0xf]
      %v895 = vld [vmem:[%s285 + $0x944] sm:$0xf]
      %v896 = vld [vmem:[%s285 + $0x948] sm:$0xf]
      %v897 = vld [vmem:[%s285 + $0x94c] sm:$0xf]
      %v898 = vld [vmem:[%s285 + $0x950] sm:$0xf]
      %v899 = vld [vmem:[%s285 + $0x954] sm:$0xf]
      %v900 = vld [vmem:[%s285 + $0x958] sm:$0xf]
      %v901 = vld [vmem:[%s285 + $0x95c] sm:$0xf]
      %v902 = vld [vmem:[%s285 + $0x960] sm:$0xf]
      %v903 = vld [vmem:[%s285 + $0x964] sm:$0xf]
      %v904 = vld [vmem:[%s285 + $0x968] sm:$0xf]
      %v905 = vld [vmem:[%s285 + $0x96c] sm:$0xf]
      %v906 = vld [vmem:[%s285 + $0x970] sm:$0xf]
      %v907 = vld [vmem:[%s285 + $0x974] sm:$0xf]
      %v908 = vld [vmem:[%s285 + $0x978] sm:$0xf]
      %v909 = vld [vmem:[%s285 + $0x97c] sm:$0xf]
      %v910 = vld [vmem:[%s285 + $0x980] sm:$0xf]
      %v911 = vld [vmem:[%s285 + $0x984] sm:$0xf]
      %v912 = vld [vmem:[%s285 + $0x988] sm:$0xf]
      %v913 = vld [vmem:[%s285 + $0x98c] sm:$0xf]
      %v914 = vld [vmem:[%s285 + $0x990] sm:$0xf]
      %v915 = vld [vmem:[%s285 + $0x994] sm:$0xf]
      %v916 = vld [vmem:[%s285 + $0x998] sm:$0xf]
      %v917 = vld [vmem:[%s285 + $0x99c] sm:$0xf]
      %v918 = vld [vmem:[%s285 + $0x9a0] sm:$0xf]
      %v919 = vld [vmem:[%s285 + $0x9a4] sm:$0xf]
      %v920 = vld [vmem:[%s285 + $0x9a8] sm:$0xf]
      %v921 = vld [vmem:[%s285 + $0x9ac] sm:$0xf]
      %v922 = vld [vmem:[%s285 + $0x9b0] sm:$0xf]
      %v923 = vld [vmem:[%s285 + $0x9b4] sm:$0xf]
      %v924 = vld [vmem:[%s285 + $0x9b8] sm:$0xf]
      %v925 = vld [vmem:[%s285 + $0x9bc] sm:$0xf]
      %v926 = vld [vmem:[%s285 + $0x9c0] sm:$0xf]
      %v927 = vld [vmem:[%s285 + $0x9c4] sm:$0xf]
      %v928 = vld [vmem:[%s285 + $0x9c8] sm:$0xf]
      %v929 = vld [vmem:[%s285 + $0x9cc] sm:$0xf]
      %v930 = vld [vmem:[%s285 + $0x9d0] sm:$0xf]
      %v931 = vld [vmem:[%s285 + $0x9d4] sm:$0xf]
      %v932 = vld [vmem:[%s285 + $0x9d8] sm:$0xf]
      %v933 = vld [vmem:[%s285 + $0x9dc] sm:$0xf]
      %v934 = vld [vmem:[%s285 + $0x9e0] sm:$0xf]
      %v935 = vld [vmem:[%s285 + $0x9e4] sm:$0xf]
      %v936 = vld [vmem:[%s285 + $0x9e8] sm:$0xf]
      %v937 = vld [vmem:[%s285 + $0x9ec] sm:$0xf]
      %v938 = vld [vmem:[%s285 + $0x9f0] sm:$0xf]
      %v939 = vld [vmem:[%s285 + $0x9f4] sm:$0xf]
      %v940 = vld [vmem:[%s285 + $0x9f8] sm:$0xf]
      %v941 = vld [vmem:[%s285 + $0x9fc] sm:$0xf]
      %v942 = vld [vmem:[%s285 + $0xa00] sm:$0xf]
      %v943 = vld [vmem:[%s285 + $0xa04] sm:$0xf]
      %v944 = vld [vmem:[%s285 + $0xa08] sm:$0xf]
      %v945 = vld [vmem:[%s285 + $0xa0c] sm:$0xf]
      %v946 = vld [vmem:[%s285 + $0xa10] sm:$0xf]
      %v947 = vld [vmem:[%s285 + $0xa14] sm:$0xf]
      %v948 = vld [vmem:[%s285 + $0xa18] sm:$0xf]
      %v949 = vld [vmem:[%s285 + $0xa1c] sm:$0xf]
      %v950 = vld [vmem:[%s285 + $0xa20] sm:$0xf]
      %v951 = vld [vmem:[%s285 + $0xa24] sm:$0xf]
      %v952 = vld [vmem:[%s285 + $0xa28] sm:$0xf]
      %v953 = vld [vmem:[%s285 + $0xa2c] sm:$0xf]
      %v954 = vld [vmem:[%s285 + $0xa30] sm:$0xf]
      %v955 = vld [vmem:[%s285 + $0xa34] sm:$0xf]
      %v956 = vld [vmem:[%s285 + $0xa38] sm:$0xf]
      %v957 = vld [vmem:[%s285 + $0xa3c] sm:$0xf]
      %v958 = vld [vmem:[%s285 + $0xa40] sm:$0xf]
      %v959 = vld [vmem:[%s285 + $0xa44] sm:$0xf]
      %v960 = vld [vmem:[%s285 + $0xa48] sm:$0xf]
      %v961 = vld [vmem:[%s285 + $0xa4c] sm:$0xf]
      %v962 = vld [vmem:[%s285 + $0xa50] sm:$0xf]
      %v963 = vld [vmem:[%s285 + $0xa54] sm:$0xf]
      %v964 = vld [vmem:[%s285 + $0xa58] sm:$0xf]
      %v965 = vld [vmem:[%s285 + $0xa5c] sm:$0xf]
      %v966 = vld [vmem:[%s285 + $0xa60] sm:$0xf]
      %v967 = vld [vmem:[%s285 + $0xa64] sm:$0xf]
      %v968 = vld [vmem:[%s285 + $0xa68] sm:$0xf]
      %v969 = vld [vmem:[%s285 + $0xa6c] sm:$0xf]
      %v970 = vld [vmem:[%s285 + $0xa70] sm:$0xf]
      %v971 = vld [vmem:[%s285 + $0xa74] sm:$0xf]
      %v972 = vld [vmem:[%s285 + $0xa78] sm:$0xf]
      %v973 = vld [vmem:[%s285 + $0xa7c] sm:$0xf]
      %v974 = vld [vmem:[%s285 + $0xa80] sm:$0xf]
      %v975 = vld [vmem:[%s285 + $0xa84] sm:$0xf]
      %v976 = vld [vmem:[%s285 + $0xa88] sm:$0xf]
      %v977 = vld [vmem:[%s285 + $0xa8c] sm:$0xf]
      %v978 = vld [vmem:[%s285 + $0xa90] sm:$0xf]
      %v979 = vld [vmem:[%s285 + $0xa94] sm:$0xf]
      %v980 = vld [vmem:[%s285 + $0xa98] sm:$0xf]
      %v981 = vld [vmem:[%s285 + $0xa9c] sm:$0xf]
      %v982 = vld [vmem:[%s285 + $0xaa0] sm:$0xf]
      %v983 = vld [vmem:[%s285 + $0xaa4] sm:$0xf]
      %v984 = vld [vmem:[%s285 + $0xaa8] sm:$0xf]
      %v985 = vld [vmem:[%s285 + $0xaac] sm:$0xf]
      %v986 = vld [vmem:[%s285 + $0xab0] sm:$0xf]
      %v987 = vld [vmem:[%s285 + $0xab4] sm:$0xf]
      %v988 = vld [vmem:[%s285 + $0xab8] sm:$0xf]
      %v989 = vld [vmem:[%s285 + $0xabc] sm:$0xf]
      %v990 = vld [vmem:[%s285 + $0xac0] sm:$0xf]
      %v991 = vld [vmem:[%s285 + $0xac4] sm:$0xf]
      %v992 = vld [vmem:[%s285 + $0xac8] sm:$0xf]
      %v993 = vld [vmem:[%s285 + $0xacc] sm:$0xf]
      %v994 = vld [vmem:[%s285 + $0xad0] sm:$0xf]
      %v995 = vld [vmem:[%s285 + $0xad4] sm:$0xf]
      %v996 = vld [vmem:[%s285 + $0xad8] sm:$0xf]
      %v997 = vld [vmem:[%s285 + $0xadc] sm:$0xf]
      %v998 = vld [vmem:[%s285 + $0xae0] sm:$0xf]
      %v999 = vld [vmem:[%s285 + $0xae4] sm:$0xf]
      %v1000 = vld [vmem:[%s285 + $0xae8] sm:$0xf]
      %v1001 = vld [vmem:[%s285 + $0xaec] sm:$0xf]
      %v1002 = vld [vmem:[%s285 + $0xaf0] sm:$0xf]
      %v1003 = vld [vmem:[%s285 + $0xaf4] sm:$0xf]
      %v1004 = vld [vmem:[%s285 + $0xaf8] sm:$0xf]
      %v1005 = vld [vmem:[%s285 + $0xafc] sm:$0xf]
      %v1006 = vld [vmem:[%s285 + $0xb00] sm:$0xf]
      %v1007 = vld [vmem:[%s285 + $0xb04] sm:$0xf]
      %v1008 = vld [vmem:[%s285 + $0xb08] sm:$0xf]
      %v1009 = vld [vmem:[%s285 + $0xb0c] sm:$0xf]
      %v1010 = vld [vmem:[%s285 + $0xb10] sm:$0xf]
      %v1011 = vld [vmem:[%s285 + $0xb14] sm:$0xf]
      %v1012 = vld [vmem:[%s285 + $0xb18] sm:$0xf]
      %v1013 = vld [vmem:[%s285 + $0xb1c] sm:$0xf]
      %v1014 = vld [vmem:[%s285 + $0xb20] sm:$0xf]
      %v1015 = vld [vmem:[%s285 + $0xb24] sm:$0xf]
      %v1016 = vld [vmem:[%s285 + $0xb28] sm:$0xf]
      %v1017 = vld [vmem:[%s285 + $0xb2c] sm:$0xf]
      %v1018 = vld [vmem:[%s285 + $0xb30] sm:$0xf]
      %v1019 = vld [vmem:[%s285 + $0xb34] sm:$0xf]
      %v1020 = vld [vmem:[%s285 + $0xb38] sm:$0xf]
      %v1021 = vld [vmem:[%s285 + $0xb3c] sm:$0xf]
      %v1022 = vld [vmem:[%s285 + $0xb40] sm:$0xf]
      %v1023 = vld [vmem:[%s285 + $0xb44] sm:$0xf]
      %v1024 = vld [vmem:[%s285 + $0xb48] sm:$0xf]
      %v1025 = vld [vmem:[%s285 + $0xb4c] sm:$0xf]
      %v1026 = vld [vmem:[%s285 + $0xb50] sm:$0xf]
      %v1027 = vld [vmem:[%s285 + $0xb54] sm:$0xf]
      %v1028 = vld [vmem:[%s285 + $0xb58] sm:$0xf]
      %v1029 = vld [vmem:[%s285 + $0xb5c] sm:$0xf]
      %v1030 = vld [vmem:[%s285 + $0xb60] sm:$0xf]
      %v1031 = vld [vmem:[%s285 + $0xb64] sm:$0xf]
      %v1032 = vld [vmem:[%s285 + $0xb68] sm:$0xf]
      %v1033 = vld [vmem:[%s285 + $0xb6c] sm:$0xf]
      %v1034 = vld [vmem:[%s285 + $0xb70] sm:$0xf]
      %v1035 = vld [vmem:[%s285 + $0xb74] sm:$0xf]
      %v1036 = vld [vmem:[%s285 + $0xb78] sm:$0xf]
      %v1037 = vld [vmem:[%s285 + $0xb7c] sm:$0xf]
      %v1038 = vld [vmem:[%s285 + $0xb80] sm:$0xf]
      %v1039 = vld [vmem:[%s285 + $0xb84] sm:$0xf]
      %v1040 = vld [vmem:[%s285 + $0xb88] sm:$0xf]
      %v1041 = vld [vmem:[%s285 + $0xb8c] sm:$0xf]
      %v1042 = vld [vmem:[%s285 + $0xb90] sm:$0xf]
      %v1043 = vld [vmem:[%s285 + $0xb94] sm:$0xf]
      %v1044 = vld [vmem:[%s285 + $0xb98] sm:$0xf]
      %v1045 = vld [vmem:[%s285 + $0xb9c] sm:$0xf]
      %v1046 = vld [vmem:[%s285 + $0xba0] sm:$0xf]
      %v1047 = vld [vmem:[%s285 + $0xba4] sm:$0xf]
      %v1048 = vld [vmem:[%s285 + $0xba8] sm:$0xf]
      %v1049 = vld [vmem:[%s285 + $0xbac] sm:$0xf]
      %v1050 = vld [vmem:[%s285 + $0xbb0] sm:$0xf]
      %v1051 = vld [vmem:[%s285 + $0xbb4] sm:$0xf]
      %v1052 = vld [vmem:[%s285 + $0xbb8] sm:$0xf]
      %v1053 = vld [vmem:[%s285 + $0xbbc] sm:$0xf]
      %v1054 = vld [vmem:[%s285 + $0xbc0] sm:$0xf]
      %v1055 = vld [vmem:[%s285 + $0xbc4] sm:$0xf]
      %v1056 = vld [vmem:[%s285 + $0xbc8] sm:$0xf]
      %v1057 = vld [vmem:[%s285 + $0xbcc] sm:$0xf]
      %v1058 = vld [vmem:[%s285 + $0xbd0] sm:$0xf]
      %v1059 = vld [vmem:[%s285 + $0xbd4] sm:$0xf]
      %v1060 = vld [vmem:[%s285 + $0xbd8] sm:$0xf]
      %v1061 = vld [vmem:[%s285 + $0xbdc] sm:$0xf]
      %v1062 = vld [vmem:[%s285 + $0xbe0] sm:$0xf]
      %v1063 = vld [vmem:[%s285 + $0xbe4] sm:$0xf]
      %v1064 = vld [vmem:[%s285 + $0xbe8] sm:$0xf]
      %v1065 = vld [vmem:[%s285 + $0xbec] sm:$0xf]
      %v1066 = vld [vmem:[%s285 + $0xbf0] sm:$0xf]
      %v1067 = vld [vmem:[%s285 + $0xbf4] sm:$0xf]
      %v1068 = vld [vmem:[%s285 + $0xbf8] sm:$0xf]
      %v1069 = vld [vmem:[%s285 + $0xbfc] sm:$0xf]
      %v1070 = vld [vmem:[%s285 + $0xc00] sm:$0xf]
      %v1071 = vld [vmem:[%s285 + $0xc04] sm:$0xf]
      %v1072 = vld [vmem:[%s285 + $0xc08] sm:$0xf]
      %v1073 = vld [vmem:[%s285 + $0xc0c] sm:$0xf]
      %v1074 = vld [vmem:[%s285 + $0xc10] sm:$0xf]
      %v1075 = vld [vmem:[%s285 + $0xc14] sm:$0xf]
      %v1076 = vld [vmem:[%s285 + $0xc18] sm:$0xf]
      %v1077 = vld [vmem:[%s285 + $0xc1c] sm:$0xf]
      %v1078 = vld [vmem:[%s285 + $0xc20] sm:$0xf]
      %v1079 = vld [vmem:[%s285 + $0xc24] sm:$0xf]
      %v1080 = vld [vmem:[%s285 + $0xc28] sm:$0xf]
      %v1081 = vld [vmem:[%s285 + $0xc2c] sm:$0xf]
      %v1082 = vld [vmem:[%s285 + $0xc30] sm:$0xf]
      %v1083 = vld [vmem:[%s285 + $0xc34] sm:$0xf]
      %v1084 = vld [vmem:[%s285 + $0xc38] sm:$0xf]
      %v1085 = vld [vmem:[%s285 + $0xc3c] sm:$0xf]
      %v1093 = vcombine.high %v295, %v295
      %v1095 = vunpack.c.l.s4 1966171168
      %v1096 = vunpack.c.0.s8 %v1095
      %v1097 = vlaneseq
      %v1098 = vshrl.u32 %v1097, 7
      %v1099 = vsub.s32 %v1096, %v1098
      %v1100 = vrot.slane %v295, %v1099
      %v1102 = vunpack.c.l.s4 1966171168
      %v1103 = vunpack.c.0.s8 %v1102
      %v1104 = vlaneseq
      %v1105 = vshrl.u32 %v1104, 7
      %v1106 = vsub.s32 %v1103, %v1105
      %v1107 = vrot.slane %v1093, %v1106
      %v1108 = vcombine.high %v1100, %v1100
      %v1109 = vcombine.high %v1107, %v1107
      %v1111 = vunpack.c.l.s4 1966171168
      %v1112 = vunpack.c.0.s8 %v1111
      %v1113 = vlaneseq
      %v1114 = vshrl.u32 %v1113, 7
      %v1115 = vsub.s32 %v1112, %v1114
      %v1116 = vrot.slane %v1100, %v1115
      %v1118 = vunpack.c.l.s4 1966171168
      %v1119 = vunpack.c.0.s8 %v1118
      %v1120 = vlaneseq
      %v1121 = vshrl.u32 %v1120, 7
      %v1122 = vsub.s32 %v1119, %v1121
      %v1123 = vrot.slane %v1107, %v1122
      %v1125 = vunpack.c.l.s4 1966171168
      %v1126 = vunpack.c.0.s8 %v1125
      %v1127 = vlaneseq
      %v1128 = vshrl.u32 %v1127, 7
      %v1129 = vsub.s32 %v1126, %v1128
      %v1130 = vrot.slane %v1108, %v1129
      %v1132 = vunpack.c.l.s4 1966171168
      %v1133 = vunpack.c.0.s8 %v1132
      %v1134 = vlaneseq
      %v1135 = vshrl.u32 %v1134, 7
      %v1136 = vsub.s32 %v1133, %v1135
      %v1137 = vrot.slane %v1109, %v1136
      %v1138 = vcombine.high %v1116, %v1116
      %v1139 = vcombine.high %v1123, %v1123
      %v1140 = vcombine.high %v1130, %v1130
      %v1141 = vcombine.high %v1137, %v1137
      %v1142 = vcombine.high %v296, %v296
      %v1144 = vunpack.c.l.s4 1966171168
      %v1145 = vunpack.c.0.s8 %v1144
      %v1146 = vlaneseq
      %v1147 = vshrl.u32 %v1146, 7
      %v1148 = vsub.s32 %v1145, %v1147
      %v1149 = vrot.slane %v296, %v1148
      %v1151 = vunpack.c.l.s4 1966171168
      %v1152 = vunpack.c.0.s8 %v1151
      %v1153 = vlaneseq
      %v1154 = vshrl.u32 %v1153, 7
      %v1155 = vsub.s32 %v1152, %v1154
      %v1156 = vrot.slane %v1142, %v1155
      %v1157 = vcombine.high %v1149, %v1149
      %v1158 = vcombine.high %v1156, %v1156
      %v1160 = vunpack.c.l.s4 1966171168
      %v1161 = vunpack.c.0.s8 %v1160
      %v1162 = vlaneseq
      %v1163 = vshrl.u32 %v1162, 7
      %v1164 = vsub.s32 %v1161, %v1163
      %v1165 = vrot.slane %v1149, %v1164
      %v1167 = vunpack.c.l.s4 1966171168
      %v1168 = vunpack.c.0.s8 %v1167
      %v1169 = vlaneseq
      %v1170 = vshrl.u32 %v1169, 7
      %v1171 = vsub.s32 %v1168, %v1170
      %v1172 = vrot.slane %v1156, %v1171
      %v1174 = vunpack.c.l.s4 1966171168
      %v1175 = vunpack.c.0.s8 %v1174
      %v1176 = vlaneseq
      %v1177 = vshrl.u32 %v1176, 7
      %v1178 = vsub.s32 %v1175, %v1177
      %v1179 = vrot.slane %v1157, %v1178
      %v1181 = vunpack.c.l.s4 1966171168
      %v1182 = vunpack.c.0.s8 %v1181
      %v1183 = vlaneseq
      %v1184 = vshrl.u32 %v1183, 7
      %v1185 = vsub.s32 %v1182, %v1184
      %v1186 = vrot.slane %v1158, %v1185
      %v1187 = vcombine.high %v1165, %v1165
      %v1188 = vcombine.high %v1172, %v1172
      %v1189 = vcombine.high %v1179, %v1179
      %v1190 = vcombine.high %v1186, %v1186
      %v1191 = vcombine.high %v297, %v297
      %v1193 = vunpack.c.l.s4 1966171168
      %v1194 = vunpack.c.0.s8 %v1193
      %v1195 = vlaneseq
      %v1196 = vshrl.u32 %v1195, 7
      %v1197 = vsub.s32 %v1194, %v1196
      %v1198 = vrot.slane %v297, %v1197
      %v1200 = vunpack.c.l.s4 1966171168
      %v1201 = vunpack.c.0.s8 %v1200
      %v1202 = vlaneseq
      %v1203 = vshrl.u32 %v1202, 7
      %v1204 = vsub.s32 %v1201, %v1203
      %v1205 = vrot.slane %v1191, %v1204
      %v1206 = vcombine.high %v1198, %v1198
      %v1207 = vcombine.high %v1205, %v1205
      %v1209 = vunpack.c.l.s4 1966171168
      %v1210 = vunpack.c.0.s8 %v1209
      %v1211 = vlaneseq
      %v1212 = vshrl.u32 %v1211, 7
      %v1213 = vsub.s32 %v1210, %v1212
      %v1214 = vrot.slane %v1198, %v1213
      %v1216 = vunpack.c.l.s4 1966171168
      %v1217 = vunpack.c.0.s8 %v1216
      %v1218 = vlaneseq
      %v1219 = vshrl.u32 %v1218, 7
      %v1220 = vsub.s32 %v1217, %v1219
      %v1221 = vrot.slane %v1205, %v1220
      %v1223 = vunpack.c.l.s4 1966171168
      %v1224 = vunpack.c.0.s8 %v1223
      %v1225 = vlaneseq
      %v1226 = vshrl.u32 %v1225, 7
      %v1227 = vsub.s32 %v1224, %v1226
      %v1228 = vrot.slane %v1206, %v1227
      %v1230 = vunpack.c.l.s4 1966171168
      %v1231 = vunpack.c.0.s8 %v1230
      %v1232 = vlaneseq
      %v1233 = vshrl.u32 %v1232, 7
      %v1234 = vsub.s32 %v1231, %v1233
      %v1235 = vrot.slane %v1207, %v1234
      %v1236 = vcombine.high %v1214, %v1214
      %v1237 = vcombine.high %v1221, %v1221
      %v1238 = vcombine.high %v1228, %v1228
      %v1239 = vcombine.high %v1235, %v1235
      %v1240 = vcombine.high %v298, %v298
      %v1242 = vunpack.c.l.s4 1966171168
      %v1243 = vunpack.c.0.s8 %v1242
      %v1244 = vlaneseq
      %v1245 = vshrl.u32 %v1244, 7
      %v1246 = vsub.s32 %v1243, %v1245
      %v1247 = vrot.slane %v298, %v1246
      %v1249 = vunpack.c.l.s4 1966171168
      %v1250 = vunpack.c.0.s8 %v1249
      %v1251 = vlaneseq
      %v1252 = vshrl.u32 %v1251, 7
      %v1253 = vsub.s32 %v1250, %v1252
      %v1254 = vrot.slane %v1240, %v1253
      %v1255 = vcombine.high %v1247, %v1247
      %v1256 = vcombine.high %v1254, %v1254
      %v1258 = vunpack.c.l.s4 1966171168
      %v1259 = vunpack.c.0.s8 %v1258
      %v1260 = vlaneseq
      %v1261 = vshrl.u32 %v1260, 7
      %v1262 = vsub.s32 %v1259, %v1261
      %v1263 = vrot.slane %v1247, %v1262
      %v1265 = vunpack.c.l.s4 1966171168
      %v1266 = vunpack.c.0.s8 %v1265
      %v1267 = vlaneseq
      %v1268 = vshrl.u32 %v1267, 7
      %v1269 = vsub.s32 %v1266, %v1268
      %v1270 = vrot.slane %v1254, %v1269
      %v1272 = vunpack.c.l.s4 1966171168
      %v1273 = vunpack.c.0.s8 %v1272
      %v1274 = vlaneseq
      %v1275 = vshrl.u32 %v1274, 7
      %v1276 = vsub.s32 %v1273, %v1275
      %v1277 = vrot.slane %v1255, %v1276
      %v1279 = vunpack.c.l.s4 1966171168
      %v1280 = vunpack.c.0.s8 %v1279
      %v1281 = vlaneseq
      %v1282 = vshrl.u32 %v1281, 7
      %v1283 = vsub.s32 %v1280, %v1282
      %v1284 = vrot.slane %v1256, %v1283
      %v1285 = vcombine.high %v1263, %v1263
      %v1286 = vcombine.high %v1270, %v1270
      %v1287 = vcombine.high %v1277, %v1277
      %v1288 = vcombine.high %v1284, %v1284
      %v1289 = vcombine.high %v299, %v299
      %v1291 = vunpack.c.l.s4 1966171168
      %v1292 = vunpack.c.0.s8 %v1291
      %v1293 = vlaneseq
      %v1294 = vshrl.u32 %v1293, 7
      %v1295 = vsub.s32 %v1292, %v1294
      %v1296 = vrot.slane %v299, %v1295
      %v1298 = vunpack.c.l.s4 1966171168
      %v1299 = vunpack.c.0.s8 %v1298
      %v1300 = vlaneseq
      %v1301 = vshrl.u32 %v1300, 7
      %v1302 = vsub.s32 %v1299, %v1301
      %v1303 = vrot.slane %v1289, %v1302
      %v1304 = vcombine.high %v1296, %v1296
      %v1305 = vcombine.high %v1303, %v1303
      %v1307 = vunpack.c.l.s4 1966171168
      %v1308 = vunpack.c.0.s8 %v1307
      %v1309 = vlaneseq
      %v1310 = vshrl.u32 %v1309, 7
      %v1311 = vsub.s32 %v1308, %v1310
      %v1312 = vrot.slane %v1296, %v1311
      %v1314 = vunpack.c.l.s4 1966171168
      %v1315 = vunpack.c.0.s8 %v1314
      %v1316 = vlaneseq
      %v1317 = vshrl.u32 %v1316, 7
      %v1318 = vsub.s32 %v1315, %v1317
      %v1319 = vrot.slane %v1303, %v1318
      %v1321 = vunpack.c.l.s4 1966171168
      %v1322 = vunpack.c.0.s8 %v1321
      %v1323 = vlaneseq
      %v1324 = vshrl.u32 %v1323, 7
      %v1325 = vsub.s32 %v1322, %v1324
      %v1326 = vrot.slane %v1304, %v1325
      %v1328 = vunpack.c.l.s4 1966171168
      %v1329 = vunpack.c.0.s8 %v1328
      %v1330 = vlaneseq
      %v1331 = vshrl.u32 %v1330, 7
      %v1332 = vsub.s32 %v1329, %v1331
      %v1333 = vrot.slane %v1305, %v1332
      %v1334 = vcombine.high %v1312, %v1312
      %v1335 = vcombine.high %v1319, %v1319
      %v1336 = vcombine.high %v1326, %v1326
      %v1337 = vcombine.high %v1333, %v1333
      %v1338 = vcombine.high %v300, %v300
      %v1340 = vunpack.c.l.s4 1966171168
      %v1341 = vunpack.c.0.s8 %v1340
      %v1342 = vlaneseq
      %v1343 = vshrl.u32 %v1342, 7
      %v1344 = vsub.s32 %v1341, %v1343
      %v1345 = vrot.slane %v300, %v1344
      %v1347 = vunpack.c.l.s4 1966171168
      %v1348 = vunpack.c.0.s8 %v1347
      %v1349 = vlaneseq
      %v1350 = vshrl.u32 %v1349, 7
      %v1351 = vsub.s32 %v1348, %v1350
      %v1352 = vrot.slane %v1338, %v1351
      %v1353 = vcombine.high %v1345, %v1345
      %v1354 = vcombine.high %v1352, %v1352
      %v1356 = vunpack.c.l.s4 1966171168
      %v1357 = vunpack.c.0.s8 %v1356
      %v1358 = vlaneseq
      %v1359 = vshrl.u32 %v1358, 7
      %v1360 = vsub.s32 %v1357, %v1359
      %v1361 = vrot.slane %v1345, %v1360
      %v1363 = vunpack.c.l.s4 1966171168
      %v1364 = vunpack.c.0.s8 %v1363
      %v1365 = vlaneseq
      %v1366 = vshrl.u32 %v1365, 7
      %v1367 = vsub.s32 %v1364, %v1366
      %v1368 = vrot.slane %v1352, %v1367
      %v1370 = vunpack.c.l.s4 1966171168
      %v1371 = vunpack.c.0.s8 %v1370
      %v1372 = vlaneseq
      %v1373 = vshrl.u32 %v1372, 7
      %v1374 = vsub.s32 %v1371, %v1373
      %v1375 = vrot.slane %v1353, %v1374
      %v1377 = vunpack.c.l.s4 1966171168
      %v1378 = vunpack.c.0.s8 %v1377
      %v1379 = vlaneseq
      %v1380 = vshrl.u32 %v1379, 7
      %v1381 = vsub.s32 %v1378, %v1380
      %v1382 = vrot.slane %v1354, %v1381
      %v1383 = vcombine.high %v1361, %v1361
      %v1384 = vcombine.high %v1368, %v1368
      %v1385 = vcombine.high %v1375, %v1375
      %v1386 = vcombine.high %v1382, %v1382
      %v1388 = vunpack.c.l.s4 1966171168
      %v1389 = vunpack.c.0.s8 %v1388
      %v1390 = vlaneseq
      %v1391 = vshrl.u32 %v1390, 7
      %v1392 = vsub.s32 %v1389, %v1391
      %v1393 = vrot.slane %v301, %v1392
      %v1395 = vunpack.c.l.s4 1966171168
      %v1396 = vunpack.c.0.s8 %v1395
      %v1397 = vlaneseq
      %v1398 = vshrl.u32 %v1397, 7
      %v1399 = vsub.s32 %v1396, %v1398
      %v1400 = vrot.slane %v1393, %v1399
      %v2234 = vunpack.c.l.b16 %v302
      %v2235 = vunpack.c.l.b16 %v303
      %v2236 = vunpack.c.l.b16 %v304
      %v2237 = vunpack.c.l.b16 %v305
      %v2238 = vunpack.c.l.b16 %v306
      %v2239 = vunpack.c.l.b16 %v307
      %v2240 = vunpack.c.l.b16 %v308
      %v2241 = vunpack.c.l.b16 %v309
      %v2242 = vunpack.c.l.b16 %v310
      %v2243 = vunpack.c.l.b16 %v311
      %v2244 = vunpack.c.l.b16 %v312
      %v2245 = vunpack.c.l.b16 %v313
      %v2246 = vunpack.c.l.b16 %v314
      %v2247 = vunpack.c.l.b16 %v315
      %v2248 = vunpack.c.l.b16 %v316
      %v2249 = vunpack.c.l.b16 %v317
      %v2250 = vunpack.c.l.b16 %v318
      %v2251 = vunpack.c.l.b16 %v319
      %v2252 = vunpack.c.l.b16 %v320
      %v2253 = vunpack.c.l.b16 %v321
      %v2254 = vunpack.c.l.b16 %v322
      %v2255 = vunpack.c.l.b16 %v323
      %v2256 = vunpack.c.l.b16 %v324
      %v2257 = vunpack.c.l.b16 %v325
      %v2258 = vunpack.c.l.b16 %v326
      %v2259 = vunpack.c.l.b16 %v327
      %v2260 = vunpack.c.l.b16 %v328
      %v2261 = vunpack.c.l.b16 %v329
      %v2262 = vunpack.c.l.b16 %v330
      %v2263 = vunpack.c.l.b16 %v331
      %v2264 = vunpack.c.l.b16 %v332
      %v2265 = vunpack.c.l.b16 %v333
      %v2266 = vunpack.c.l.b16 %v334
      %v2267 = vunpack.c.l.b16 %v335
      %v2268 = vunpack.c.l.b16 %v336
      %v2269 = vunpack.c.l.b16 %v337
      %v2270 = vunpack.c.l.b16 %v338
      %v2271 = vunpack.c.l.b16 %v339
      %v2272 = vunpack.c.l.b16 %v340
      %v2273 = vunpack.c.l.b16 %v341
      %v2274 = vunpack.c.l.b16 %v342
      %v2275 = vunpack.c.l.b16 %v343
      %v2276 = vunpack.c.l.b16 %v344
      %v2277 = vunpack.c.l.b16 %v345
      %v2278 = vunpack.c.l.b16 %v346
      %v2279 = vunpack.c.l.b16 %v347
      %v2280 = vunpack.c.l.b16 %v348
      %v2281 = vunpack.c.l.b16 %v349
      %v2282 = vunpack.c.l.b16 %v350
      %v2283 = vunpack.c.l.b16 %v351
      %v2284 = vunpack.c.l.b16 %v352
      %v2285 = vunpack.c.l.b16 %v353
      %v2286 = vunpack.c.l.b16 %v354
      %v2287 = vunpack.c.l.b16 %v355
      %v2288 = vunpack.c.l.b16 %v356
      %v2289 = vunpack.c.l.b16 %v357
      %v2290 = vunpack.c.l.b16 %v358
      %v2291 = vunpack.c.l.b16 %v359
      %v2292 = vunpack.c.l.b16 %v360
      %v2293 = vunpack.c.l.b16 %v361
      %v2294 = vunpack.c.l.b16 %v362
      %v2295 = vunpack.c.l.b16 %v363
      %v2296 = vunpack.c.l.b16 %v364
      %v2297 = vunpack.c.l.b16 %v365
      %v2298 = vunpack.c.l.b16 %v366
      %v2299 = vunpack.c.l.b16 %v367
      %v2300 = vunpack.c.l.b16 %v368
      %v2301 = vunpack.c.l.b16 %v369
      %v2302 = vunpack.c.l.b16 %v370
      %v2303 = vunpack.c.l.b16 %v371
      %v2304 = vunpack.c.l.b16 %v372
      %v2305 = vunpack.c.l.b16 %v373
      %v2306 = vunpack.c.l.b16 %v374
      %v2307 = vunpack.c.l.b16 %v375
      %v2308 = vunpack.c.l.b16 %v376
      %v2309 = vunpack.c.l.b16 %v377
      %v2310 = vunpack.c.l.b16 %v378
      %v2311 = vunpack.c.l.b16 %v379
      %v2312 = vunpack.c.l.b16 %v380
      %v2313 = vunpack.c.l.b16 %v381
      %v2314 = vunpack.c.l.b16 %v382
      %v2315 = vunpack.c.l.b16 %v383
      %v2316 = vunpack.c.l.b16 %v384
      %v2317 = vunpack.c.l.b16 %v385
      %v2318 = vunpack.c.l.b16 %v386
      %v2319 = vunpack.c.l.b16 %v387
      %v2320 = vunpack.c.l.b16 %v388
      %v2321 = vunpack.c.l.b16 %v389
      %v2322 = vunpack.c.l.b16 %v390
      %v2323 = vunpack.c.l.b16 %v391
      %v2324 = vunpack.c.l.b16 %v392
      %v2325 = vunpack.c.l.b16 %v393
      %v2326 = vunpack.c.l.b16 %v394
      %v2327 = vunpack.c.l.b16 %v395
      %v2328 = vunpack.c.l.b16 %v396
      %v2329 = vunpack.c.l.b16 %v397
      %v2330 = vunpack.c.l.b16 %v398
      %v2331 = vunpack.c.l.b16 %v399
      %v2332 = vunpack.c.l.b16 %v400
      %v2333 = vunpack.c.l.b16 %v401
      %v2334 = vunpack.c.l.b16 %v402
      %v2335 = vunpack.c.l.b16 %v403
      %v2336 = vunpack.c.l.b16 %v404
      %v2337 = vunpack.c.l.b16 %v405
      %v2338 = vunpack.c.l.b16 %v406
      %v2339 = vunpack.c.l.b16 %v407
      %v2340 = vunpack.c.l.b16 %v408
      %v2341 = vunpack.c.l.b16 %v409
      %v2342 = vunpack.c.l.b16 %v410
      %v2343 = vunpack.c.l.b16 %v411
      %v2344 = vunpack.c.l.b16 %v412
      %v2345 = vunpack.c.l.b16 %v413
      %v2346 = vunpack.c.l.b16 %v414
      %v2347 = vunpack.c.l.b16 %v415
      %v2348 = vunpack.c.l.b16 %v416
      %v2349 = vunpack.c.l.b16 %v417
      %v2350 = vunpack.c.l.b16 %v418
      %v2351 = vunpack.c.l.b16 %v419
      %v2352 = vunpack.c.l.b16 %v420
      %v2353 = vunpack.c.l.b16 %v421
      %v2354 = vunpack.c.l.b16 %v422
      %v2355 = vunpack.c.l.b16 %v423
      %v2356 = vunpack.c.l.b16 %v424
      %v2357 = vunpack.c.l.b16 %v425
      %v2358 = vunpack.c.l.b16 %v426
      %v2359 = vunpack.c.l.b16 %v427
      %v2360 = vunpack.c.l.b16 %v428
      %v2361 = vunpack.c.l.b16 %v429
      %v2362 = vunpack.c.l.b16 %v430
      %v2363 = vunpack.c.l.b16 %v431
      %v2364 = vunpack.c.l.b16 %v432
      %v2365 = vunpack.c.l.b16 %v433
      %v2366 = vunpack.c.l.b16 %v434
      %v2367 = vunpack.c.l.b16 %v435
      %v2368 = vunpack.c.l.b16 %v436
      %v2369 = vunpack.c.l.b16 %v437
      %v2370 = vunpack.c.l.b16 %v438
      %v2371 = vunpack.c.l.b16 %v439
      %v2372 = vunpack.c.l.b16 %v440
      %v2373 = vunpack.c.l.b16 %v441
      %v2374 = vunpack.c.l.b16 %v442
      %v2375 = vunpack.c.l.b16 %v443
      %v2376 = vunpack.c.l.b16 %v444
      %v2377 = vunpack.c.l.b16 %v445
      %v2378 = vunpack.c.l.b16 %v446
      %v2379 = vunpack.c.l.b16 %v447
      %v2380 = vunpack.c.l.b16 %v448
      %v2381 = vunpack.c.l.b16 %v449
      %v2382 = vunpack.c.l.b16 %v450
      %v2383 = vunpack.c.l.b16 %v451
      %v2384 = vunpack.c.l.b16 %v452
      %v2385 = vunpack.c.l.b16 %v453
      %v2386 = vunpack.c.l.b16 %v454
      %v2387 = vunpack.c.l.b16 %v455
      %v2388 = vunpack.c.l.b16 %v456
      %v2389 = vunpack.c.l.b16 %v457
      %v2390 = vunpack.c.l.b16 %v458
      %v2391 = vunpack.c.l.b16 %v459
      %v2392 = vunpack.c.l.b16 %v460
      %v2393 = vunpack.c.l.b16 %v461
      %v2394 = vunpack.c.l.b16 %v462
      %v2395 = vunpack.c.l.b16 %v463
      %v2396 = vunpack.c.l.b16 %v464
      %v2397 = vunpack.c.l.b16 %v465
      %v2398 = vunpack.c.l.b16 %v466
      %v2399 = vunpack.c.l.b16 %v467
      %v2400 = vunpack.c.l.b16 %v468
      %v2401 = vunpack.c.l.b16 %v469
      %v2402 = vunpack.c.l.b16 %v470
      %v2403 = vunpack.c.l.b16 %v471
      %v2404 = vunpack.c.l.b16 %v472
      %v2405 = vunpack.c.l.b16 %v473
      %v2406 = vunpack.c.l.b16 %v474
      %v2407 = vunpack.c.l.b16 %v475
      %v2408 = vunpack.c.l.b16 %v476
      %v2409 = vunpack.c.l.b16 %v477
      %v2410 = vunpack.c.l.b16 %v478
      %v2411 = vunpack.c.l.b16 %v479
      %v2412 = vunpack.c.l.b16 %v480
      %v2413 = vunpack.c.l.b16 %v481
      %v2414 = vunpack.c.l.b16 %v482
      %v2415 = vunpack.c.l.b16 %v483
      %v2416 = vunpack.c.l.b16 %v484
      %v2417 = vunpack.c.l.b16 %v485
      %v2418 = vunpack.c.l.b16 %v486
      %v2419 = vunpack.c.l.b16 %v487
      %v2420 = vunpack.c.l.b16 %v488
      %v2421 = vunpack.c.l.b16 %v489
      %v2422 = vunpack.c.l.b16 %v490
      %v2423 = vunpack.c.l.b16 %v491
      %v2424 = vunpack.c.l.b16 %v492
      %v2425 = vunpack.c.l.b16 %v493
      %v2426 = vunpack.c.l.b16 %v494
      %v2427 = vunpack.c.l.b16 %v495
      %v2428 = vunpack.c.l.b16 %v496
      %v2429 = vunpack.c.l.b16 %v497
      %v2430 = vunpack.c.l.b16 %v498
      %v2431 = vunpack.c.l.b16 %v499
      %v2432 = vunpack.c.l.b16 %v500
      %v2433 = vunpack.c.l.b16 %v501
      %v2434 = vunpack.c.l.b16 %v502
      %v2435 = vunpack.c.l.b16 %v503
      %v2436 = vunpack.c.l.b16 %v504
      %v2437 = vunpack.c.l.b16 %v505
      %v2438 = vunpack.c.l.b16 %v506
      %v2439 = vunpack.c.l.b16 %v507
      %v2440 = vunpack.c.l.b16 %v508
      %v2441 = vunpack.c.l.b16 %v509
      %v2442 = vunpack.c.l.b16 %v510
      %v2443 = vunpack.c.l.b16 %v511
      %v2444 = vunpack.c.l.b16 %v512
      %v2445 = vunpack.c.l.b16 %v513
      %v2446 = vunpack.c.l.b16 %v514
      %v2447 = vunpack.c.l.b16 %v515
      %v2448 = vunpack.c.l.b16 %v516
      %v2449 = vunpack.c.l.b16 %v517
      %v2450 = vunpack.c.l.b16 %v518
      %v2451 = vunpack.c.l.b16 %v519
      %v2452 = vunpack.c.l.b16 %v520
      %v2453 = vunpack.c.l.b16 %v521
      %v2454 = vunpack.c.l.b16 %v522
      %v2455 = vunpack.c.l.b16 %v523
      %v2456 = vunpack.c.l.b16 %v524
      %v2457 = vunpack.c.l.b16 %v525
      %v2458 = vunpack.c.l.b16 %v526
      %v2459 = vunpack.c.l.b16 %v527
      %v2460 = vunpack.c.l.b16 %v528
      %v2461 = vunpack.c.l.b16 %v529
      %v2462 = vunpack.c.l.b16 %v530
      %v2463 = vunpack.c.l.b16 %v531
      %v2464 = vunpack.c.l.b16 %v532
      %v2465 = vunpack.c.l.b16 %v533
      %v2466 = vunpack.c.l.b16 %v534
      %v2467 = vunpack.c.l.b16 %v535
      %v2468 = vunpack.c.l.b16 %v536
      %v2469 = vunpack.c.l.b16 %v537
      %v2470 = vunpack.c.l.b16 %v538
      %v2471 = vunpack.c.l.b16 %v539
      %v2472 = vunpack.c.l.b16 %v540
      %v2473 = vunpack.c.l.b16 %v541
      %v2474 = vunpack.c.l.b16 %v542
      %v2475 = vunpack.c.l.b16 %v543
      %v2476 = vunpack.c.l.b16 %v544
      %v2477 = vunpack.c.l.b16 %v545
      %v2478 = vunpack.c.l.b16 %v546
      %v2479 = vunpack.c.l.b16 %v547
      %v2480 = vunpack.c.l.b16 %v548
      %v2481 = vunpack.c.l.b16 %v549
      %v2482 = vunpack.c.l.b16 %v550
      %v2483 = vunpack.c.l.b16 %v551
      %v2484 = vunpack.c.l.b16 %v552
      %v2485 = vunpack.c.l.b16 %v553
      %v2486 = vunpack.c.l.b16 %v554
      %v2487 = vunpack.c.l.b16 %v555
      %v2488 = vunpack.c.l.b16 %v556
      %v2489 = vunpack.c.l.b16 %v557
      %v2490 = vunpack.c.l.b16 %v558
      %v2491 = vunpack.c.l.b16 %v559
      %v2492 = vunpack.c.l.b16 %v560
      %v2493 = vunpack.c.l.b16 %v561
      %v2494 = vunpack.c.l.b16 %v562
      %v2495 = vunpack.c.l.b16 %v563
      %v2496 = vunpack.c.l.b16 %v564
      %v2497 = vunpack.c.l.b16 %v565
      %v2498 = vunpack.c.l.b16 %v566
      %v2499 = vunpack.c.l.b16 %v567
      %v2500 = vunpack.c.l.b16 %v568
      %v2501 = vunpack.c.l.b16 %v569
      %v2502 = vunpack.c.l.b16 %v570
      %v2503 = vunpack.c.l.b16 %v571
      %v2504 = vunpack.c.l.b16 %v572
      %v2505 = vunpack.c.l.b16 %v573
      %v2506 = vunpack.c.l.b16 %v574
      %v2507 = vunpack.c.l.b16 %v575
      %v2508 = vunpack.c.l.b16 %v576
      %v2509 = vunpack.c.l.b16 %v577
      %v2510 = vunpack.c.l.b16 %v578
      %v2511 = vunpack.c.l.b16 %v579
      %v2512 = vunpack.c.l.b16 %v580
      %v2513 = vunpack.c.l.b16 %v581
      %v2514 = vunpack.c.l.b16 %v582
      %v2515 = vunpack.c.l.b16 %v583
      %v2516 = vunpack.c.l.b16 %v584
      %v2517 = vunpack.c.l.b16 %v585
      %v2518 = vunpack.c.l.b16 %v586
      %v2519 = vunpack.c.l.b16 %v587
      %v2520 = vunpack.c.l.b16 %v588
      %v2521 = vunpack.c.l.b16 %v589
      %v2522 = vunpack.c.l.b16 %v590
      %v2523 = vunpack.c.l.b16 %v591
      %v2524 = vunpack.c.l.b16 %v592
      %v2525 = vunpack.c.l.b16 %v593
      %v2526 = vunpack.c.l.b16 %v594
      %v2527 = vunpack.c.l.b16 %v595
      %v2528 = vunpack.c.l.b16 %v596
      %v2529 = vunpack.c.l.b16 %v597
      %v2530 = vunpack.c.l.b16 %v598
      %v2531 = vunpack.c.l.b16 %v599
      %v2532 = vunpack.c.l.b16 %v600
      %v2533 = vunpack.c.l.b16 %v601
      %v2534 = vunpack.c.l.b16 %v602
      %v2535 = vunpack.c.l.b16 %v603
      %v2536 = vunpack.c.l.b16 %v604
      %v2537 = vunpack.c.l.b16 %v605
      %v2538 = vunpack.c.l.b16 %v606
      %v2539 = vunpack.c.l.b16 %v607
      %v2540 = vunpack.c.l.b16 %v608
      %v2541 = vunpack.c.l.b16 %v609
      %v2542 = vunpack.c.l.b16 %v610
      %v2543 = vunpack.c.l.b16 %v611
      %v2544 = vunpack.c.l.b16 %v612
      %v2545 = vunpack.c.l.b16 %v613
      %v2546 = vunpack.c.l.b16 %v614
      %v2547 = vunpack.c.l.b16 %v615
      %v2548 = vunpack.c.l.b16 %v616
      %v2549 = vunpack.c.l.b16 %v617
      %v2550 = vunpack.c.l.b16 %v618
      %v2551 = vunpack.c.l.b16 %v619
      %v2552 = vunpack.c.l.b16 %v620
      %v2553 = vunpack.c.l.b16 %v621
      %v2554 = vunpack.c.l.b16 %v622
      %v2555 = vunpack.c.l.b16 %v623
      %v2556 = vunpack.c.l.b16 %v624
      %v2557 = vunpack.c.l.b16 %v625
      %v2558 = vunpack.c.l.b16 %v626
      %v2559 = vunpack.c.l.b16 %v627
      %v2560 = vunpack.c.l.b16 %v628
      %v2561 = vunpack.c.l.b16 %v629
      %v2562 = vunpack.c.l.b16 %v630
      %v2563 = vunpack.c.l.b16 %v631
      %v2564 = vunpack.c.l.b16 %v632
      %v2565 = vunpack.c.l.b16 %v633
      %v2566 = vunpack.c.l.b16 %v634
      %v2567 = vunpack.c.l.b16 %v635
      %v2568 = vunpack.c.l.b16 %v636
      %v2569 = vunpack.c.l.b16 %v637
      %v2570 = vunpack.c.l.b16 %v638
      %v2571 = vunpack.c.l.b16 %v639
      %v2572 = vunpack.c.l.b16 %v640
      %v2573 = vunpack.c.l.b16 %v641
      %v2574 = vunpack.c.l.b16 %v642
      %v2575 = vunpack.c.l.b16 %v643
      %v2576 = vunpack.c.l.b16 %v644
      %v2577 = vunpack.c.l.b16 %v645
      %v2578 = vunpack.c.l.b16 %v646
      %v2579 = vunpack.c.l.b16 %v647
      %v2580 = vunpack.c.l.b16 %v648
      %v2581 = vunpack.c.l.b16 %v649
      %v2582 = vunpack.c.l.b16 %v650
      %v2583 = vunpack.c.l.b16 %v651
      %v2584 = vunpack.c.l.b16 %v652
      %v2585 = vunpack.c.l.b16 %v653
      %v2586 = vunpack.c.l.b16 %v654
      %v2587 = vunpack.c.l.b16 %v655
      %v2588 = vunpack.c.l.b16 %v656
      %v2589 = vunpack.c.l.b16 %v657
      %v2590 = vunpack.c.l.b16 %v658
      %v2591 = vunpack.c.l.b16 %v659
      %v2592 = vunpack.c.l.b16 %v660
      %v2593 = vunpack.c.l.b16 %v661
      %v2594 = vunpack.c.l.b16 %v662
      %v2595 = vunpack.c.l.b16 %v663
      %v2596 = vunpack.c.l.b16 %v664
      %v2597 = vunpack.c.l.b16 %v665
      %v2598 = vunpack.c.l.b16 %v666
      %v2599 = vunpack.c.l.b16 %v667
      %v2600 = vunpack.c.l.b16 %v668
      %v2601 = vunpack.c.l.b16 %v669
      %v2602 = vunpack.c.l.b16 %v670
      %v2603 = vunpack.c.l.b16 %v671
      %v2604 = vunpack.c.l.b16 %v672
      %v2605 = vunpack.c.l.b16 %v673
      %v2606 = vunpack.c.l.b16 %v674
      %v2607 = vunpack.c.l.b16 %v675
      %v2608 = vunpack.c.l.b16 %v676
      %v2609 = vunpack.c.l.b16 %v677
      %v2610 = vunpack.c.l.b16 %v678
      %v2611 = vunpack.c.l.b16 %v679
      %v2612 = vunpack.c.l.b16 %v680
      %v2613 = vunpack.c.l.b16 %v681
      %v2614 = vunpack.c.l.b16 %v682
      %v2615 = vunpack.c.l.b16 %v683
      %v2616 = vunpack.c.l.b16 %v684
      %v2617 = vunpack.c.l.b16 %v685
      %v2618 = vunpack.c.l.b16 %v686
      %v2619 = vunpack.c.l.b16 %v687
      %v2620 = vunpack.c.l.b16 %v688
      %v2621 = vunpack.c.l.b16 %v689
      %v2622 = vunpack.c.l.b16 %v690
      %v2623 = vunpack.c.l.b16 %v691
      %v2624 = vunpack.c.l.b16 %v692
      %v2625 = vunpack.c.l.b16 %v693
      %v2626 = vunpack.c.l.b16 %v694
      %v2627 = vunpack.c.l.b16 %v695
      %v2628 = vunpack.c.l.b16 %v696
      %v2629 = vunpack.c.l.b16 %v697
      %v2630 = vunpack.c.l.b16 %v698
      %v2631 = vunpack.c.l.b16 %v699
      %v2632 = vunpack.c.l.b16 %v700
      %v2633 = vunpack.c.l.b16 %v701
      %v2634 = vunpack.c.l.b16 %v702
      %v2635 = vunpack.c.l.b16 %v703
      %v2636 = vunpack.c.l.b16 %v704
      %v2637 = vunpack.c.l.b16 %v705
      %v2638 = vunpack.c.l.b16 %v706
      %v2639 = vunpack.c.l.b16 %v707
      %v2640 = vunpack.c.l.b16 %v708
      %v2641 = vunpack.c.l.b16 %v709
      %v2642 = vunpack.c.l.b16 %v710
      %v2643 = vunpack.c.l.b16 %v711
      %v2644 = vunpack.c.l.b16 %v712
      %v2645 = vunpack.c.l.b16 %v713
      %v2646 = vunpack.c.l.b16 %v714
      %v2647 = vunpack.c.l.b16 %v715
      %v2648 = vunpack.c.l.b16 %v716
      %v2649 = vunpack.c.l.b16 %v717
      %v2650 = vunpack.c.l.b16 %v718
      %v2651 = vunpack.c.l.b16 %v719
      %v2652 = vunpack.c.l.b16 %v720
      %v2653 = vunpack.c.l.b16 %v721
      %v2654 = vunpack.c.l.b16 %v722
      %v2655 = vunpack.c.l.b16 %v723
      %v2656 = vunpack.c.l.b16 %v724
      %v2657 = vunpack.c.l.b16 %v725
      %v2658 = vunpack.c.l.b16 %v726
      %v2659 = vunpack.c.l.b16 %v727
      %v2660 = vunpack.c.l.b16 %v728
      %v2661 = vunpack.c.l.b16 %v729
      %v2662 = vunpack.c.l.b16 %v730
      %v2663 = vunpack.c.l.b16 %v731
      %v2664 = vunpack.c.l.b16 %v732
      %v2665 = vunpack.c.l.b16 %v733
      %v2666 = vunpack.c.l.b16 %v734
      %v2667 = vunpack.c.l.b16 %v735
      %v2668 = vunpack.c.l.b16 %v736
      %v2669 = vunpack.c.l.b16 %v737
      %v2670 = vunpack.c.l.b16 %v738
      %v2671 = vunpack.c.l.b16 %v739
      %v2672 = vunpack.c.l.b16 %v740
      %v2673 = vunpack.c.l.b16 %v741
      %v2674 = vunpack.c.l.b16 %v742
      %v2675 = vunpack.c.l.b16 %v743
      %v2676 = vunpack.c.l.b16 %v744
      %v2677 = vunpack.c.l.b16 %v745
      %v2678 = vunpack.c.l.b16 %v746
      %v2679 = vunpack.c.l.b16 %v747
      %v2680 = vunpack.c.l.b16 %v748
      %v2681 = vunpack.c.l.b16 %v749
      %v2682 = vunpack.c.l.b16 %v750
      %v2683 = vunpack.c.l.b16 %v751
      %v2684 = vunpack.c.l.b16 %v752
      %v2685 = vunpack.c.l.b16 %v753
      %v2686 = vunpack.c.l.b16 %v754
      %v2687 = vunpack.c.l.b16 %v755
      %v2688 = vunpack.c.l.b16 %v756
      %v2689 = vunpack.c.l.b16 %v757
      %v2690 = vunpack.c.l.b16 %v758
      %v2691 = vunpack.c.l.b16 %v759
      %v2692 = vunpack.c.l.b16 %v760
      %v2693 = vunpack.c.l.b16 %v761
      %v2694 = vunpack.c.l.b16 %v762
      %v2695 = vunpack.c.l.b16 %v763
      %v2696 = vunpack.c.l.b16 %v764
      %v2697 = vunpack.c.l.b16 %v765
      %v2698 = vunpack.c.l.b16 %v766
      %v2699 = vunpack.c.l.b16 %v767
      %v2700 = vunpack.c.l.b16 %v768
      %v2701 = vunpack.c.l.b16 %v769
      %v2702 = vunpack.c.l.b16 %v770
      %v2703 = vunpack.c.l.b16 %v771
      %v2704 = vunpack.c.l.b16 %v772
      %v2705 = vunpack.c.l.b16 %v773
      %v2706 = vunpack.c.l.b16 %v774
      %v2707 = vunpack.c.l.b16 %v775
      %v2708 = vunpack.c.l.b16 %v776
      %v2709 = vunpack.c.l.b16 %v777
      %v2710 = vunpack.c.l.b16 %v778
      %v2711 = vunpack.c.l.b16 %v779
      %v2712 = vunpack.c.l.b16 %v780
      %v2713 = vunpack.c.l.b16 %v781
      %v2714 = vunpack.c.l.b16 %v782
      %v2715 = vunpack.c.l.b16 %v783
      %v2716 = vunpack.c.l.b16 %v784
      %v2717 = vunpack.c.l.b16 %v785
      %v2718 = vunpack.c.l.b16 %v786
      %v2719 = vunpack.c.l.b16 %v787
      %v2720 = vunpack.c.l.b16 %v788
      %v2721 = vunpack.c.l.b16 %v789
      %v2722 = vunpack.c.l.b16 %v790
      %v2723 = vunpack.c.l.b16 %v791
      %v2724 = vunpack.c.l.b16 %v792
      %v2725 = vunpack.c.l.b16 %v793
      %v2726 = vunpack.c.l.b16 %v794
      %v2727 = vunpack.c.l.b16 %v795
      %v2728 = vunpack.c.l.b16 %v796
      %v2729 = vunpack.c.l.b16 %v797
      %v2730 = vunpack.c.l.b16 %v798
      %v2731 = vunpack.c.l.b16 %v799
      %v2732 = vunpack.c.l.b16 %v800
      %v2733 = vunpack.c.l.b16 %v801
      %v2734 = vunpack.c.l.b16 %v802
      %v2735 = vunpack.c.l.b16 %v803
      %v2736 = vunpack.c.l.b16 %v804
      %v2737 = vunpack.c.l.b16 %v805
      %v2738 = vunpack.c.l.b16 %v806
      %v2739 = vunpack.c.l.b16 %v807
      %v2740 = vunpack.c.l.b16 %v808
      %v2741 = vunpack.c.l.b16 %v809
      %v2742 = vunpack.c.l.b16 %v810
      %v2743 = vunpack.c.l.b16 %v811
      %v2744 = vunpack.c.l.b16 %v812
      %v2745 = vunpack.c.l.b16 %v813
      %v2746 = vunpack.c.l.b16 %v814
      %v2747 = vunpack.c.l.b16 %v815
      %v2748 = vunpack.c.l.b16 %v816
      %v2749 = vunpack.c.l.b16 %v817
      %v2750 = vunpack.c.l.b16 %v818
      %v2751 = vunpack.c.l.b16 %v819
      %v2752 = vunpack.c.l.b16 %v820
      %v2753 = vunpack.c.l.b16 %v821
      %v2754 = vunpack.c.l.b16 %v822
      %v2755 = vunpack.c.l.b16 %v823
      %v2756 = vunpack.c.l.b16 %v824
      %v2757 = vunpack.c.l.b16 %v825
      %v2758 = vunpack.c.l.b16 %v826
      %v2759 = vunpack.c.l.b16 %v827
      %v2760 = vunpack.c.l.b16 %v828
      %v2761 = vunpack.c.l.b16 %v829
      %v2762 = vunpack.c.l.b16 %v830
      %v2763 = vunpack.c.l.b16 %v831
      %v2764 = vunpack.c.l.b16 %v832
      %v2765 = vunpack.c.l.b16 %v833
      %v2766 = vunpack.c.l.b16 %v834
      %v2767 = vunpack.c.l.b16 %v835
      %v2768 = vunpack.c.l.b16 %v836
      %v2769 = vunpack.c.l.b16 %v837
      %v2770 = vunpack.c.l.b16 %v838
      %v2771 = vunpack.c.l.b16 %v839
      %v2772 = vunpack.c.l.b16 %v840
      %v2773 = vunpack.c.l.b16 %v841
      %v2774 = vunpack.c.l.b16 %v842
      %v2775 = vunpack.c.l.b16 %v843
      %v2776 = vunpack.c.l.b16 %v844
      %v2777 = vunpack.c.l.b16 %v845
      %v2778 = vunpack.c.l.b16 %v846
      %v2779 = vunpack.c.l.b16 %v847
      %v2780 = vunpack.c.l.b16 %v848
      %v2781 = vunpack.c.l.b16 %v849
      %v2782 = vunpack.c.l.b16 %v850
      %v2783 = vunpack.c.l.b16 %v851
      %v2784 = vunpack.c.l.b16 %v852
      %v2785 = vunpack.c.l.b16 %v853
      %v2786 = vunpack.c.l.b16 %v854
      %v2787 = vunpack.c.l.b16 %v855
      %v2788 = vunpack.c.l.b16 %v856
      %v2789 = vunpack.c.l.b16 %v857
      %v2790 = vunpack.c.l.b16 %v858
      %v2791 = vunpack.c.l.b16 %v859
      %v2792 = vunpack.c.l.b16 %v860
      %v2793 = vunpack.c.l.b16 %v861
      %v2794 = vunpack.c.l.b16 %v862
      %v2795 = vunpack.c.l.b16 %v863
      %v2796 = vunpack.c.l.b16 %v864
      %v2797 = vunpack.c.l.b16 %v865
      %v2798 = vunpack.c.l.b16 %v866
      %v2799 = vunpack.c.l.b16 %v867
      %v2800 = vunpack.c.l.b16 %v868
      %v2801 = vunpack.c.l.b16 %v869
      %v2802 = vunpack.c.l.b16 %v870
      %v2803 = vunpack.c.l.b16 %v871
      %v2804 = vunpack.c.l.b16 %v872
      %v2805 = vunpack.c.l.b16 %v873
      %v2806 = vunpack.c.l.b16 %v874
      %v2807 = vunpack.c.l.b16 %v875
      %v2808 = vunpack.c.l.b16 %v876
      %v2809 = vunpack.c.l.b16 %v877
      %v2810 = vunpack.c.l.b16 %v878
      %v2811 = vunpack.c.l.b16 %v879
      %v2812 = vunpack.c.l.b16 %v880
      %v2813 = vunpack.c.l.b16 %v881
      %v2814 = vunpack.c.l.b16 %v882
      %v2815 = vunpack.c.l.b16 %v883
      %v2816 = vunpack.c.l.b16 %v884
      %v2817 = vunpack.c.l.b16 %v885
      %v2818 = vunpack.c.l.b16 %v886
      %v2819 = vunpack.c.l.b16 %v887
      %v2820 = vunpack.c.l.b16 %v888
      %v2821 = vunpack.c.l.b16 %v889
      %v2822 = vunpack.c.l.b16 %v890
      %v2823 = vunpack.c.l.b16 %v891
      %v2824 = vunpack.c.l.b16 %v892
      %v2825 = vunpack.c.l.b16 %v893
      %v2826 = vunpack.c.l.b16 %v894
      %v2827 = vunpack.c.l.b16 %v895
      %v2828 = vunpack.c.l.b16 %v896
      %v2829 = vunpack.c.l.b16 %v897
      %v2830 = vunpack.c.l.b16 %v898
      %v2831 = vunpack.c.l.b16 %v899
      %v2832 = vunpack.c.l.b16 %v900
      %v2833 = vunpack.c.l.b16 %v901
      %v2834 = vunpack.c.l.b16 %v902
      %v2835 = vunpack.c.l.b16 %v903
      %v2836 = vunpack.c.l.b16 %v904
      %v2837 = vunpack.c.l.b16 %v905
      %v2838 = vunpack.c.l.b16 %v906
      %v2839 = vunpack.c.l.b16 %v907
      %v2840 = vunpack.c.l.b16 %v908
      %v2841 = vunpack.c.l.b16 %v909
      %v2842 = vunpack.c.l.b16 %v910
      %v2843 = vunpack.c.l.b16 %v911
      %v2844 = vunpack.c.l.b16 %v912
      %v2845 = vunpack.c.l.b16 %v913
      %v2846 = vunpack.c.l.b16 %v914
      %v2847 = vunpack.c.l.b16 %v915
      %v2848 = vunpack.c.l.b16 %v916
      %v2849 = vunpack.c.l.b16 %v917
      %v2850 = vunpack.c.l.b16 %v918
      %v2851 = vunpack.c.l.b16 %v919
      %v2852 = vunpack.c.l.b16 %v920
      %v2853 = vunpack.c.l.b16 %v921
      %v2854 = vunpack.c.l.b16 %v922
      %v2855 = vunpack.c.l.b16 %v923
      %v2856 = vunpack.c.l.b16 %v924
      %v2857 = vunpack.c.l.b16 %v925
      %v2858 = vunpack.c.l.b16 %v926
      %v2859 = vunpack.c.l.b16 %v927
      %v2860 = vunpack.c.l.b16 %v928
      %v2861 = vunpack.c.l.b16 %v929
      %v2862 = vunpack.c.l.b16 %v930
      %v2863 = vunpack.c.l.b16 %v931
      %v2864 = vunpack.c.l.b16 %v932
      %v2865 = vunpack.c.l.b16 %v933
      %v2866 = vunpack.c.l.b16 %v934
      %v2867 = vunpack.c.l.b16 %v935
      %v2868 = vunpack.c.l.b16 %v936
      %v2869 = vunpack.c.l.b16 %v937
      %v2870 = vunpack.c.l.b16 %v938
      %v2871 = vunpack.c.l.b16 %v939
      %v2872 = vunpack.c.l.b16 %v940
      %v2873 = vunpack.c.l.b16 %v941
      %v2874 = vunpack.c.l.b16 %v942
      %v2875 = vunpack.c.l.b16 %v943
      %v2876 = vunpack.c.l.b16 %v944
      %v2877 = vunpack.c.l.b16 %v945
      %v2878 = vunpack.c.l.b16 %v946
      %v2879 = vunpack.c.l.b16 %v947
      %v2880 = vunpack.c.l.b16 %v948
      %v2881 = vunpack.c.l.b16 %v949
      %v2882 = vunpack.c.l.b16 %v950
      %v2883 = vunpack.c.l.b16 %v951
      %v2884 = vunpack.c.l.b16 %v952
      %v2885 = vunpack.c.l.b16 %v953
      %v2886 = vunpack.c.l.b16 %v954
      %v2887 = vunpack.c.l.b16 %v955
      %v2888 = vunpack.c.l.b16 %v956
      %v2889 = vunpack.c.l.b16 %v957
      %v2890 = vunpack.c.l.b16 %v958
      %v2891 = vunpack.c.l.b16 %v959
      %v2892 = vunpack.c.l.b16 %v960
      %v2893 = vunpack.c.l.b16 %v961
      %v2894 = vunpack.c.l.b16 %v962
      %v2895 = vunpack.c.l.b16 %v963
      %v2896 = vunpack.c.l.b16 %v964
      %v2897 = vunpack.c.l.b16 %v965
      %v2898 = vunpack.c.l.b16 %v966
      %v2899 = vunpack.c.l.b16 %v967
      %v2900 = vunpack.c.l.b16 %v968
      %v2901 = vunpack.c.l.b16 %v969
      %v2902 = vunpack.c.l.b16 %v970
      %v2903 = vunpack.c.l.b16 %v971
      %v2904 = vunpack.c.l.b16 %v972
      %v2905 = vunpack.c.l.b16 %v973
      %v2906 = vunpack.c.l.b16 %v974
      %v2907 = vunpack.c.l.b16 %v975
      %v2908 = vunpack.c.l.b16 %v976
      %v2909 = vunpack.c.l.b16 %v977
      %v2910 = vunpack.c.l.b16 %v978
      %v2911 = vunpack.c.l.b16 %v979
      %v2912 = vunpack.c.l.b16 %v980
      %v2913 = vunpack.c.l.b16 %v981
      %v2914 = vunpack.c.l.b16 %v982
      %v2915 = vunpack.c.l.b16 %v983
      %v2916 = vunpack.c.l.b16 %v984
      %v2917 = vunpack.c.l.b16 %v985
      %v2918 = vunpack.c.l.b16 %v986
      %v2919 = vunpack.c.l.b16 %v987
      %v2920 = vunpack.c.l.b16 %v988
      %v2921 = vunpack.c.l.b16 %v989
      %v2922 = vunpack.c.l.b16 %v990
      %v2923 = vunpack.c.l.b16 %v991
      %v2924 = vunpack.c.l.b16 %v992
      %v2925 = vunpack.c.l.b16 %v993
      %v2926 = vunpack.c.l.b16 %v994
      %v2927 = vunpack.c.l.b16 %v995
      %v2928 = vunpack.c.l.b16 %v996
      %v2929 = vunpack.c.l.b16 %v997
      %v2930 = vunpack.c.l.b16 %v998
      %v2931 = vunpack.c.l.b16 %v999
      %v2932 = vunpack.c.l.b16 %v1000
      %v2933 = vunpack.c.l.b16 %v1001
      %v2934 = vunpack.c.l.b16 %v1002
      %v2935 = vunpack.c.l.b16 %v1003
      %v2936 = vunpack.c.l.b16 %v1004
      %v2937 = vunpack.c.l.b16 %v1005
      %v2938 = vunpack.c.l.b16 %v1006
      %v2939 = vunpack.c.l.b16 %v1007
      %v2940 = vunpack.c.l.b16 %v1008
      %v2941 = vunpack.c.l.b16 %v1009
      %v2942 = vunpack.c.l.b16 %v1010
      %v2943 = vunpack.c.l.b16 %v1011
      %v2944 = vunpack.c.l.b16 %v1012
      %v2945 = vunpack.c.l.b16 %v1013
      %v2946 = vunpack.c.l.b16 %v1014
      %v2947 = vunpack.c.l.b16 %v1015
      %v2948 = vunpack.c.l.b16 %v1016
      %v2949 = vunpack.c.l.b16 %v1017
      %v2950 = vunpack.c.l.b16 %v1018
      %v2951 = vunpack.c.l.b16 %v1019
      %v2952 = vunpack.c.l.b16 %v1020
      %v2953 = vunpack.c.l.b16 %v1021
      %v2954 = vunpack.c.l.b16 %v1022
      %v2955 = vunpack.c.l.b16 %v1023
      %v2956 = vunpack.c.l.b16 %v1024
      %v2957 = vunpack.c.l.b16 %v1025
      %v2958 = vunpack.c.l.b16 %v1026
      %v2959 = vunpack.c.l.b16 %v1027
      %v2960 = vunpack.c.l.b16 %v1028
      %v2961 = vunpack.c.l.b16 %v1029
      %v2962 = vunpack.c.l.b16 %v1030
      %v2963 = vunpack.c.l.b16 %v1031
      %v2964 = vunpack.c.l.b16 %v1032
      %v2965 = vunpack.c.l.b16 %v1033
      %v2966 = vunpack.c.l.b16 %v1034
      %v2967 = vunpack.c.l.b16 %v1035
      %v2968 = vunpack.c.l.b16 %v1036
      %v2969 = vunpack.c.l.b16 %v1037
      %v2970 = vunpack.c.l.b16 %v1038
      %v2971 = vunpack.c.l.b16 %v1039
      %v2972 = vunpack.c.l.b16 %v1040
      %v2973 = vunpack.c.l.b16 %v1041
      %v2974 = vunpack.c.l.b16 %v1042
      %v2975 = vunpack.c.l.b16 %v1043
      %v2976 = vunpack.c.l.b16 %v1044
      %v2977 = vunpack.c.l.b16 %v1045
      %v2978 = vunpack.c.l.b16 %v1046
      %v2979 = vunpack.c.l.b16 %v1047
      %v2980 = vunpack.c.l.b16 %v1048
      %v2981 = vunpack.c.l.b16 %v1049
      %v2982 = vunpack.c.l.b16 %v1050
      %v2983 = vunpack.c.l.b16 %v1051
      %v2984 = vunpack.c.l.b16 %v1052
      %v2985 = vunpack.c.l.b16 %v1053
      %v2986 = vunpack.c.l.b16 %v1054
      %v2987 = vunpack.c.l.b16 %v1055
      %v2988 = vunpack.c.l.b16 %v1056
      %v2989 = vunpack.c.l.b16 %v1057
      %v2990 = vunpack.c.l.b16 %v1058
      %v2991 = vunpack.c.l.b16 %v1059
      %v2992 = vunpack.c.l.b16 %v1060
      %v2993 = vunpack.c.l.b16 %v1061
      %v2994 = vunpack.c.l.b16 %v1062
      %v2995 = vunpack.c.l.b16 %v1063
      %v2996 = vunpack.c.l.b16 %v1064
      %v2997 = vunpack.c.l.b16 %v1065
      %v2998 = vunpack.c.l.b16 %v1066
      %v2999 = vunpack.c.l.b16 %v1067
      %v3000 = vunpack.c.l.b16 %v1068
      %v3001 = vunpack.c.l.b16 %v1069
      %v3002 = vunpack.c.l.b16 %v1070
      %v3003 = vunpack.c.l.b16 %v1071
      %v3004 = vunpack.c.l.b16 %v1072
      %v3005 = vunpack.c.l.b16 %v1073
      %v3006 = vunpack.c.l.b16 %v1074
      %v3007 = vunpack.c.l.b16 %v1075
      %v3008 = vunpack.c.l.b16 %v1076
      %v3009 = vunpack.c.l.b16 %v1077
      %v3010 = vunpack.c.l.b16 %v1078
      %v3011 = vunpack.c.l.b16 %v1079
      %v3012 = vunpack.c.l.b16 %v1080
      %v3013 = vunpack.c.l.b16 %v1081
      %v3014 = vunpack.c.l.b16 %v1082
      %v3015 = vunpack.c.l.b16 %v1083
      %v3016 = vunpack.c.l.b16 %v1084
      %v3017 = vunpack.c.l.b16 %v1085
      %v3018 = vpack.c.b16 %v2235, %v2234
      %v3019 = vpack.c.b16 %v2237, %v2236
      %v3020 = vpack.c.b16 %v2239, %v2238
      %v3021 = vpack.c.b16 %v2241, %v2240
      %v3022 = vpack.c.b16 %v2243, %v2242
      %v3023 = vpack.c.b16 %v2245, %v2244
      %v3024 = vpack.c.b16 %v2247, %v2246
      %v3025 = vpack.c.b16 %v2249, %v2248
      %v3026 = vpack.c.b16 %v2251, %v2250
      %v3027 = vpack.c.b16 %v2253, %v2252
      %v3028 = vpack.c.b16 %v2255, %v2254
      %v3029 = vpack.c.b16 %v2257, %v2256
      %v3030 = vpack.c.b16 %v2259, %v2258
      %v3031 = vpack.c.b16 %v2261, %v2260
      %v3032 = vpack.c.b16 %v2263, %v2262
      %v3033 = vpack.c.b16 %v2265, %v2264
      %v3034 = vpack.c.b16 %v2267, %v2266
      %v3035 = vpack.c.b16 %v2269, %v2268
      %v3036 = vpack.c.b16 %v2271, %v2270
      %v3037 = vpack.c.b16 %v2273, %v2272
      %v3038 = vpack.c.b16 %v2275, %v2274
      %v3039 = vpack.c.b16 %v2277, %v2276
      %v3040 = vpack.c.b16 %v2279, %v2278
      %v3041 = vpack.c.b16 %v2281, %v2280
      %v3042 = vpack.c.b16 %v2283, %v2282
      %v3043 = vpack.c.b16 %v2285, %v2284
      %v3044 = vpack.c.b16 %v2287, %v2286
      %v3045 = vpack.c.b16 %v2289, %v2288
      %v3046 = vpack.c.b16 %v2291, %v2290
      %v3047 = vpack.c.b16 %v2293, %v2292
      %v3048 = vpack.c.b16 %v2295, %v2294
      %v3049 = vpack.c.b16 %v2297, %v2296
      %v3050 = vpack.c.b16 %v2299, %v2298
      %v3051 = vpack.c.b16 %v2301, %v2300
      %v3052 = vpack.c.b16 %v2303, %v2302
      %v3053 = vpack.c.b16 %v2305, %v2304
      %v3054 = vpack.c.b16 %v2307, %v2306
      %v3055 = vpack.c.b16 %v2309, %v2308
      %v3056 = vpack.c.b16 %v2311, %v2310
      %v3057 = vpack.c.b16 %v2313, %v2312
      %v3058 = vpack.c.b16 %v2315, %v2314
      %v3059 = vpack.c.b16 %v2317, %v2316
      %v3060 = vpack.c.b16 %v2319, %v2318
      %v3061 = vpack.c.b16 %v2321, %v2320
      %v3062 = vpack.c.b16 %v2323, %v2322
      %v3063 = vpack.c.b16 %v2325, %v2324
      %v3064 = vpack.c.b16 %v2327, %v2326
      %v3065 = vpack.c.b16 %v2329, %v2328
      %v3066 = vpack.c.b16 %v2331, %v2330
      %v3067 = vpack.c.b16 %v2333, %v2332
      %v3068 = vpack.c.b16 %v2335, %v2334
      %v3069 = vpack.c.b16 %v2337, %v2336
      %v3070 = vpack.c.b16 %v2339, %v2338
      %v3071 = vpack.c.b16 %v2341, %v2340
      %v3072 = vpack.c.b16 %v2343, %v2342
      %v3073 = vpack.c.b16 %v2345, %v2344
      %v3074 = vpack.c.b16 %v2347, %v2346
      %v3075 = vpack.c.b16 %v2349, %v2348
      %v3076 = vpack.c.b16 %v2351, %v2350
      %v3077 = vpack.c.b16 %v2353, %v2352
      %v3078 = vpack.c.b16 %v2355, %v2354
      %v3079 = vpack.c.b16 %v2357, %v2356
      %v3080 = vpack.c.b16 %v2359, %v2358
      %v3081 = vpack.c.b16 %v2361, %v2360
      %v3082 = vpack.c.b16 %v2363, %v2362
      %v3083 = vpack.c.b16 %v2365, %v2364
      %v3084 = vpack.c.b16 %v2367, %v2366
      %v3085 = vpack.c.b16 %v2369, %v2368
      %v3086 = vpack.c.b16 %v2371, %v2370
      %v3087 = vpack.c.b16 %v2373, %v2372
      %v3088 = vpack.c.b16 %v2375, %v2374
      %v3089 = vpack.c.b16 %v2377, %v2376
      %v3090 = vpack.c.b16 %v2379, %v2378
      %v3091 = vpack.c.b16 %v2381, %v2380
      %v3092 = vpack.c.b16 %v2383, %v2382
      %v3093 = vpack.c.b16 %v2385, %v2384
      %v3094 = vpack.c.b16 %v2387, %v2386
      %v3095 = vpack.c.b16 %v2389, %v2388
      %v3096 = vpack.c.b16 %v2391, %v2390
      %v3097 = vpack.c.b16 %v2393, %v2392
      %v3098 = vpack.c.b16 %v2395, %v2394
      %v3099 = vpack.c.b16 %v2397, %v2396
      %v3100 = vpack.c.b16 %v2399, %v2398
      %v3101 = vpack.c.b16 %v2401, %v2400
      %v3102 = vpack.c.b16 %v2403, %v2402
      %v3103 = vpack.c.b16 %v2405, %v2404
      %v3104 = vpack.c.b16 %v2407, %v2406
      %v3105 = vpack.c.b16 %v2409, %v2408
      %v3106 = vpack.c.b16 %v2411, %v2410
      %v3107 = vpack.c.b16 %v2413, %v2412
      %v3108 = vpack.c.b16 %v2415, %v2414
      %v3109 = vpack.c.b16 %v2417, %v2416
      %v3110 = vpack.c.b16 %v2419, %v2418
      %v3111 = vpack.c.b16 %v2421, %v2420
      %v3112 = vpack.c.b16 %v2423, %v2422
      %v3113 = vpack.c.b16 %v2425, %v2424
      %v3114 = vpack.c.b16 %v2427, %v2426
      %v3115 = vpack.c.b16 %v2429, %v2428
      %v3116 = vpack.c.b16 %v2431, %v2430
      %v3117 = vpack.c.b16 %v2433, %v2432
      %v3118 = vpack.c.b16 %v2435, %v2434
      %v3119 = vpack.c.b16 %v2437, %v2436
      %v3120 = vpack.c.b16 %v2439, %v2438
      %v3121 = vpack.c.b16 %v2441, %v2440
      %v3122 = vpack.c.b16 %v2443, %v2442
      %v3123 = vpack.c.b16 %v2445, %v2444
      %v3124 = vpack.c.b16 %v2447, %v2446
      %v3125 = vpack.c.b16 %v2449, %v2448
      %v3126 = vpack.c.b16 %v2451, %v2450
      %v3127 = vpack.c.b16 %v2453, %v2452
      %v3128 = vpack.c.b16 %v2455, %v2454
      %v3129 = vpack.c.b16 %v2457, %v2456
      %v3130 = vpack.c.b16 %v2459, %v2458
      %v3131 = vpack.c.b16 %v2461, %v2460
      %v3132 = vpack.c.b16 %v2463, %v2462
      %v3133 = vpack.c.b16 %v2465, %v2464
      %v3134 = vpack.c.b16 %v2467, %v2466
      %v3135 = vpack.c.b16 %v2469, %v2468
      %v3136 = vpack.c.b16 %v2471, %v2470
      %v3137 = vpack.c.b16 %v2473, %v2472
      %v3138 = vpack.c.b16 %v2475, %v2474
      %v3139 = vpack.c.b16 %v2477, %v2476
      %v3140 = vpack.c.b16 %v2479, %v2478
      %v3141 = vpack.c.b16 %v2481, %v2480
      %v3142 = vpack.c.b16 %v2483, %v2482
      %v3143 = vpack.c.b16 %v2485, %v2484
      %v3144 = vpack.c.b16 %v2487, %v2486
      %v3145 = vpack.c.b16 %v2489, %v2488
      %v3146 = vpack.c.b16 %v2491, %v2490
      %v3147 = vpack.c.b16 %v2493, %v2492
      %v3148 = vpack.c.b16 %v2495, %v2494
      %v3149 = vpack.c.b16 %v2497, %v2496
      %v3150 = vpack.c.b16 %v2499, %v2498
      %v3151 = vpack.c.b16 %v2501, %v2500
      %v3152 = vpack.c.b16 %v2503, %v2502
      %v3153 = vpack.c.b16 %v2505, %v2504
      %v3154 = vpack.c.b16 %v2507, %v2506
      %v3155 = vpack.c.b16 %v2509, %v2508
      %v3156 = vpack.c.b16 %v2511, %v2510
      %v3157 = vpack.c.b16 %v2513, %v2512
      %v3158 = vpack.c.b16 %v2515, %v2514
      %v3159 = vpack.c.b16 %v2517, %v2516
      %v3160 = vpack.c.b16 %v2519, %v2518
      %v3161 = vpack.c.b16 %v2521, %v2520
      %v3162 = vpack.c.b16 %v2523, %v2522
      %v3163 = vpack.c.b16 %v2525, %v2524
      %v3164 = vpack.c.b16 %v2527, %v2526
      %v3165 = vpack.c.b16 %v2529, %v2528
      %v3166 = vpack.c.b16 %v2531, %v2530
      %v3167 = vpack.c.b16 %v2533, %v2532
      %v3168 = vpack.c.b16 %v2535, %v2534
      %v3169 = vpack.c.b16 %v2537, %v2536
      %v3170 = vpack.c.b16 %v2539, %v2538
      %v3171 = vpack.c.b16 %v2541, %v2540
      %v3172 = vpack.c.b16 %v2543, %v2542
      %v3173 = vpack.c.b16 %v2545, %v2544
      %v3174 = vpack.c.b16 %v2547, %v2546
      %v3175 = vpack.c.b16 %v2549, %v2548
      %v3176 = vpack.c.b16 %v2551, %v2550
      %v3177 = vpack.c.b16 %v2553, %v2552
      %v3178 = vpack.c.b16 %v2555, %v2554
      %v3179 = vpack.c.b16 %v2557, %v2556
      %v3180 = vpack.c.b16 %v2559, %v2558
      %v3181 = vpack.c.b16 %v2561, %v2560
      %v3182 = vpack.c.b16 %v2563, %v2562
      %v3183 = vpack.c.b16 %v2565, %v2564
      %v3184 = vpack.c.b16 %v2567, %v2566
      %v3185 = vpack.c.b16 %v2569, %v2568
      %v3186 = vpack.c.b16 %v2571, %v2570
      %v3187 = vpack.c.b16 %v2573, %v2572
      %v3188 = vpack.c.b16 %v2575, %v2574
      %v3189 = vpack.c.b16 %v2577, %v2576
      %v3190 = vpack.c.b16 %v2579, %v2578
      %v3191 = vpack.c.b16 %v2581, %v2580
      %v3192 = vpack.c.b16 %v2583, %v2582
      %v3193 = vpack.c.b16 %v2585, %v2584
      %v3194 = vpack.c.b16 %v2587, %v2586
      %v3195 = vpack.c.b16 %v2589, %v2588
      %v3196 = vpack.c.b16 %v2591, %v2590
      %v3197 = vpack.c.b16 %v2593, %v2592
      %v3198 = vpack.c.b16 %v2595, %v2594
      %v3199 = vpack.c.b16 %v2597, %v2596
      %v3200 = vpack.c.b16 %v2599, %v2598
      %v3201 = vpack.c.b16 %v2601, %v2600
      %v3202 = vpack.c.b16 %v2603, %v2602
      %v3203 = vpack.c.b16 %v2605, %v2604
      %v3204 = vpack.c.b16 %v2607, %v2606
      %v3205 = vpack.c.b16 %v2609, %v2608
      %v3206 = vpack.c.b16 %v2611, %v2610
      %v3207 = vpack.c.b16 %v2613, %v2612
      %v3208 = vpack.c.b16 %v2615, %v2614
      %v3209 = vpack.c.b16 %v2617, %v2616
      %v3210 = vpack.c.b16 %v2619, %v2618
      %v3211 = vpack.c.b16 %v2621, %v2620
      %v3212 = vpack.c.b16 %v2623, %v2622
      %v3213 = vpack.c.b16 %v2625, %v2624
      %v3214 = vpack.c.b16 %v2627, %v2626
      %v3215 = vpack.c.b16 %v2629, %v2628
      %v3216 = vpack.c.b16 %v2631, %v2630
      %v3217 = vpack.c.b16 %v2633, %v2632
      %v3218 = vpack.c.b16 %v2635, %v2634
      %v3219 = vpack.c.b16 %v2637, %v2636
      %v3220 = vpack.c.b16 %v2639, %v2638
      %v3221 = vpack.c.b16 %v2641, %v2640
      %v3222 = vpack.c.b16 %v2643, %v2642
      %v3223 = vpack.c.b16 %v2645, %v2644
      %v3224 = vpack.c.b16 %v2647, %v2646
      %v3225 = vpack.c.b16 %v2649, %v2648
      %v3226 = vpack.c.b16 %v2651, %v2650
      %v3227 = vpack.c.b16 %v2653, %v2652
      %v3228 = vpack.c.b16 %v2655, %v2654
      %v3229 = vpack.c.b16 %v2657, %v2656
      %v3230 = vpack.c.b16 %v2659, %v2658
      %v3231 = vpack.c.b16 %v2661, %v2660
      %v3232 = vpack.c.b16 %v2663, %v2662
      %v3233 = vpack.c.b16 %v2665, %v2664
      %v3234 = vpack.c.b16 %v2667, %v2666
      %v3235 = vpack.c.b16 %v2669, %v2668
      %v3236 = vpack.c.b16 %v2671, %v2670
      %v3237 = vpack.c.b16 %v2673, %v2672
      %v3238 = vpack.c.b16 %v2675, %v2674
      %v3239 = vpack.c.b16 %v2677, %v2676
      %v3240 = vpack.c.b16 %v2679, %v2678
      %v3241 = vpack.c.b16 %v2681, %v2680
      %v3242 = vpack.c.b16 %v2683, %v2682
      %v3243 = vpack.c.b16 %v2685, %v2684
      %v3244 = vpack.c.b16 %v2687, %v2686
      %v3245 = vpack.c.b16 %v2689, %v2688
      %v3246 = vpack.c.b16 %v2691, %v2690
      %v3247 = vpack.c.b16 %v2693, %v2692
      %v3248 = vpack.c.b16 %v2695, %v2694
      %v3249 = vpack.c.b16 %v2697, %v2696
      %v3250 = vpack.c.b16 %v2699, %v2698
      %v3251 = vpack.c.b16 %v2701, %v2700
      %v3252 = vpack.c.b16 %v2703, %v2702
      %v3253 = vpack.c.b16 %v2705, %v2704
      %v3254 = vpack.c.b16 %v2707, %v2706
      %v3255 = vpack.c.b16 %v2709, %v2708
      %v3256 = vpack.c.b16 %v2711, %v2710
      %v3257 = vpack.c.b16 %v2713, %v2712
      %v3258 = vpack.c.b16 %v2715, %v2714
      %v3259 = vpack.c.b16 %v2717, %v2716
      %v3260 = vpack.c.b16 %v2719, %v2718
      %v3261 = vpack.c.b16 %v2721, %v2720
      %v3262 = vpack.c.b16 %v2723, %v2722
      %v3263 = vpack.c.b16 %v2725, %v2724
      %v3264 = vpack.c.b16 %v2727, %v2726
      %v3265 = vpack.c.b16 %v2729, %v2728
      %v3266 = vpack.c.b16 %v2731, %v2730
      %v3267 = vpack.c.b16 %v2733, %v2732
      %v3268 = vpack.c.b16 %v2735, %v2734
      %v3269 = vpack.c.b16 %v2737, %v2736
      %v3270 = vpack.c.b16 %v2739, %v2738
      %v3271 = vpack.c.b16 %v2741, %v2740
      %v3272 = vpack.c.b16 %v2743, %v2742
      %v3273 = vpack.c.b16 %v2745, %v2744
      %v3274 = vpack.c.b16 %v2747, %v2746
      %v3275 = vpack.c.b16 %v2749, %v2748
      %v3276 = vpack.c.b16 %v2751, %v2750
      %v3277 = vpack.c.b16 %v2753, %v2752
      %v3278 = vpack.c.b16 %v2755, %v2754
      %v3279 = vpack.c.b16 %v2757, %v2756
      %v3280 = vpack.c.b16 %v2759, %v2758
      %v3281 = vpack.c.b16 %v2761, %v2760
      %v3282 = vpack.c.b16 %v2763, %v2762
      %v3283 = vpack.c.b16 %v2765, %v2764
      %v3284 = vpack.c.b16 %v2767, %v2766
      %v3285 = vpack.c.b16 %v2769, %v2768
      %v3286 = vpack.c.b16 %v2771, %v2770
      %v3287 = vpack.c.b16 %v2773, %v2772
      %v3288 = vpack.c.b16 %v2775, %v2774
      %v3289 = vpack.c.b16 %v2777, %v2776
      %v3290 = vpack.c.b16 %v2779, %v2778
      %v3291 = vpack.c.b16 %v2781, %v2780
      %v3292 = vpack.c.b16 %v2783, %v2782
      %v3293 = vpack.c.b16 %v2785, %v2784
      %v3294 = vpack.c.b16 %v2787, %v2786
      %v3295 = vpack.c.b16 %v2789, %v2788
      %v3296 = vpack.c.b16 %v2791, %v2790
      %v3297 = vpack.c.b16 %v2793, %v2792
      %v3298 = vpack.c.b16 %v2795, %v2794
      %v3299 = vpack.c.b16 %v2797, %v2796
      %v3300 = vpack.c.b16 %v2799, %v2798
      %v3301 = vpack.c.b16 %v2801, %v2800
      %v3302 = vpack.c.b16 %v2803, %v2802
      %v3303 = vpack.c.b16 %v2805, %v2804
      %v3304 = vpack.c.b16 %v2807, %v2806
      %v3305 = vpack.c.b16 %v2809, %v2808
      %v3306 = vpack.c.b16 %v2811, %v2810
      %v3307 = vpack.c.b16 %v2813, %v2812
      %v3308 = vpack.c.b16 %v2815, %v2814
      %v3309 = vpack.c.b16 %v2817, %v2816
      %v3310 = vpack.c.b16 %v2819, %v2818
      %v3311 = vpack.c.b16 %v2821, %v2820
      %v3312 = vpack.c.b16 %v2823, %v2822
      %v3313 = vpack.c.b16 %v2825, %v2824
      %v3314 = vpack.c.b16 %v2827, %v2826
      %v3315 = vpack.c.b16 %v2829, %v2828
      %v3316 = vpack.c.b16 %v2831, %v2830
      %v3317 = vpack.c.b16 %v2833, %v2832
      %v3318 = vpack.c.b16 %v2835, %v2834
      %v3319 = vpack.c.b16 %v2837, %v2836
      %v3320 = vpack.c.b16 %v2839, %v2838
      %v3321 = vpack.c.b16 %v2841, %v2840
      %v3322 = vpack.c.b16 %v2843, %v2842
      %v3323 = vpack.c.b16 %v2845, %v2844
      %v3324 = vpack.c.b16 %v2847, %v2846
      %v3325 = vpack.c.b16 %v2849, %v2848
      %v3326 = vpack.c.b16 %v2851, %v2850
      %v3327 = vpack.c.b16 %v2853, %v2852
      %v3328 = vpack.c.b16 %v2855, %v2854
      %v3329 = vpack.c.b16 %v2857, %v2856
      %v3330 = vpack.c.b16 %v2859, %v2858
      %v3331 = vpack.c.b16 %v2861, %v2860
      %v3332 = vpack.c.b16 %v2863, %v2862
      %v3333 = vpack.c.b16 %v2865, %v2864
      %v3334 = vpack.c.b16 %v2867, %v2866
      %v3335 = vpack.c.b16 %v2869, %v2868
      %v3336 = vpack.c.b16 %v2871, %v2870
      %v3337 = vpack.c.b16 %v2873, %v2872
      %v3338 = vpack.c.b16 %v2875, %v2874
      %v3339 = vpack.c.b16 %v2877, %v2876
      %v3340 = vpack.c.b16 %v2879, %v2878
      %v3341 = vpack.c.b16 %v2881, %v2880
      %v3342 = vpack.c.b16 %v2883, %v2882
      %v3343 = vpack.c.b16 %v2885, %v2884
      %v3344 = vpack.c.b16 %v2887, %v2886
      %v3345 = vpack.c.b16 %v2889, %v2888
      %v3346 = vpack.c.b16 %v2891, %v2890
      %v3347 = vpack.c.b16 %v2893, %v2892
      %v3348 = vpack.c.b16 %v2895, %v2894
      %v3349 = vpack.c.b16 %v2897, %v2896
      %v3350 = vpack.c.b16 %v2899, %v2898
      %v3351 = vpack.c.b16 %v2901, %v2900
      %v3352 = vpack.c.b16 %v2903, %v2902
      %v3353 = vpack.c.b16 %v2905, %v2904
      %v3354 = vpack.c.b16 %v2907, %v2906
      %v3355 = vpack.c.b16 %v2909, %v2908
      %v3356 = vpack.c.b16 %v2911, %v2910
      %v3357 = vpack.c.b16 %v2913, %v2912
      %v3358 = vpack.c.b16 %v2915, %v2914
      %v3359 = vpack.c.b16 %v2917, %v2916
      %v3360 = vpack.c.b16 %v2919, %v2918
      %v3361 = vpack.c.b16 %v2921, %v2920
      %v3362 = vpack.c.b16 %v2923, %v2922
      %v3363 = vpack.c.b16 %v2925, %v2924
      %v3364 = vpack.c.b16 %v2927, %v2926
      %v3365 = vpack.c.b16 %v2929, %v2928
      %v3366 = vpack.c.b16 %v2931, %v2930
      %v3367 = vpack.c.b16 %v2933, %v2932
      %v3368 = vpack.c.b16 %v2935, %v2934
      %v3369 = vpack.c.b16 %v2937, %v2936
      %v3370 = vpack.c.b16 %v2939, %v2938
      %v3371 = vpack.c.b16 %v2941, %v2940
      %v3372 = vpack.c.b16 %v2943, %v2942
      %v3373 = vpack.c.b16 %v2945, %v2944
      %v3374 = vpack.c.b16 %v2947, %v2946
      %v3375 = vpack.c.b16 %v2949, %v2948
      %v3376 = vpack.c.b16 %v2951, %v2950
      %v3377 = vpack.c.b16 %v2953, %v2952
      %v3378 = vpack.c.b16 %v2955, %v2954
      %v3379 = vpack.c.b16 %v2957, %v2956
      %v3380 = vpack.c.b16 %v2959, %v2958
      %v3381 = vpack.c.b16 %v2961, %v2960
      %v3382 = vpack.c.b16 %v2963, %v2962
      %v3383 = vpack.c.b16 %v2965, %v2964
      %v3384 = vpack.c.b16 %v2967, %v2966
      %v3385 = vpack.c.b16 %v2969, %v2968
      %v3386 = vpack.c.b16 %v2971, %v2970
      %v3387 = vpack.c.b16 %v2973, %v2972
      %v3388 = vpack.c.b16 %v2975, %v2974
      %v3389 = vpack.c.b16 %v2977, %v2976
      %v3390 = vpack.c.b16 %v2979, %v2978
      %v3391 = vpack.c.b16 %v2981, %v2980
      %v3392 = vpack.c.b16 %v2983, %v2982
      %v3393 = vpack.c.b16 %v2985, %v2984
      %v3394 = vpack.c.b16 %v2987, %v2986
      %v3395 = vpack.c.b16 %v2989, %v2988
      %v3396 = vpack.c.b16 %v2991, %v2990
      %v3397 = vpack.c.b16 %v2993, %v2992
      %v3398 = vpack.c.b16 %v2995, %v2994
      %v3399 = vpack.c.b16 %v2997, %v2996
      %v3400 = vpack.c.b16 %v2999, %v2998
      %v3401 = vpack.c.b16 %v3001, %v3000
      %v3402 = vpack.c.b16 %v3003, %v3002
      %v3403 = vpack.c.b16 %v3005, %v3004
      %v3404 = vpack.c.b16 %v3007, %v3006
      %v3405 = vpack.c.b16 %v3009, %v3008
      %v3406 = vpack.c.b16 %v3011, %v3010
      %v3407 = vpack.c.b16 %v3013, %v3012
      %v3408 = vpack.c.b16 %v3015, %v3014
      %v3409 = vpack.c.b16 %v3017, %v3016
      %3802 = vmatprep.subr.bf16.mxu0 0
      %3803 = vmatpush1.bf16.msra.mxu0 %v3025
      %3804 = vmatprep.subr.bf16.mxu0 0
      %3805 = vmatpush1.bf16.msra.mxu0 %v3024
      %3806 = vmatprep.subr.bf16.mxu0 0
      %3807 = vmatpush1.bf16.msra.mxu0 %v3023
      %3808 = vmatprep.subr.bf16.mxu0 0
      %3809 = vmatpush1.bf16.msra.mxu0 %v3022
      %3810 = vmatprep.subr.bf16.mxu0 0
      %3811 = vmatpush1.bf16.msra.mxu0 %v3021
      %3812 = vmatprep.subr.bf16.mxu0 0
      %3813 = vmatpush1.bf16.msra.mxu0 %v3020
      %3814 = vmatprep.subr.bf16.mxu0 0
      %3815 = vmatpush1.bf16.msra.mxu0 %v3019
      %3816 = vmatprep.subr.bf16.mxu0 0
      %3817 = vmatpush1.bf16.msra.mxu0 %v3018
      %3818 = vmatprep.subr.bf16.mxu0 0
      %3819 = vmatpush2.bf16.msra.mxu0 %v3033
      %3820 = vmatprep.subr.bf16.mxu0 0
      %3821 = vmatpush2.bf16.msra.mxu0 %v3032
      %3822 = vmatprep.subr.bf16.mxu0 0
      %3823 = vmatpush2.bf16.msra.mxu0 %v3031
      %3824 = vmatprep.subr.bf16.mxu0 0
      %3825 = vmatpush2.bf16.msra.mxu0 %v3030
      %3826 = vmatprep.subr.bf16.mxu0 0
      %3827 = vmatpush2.bf16.msra.mxu0 %v3029
      %3828 = vmatprep.subr.bf16.mxu0 0
      %3829 = vmatpush2.bf16.msra.mxu0 %v3028
      %3830 = vmatprep.subr.bf16.mxu0 0
      %3831 = vmatpush2.bf16.msra.mxu0 %v3027
      %3832 = vmatprep.subr.bf16.mxu0 0
      %3833 = vmatpush2.bf16.msra.mxu0 %v3026
      %3834 = vmatprep.mubr.bf16.mxu0 %v1130
      %3835 = vmatmul.mubr.bf16.gmra.mxu0 %v1116
      %v3836 = vpop.f32.mrf.mxu0
      %v3837 = vadd.f32 0.0, %v3836
      %v3838 = vpop.f32.mrf.mxu0
      %v3839 = vpop.f32.mrf.mxu0
      %v3840 = vpop.f32.mrf.mxu0
      %3841 = vdwg.mxu0
      %3842 = vmatprep.subr.bf16.mxu0 0
      %3843 = vmatpush1.bf16.msra.mxu0 %v3041
      %3844 = vmatprep.subr.bf16.mxu0 0
      %3845 = vmatpush1.bf16.msra.mxu0 %v3040
      %3846 = vmatprep.subr.bf16.mxu0 0
      %3847 = vmatpush1.bf16.msra.mxu0 %v3039
      %3848 = vmatprep.subr.bf16.mxu0 0
      %3849 = vmatpush1.bf16.msra.mxu0 %v3038
      %3850 = vmatprep.subr.bf16.mxu0 0
      %3851 = vmatpush1.bf16.msra.mxu0 %v3037
      %3852 = vmatprep.subr.bf16.mxu0 0
      %3853 = vmatpush1.bf16.msra.mxu0 %v3036
      %3854 = vmatprep.subr.bf16.mxu0 0
      %3855 = vmatpush1.bf16.msra.mxu0 %v3035
      %3856 = vmatprep.subr.bf16.mxu0 0
      %3857 = vmatpush1.bf16.msra.mxu0 %v3034
      %3858 = vmatprep.subr.bf16.mxu0 0
      %3859 = vmatpush2.bf16.msra.mxu0 %v3049
      %3860 = vmatprep.subr.bf16.mxu0 0
      %3861 = vmatpush2.bf16.msra.mxu0 %v3048
      %3862 = vmatprep.subr.bf16.mxu0 0
      %3863 = vmatpush2.bf16.msra.mxu0 %v3047
      %3864 = vmatprep.subr.bf16.mxu0 0
      %3865 = vmatpush2.bf16.msra.mxu0 %v3046
      %3866 = vmatprep.subr.bf16.mxu0 0
      %3867 = vmatpush2.bf16.msra.mxu0 %v3045
      %3868 = vmatprep.subr.bf16.mxu0 0
      %3869 = vmatpush2.bf16.msra.mxu0 %v3044
      %3870 = vmatprep.subr.bf16.mxu0 0
      %3871 = vmatpush2.bf16.msra.mxu0 %v3043
      %3872 = vmatprep.subr.bf16.mxu0 0
      %3873 = vmatpush2.bf16.msra.mxu0 %v3042
      %3874 = vmatprep.mubr.bf16.mxu0 %v1140
      %3875 = vmatmul.mubr.bf16.gmra.mxu0 %v1138
      %v3876 = vpop.f32.mrf.mxu0
      %v3877 = vadd.f32 %v3837, %v3876
      %v3878 = vpop.f32.mrf.mxu0
      %v3879 = vpop.f32.mrf.mxu0
      %v3880 = vpop.f32.mrf.mxu0
      %3881 = vdwg.mxu0
      %3882 = vmatprep.subr.bf16.mxu0 0
      %3883 = vmatpush1.bf16.msra.mxu0 %v3057
      %3884 = vmatprep.subr.bf16.mxu0 0
      %3885 = vmatpush1.bf16.msra.mxu0 %v3056
      %3886 = vmatprep.subr.bf16.mxu0 0
      %3887 = vmatpush1.bf16.msra.mxu0 %v3055
      %3888 = vmatprep.subr.bf16.mxu0 0
      %3889 = vmatpush1.bf16.msra.mxu0 %v3054
      %3890 = vmatprep.subr.bf16.mxu0 0
      %3891 = vmatpush1.bf16.msra.mxu0 %v3053
      %3892 = vmatprep.subr.bf16.mxu0 0
      %3893 = vmatpush1.bf16.msra.mxu0 %v3052
      %3894 = vmatprep.subr.bf16.mxu0 0
      %3895 = vmatpush1.bf16.msra.mxu0 %v3051
      %3896 = vmatprep.subr.bf16.mxu0 0
      %3897 = vmatpush1.bf16.msra.mxu0 %v3050
      %3898 = vmatprep.subr.bf16.mxu0 0
      %3899 = vmatpush2.bf16.msra.mxu0 %v3065
      %3900 = vmatprep.subr.bf16.mxu0 0
      %3901 = vmatpush2.bf16.msra.mxu0 %v3064
      %3902 = vmatprep.subr.bf16.mxu0 0
      %3903 = vmatpush2.bf16.msra.mxu0 %v3063
      %3904 = vmatprep.subr.bf16.mxu0 0
      %3905 = vmatpush2.bf16.msra.mxu0 %v3062
      %3906 = vmatprep.subr.bf16.mxu0 0
      %3907 = vmatpush2.bf16.msra.mxu0 %v3061
      %3908 = vmatprep.subr.bf16.mxu0 0
      %3909 = vmatpush2.bf16.msra.mxu0 %v3060
      %3910 = vmatprep.subr.bf16.mxu0 0
      %3911 = vmatpush2.bf16.msra.mxu0 %v3059
      %3912 = vmatprep.subr.bf16.mxu0 0
      %3913 = vmatpush2.bf16.msra.mxu0 %v3058
      %3914 = vmatprep.mubr.bf16.mxu0 %v1137
      %3915 = vmatmul.mubr.bf16.gmra.mxu0 %v1123
      %v3916 = vpop.f32.mrf.mxu0
      %v3917 = vadd.f32 %v3877, %v3916
      %v3918 = vpop.f32.mrf.mxu0
      %v3919 = vpop.f32.mrf.mxu0
      %v3920 = vpop.f32.mrf.mxu0
      %3921 = vdwg.mxu0
      %3922 = vmatprep.subr.bf16.mxu0 0
      %3923 = vmatpush1.bf16.msra.mxu0 %v3073
      %3924 = vmatprep.subr.bf16.mxu0 0
      %3925 = vmatpush1.bf16.msra.mxu0 %v3072
      %3926 = vmatprep.subr.bf16.mxu0 0
      %3927 = vmatpush1.bf16.msra.mxu0 %v3071
      %3928 = vmatprep.subr.bf16.mxu0 0
      %3929 = vmatpush1.bf16.msra.mxu0 %v3070
      %3930 = vmatprep.subr.bf16.mxu0 0
      %3931 = vmatpush1.bf16.msra.mxu0 %v3069
      %3932 = vmatprep.subr.bf16.mxu0 0
      %3933 = vmatpush1.bf16.msra.mxu0 %v3068
      %3934 = vmatprep.subr.bf16.mxu0 0
      %3935 = vmatpush1.bf16.msra.mxu0 %v3067
      %3936 = vmatprep.subr.bf16.mxu0 0
      %3937 = vmatpush1.bf16.msra.mxu0 %v3066
      %3938 = vmatprep.subr.bf16.mxu0 0
      %3939 = vmatpush2.bf16.msra.mxu0 %v3081
      %3940 = vmatprep.subr.bf16.mxu0 0
      %3941 = vmatpush2.bf16.msra.mxu0 %v3080
      %3942 = vmatprep.subr.bf16.mxu0 0
      %3943 = vmatpush2.bf16.msra.mxu0 %v3079
      %3944 = vmatprep.subr.bf16.mxu0 0
      %3945 = vmatpush2.bf16.msra.mxu0 %v3078
      %3946 = vmatprep.subr.bf16.mxu0 0
      %3947 = vmatpush2.bf16.msra.mxu0 %v3077
      %3948 = vmatprep.subr.bf16.mxu0 0
      %3949 = vmatpush2.bf16.msra.mxu0 %v3076
      %3950 = vmatprep.subr.bf16.mxu0 0
      %3951 = vmatpush2.bf16.msra.mxu0 %v3075
      %3952 = vmatprep.subr.bf16.mxu0 0
      %3953 = vmatpush2.bf16.msra.mxu0 %v3074
      %3954 = vmatprep.mubr.bf16.mxu0 %v1141
      %3955 = vmatmul.mubr.bf16.gmra.mxu0 %v1139
      %v3956 = vpop.f32.mrf.mxu0
      %v3957 = vadd.f32 %v3917, %v3956
      %v3958 = vpop.f32.mrf.mxu0
      %v3959 = vpop.f32.mrf.mxu0
      %v3960 = vpop.f32.mrf.mxu0
      %3961 = vdwg.mxu0
      %3962 = vmatprep.subr.bf16.mxu0 0
      %3963 = vmatpush1.bf16.msra.mxu0 %v3089
      %3964 = vmatprep.subr.bf16.mxu0 0
      %3965 = vmatpush1.bf16.msra.mxu0 %v3088
      %3966 = vmatprep.subr.bf16.mxu0 0
      %3967 = vmatpush1.bf16.msra.mxu0 %v3087
      %3968 = vmatprep.subr.bf16.mxu0 0
      %3969 = vmatpush1.bf16.msra.mxu0 %v3086
      %3970 = vmatprep.subr.bf16.mxu0 0
      %3971 = vmatpush1.bf16.msra.mxu0 %v3085
      %3972 = vmatprep.subr.bf16.mxu0 0
      %3973 = vmatpush1.bf16.msra.mxu0 %v3084
      %3974 = vmatprep.subr.bf16.mxu0 0
      %3975 = vmatpush1.bf16.msra.mxu0 %v3083
      %3976 = vmatprep.subr.bf16.mxu0 0
      %3977 = vmatpush1.bf16.msra.mxu0 %v3082
      %3978 = vmatprep.subr.bf16.mxu0 0
      %3979 = vmatpush2.bf16.msra.mxu0 %v3097
      %3980 = vmatprep.subr.bf16.mxu0 0
      %3981 = vmatpush2.bf16.msra.mxu0 %v3096
      %3982 = vmatprep.subr.bf16.mxu0 0
      %3983 = vmatpush2.bf16.msra.mxu0 %v3095
      %3984 = vmatprep.subr.bf16.mxu0 0
      %3985 = vmatpush2.bf16.msra.mxu0 %v3094
      %3986 = vmatprep.subr.bf16.mxu0 0
      %3987 = vmatpush2.bf16.msra.mxu0 %v3093
      %3988 = vmatprep.subr.bf16.mxu0 0
      %3989 = vmatpush2.bf16.msra.mxu0 %v3092
      %3990 = vmatprep.subr.bf16.mxu0 0
      %3991 = vmatpush2.bf16.msra.mxu0 %v3091
      %3992 = vmatprep.subr.bf16.mxu0 0
      %3993 = vmatpush2.bf16.msra.mxu0 %v3090
      %3994 = vmatprep.mubr.bf16.mxu0 %v1179
      %3995 = vmatmul.mubr.bf16.gmra.mxu0 %v1165
      %v3996 = vpop.f32.mrf.mxu0
      %v3997 = vadd.f32 %v3957, %v3996
      %v3998 = vpop.f32.mrf.mxu0
      %v3999 = vpop.f32.mrf.mxu0
      %v4000 = vpop.f32.mrf.mxu0
      %4001 = vdwg.mxu0
      %4002 = vmatprep.subr.bf16.mxu0 0
      %4003 = vmatpush1.bf16.msra.mxu0 %v3105
      %4004 = vmatprep.subr.bf16.mxu0 0
      %4005 = vmatpush1.bf16.msra.mxu0 %v3104
      %4006 = vmatprep.subr.bf16.mxu0 0
      %4007 = vmatpush1.bf16.msra.mxu0 %v3103
      %4008 = vmatprep.subr.bf16.mxu0 0
      %4009 = vmatpush1.bf16.msra.mxu0 %v3102
      %4010 = vmatprep.subr.bf16.mxu0 0
      %4011 = vmatpush1.bf16.msra.mxu0 %v3101
      %4012 = vmatprep.subr.bf16.mxu0 0
      %4013 = vmatpush1.bf16.msra.mxu0 %v3100
      %4014 = vmatprep.subr.bf16.mxu0 0
      %4015 = vmatpush1.bf16.msra.mxu0 %v3099
      %4016 = vmatprep.subr.bf16.mxu0 0
      %4017 = vmatpush1.bf16.msra.mxu0 %v3098
      %4018 = vmatprep.subr.bf16.mxu0 0
      %4019 = vmatpush2.bf16.msra.mxu0 %v3113
      %4020 = vmatprep.subr.bf16.mxu0 0
      %4021 = vmatpush2.bf16.msra.mxu0 %v3112
      %4022 = vmatprep.subr.bf16.mxu0 0
      %4023 = vmatpush2.bf16.msra.mxu0 %v3111
      %4024 = vmatprep.subr.bf16.mxu0 0
      %4025 = vmatpush2.bf16.msra.mxu0 %v3110
      %4026 = vmatprep.subr.bf16.mxu0 0
      %4027 = vmatpush2.bf16.msra.mxu0 %v3109
      %4028 = vmatprep.subr.bf16.mxu0 0
      %4029 = vmatpush2.bf16.msra.mxu0 %v3108
      %4030 = vmatprep.subr.bf16.mxu0 0
      %4031 = vmatpush2.bf16.msra.mxu0 %v3107
      %4032 = vmatprep.subr.bf16.mxu0 0
      %4033 = vmatpush2.bf16.msra.mxu0 %v3106
      %4034 = vmatprep.mubr.bf16.mxu0 %v1189
      %4035 = vmatmul.mubr.bf16.gmra.mxu0 %v1187
      %v4036 = vpop.f32.mrf.mxu0
      %v4037 = vadd.f32 %v3997, %v4036
      %v4038 = vpop.f32.mrf.mxu0
      %v4039 = vpop.f32.mrf.mxu0
      %v4040 = vpop.f32.mrf.mxu0
      %4041 = vdwg.mxu0
      %4042 = vmatprep.subr.bf16.mxu0 0
      %4043 = vmatpush1.bf16.msra.mxu0 %v3121
      %4044 = vmatprep.subr.bf16.mxu0 0
      %4045 = vmatpush1.bf16.msra.mxu0 %v3120
      %4046 = vmatprep.subr.bf16.mxu0 0
      %4047 = vmatpush1.bf16.msra.mxu0 %v3119
      %4048 = vmatprep.subr.bf16.mxu0 0
      %4049 = vmatpush1.bf16.msra.mxu0 %v3118
      %4050 = vmatprep.subr.bf16.mxu0 0
      %4051 = vmatpush1.bf16.msra.mxu0 %v3117
      %4052 = vmatprep.subr.bf16.mxu0 0
      %4053 = vmatpush1.bf16.msra.mxu0 %v3116
      %4054 = vmatprep.subr.bf16.mxu0 0
      %4055 = vmatpush1.bf16.msra.mxu0 %v3115
      %4056 = vmatprep.subr.bf16.mxu0 0
      %4057 = vmatpush1.bf16.msra.mxu0 %v3114
      %4058 = vmatprep.subr.bf16.mxu0 0
      %4059 = vmatpush2.bf16.msra.mxu0 %v3129
      %4060 = vmatprep.subr.bf16.mxu0 0
      %4061 = vmatpush2.bf16.msra.mxu0 %v3128
      %4062 = vmatprep.subr.bf16.mxu0 0
      %4063 = vmatpush2.bf16.msra.mxu0 %v3127
      %4064 = vmatprep.subr.bf16.mxu0 0
      %4065 = vmatpush2.bf16.msra.mxu0 %v3126
      %4066 = vmatprep.subr.bf16.mxu0 0
      %4067 = vmatpush2.bf16.msra.mxu0 %v3125
      %4068 = vmatprep.subr.bf16.mxu0 0
      %4069 = vmatpush2.bf16.msra.mxu0 %v3124
      %4070 = vmatprep.subr.bf16.mxu0 0
      %4071 = vmatpush2.bf16.msra.mxu0 %v3123
      %4072 = vmatprep.subr.bf16.mxu0 0
      %4073 = vmatpush2.bf16.msra.mxu0 %v3122
      %4074 = vmatprep.mubr.bf16.mxu0 %v1186
      %4075 = vmatmul.mubr.bf16.gmra.mxu0 %v1172
      %v4076 = vpop.f32.mrf.mxu0
      %v4077 = vadd.f32 %v4037, %v4076
      %v4078 = vpop.f32.mrf.mxu0
      %v4079 = vpop.f32.mrf.mxu0
      %v4080 = vpop.f32.mrf.mxu0
      %4081 = vdwg.mxu0
      %4082 = vmatprep.subr.bf16.mxu0 0
      %4083 = vmatpush1.bf16.msra.mxu0 %v3137
      %4084 = vmatprep.subr.bf16.mxu0 0
      %4085 = vmatpush1.bf16.msra.mxu0 %v3136
      %4086 = vmatprep.subr.bf16.mxu0 0
      %4087 = vmatpush1.bf16.msra.mxu0 %v3135
      %4088 = vmatprep.subr.bf16.mxu0 0
      %4089 = vmatpush1.bf16.msra.mxu0 %v3134
      %4090 = vmatprep.subr.bf16.mxu0 0
      %4091 = vmatpush1.bf16.msra.mxu0 %v3133
      %4092 = vmatprep.subr.bf16.mxu0 0
      %4093 = vmatpush1.bf16.msra.mxu0 %v3132
      %4094 = vmatprep.subr.bf16.mxu0 0
      %4095 = vmatpush1.bf16.msra.mxu0 %v3131
      %4096 = vmatprep.subr.bf16.mxu0 0
      %4097 = vmatpush1.bf16.msra.mxu0 %v3130
      %4098 = vmatprep.subr.bf16.mxu0 0
      %4099 = vmatpush2.bf16.msra.mxu0 %v3145
      %4100 = vmatprep.subr.bf16.mxu0 0
      %4101 = vmatpush2.bf16.msra.mxu0 %v3144
      %4102 = vmatprep.subr.bf16.mxu0 0
      %4103 = vmatpush2.bf16.msra.mxu0 %v3143
      %4104 = vmatprep.subr.bf16.mxu0 0
      %4105 = vmatpush2.bf16.msra.mxu0 %v3142
      %4106 = vmatprep.subr.bf16.mxu0 0
      %4107 = vmatpush2.bf16.msra.mxu0 %v3141
      %4108 = vmatprep.subr.bf16.mxu0 0
      %4109 = vmatpush2.bf16.msra.mxu0 %v3140
      %4110 = vmatprep.subr.bf16.mxu0 0
      %4111 = vmatpush2.bf16.msra.mxu0 %v3139
      %4112 = vmatprep.subr.bf16.mxu0 0
      %4113 = vmatpush2.bf16.msra.mxu0 %v3138
      %4114 = vmatprep.mubr.bf16.mxu0 %v1190
      %4115 = vmatmul.mubr.bf16.gmra.mxu0 %v1188
      %v4116 = vpop.f32.mrf.mxu0
      %v4117 = vadd.f32 %v4077, %v4116
      %v4118 = vpop.f32.mrf.mxu0
      %v4119 = vpop.f32.mrf.mxu0
      %v4120 = vpop.f32.mrf.mxu0
      %4121 = vdwg.mxu0
      %4122 = vmatprep.subr.bf16.mxu0 0
      %4123 = vmatpush1.bf16.msra.mxu0 %v3153
      %4124 = vmatprep.subr.bf16.mxu0 0
      %4125 = vmatpush1.bf16.msra.mxu0 %v3152
      %4126 = vmatprep.subr.bf16.mxu0 0
      %4127 = vmatpush1.bf16.msra.mxu0 %v3151
      %4128 = vmatprep.subr.bf16.mxu0 0
      %4129 = vmatpush1.bf16.msra.mxu0 %v3150
      %4130 = vmatprep.subr.bf16.mxu0 0
      %4131 = vmatpush1.bf16.msra.mxu0 %v3149
      %4132 = vmatprep.subr.bf16.mxu0 0
      %4133 = vmatpush1.bf16.msra.mxu0 %v3148
      %4134 = vmatprep.subr.bf16.mxu0 0
      %4135 = vmatpush1.bf16.msra.mxu0 %v3147
      %4136 = vmatprep.subr.bf16.mxu0 0
      %4137 = vmatpush1.bf16.msra.mxu0 %v3146
      %4138 = vmatprep.subr.bf16.mxu0 0
      %4139 = vmatpush2.bf16.msra.mxu0 %v3161
      %4140 = vmatprep.subr.bf16.mxu0 0
      %4141 = vmatpush2.bf16.msra.mxu0 %v3160
      %4142 = vmatprep.subr.bf16.mxu0 0
      %4143 = vmatpush2.bf16.msra.mxu0 %v3159
      %4144 = vmatprep.subr.bf16.mxu0 0
      %4145 = vmatpush2.bf16.msra.mxu0 %v3158
      %4146 = vmatprep.subr.bf16.mxu0 0
      %4147 = vmatpush2.bf16.msra.mxu0 %v3157
      %4148 = vmatprep.subr.bf16.mxu0 0
      %4149 = vmatpush2.bf16.msra.mxu0 %v3156
      %4150 = vmatprep.subr.bf16.mxu0 0
      %4151 = vmatpush2.bf16.msra.mxu0 %v3155
      %4152 = vmatprep.subr.bf16.mxu0 0
      %4153 = vmatpush2.bf16.msra.mxu0 %v3154
      %4154 = vmatprep.mubr.bf16.mxu0 %v1228
      %4155 = vmatmul.mubr.bf16.gmra.mxu0 %v1214
      %v4156 = vpop.f32.mrf.mxu0
      %v4157 = vadd.f32 %v4117, %v4156
      %v4158 = vpop.f32.mrf.mxu0
      %v4159 = vpop.f32.mrf.mxu0
      %v4160 = vpop.f32.mrf.mxu0
      %4161 = vdwg.mxu0
      %4162 = vmatprep.subr.bf16.mxu0 0
      %4163 = vmatpush1.bf16.msra.mxu0 %v3169
      %4164 = vmatprep.subr.bf16.mxu0 0
      %4165 = vmatpush1.bf16.msra.mxu0 %v3168
      %4166 = vmatprep.subr.bf16.mxu0 0
      %4167 = vmatpush1.bf16.msra.mxu0 %v3167
      %4168 = vmatprep.subr.bf16.mxu0 0
      %4169 = vmatpush1.bf16.msra.mxu0 %v3166
      %4170 = vmatprep.subr.bf16.mxu0 0
      %4171 = vmatpush1.bf16.msra.mxu0 %v3165
      %4172 = vmatprep.subr.bf16.mxu0 0
      %4173 = vmatpush1.bf16.msra.mxu0 %v3164
      %4174 = vmatprep.subr.bf16.mxu0 0
      %4175 = vmatpush1.bf16.msra.mxu0 %v3163
      %4176 = vmatprep.subr.bf16.mxu0 0
      %4177 = vmatpush1.bf16.msra.mxu0 %v3162
      %4178 = vmatprep.subr.bf16.mxu0 0
      %4179 = vmatpush2.bf16.msra.mxu0 %v3177
      %4180 = vmatprep.subr.bf16.mxu0 0
      %4181 = vmatpush2.bf16.msra.mxu0 %v3176
      %4182 = vmatprep.subr.bf16.mxu0 0
      %4183 = vmatpush2.bf16.msra.mxu0 %v3175
      %4184 = vmatprep.subr.bf16.mxu0 0
      %4185 = vmatpush2.bf16.msra.mxu0 %v3174
      %4186 = vmatprep.subr.bf16.mxu0 0
      %4187 = vmatpush2.bf16.msra.mxu0 %v3173
      %4188 = vmatprep.subr.bf16.mxu0 0
      %4189 = vmatpush2.bf16.msra.mxu0 %v3172
      %4190 = vmatprep.subr.bf16.mxu0 0
      %4191 = vmatpush2.bf16.msra.mxu0 %v3171
      %4192 = vmatprep.subr.bf16.mxu0 0
      %4193 = vmatpush2.bf16.msra.mxu0 %v3170
      %4194 = vmatprep.mubr.bf16.mxu0 %v1238
      %4195 = vmatmul.mubr.bf16.gmra.mxu0 %v1236
      %v4196 = vpop.f32.mrf.mxu0
      %v4197 = vadd.f32 %v4157, %v4196
      %v4198 = vpop.f32.mrf.mxu0
      %v4199 = vpop.f32.mrf.mxu0
      %v4200 = vpop.f32.mrf.mxu0
      %4201 = vdwg.mxu0
      %4202 = vmatprep.subr.bf16.mxu0 0
      %4203 = vmatpush1.bf16.msra.mxu0 %v3185
      %4204 = vmatprep.subr.bf16.mxu0 0
      %4205 = vmatpush1.bf16.msra.mxu0 %v3184
      %4206 = vmatprep.subr.bf16.mxu0 0
      %4207 = vmatpush1.bf16.msra.mxu0 %v3183
      %4208 = vmatprep.subr.bf16.mxu0 0
      %4209 = vmatpush1.bf16.msra.mxu0 %v3182
      %4210 = vmatprep.subr.bf16.mxu0 0
      %4211 = vmatpush1.bf16.msra.mxu0 %v3181
      %4212 = vmatprep.subr.bf16.mxu0 0
      %4213 = vmatpush1.bf16.msra.mxu0 %v3180
      %4214 = vmatprep.subr.bf16.mxu0 0
      %4215 = vmatpush1.bf16.msra.mxu0 %v3179
      %4216 = vmatprep.subr.bf16.mxu0 0
      %4217 = vmatpush1.bf16.msra.mxu0 %v3178
      %4218 = vmatprep.subr.bf16.mxu0 0
      %4219 = vmatpush2.bf16.msra.mxu0 %v3193
      %4220 = vmatprep.subr.bf16.mxu0 0
      %4221 = vmatpush2.bf16.msra.mxu0 %v3192
      %4222 = vmatprep.subr.bf16.mxu0 0
      %4223 = vmatpush2.bf16.msra.mxu0 %v3191
      %4224 = vmatprep.subr.bf16.mxu0 0
      %4225 = vmatpush2.bf16.msra.mxu0 %v3190
      %4226 = vmatprep.subr.bf16.mxu0 0
      %4227 = vmatpush2.bf16.msra.mxu0 %v3189
      %4228 = vmatprep.subr.bf16.mxu0 0
      %4229 = vmatpush2.bf16.msra.mxu0 %v3188
      %4230 = vmatprep.subr.bf16.mxu0 0
      %4231 = vmatpush2.bf16.msra.mxu0 %v3187
      %4232 = vmatprep.subr.bf16.mxu0 0
      %4233 = vmatpush2.bf16.msra.mxu0 %v3186
      %4234 = vmatprep.mubr.bf16.mxu0 %v1235
      %4235 = vmatmul.mubr.bf16.gmra.mxu0 %v1221
      %v4236 = vpop.f32.mrf.mxu0
      %v4237 = vadd.f32 %v4197, %v4236
      %v4238 = vpop.f32.mrf.mxu0
      %v4239 = vpop.f32.mrf.mxu0
      %v4240 = vpop.f32.mrf.mxu0
      %4241 = vdwg.mxu0
      %4242 = vmatprep.subr.bf16.mxu0 0
      %4243 = vmatpush1.bf16.msra.mxu0 %v3201
      %4244 = vmatprep.subr.bf16.mxu0 0
      %4245 = vmatpush1.bf16.msra.mxu0 %v3200
      %4246 = vmatprep.subr.bf16.mxu0 0
      %4247 = vmatpush1.bf16.msra.mxu0 %v3199
      %4248 = vmatprep.subr.bf16.mxu0 0
      %4249 = vmatpush1.bf16.msra.mxu0 %v3198
      %4250 = vmatprep.subr.bf16.mxu0 0
      %4251 = vmatpush1.bf16.msra.mxu0 %v3197
      %4252 = vmatprep.subr.bf16.mxu0 0
      %4253 = vmatpush1.bf16.msra.mxu0 %v3196
      %4254 = vmatprep.subr.bf16.mxu0 0
      %4255 = vmatpush1.bf16.msra.mxu0 %v3195
      %4256 = vmatprep.subr.bf16.mxu0 0
      %4257 = vmatpush1.bf16.msra.mxu0 %v3194
      %4258 = vmatprep.subr.bf16.mxu0 0
      %4259 = vmatpush2.bf16.msra.mxu0 %v3209
      %4260 = vmatprep.subr.bf16.mxu0 0
      %4261 = vmatpush2.bf16.msra.mxu0 %v3208
      %4262 = vmatprep.subr.bf16.mxu0 0
      %4263 = vmatpush2.bf16.msra.mxu0 %v3207
      %4264 = vmatprep.subr.bf16.mxu0 0
      %4265 = vmatpush2.bf16.msra.mxu0 %v3206
      %4266 = vmatprep.subr.bf16.mxu0 0
      %4267 = vmatpush2.bf16.msra.mxu0 %v3205
      %4268 = vmatprep.subr.bf16.mxu0 0
      %4269 = vmatpush2.bf16.msra.mxu0 %v3204
      %4270 = vmatprep.subr.bf16.mxu0 0
      %4271 = vmatpush2.bf16.msra.mxu0 %v3203
      %4272 = vmatprep.subr.bf16.mxu0 0
      %4273 = vmatpush2.bf16.msra.mxu0 %v3202
      %4274 = vmatprep.mubr.bf16.mxu0 %v1239
      %4275 = vmatmul.mubr.bf16.gmra.mxu0 %v1237
      %v4276 = vpop.f32.mrf.mxu0
      %v4277 = vadd.f32 %v4237, %v4276
      %v4278 = vpop.f32.mrf.mxu0
      %v4279 = vpop.f32.mrf.mxu0
      %v4280 = vpop.f32.mrf.mxu0
      %4281 = vdwg.mxu0
      %4282 = vmatprep.subr.bf16.mxu0 0
      %4283 = vmatpush1.bf16.msra.mxu0 %v3217
      %4284 = vmatprep.subr.bf16.mxu0 0
      %4285 = vmatpush1.bf16.msra.mxu0 %v3216
      %4286 = vmatprep.subr.bf16.mxu0 0
      %4287 = vmatpush1.bf16.msra.mxu0 %v3215
      %4288 = vmatprep.subr.bf16.mxu0 0
      %4289 = vmatpush1.bf16.msra.mxu0 %v3214
      %4290 = vmatprep.subr.bf16.mxu0 0
      %4291 = vmatpush1.bf16.msra.mxu0 %v3213
      %4292 = vmatprep.subr.bf16.mxu0 0
      %4293 = vmatpush1.bf16.msra.mxu0 %v3212
      %4294 = vmatprep.subr.bf16.mxu0 0
      %4295 = vmatpush1.bf16.msra.mxu0 %v3211
      %4296 = vmatprep.subr.bf16.mxu0 0
      %4297 = vmatpush1.bf16.msra.mxu0 %v3210
      %4298 = vmatprep.subr.bf16.mxu0 0
      %4299 = vmatpush2.bf16.msra.mxu0 %v3225
      %4300 = vmatprep.subr.bf16.mxu0 0
      %4301 = vmatpush2.bf16.msra.mxu0 %v3224
      %4302 = vmatprep.subr.bf16.mxu0 0
      %4303 = vmatpush2.bf16.msra.mxu0 %v3223
      %4304 = vmatprep.subr.bf16.mxu0 0
      %4305 = vmatpush2.bf16.msra.mxu0 %v3222
      %4306 = vmatprep.subr.bf16.mxu0 0
      %4307 = vmatpush2.bf16.msra.mxu0 %v3221
      %4308 = vmatprep.subr.bf16.mxu0 0
      %4309 = vmatpush2.bf16.msra.mxu0 %v3220
      %4310 = vmatprep.subr.bf16.mxu0 0
      %4311 = vmatpush2.bf16.msra.mxu0 %v3219
      %4312 = vmatprep.subr.bf16.mxu0 0
      %4313 = vmatpush2.bf16.msra.mxu0 %v3218
      %4314 = vmatprep.mubr.bf16.mxu0 %v1277
      %4315 = vmatmul.mubr.bf16.gmra.mxu0 %v1263
      %v4316 = vpop.f32.mrf.mxu0
      %v4317 = vadd.f32 %v4277, %v4316
      %v4318 = vpop.f32.mrf.mxu0
      %v4319 = vpop.f32.mrf.mxu0
      %v4320 = vpop.f32.mrf.mxu0
      %4321 = vdwg.mxu0
      %4322 = vmatprep.subr.bf16.mxu0 0
      %4323 = vmatpush1.bf16.msra.mxu0 %v3233
      %4324 = vmatprep.subr.bf16.mxu0 0
      %4325 = vmatpush1.bf16.msra.mxu0 %v3232
      %4326 = vmatprep.subr.bf16.mxu0 0
      %4327 = vmatpush1.bf16.msra.mxu0 %v3231
      %4328 = vmatprep.subr.bf16.mxu0 0
      %4329 = vmatpush1.bf16.msra.mxu0 %v3230
      %4330 = vmatprep.subr.bf16.mxu0 0
      %4331 = vmatpush1.bf16.msra.mxu0 %v3229
      %4332 = vmatprep.subr.bf16.mxu0 0
      %4333 = vmatpush1.bf16.msra.mxu0 %v3228
      %4334 = vmatprep.subr.bf16.mxu0 0
      %4335 = vmatpush1.bf16.msra.mxu0 %v3227
      %4336 = vmatprep.subr.bf16.mxu0 0
      %4337 = vmatpush1.bf16.msra.mxu0 %v3226
      %4338 = vmatprep.subr.bf16.mxu0 0
      %4339 = vmatpush2.bf16.msra.mxu0 %v3241
      %4340 = vmatprep.subr.bf16.mxu0 0
      %4341 = vmatpush2.bf16.msra.mxu0 %v3240
      %4342 = vmatprep.subr.bf16.mxu0 0
      %4343 = vmatpush2.bf16.msra.mxu0 %v3239
      %4344 = vmatprep.subr.bf16.mxu0 0
      %4345 = vmatpush2.bf16.msra.mxu0 %v3238
      %4346 = vmatprep.subr.bf16.mxu0 0
      %4347 = vmatpush2.bf16.msra.mxu0 %v3237
      %4348 = vmatprep.subr.bf16.mxu0 0
      %4349 = vmatpush2.bf16.msra.mxu0 %v3236
      %4350 = vmatprep.subr.bf16.mxu0 0
      %4351 = vmatpush2.bf16.msra.mxu0 %v3235
      %4352 = vmatprep.subr.bf16.mxu0 0
      %4353 = vmatpush2.bf16.msra.mxu0 %v3234
      %4354 = vmatprep.mubr.bf16.mxu0 %v1287
      %4355 = vmatmul.mubr.bf16.gmra.mxu0 %v1285
      %v4356 = vpop.f32.mrf.mxu0
      %v4357 = vadd.f32 %v4317, %v4356
      %v4358 = vpop.f32.mrf.mxu0
      %v4359 = vpop.f32.mrf.mxu0
      %v4360 = vpop.f32.mrf.mxu0
      %4361 = vdwg.mxu0
      %4362 = vmatprep.subr.bf16.mxu0 0
      %4363 = vmatpush1.bf16.msra.mxu0 %v3249
      %4364 = vmatprep.subr.bf16.mxu0 0
      %4365 = vmatpush1.bf16.msra.mxu0 %v3248
      %4366 = vmatprep.subr.bf16.mxu0 0
      %4367 = vmatpush1.bf16.msra.mxu0 %v3247
      %4368 = vmatprep.subr.bf16.mxu0 0
      %4369 = vmatpush1.bf16.msra.mxu0 %v3246
      %4370 = vmatprep.subr.bf16.mxu0 0
      %4371 = vmatpush1.bf16.msra.mxu0 %v3245
      %4372 = vmatprep.subr.bf16.mxu0 0
      %4373 = vmatpush1.bf16.msra.mxu0 %v3244
      %4374 = vmatprep.subr.bf16.mxu0 0
      %4375 = vmatpush1.bf16.msra.mxu0 %v3243
      %4376 = vmatprep.subr.bf16.mxu0 0
      %4377 = vmatpush1.bf16.msra.mxu0 %v3242
      %4378 = vmatprep.subr.bf16.mxu0 0
      %4379 = vmatpush2.bf16.msra.mxu0 %v3257
      %4380 = vmatprep.subr.bf16.mxu0 0
      %4381 = vmatpush2.bf16.msra.mxu0 %v3256
      %4382 = vmatprep.subr.bf16.mxu0 0
      %4383 = vmatpush2.bf16.msra.mxu0 %v3255
      %4384 = vmatprep.subr.bf16.mxu0 0
      %4385 = vmatpush2.bf16.msra.mxu0 %v3254
      %4386 = vmatprep.subr.bf16.mxu0 0
      %4387 = vmatpush2.bf16.msra.mxu0 %v3253
      %4388 = vmatprep.subr.bf16.mxu0 0
      %4389 = vmatpush2.bf16.msra.mxu0 %v3252
      %4390 = vmatprep.subr.bf16.mxu0 0
      %4391 = vmatpush2.bf16.msra.mxu0 %v3251
      %4392 = vmatprep.subr.bf16.mxu0 0
      %4393 = vmatpush2.bf16.msra.mxu0 %v3250
      %4394 = vmatprep.mubr.bf16.mxu0 %v1284
      %4395 = vmatmul.mubr.bf16.gmra.mxu0 %v1270
      %v4396 = vpop.f32.mrf.mxu0
      %v4397 = vadd.f32 %v4357, %v4396
      %v4398 = vpop.f32.mrf.mxu0
      %v4399 = vpop.f32.mrf.mxu0
      %v4400 = vpop.f32.mrf.mxu0
      %4401 = vdwg.mxu0
      %4402 = vmatprep.subr.bf16.mxu0 0
      %4403 = vmatpush1.bf16.msra.mxu0 %v3265
      %4404 = vmatprep.subr.bf16.mxu0 0
      %4405 = vmatpush1.bf16.msra.mxu0 %v3264
      %4406 = vmatprep.subr.bf16.mxu0 0
      %4407 = vmatpush1.bf16.msra.mxu0 %v3263
      %4408 = vmatprep.subr.bf16.mxu0 0
      %4409 = vmatpush1.bf16.msra.mxu0 %v3262
      %4410 = vmatprep.subr.bf16.mxu0 0
      %4411 = vmatpush1.bf16.msra.mxu0 %v3261
      %4412 = vmatprep.subr.bf16.mxu0 0
      %4413 = vmatpush1.bf16.msra.mxu0 %v3260
      %4414 = vmatprep.subr.bf16.mxu0 0
      %4415 = vmatpush1.bf16.msra.mxu0 %v3259
      %4416 = vmatprep.subr.bf16.mxu0 0
      %4417 = vmatpush1.bf16.msra.mxu0 %v3258
      %4418 = vmatprep.subr.bf16.mxu0 0
      %4419 = vmatpush2.bf16.msra.mxu0 %v3273
      %4420 = vmatprep.subr.bf16.mxu0 0
      %4421 = vmatpush2.bf16.msra.mxu0 %v3272
      %4422 = vmatprep.subr.bf16.mxu0 0
      %4423 = vmatpush2.bf16.msra.mxu0 %v3271
      %4424 = vmatprep.subr.bf16.mxu0 0
      %4425 = vmatpush2.bf16.msra.mxu0 %v3270
      %4426 = vmatprep.subr.bf16.mxu0 0
      %4427 = vmatpush2.bf16.msra.mxu0 %v3269
      %4428 = vmatprep.subr.bf16.mxu0 0
      %4429 = vmatpush2.bf16.msra.mxu0 %v3268
      %4430 = vmatprep.subr.bf16.mxu0 0
      %4431 = vmatpush2.bf16.msra.mxu0 %v3267
      %4432 = vmatprep.subr.bf16.mxu0 0
      %4433 = vmatpush2.bf16.msra.mxu0 %v3266
      %4434 = vmatprep.mubr.bf16.mxu0 %v1288
      %4435 = vmatmul.mubr.bf16.gmra.mxu0 %v1286
      %v4436 = vpop.f32.mrf.mxu0
      %v4437 = vadd.f32 %v4397, %v4436
      %v4438 = vpop.f32.mrf.mxu0
      %v4439 = vpop.f32.mrf.mxu0
      %v4440 = vpop.f32.mrf.mxu0
      %4441 = vdwg.mxu0
      %4442 = vmatprep.subr.bf16.mxu0 0
      %4443 = vmatpush1.bf16.msra.mxu0 %v3281
      %4444 = vmatprep.subr.bf16.mxu0 0
      %4445 = vmatpush1.bf16.msra.mxu0 %v3280
      %4446 = vmatprep.subr.bf16.mxu0 0
      %4447 = vmatpush1.bf16.msra.mxu0 %v3279
      %4448 = vmatprep.subr.bf16.mxu0 0
      %4449 = vmatpush1.bf16.msra.mxu0 %v3278
      %4450 = vmatprep.subr.bf16.mxu0 0
      %4451 = vmatpush1.bf16.msra.mxu0 %v3277
      %4452 = vmatprep.subr.bf16.mxu0 0
      %4453 = vmatpush1.bf16.msra.mxu0 %v3276
      %4454 = vmatprep.subr.bf16.mxu0 0
      %4455 = vmatpush1.bf16.msra.mxu0 %v3275
      %4456 = vmatprep.subr.bf16.mxu0 0
      %4457 = vmatpush1.bf16.msra.mxu0 %v3274
      %4458 = vmatprep.subr.bf16.mxu0 0
      %4459 = vmatpush2.bf16.msra.mxu0 %v3289
      %4460 = vmatprep.subr.bf16.mxu0 0
      %4461 = vmatpush2.bf16.msra.mxu0 %v3288
      %4462 = vmatprep.subr.bf16.mxu0 0
      %4463 = vmatpush2.bf16.msra.mxu0 %v3287
      %4464 = vmatprep.subr.bf16.mxu0 0
      %4465 = vmatpush2.bf16.msra.mxu0 %v3286
      %4466 = vmatprep.subr.bf16.mxu0 0
      %4467 = vmatpush2.bf16.msra.mxu0 %v3285
      %4468 = vmatprep.subr.bf16.mxu0 0
      %4469 = vmatpush2.bf16.msra.mxu0 %v3284
      %4470 = vmatprep.subr.bf16.mxu0 0
      %4471 = vmatpush2.bf16.msra.mxu0 %v3283
      %4472 = vmatprep.subr.bf16.mxu0 0
      %4473 = vmatpush2.bf16.msra.mxu0 %v3282
      %4474 = vmatprep.mubr.bf16.mxu0 %v1326
      %4475 = vmatmul.mubr.bf16.gmra.mxu0 %v1312
      %v4476 = vpop.f32.mrf.mxu0
      %v4477 = vadd.f32 %v4437, %v4476
      %v4478 = vpop.f32.mrf.mxu0
      %v4479 = vpop.f32.mrf.mxu0
      %v4480 = vpop.f32.mrf.mxu0
      %4481 = vdwg.mxu0
      %4482 = vmatprep.subr.bf16.mxu0 0
      %4483 = vmatpush1.bf16.msra.mxu0 %v3297
      %4484 = vmatprep.subr.bf16.mxu0 0
      %4485 = vmatpush1.bf16.msra.mxu0 %v3296
      %4486 = vmatprep.subr.bf16.mxu0 0
      %4487 = vmatpush1.bf16.msra.mxu0 %v3295
      %4488 = vmatprep.subr.bf16.mxu0 0
      %4489 = vmatpush1.bf16.msra.mxu0 %v3294
      %4490 = vmatprep.subr.bf16.mxu0 0
      %4491 = vmatpush1.bf16.msra.mxu0 %v3293
      %4492 = vmatprep.subr.bf16.mxu0 0
      %4493 = vmatpush1.bf16.msra.mxu0 %v3292
      %4494 = vmatprep.subr.bf16.mxu0 0
      %4495 = vmatpush1.bf16.msra.mxu0 %v3291
      %4496 = vmatprep.subr.bf16.mxu0 0
      %4497 = vmatpush1.bf16.msra.mxu0 %v3290
      %4498 = vmatprep.subr.bf16.mxu0 0
      %4499 = vmatpush2.bf16.msra.mxu0 %v3305
      %4500 = vmatprep.subr.bf16.mxu0 0
      %4501 = vmatpush2.bf16.msra.mxu0 %v3304
      %4502 = vmatprep.subr.bf16.mxu0 0
      %4503 = vmatpush2.bf16.msra.mxu0 %v3303
      %4504 = vmatprep.subr.bf16.mxu0 0
      %4505 = vmatpush2.bf16.msra.mxu0 %v3302
      %4506 = vmatprep.subr.bf16.mxu0 0
      %4507 = vmatpush2.bf16.msra.mxu0 %v3301
      %4508 = vmatprep.subr.bf16.mxu0 0
      %4509 = vmatpush2.bf16.msra.mxu0 %v3300
      %4510 = vmatprep.subr.bf16.mxu0 0
      %4511 = vmatpush2.bf16.msra.mxu0 %v3299
      %4512 = vmatprep.subr.bf16.mxu0 0
      %4513 = vmatpush2.bf16.msra.mxu0 %v3298
      %4514 = vmatprep.mubr.bf16.mxu0 %v1336
      %4515 = vmatmul.mubr.bf16.gmra.mxu0 %v1334
      %v4516 = vpop.f32.mrf.mxu0
      %v4517 = vadd.f32 %v4477, %v4516
      %v4518 = vpop.f32.mrf.mxu0
      %v4519 = vpop.f32.mrf.mxu0
      %v4520 = vpop.f32.mrf.mxu0
      %4521 = vdwg.mxu0
      %4522 = vmatprep.subr.bf16.mxu0 0
      %4523 = vmatpush1.bf16.msra.mxu0 %v3313
      %4524 = vmatprep.subr.bf16.mxu0 0
      %4525 = vmatpush1.bf16.msra.mxu0 %v3312
      %4526 = vmatprep.subr.bf16.mxu0 0
      %4527 = vmatpush1.bf16.msra.mxu0 %v3311
      %4528 = vmatprep.subr.bf16.mxu0 0
      %4529 = vmatpush1.bf16.msra.mxu0 %v3310
      %4530 = vmatprep.subr.bf16.mxu0 0
      %4531 = vmatpush1.bf16.msra.mxu0 %v3309
      %4532 = vmatprep.subr.bf16.mxu0 0
      %4533 = vmatpush1.bf16.msra.mxu0 %v3308
      %4534 = vmatprep.subr.bf16.mxu0 0
      %4535 = vmatpush1.bf16.msra.mxu0 %v3307
      %4536 = vmatprep.subr.bf16.mxu0 0
      %4537 = vmatpush1.bf16.msra.mxu0 %v3306
      %4538 = vmatprep.subr.bf16.mxu0 0
      %4539 = vmatpush2.bf16.msra.mxu0 %v3321
      %4540 = vmatprep.subr.bf16.mxu0 0
      %4541 = vmatpush2.bf16.msra.mxu0 %v3320
      %4542 = vmatprep.subr.bf16.mxu0 0
      %4543 = vmatpush2.bf16.msra.mxu0 %v3319
      %4544 = vmatprep.subr.bf16.mxu0 0
      %4545 = vmatpush2.bf16.msra.mxu0 %v3318
      %4546 = vmatprep.subr.bf16.mxu0 0
      %4547 = vmatpush2.bf16.msra.mxu0 %v3317
      %4548 = vmatprep.subr.bf16.mxu0 0
      %4549 = vmatpush2.bf16.msra.mxu0 %v3316
      %4550 = vmatprep.subr.bf16.mxu0 0
      %4551 = vmatpush2.bf16.msra.mxu0 %v3315
      %4552 = vmatprep.subr.bf16.mxu0 0
      %4553 = vmatpush2.bf16.msra.mxu0 %v3314
      %4554 = vmatprep.mubr.bf16.mxu0 %v1333
      %4555 = vmatmul.mubr.bf16.gmra.mxu0 %v1319
      %v4556 = vpop.f32.mrf.mxu0
      %v4557 = vadd.f32 %v4517, %v4556
      %v4558 = vpop.f32.mrf.mxu0
      %v4559 = vpop.f32.mrf.mxu0
      %v4560 = vpop.f32.mrf.mxu0
      %4561 = vdwg.mxu0
      %4562 = vmatprep.subr.bf16.mxu0 0
      %4563 = vmatpush1.bf16.msra.mxu0 %v3329
      %4564 = vmatprep.subr.bf16.mxu0 0
      %4565 = vmatpush1.bf16.msra.mxu0 %v3328
      %4566 = vmatprep.subr.bf16.mxu0 0
      %4567 = vmatpush1.bf16.msra.mxu0 %v3327
      %4568 = vmatprep.subr.bf16.mxu0 0
      %4569 = vmatpush1.bf16.msra.mxu0 %v3326
      %4570 = vmatprep.subr.bf16.mxu0 0
      %4571 = vmatpush1.bf16.msra.mxu0 %v3325
      %4572 = vmatprep.subr.bf16.mxu0 0
      %4573 = vmatpush1.bf16.msra.mxu0 %v3324
      %4574 = vmatprep.subr.bf16.mxu0 0
      %4575 = vmatpush1.bf16.msra.mxu0 %v3323
      %4576 = vmatprep.subr.bf16.mxu0 0
      %4577 = vmatpush1.bf16.msra.mxu0 %v3322
      %4578 = vmatprep.subr.bf16.mxu0 0
      %4579 = vmatpush2.bf16.msra.mxu0 %v3337
      %4580 = vmatprep.subr.bf16.mxu0 0
      %4581 = vmatpush2.bf16.msra.mxu0 %v3336
      %4582 = vmatprep.subr.bf16.mxu0 0
      %4583 = vmatpush2.bf16.msra.mxu0 %v3335
      %4584 = vmatprep.subr.bf16.mxu0 0
      %4585 = vmatpush2.bf16.msra.mxu0 %v3334
      %4586 = vmatprep.subr.bf16.mxu0 0
      %4587 = vmatpush2.bf16.msra.mxu0 %v3333
      %4588 = vmatprep.subr.bf16.mxu0 0
      %4589 = vmatpush2.bf16.msra.mxu0 %v3332
      %4590 = vmatprep.subr.bf16.mxu0 0
      %4591 = vmatpush2.bf16.msra.mxu0 %v3331
      %4592 = vmatprep.subr.bf16.mxu0 0
      %4593 = vmatpush2.bf16.msra.mxu0 %v3330
      %4594 = vmatprep.mubr.bf16.mxu0 %v1337
      %4595 = vmatmul.mubr.bf16.gmra.mxu0 %v1335
      %v4596 = vpop.f32.mrf.mxu0
      %v4597 = vadd.f32 %v4557, %v4596
      %v4598 = vpop.f32.mrf.mxu0
      %v4599 = vpop.f32.mrf.mxu0
      %v4600 = vpop.f32.mrf.mxu0
      %4601 = vdwg.mxu0
      %4602 = vmatprep.subr.bf16.mxu0 0
      %4603 = vmatpush1.bf16.msra.mxu0 %v3345
      %4604 = vmatprep.subr.bf16.mxu0 0
      %4605 = vmatpush1.bf16.msra.mxu0 %v3344
      %4606 = vmatprep.subr.bf16.mxu0 0
      %4607 = vmatpush1.bf16.msra.mxu0 %v3343
      %4608 = vmatprep.subr.bf16.mxu0 0
      %4609 = vmatpush1.bf16.msra.mxu0 %v3342
      %4610 = vmatprep.subr.bf16.mxu0 0
      %4611 = vmatpush1.bf16.msra.mxu0 %v3341
      %4612 = vmatprep.subr.bf16.mxu0 0
      %4613 = vmatpush1.bf16.msra.mxu0 %v3340
      %4614 = vmatprep.subr.bf16.mxu0 0
      %4615 = vmatpush1.bf16.msra.mxu0 %v3339
      %4616 = vmatprep.subr.bf16.mxu0 0
      %4617 = vmatpush1.bf16.msra.mxu0 %v3338
      %4618 = vmatprep.subr.bf16.mxu0 0
      %4619 = vmatpush2.bf16.msra.mxu0 %v3353
      %4620 = vmatprep.subr.bf16.mxu0 0
      %4621 = vmatpush2.bf16.msra.mxu0 %v3352
      %4622 = vmatprep.subr.bf16.mxu0 0
      %4623 = vmatpush2.bf16.msra.mxu0 %v3351
      %4624 = vmatprep.subr.bf16.mxu0 0
      %4625 = vmatpush2.bf16.msra.mxu0 %v3350
      %4626 = vmatprep.subr.bf16.mxu0 0
      %4627 = vmatpush2.bf16.msra.mxu0 %v3349
      %4628 = vmatprep.subr.bf16.mxu0 0
      %4629 = vmatpush2.bf16.msra.mxu0 %v3348
      %4630 = vmatprep.subr.bf16.mxu0 0
      %4631 = vmatpush2.bf16.msra.mxu0 %v3347
      %4632 = vmatprep.subr.bf16.mxu0 0
      %4633 = vmatpush2.bf16.msra.mxu0 %v3346
      %4634 = vmatprep.mubr.bf16.mxu0 %v1375
      %4635 = vmatmul.mubr.bf16.gmra.mxu0 %v1361
      %v4636 = vpop.f32.mrf.mxu0
      %v4637 = vadd.f32 %v4597, %v4636
      %v4638 = vpop.f32.mrf.mxu0
      %v4639 = vpop.f32.mrf.mxu0
      %v4640 = vpop.f32.mrf.mxu0
      %4641 = vdwg.mxu0
      %4642 = vmatprep.subr.bf16.mxu0 0
      %4643 = vmatpush1.bf16.msra.mxu0 %v3361
      %4644 = vmatprep.subr.bf16.mxu0 0
      %4645 = vmatpush1.bf16.msra.mxu0 %v3360
      %4646 = vmatprep.subr.bf16.mxu0 0
      %4647 = vmatpush1.bf16.msra.mxu0 %v3359
      %4648 = vmatprep.subr.bf16.mxu0 0
      %4649 = vmatpush1.bf16.msra.mxu0 %v3358
      %4650 = vmatprep.subr.bf16.mxu0 0
      %4651 = vmatpush1.bf16.msra.mxu0 %v3357
      %4652 = vmatprep.subr.bf16.mxu0 0
      %4653 = vmatpush1.bf16.msra.mxu0 %v3356
      %4654 = vmatprep.subr.bf16.mxu0 0
      %4655 = vmatpush1.bf16.msra.mxu0 %v3355
      %4656 = vmatprep.subr.bf16.mxu0 0
      %4657 = vmatpush1.bf16.msra.mxu0 %v3354
      %4658 = vmatprep.subr.bf16.mxu0 0
      %4659 = vmatpush2.bf16.msra.mxu0 %v3369
      %4660 = vmatprep.subr.bf16.mxu0 0
      %4661 = vmatpush2.bf16.msra.mxu0 %v3368
      %4662 = vmatprep.subr.bf16.mxu0 0
      %4663 = vmatpush2.bf16.msra.mxu0 %v3367
      %4664 = vmatprep.subr.bf16.mxu0 0
      %4665 = vmatpush2.bf16.msra.mxu0 %v3366
      %4666 = vmatprep.subr.bf16.mxu0 0
      %4667 = vmatpush2.bf16.msra.mxu0 %v3365
      %4668 = vmatprep.subr.bf16.mxu0 0
      %4669 = vmatpush2.bf16.msra.mxu0 %v3364
      %4670 = vmatprep.subr.bf16.mxu0 0
      %4671 = vmatpush2.bf16.msra.mxu0 %v3363
      %4672 = vmatprep.subr.bf16.mxu0 0
      %4673 = vmatpush2.bf16.msra.mxu0 %v3362
      %4674 = vmatprep.mubr.bf16.mxu0 %v1385
      %4675 = vmatmul.mubr.bf16.gmra.mxu0 %v1383
      %v4676 = vpop.f32.mrf.mxu0
      %v4677 = vadd.f32 %v4637, %v4676
      %v4678 = vpop.f32.mrf.mxu0
      %v4679 = vpop.f32.mrf.mxu0
      %v4680 = vpop.f32.mrf.mxu0
      %4681 = vdwg.mxu0
      %4682 = vmatprep.subr.bf16.mxu0 0
      %4683 = vmatpush1.bf16.msra.mxu0 %v3377
      %4684 = vmatprep.subr.bf16.mxu0 0
      %4685 = vmatpush1.bf16.msra.mxu0 %v3376
      %4686 = vmatprep.subr.bf16.mxu0 0
      %4687 = vmatpush1.bf16.msra.mxu0 %v3375
      %4688 = vmatprep.subr.bf16.mxu0 0
      %4689 = vmatpush1.bf16.msra.mxu0 %v3374
      %4690 = vmatprep.subr.bf16.mxu0 0
      %4691 = vmatpush1.bf16.msra.mxu0 %v3373
      %4692 = vmatprep.subr.bf16.mxu0 0
      %4693 = vmatpush1.bf16.msra.mxu0 %v3372
      %4694 = vmatprep.subr.bf16.mxu0 0
      %4695 = vmatpush1.bf16.msra.mxu0 %v3371
      %4696 = vmatprep.subr.bf16.mxu0 0
      %4697 = vmatpush1.bf16.msra.mxu0 %v3370
      %4698 = vmatprep.subr.bf16.mxu0 0
      %4699 = vmatpush2.bf16.msra.mxu0 %v3385
      %4700 = vmatprep.subr.bf16.mxu0 0
      %4701 = vmatpush2.bf16.msra.mxu0 %v3384
      %4702 = vmatprep.subr.bf16.mxu0 0
      %4703 = vmatpush2.bf16.msra.mxu0 %v3383
      %4704 = vmatprep.subr.bf16.mxu0 0
      %4705 = vmatpush2.bf16.msra.mxu0 %v3382
      %4706 = vmatprep.subr.bf16.mxu0 0
      %4707 = vmatpush2.bf16.msra.mxu0 %v3381
      %4708 = vmatprep.subr.bf16.mxu0 0
      %4709 = vmatpush2.bf16.msra.mxu0 %v3380
      %4710 = vmatprep.subr.bf16.mxu0 0
      %4711 = vmatpush2.bf16.msra.mxu0 %v3379
      %4712 = vmatprep.subr.bf16.mxu0 0
      %4713 = vmatpush2.bf16.msra.mxu0 %v3378
      %4714 = vmatprep.mubr.bf16.mxu0 %v1382
      %4715 = vmatmul.mubr.bf16.gmra.mxu0 %v1368
      %v4716 = vpop.f32.mrf.mxu0
      %v4717 = vadd.f32 %v4677, %v4716
      %v4718 = vpop.f32.mrf.mxu0
      %v4719 = vpop.f32.mrf.mxu0
      %v4720 = vpop.f32.mrf.mxu0
      %4721 = vdwg.mxu0
      %4722 = vmatprep.subr.bf16.mxu0 0
      %4723 = vmatpush1.bf16.msra.mxu0 %v3393
      %4724 = vmatprep.subr.bf16.mxu0 0
      %4725 = vmatpush1.bf16.msra.mxu0 %v3392
      %4726 = vmatprep.subr.bf16.mxu0 0
      %4727 = vmatpush1.bf16.msra.mxu0 %v3391
      %4728 = vmatprep.subr.bf16.mxu0 0
      %4729 = vmatpush1.bf16.msra.mxu0 %v3390
      %4730 = vmatprep.subr.bf16.mxu0 0
      %4731 = vmatpush1.bf16.msra.mxu0 %v3389
      %4732 = vmatprep.subr.bf16.mxu0 0
      %4733 = vmatpush1.bf16.msra.mxu0 %v3388
      %4734 = vmatprep.subr.bf16.mxu0 0
      %4735 = vmatpush1.bf16.msra.mxu0 %v3387
      %4736 = vmatprep.subr.bf16.mxu0 0
      %4737 = vmatpush1.bf16.msra.mxu0 %v3386
      %4738 = vmatprep.subr.bf16.mxu0 0
      %4739 = vmatpush2.bf16.msra.mxu0 %v3401
      %4740 = vmatprep.subr.bf16.mxu0 0
      %4741 = vmatpush2.bf16.msra.mxu0 %v3400
      %4742 = vmatprep.subr.bf16.mxu0 0
      %4743 = vmatpush2.bf16.msra.mxu0 %v3399
      %4744 = vmatprep.subr.bf16.mxu0 0
      %4745 = vmatpush2.bf16.msra.mxu0 %v3398
      %4746 = vmatprep.subr.bf16.mxu0 0
      %4747 = vmatpush2.bf16.msra.mxu0 %v3397
      %4748 = vmatprep.subr.bf16.mxu0 0
      %4749 = vmatpush2.bf16.msra.mxu0 %v3396
      %4750 = vmatprep.subr.bf16.mxu0 0
      %4751 = vmatpush2.bf16.msra.mxu0 %v3395
      %4752 = vmatprep.subr.bf16.mxu0 0
      %4753 = vmatpush2.bf16.msra.mxu0 %v3394
      %4754 = vmatprep.mubr.bf16.mxu0 %v1386
      %4755 = vmatmul.mubr.bf16.gmra.mxu0 %v1384
      %v4756 = vpop.f32.mrf.mxu0
      %v4757 = vadd.f32 %v4717, %v4756
      %v4758 = vpop.f32.mrf.mxu0
      %v4759 = vpop.f32.mrf.mxu0
      %v4760 = vpop.f32.mrf.mxu0
      %4761 = vdwg.mxu0
      %4762 = vmatprep.subr.bf16.mxu0 0
      %4763 = vmatpush1.bf16.msra.mxu0 %v3409
      %4764 = vmatprep.subr.bf16.mxu0 0
      %4765 = vmatpush1.bf16.msra.mxu0 %v3408
      %4766 = vmatprep.subr.bf16.mxu0 0
      %4767 = vmatpush1.bf16.msra.mxu0 %v3407
      %4768 = vmatprep.subr.bf16.mxu0 0
      %4769 = vmatpush1.bf16.msra.mxu0 %v3406
      %4770 = vmatprep.subr.bf16.mxu0 0
      %4771 = vmatpush1.bf16.msra.mxu0 %v3405
      %4772 = vmatprep.subr.bf16.mxu0 0
      %4773 = vmatpush1.bf16.msra.mxu0 %v3404
      %4774 = vmatprep.subr.bf16.mxu0 0
      %4775 = vmatpush1.bf16.msra.mxu0 %v3403
      %4776 = vmatprep.subr.bf16.mxu0 0
      %4777 = vmatpush1.bf16.msra.mxu0 %v3402
      %4778 = vmatprep.subr.bf16.mxu0 0
      %4779 = vmatpush2.bf16.msra.mxu0 0
      %4780 = vmatprep.subr.bf16.mxu0 0
      %4781 = vmatpush2.bf16.msra.mxu0 0
      %4782 = vmatprep.subr.bf16.mxu0 0
      %4783 = vmatpush2.bf16.msra.mxu0 0
      %4784 = vmatprep.subr.bf16.mxu0 0
      %4785 = vmatpush2.bf16.msra.mxu0 0
      %4786 = vmatprep.subr.bf16.mxu0 0
      %4787 = vmatpush2.bf16.msra.mxu0 0
      %4788 = vmatprep.subr.bf16.mxu0 0
      %4789 = vmatpush2.bf16.msra.mxu0 0
      %4790 = vmatprep.subr.bf16.mxu0 0
      %4791 = vmatpush2.bf16.msra.mxu0 0
      %4792 = vmatprep.subr.bf16.mxu0 0
      %4793 = vmatpush2.bf16.msra.mxu0 0
      %4794 = vmatprep.mubr.bf16.mxu0 0
      %4795 = vmatmul.mubr.bf16.gmra.mxu0 %v1400
      %v4796 = vpop.f32.mrf.mxu0
      %v4797 = vadd.f32 %v4757, %v4796
      %v4798 = vpop.f32.mrf.mxu0
      %v4799 = vpop.f32.mrf.mxu0
      %v4800 = vpop.f32.mrf.mxu0
      %4801 = vdwg.mxu0
      %v4802 = vadd.f32 %v294, %v4797
      %vm4803 = vcmask 975872
      %4804 = vst.msk [vmem:[#allocation2] sm:$0x3] %vm4803, %v4802
      %p4805 = scmp.eq.s32.totalorder %s20, 11
      // Predicated region
      $region53: #{prefnet_forward.5} parent=47 // pred_check
        %p4806 = pneg %p4805
      $region54: #{prefnet_forward.5} parent=47 // pred_check_branch
        %4808 = sbr.rel (%p4806) target = $region56
      $region55: #{prefnet_forward.5} parent=47 // pred_region
        %v4809 = vld [vmem:[#allocation2] sm:$0x3]
        %v4810 = vld [vmem:[%s2] sm:$0x1]
        %v4812 = vlaneseq
        %v4813 = vshrl.u32 %v4812, 7
        %v4814 = vsub.s32 0, %v4813
        %v4815 = vrot.slane %v4810, %v4814
        %v4817 = vadd.f32 %v4809, %v4815
        %v4818 = vxor.u32 %v4817, 2147483648
        %v4819 = vmul.f32 %v4818, 1.442695
        %v4820 = vpow.pop %v4819
        %v4821 = vadd.f32 %v4820, 1.0
        %v4822 = vrcp.pop %v4821
        %v4823 = vmul.f32 1.0, %v4822
        %v4824 = vld [vmem:[%s3] sm:$0xff]
        %v4825 = vld [vmem:[%s3 + $0x8] sm:$0xff]
        %v4826 = vld [vmem:[%s3 + $0x10] sm:$0xff]
        %v4827 = vld [vmem:[%s3 + $0x18] sm:$0xff]
        %v4828 = vld [vmem:[%s3 + $0x20] sm:$0xff]
        %v4829 = vld [vmem:[%s3 + $0x28] sm:$0xff]
        %v4830 = vld [vmem:[%s3 + $0x30] sm:$0xff]
        %v4831 = vld [vmem:[%s3 + $0x38] sm:$0xff]
        %v4832 = vld [vmem:[%s3 + $0x40] sm:$0xff]
        %v4833 = vld [vmem:[%s3 + $0x48] sm:$0xff]
        %v4834 = vld [vmem:[%s3 + $0x50] sm:$0xff]
        %v4835 = vld [vmem:[%s3 + $0x58] sm:$0xff]
        %v4836 = vld [vmem:[%s3 + $0x60] sm:$0xff]
        %v4837 = vld [vmem:[%s3 + $0x68] sm:$0xff]
        %v4838 = vld [vmem:[%s3 + $0x70] sm:$0xff]
        %v4839 = vld [vmem:[%s4] sm:$0x1]
        %v4841 = vlaneseq
        %v4842 = vshrl.u32 %v4841, 7
        %v4843 = vsub.s32 0, %v4842
        %v4844 = vrot.slane %v4839, %v4843
        %vm4846 = vcmask 982016
        %v4848 = vsel %vm4846, %v4823, 0
        %4850 = vmatprep.subr.mxu0 0.0
        %4851 = vmatpush1.msra.mxu0 0.0
        %4852 = vmatprep.subr.mxu0 0.0
        %4853 = vmatpush1.msra.mxu0 %v4838
        %4854 = vmatprep.subr.mxu0 0.0
        %4855 = vmatpush1.msra.mxu0 %v4837
        %4856 = vmatprep.subr.mxu0 0.0
        %4857 = vmatpush1.msra.mxu0 %v4836
        %4858 = vmatprep.subr.mxu0 0.0
        %4859 = vmatpush1.msra.mxu0 %v4835
        %4860 = vmatprep.subr.mxu0 0.0
        %4861 = vmatpush1.msra.mxu0 %v4834
        %4862 = vmatprep.subr.mxu0 0.0
        %4863 = vmatpush1.msra.mxu0 %v4833
        %4864 = vmatprep.subr.mxu0 0.0
        %4865 = vmatpush1.msra.mxu0 %v4832
        %4866 = vmatprep.subr.mxu0 0.0
        %4867 = vmatpush1.msra.mxu0 %v4831
        %4868 = vmatprep.subr.mxu0 0.0
        %4869 = vmatpush1.msra.mxu0 %v4830
        %4870 = vmatprep.subr.mxu0 0.0
        %4871 = vmatpush1.msra.mxu0 %v4829
        %4872 = vmatprep.subr.mxu0 0.0
        %4873 = vmatpush1.msra.mxu0 %v4828
        %4874 = vmatprep.subr.mxu0 0.0
        %4875 = vmatpush1.msra.mxu0 %v4827
        %4876 = vmatprep.subr.mxu0 0.0
        %4877 = vmatpush1.msra.mxu0 %v4826
        %4878 = vmatprep.subr.mxu0 0.0
        %4879 = vmatpush1.msra.mxu0 %v4825
        %4880 = vmatprep.subr.mxu0 0.0
        %4881 = vmatpush1.msra.mxu0 %v4824
        %4882 = vmatprep.subr.mxu0 0.0
        %4883 = vmatpush2.msra.mxu0 0.0
        %4884 = vmatprep.subr.mxu0 0.0
        %4885 = vmatpush2.msra.mxu0 0.0
        %4886 = vmatprep.subr.mxu0 0.0
        %4887 = vmatpush2.msra.mxu0 0.0
        %4888 = vmatprep.subr.mxu0 0.0
        %4889 = vmatpush2.msra.mxu0 0.0
        %4890 = vmatprep.subr.mxu0 0.0
        %4891 = vmatpush2.msra.mxu0 0.0
        %4892 = vmatprep.subr.mxu0 0.0
        %4893 = vmatpush2.msra.mxu0 0.0
        %4894 = vmatprep.subr.mxu0 0.0
        %4895 = vmatpush2.msra.mxu0 0.0
        %4896 = vmatprep.subr.mxu0 0.0
        %4897 = vmatpush2.msra.mxu0 0.0
        %4898 = vmatprep.subr.mxu0 0.0
        %4899 = vmatpush2.msra.mxu0 0.0
        %4900 = vmatprep.subr.mxu0 0.0
        %4901 = vmatpush2.msra.mxu0 0.0
        %4902 = vmatprep.subr.mxu0 0.0
        %4903 = vmatpush2.msra.mxu0 0.0
        %4904 = vmatprep.subr.mxu0 0.0
        %4905 = vmatpush2.msra.mxu0 0.0
        %4906 = vmatprep.subr.mxu0 0.0
        %4907 = vmatpush2.msra.mxu0 0.0
        %4908 = vmatprep.subr.mxu0 0.0
        %4909 = vmatpush2.msra.mxu0 0.0
        %4910 = vmatprep.subr.mxu0 0.0
        %4911 = vmatpush2.msra.mxu0 0.0
        %4912 = vmatprep.subr.mxu0 0.0
        %4913 = vmatpush2.msra.mxu0 0.0
        %4914 = vmatprep.mubr.f32.mxu0 0.0
        %4915 = vmatmul.mubr.f32.gmra.mxu0 %v4848
        %v4916 = vpop.f32.mrf.mxu0
        %v4917 = vadd.f32 %v4844, %v4916
        %v4918 = vpop.f32.mrf.mxu0
        %4919 = vdwg.mxu0
        %v4920 = vxor.u32 %v4917, 2147483648
        %v4921 = vmul.f32 %v4920, 1.442695
        %v4922 = vpow.pop %v4921
        %v4923 = vadd.f32 %v4922, 1.0
        %v4924 = vrcp.pop %v4923
        %v4925 = vmul.f32 1.0, %v4924
        %v4926 = vld [vmem:[%s5] sm:$0xff]
        %v4927 = vld [vmem:[%s5 + $0x8] sm:$0xff]
        %v4928 = vld [vmem:[%s5 + $0x10] sm:$0xf]
        %v4929 = vld [vmem:[#allocation3] sm:$0x1]
        %v4931 = vlaneseq
        %v4932 = vshrl.u32 %v4931, 7
        %v4933 = vsub.s32 0, %v4932
        %v4934 = vrot.slane %v4929, %v4933
        %vm4936 = vcmask 162816
        %v4938 = vsel %vm4936, %v4925, 0
        %vm4940 = vcmask 1043456
        %v4942 = vsel %vm4940, %v4928, 0
        %4944 = vmatprep.subr.mxu0 0.0
        %4945 = vmatpush1.msra.mxu0 0.0
        %4946 = vmatprep.subr.mxu0 0.0
        %4947 = vmatpush1.msra.mxu0 0.0
        %4948 = vmatprep.subr.mxu0 0.0
        %4949 = vmatpush1.msra.mxu0 0.0
        %4950 = vmatprep.subr.mxu0 0.0
        %4951 = vmatpush1.msra.mxu0 0.0
        %4952 = vmatprep.subr.mxu0 0.0
        %4953 = vmatpush1.msra.mxu0 0.0
        %4954 = vmatprep.subr.mxu0 0.0
        %4955 = vmatpush1.msra.mxu0 0.0
        %4956 = vmatprep.subr.mxu0 0.0
        %4957 = vmatpush1.msra.mxu0 0.0
        %4958 = vmatprep.subr.mxu0 0.0
        %4959 = vmatpush1.msra.mxu0 0.0
        %4960 = vmatprep.subr.mxu0 0.0
        %4961 = vmatpush1.msra.mxu0 0.0
        %4962 = vmatprep.subr.mxu0 0.0
        %4963 = vmatpush1.msra.mxu0 0.0
        %4964 = vmatprep.subr.mxu0 0.0
        %4965 = vmatpush1.msra.mxu0 0.0
        %4966 = vmatprep.subr.mxu0 0.0
        %4967 = vmatpush1.msra.mxu0 0.0
        %4968 = vmatprep.subr.mxu0 0.0
        %4969 = vmatpush1.msra.mxu0 0.0
        %4970 = vmatprep.subr.mxu0 0.0
        %4971 = vmatpush1.msra.mxu0 %v4942
        %4972 = vmatprep.subr.mxu0 0.0
        %4973 = vmatpush1.msra.mxu0 %v4927
        %4974 = vmatprep.subr.mxu0 0.0
        %4975 = vmatpush1.msra.mxu0 %v4926
        %4976 = vmatprep.subr.mxu0 0.0
        %4977 = vmatpush2.msra.mxu0 0.0
        %4978 = vmatprep.subr.mxu0 0.0
        %4979 = vmatpush2.msra.mxu0 0.0
        %4980 = vmatprep.subr.mxu0 0.0
        %4981 = vmatpush2.msra.mxu0 0.0
        %4982 = vmatprep.subr.mxu0 0.0
        %4983 = vmatpush2.msra.mxu0 0.0
        %4984 = vmatprep.subr.mxu0 0.0
        %4985 = vmatpush2.msra.mxu0 0.0
        %4986 = vmatprep.subr.mxu0 0.0
        %4987 = vmatpush2.msra.mxu0 0.0
        %4988 = vmatprep.subr.mxu0 0.0
        %4989 = vmatpush2.msra.mxu0 0.0
        %4990 = vmatprep.subr.mxu0 0.0
        %4991 = vmatpush2.msra.mxu0 0.0
        %4992 = vmatprep.subr.mxu0 0.0
        %4993 = vmatpush2.msra.mxu0 0.0
        %4994 = vmatprep.subr.mxu0 0.0
        %4995 = vmatpush2.msra.mxu0 0.0
        %4996 = vmatprep.subr.mxu0 0.0
        %4997 = vmatpush2.msra.mxu0 0.0
        %4998 = vmatprep.subr.mxu0 0.0
        %4999 = vmatpush2.msra.mxu0 0.0
        %5000 = vmatprep.subr.mxu0 0.0
        %5001 = vmatpush2.msra.mxu0 0.0
        %5002 = vmatprep.subr.mxu0 0.0
        %5003 = vmatpush2.msra.mxu0 0.0
        %5004 = vmatprep.subr.mxu0 0.0
        %5005 = vmatpush2.msra.mxu0 0.0
        %5006 = vmatprep.subr.mxu0 0.0
        %5007 = vmatpush2.msra.mxu0 0.0
        %5008 = vmatprep.mubr.f32.mxu0 0.0
        %5009 = vmatmul.mubr.f32.gmra.mxu0 %v4938
        %v5010 = vpop.f32.mrf.mxu0
        %v5011 = vadd.f32 %v4934, %v5010
        %v5012 = vpop.f32.mrf.mxu0
        %5013 = vdwg.mxu0
        %vm5014 = vcmask 1024
        %5015 = vst.msk [vmem:[%s7] sm:$0x3] %vm5014, %v5011
      $region56: #{prefnet_forward.5} parent=47 // pred_fallthru
        _
      // Predicated region
      $region57: #{prefnet_forward.5} parent=47 // pred_check
        %p5016 = pneg %p190
      $region58: #{prefnet_forward.5} parent=47 // pred_check_branch
        %5018 = sbr.rel (%p5016) target = $region60
      $region59: #{prefnet_forward.5} parent=47 // pred_region
        _
      $region60: #{prefnet_forward.5} parent=47 // pred_fallthru
        _
      // Predicated region
      $region61: #{prefnet_forward.5} parent=47 // pred_check
        %p5019 = pneg %p190
      $region62: #{prefnet_forward.5} parent=47 // pred_check_branch
        %5021 = sbr.rel (%p5019) target = $region64
      $region63: #{prefnet_forward.5} parent=47 // pred_region
        _
      $region64: #{prefnet_forward.5} parent=47 // pred_fallthru
        _
    $region48: #{prefnet_forward.5} parent=5 // pred_fallthru
      _
    %p5022 = scmp.le.s32.totalorder 2, %s15
    // Predicated region
    $region65: #{prefnet_forward.5} parent=5 // pred_check
      %p5023 = pneg %p5022
    $region66: #{prefnet_forward.5} parent=5 // pred_check_branch
      %5025 = sbr.rel (%p5023) target = $region68
    $region67: #{prefnet_forward.5} parent=5 // pred_region
      %s5026 = ssub.s32 %s15, 2
    $region68: #{prefnet_forward.5} parent=5 // pred_fallthru
      _
  $region6: #{prefnet_forward.5} parent=0 // loop_footer
    %s19 = sadd.s32 1, %s15
  $region7: #{prefnet_forward.5} parent=0 // loop_footer_branch
    %14 = sbr.rel target = $region3
  $region8: #{prefnet_forward.5} parent=0 // loop_exit
    _

</llo_original>
